<compile_context>
chip_gen: v5e
topology: v5e:2x2
jax: 0.10.0
libtpu: 0.0.40
codegen_flags: <defaults>
</compile_context>

<pallas_src>
import numpy as np
import jax
import jax.numpy as jnp
from jax import lax
from jax.experimental import pallas as pl
from jax.experimental.pallas import tpu as pltpu


# ----------------------------------------------------------------------------
# Kernel 1: fused conv1(+bias,ReLU)+pool -> conv2(+bias,ReLU)+pool, per image.
# ----------------------------------------------------------------------------
def _fused_conv_kernel(x_ref, b1k_ref, b1_ref, w2_ref, b2_ref, out_ref,
                       y1p_ref):
    # x_ref  : (1, H, W)                input image, channel squeezed
    # b1k_ref: (3, W, W*C1)             banded conv1 weights, one per kh tap
    # b1_ref : (1, W*C1)                conv1 bias tiled along w
    # w2_ref : (9*C1, C2)               conv2 weights, rows ordered (kh, kw, ci)
    # b2_ref : (1, C2)
    # out_ref: (1, H//4, (W//4)*C2)     lane-dense pooled conv2 output
    # y1p_ref: (H//2+2, W//2+2, C1)     pooled conv1 output + 1-pixel zero halo
    _, H, W = x_ref.shape
    hp, wp = H // 2, W // 2
    C1 = y1p_ref.shape[-1]
    C2 = w2_ref.shape[-1]
    wp2 = wp // 2
    hb = 8                                # conv2 output rows per inner block

    # ---- conv1 (+bias, ReLU): 3 banded matmuls, no im2col, no input halo ----
    x = x_ref[0]                                         # (H, W), W on lanes
    zrow = jnp.zeros((1, W), jnp.float32)
    x_up = jnp.concatenate([zrow, x[:-1, :]], axis=0)    # input row h-1
    x_dn = jnp.concatenate([x[1:, :], zrow], axis=0)     # input row h+1
    y = jnp.dot(x_up, b1k_ref[0], preferred_element_type=jnp.float32)
    y = y + jnp.dot(x, b1k_ref[1], preferred_element_type=jnp.float32)
    y = y + jnp.dot(x_dn, b1k_ref[2], preferred_element_type=jnp.float32)
    y = jnp.maximum(y + b1_ref[...], 0.0)                # (H, W*C1), cols (p,w2,c)

    # ---- 2x2 max pool on conv1 (W-pool is an aligned half/half max) --------
    half = wp * C1
    yw = jnp.maximum(y[:, :half], y[:, half:])           # pool over W
    t = yw.reshape(hp, 2, half)
    y1 = jnp.maximum(t[:, 0, :], t[:, 1, :])             # pool over H -> (hp, wp*C1)

    # ---- stash pooled conv1 output (channel-minor) with a zero halo only ---
    zrow2 = jnp.zeros((wp + 2, C1), jnp.float32)
    zcol = jnp.zeros((hp, 1, C1), jnp.float32)
    y1p_ref[0] = zrow2
    y1p_ref[hp + 1] = zrow2
    y1p_ref[1:hp + 1] = jnp.concatenate(
        [zcol, y1.reshape(hp, wp, C1), zcol], axis=1)

    # ---- conv2 (+bias, ReLU) + 2x2 pool: 9 accumulated K=C1 dots per block --
    # TODO(synk): at 256x256 turn this 2-iteration Python loop into a
    # pl.loop / second grid axis and stream y1 row blocks.
    for h0 in range(0, hp, hb):
        acc = jnp.zeros((hb * wp, C2), jnp.float32)
        for kh in range(3):
            for kw in range(3):
                a = y1p_ref[h0 + kh:h0 + kh + hb, kw:kw + wp, :]
                wtap = w2_ref[(kh * 3 + kw) * C1:(kh * 3 + kw + 1) * C1, :]
                acc = acc + jnp.dot(a.reshape(hb * wp, C1), wtap,
                                    preferred_element_type=jnp.float32)
        acc = jnp.maximum(acc + b2_ref[...], 0.0)         # rows (r, w), lanes C2
        accp = acc.reshape(hb * wp // 2, 2, C2)
        pw = jnp.maximum(accp[:, 0, :], accp[:, 1, :])    # pool over W -> (r, w2)
        pwr = pw.reshape(hb // 2, 2, wp2, C2)
        ph = jnp.maximum(pwr[:, 0], pwr[:, 1])            # pool over H -> (r2, w2, c)
        out_ref[0, h0 // 2:h0 // 2 + hb // 2, :] = (
            ph.reshape(hb // 2, wp2 * C2).astype(out_ref.dtype))


def conv_block_fused(x, b1_band, b1_lane, w2_flat, b2_row):
    N, H, W = x.shape
    C1 = b1_band.shape[2] // W
    C2 = w2_flat.shape[1]
    hp, wp = H // 2, W // 2
    hp2, wp2 = hp // 2, wp // 2
    assert H % 4 == 0 and W % 4 == 0 and hp % 8 == 0

    return pl.pallas_call(
        _fused_conv_kernel,
        out_shape=jax.ShapeDtypeStruct((N, hp2, wp2 * C2), x.dtype),
        grid_spec=pltpu.PrefetchScalarGridSpec(
            num_scalar_prefetch=0,
            grid=(N,),                       # one image / step: 2 parallel steps
            in_specs=[
                pl.BlockSpec((1, H, W), lambda n: (n, 0, 0)),
                pl.BlockSpec((3, W, W * C1), lambda n: (0, 0, 0)),
                pl.BlockSpec((1, W * C1), lambda n: (0, 0)),
                pl.BlockSpec((9 * C1, C2), lambda n: (0, 0)),
                pl.BlockSpec((1, C2), lambda n: (0, 0)),
            ],
            out_specs=pl.BlockSpec((1, hp2, wp2 * C2), lambda n: (n, 0, 0)),
            scratch_shapes=[pltpu.VMEM((hp + 2, wp + 2, C1), jnp.float32)],
        ),
        compiler_params=pltpu.CompilerParams(
            dimension_semantics=("parallel",)),
    )(x, b1_band, b1_lane, w2_flat, b2_row)


# ----------------------------------------------------------------------------
# Kernel 2: fused MLP head (fc1 + ReLU, then fc2), K-tiled with an accumulator.
# ----------------------------------------------------------------------------
def _mlp_head_kernel(x_ref, w1_ref, b1_ref, w2_ref, b2_ref, out_ref, acc_ref):
    k = pl.program_id(0)

    @pl.when(k == 0)
    def _():
        acc_ref[...] = jnp.zeros_like(acc_ref)

    acc_ref[...] += jnp.dot(x_ref[...], w1_ref[...],
                            preferred_element_type=jnp.float32)

    @pl.when(k == pl.num_programs(0) - 1)
    def _():
        h = jnp.maximum(acc_ref[...] + b1_ref[...], 0.0)      # fc1 bias + ReLU
        o = jnp.dot(h, w2_ref[...], preferred_element_type=jnp.float32)
        out_ref[...] = (o + b2_ref[...]).astype(out_ref.dtype)


def mlp_head(feat, w1, b1_row, w2, b2_row, *, block_k=1024):
    N, F = feat.shape
    Hd = w1.shape[1]
    O = w2.shape[1]
    tk = min(block_k, F)
    assert F % tk == 0
    # TODO(synk): at the original fc1_input_size (262144) size tk per
    # generation (~4096 v5e/v6e, 2048-4096 v7x), set vmem_limit_bytes, and
    # consider pipeline_mode=pl.Buffered(3) on the w1 spec.
    return pl.pallas_call(
        _mlp_head_kernel,
        out_shape=jax.ShapeDtypeStruct((N, O), feat.dtype),
        grid_spec=pltpu.PrefetchScalarGridSpec(
            num_scalar_prefetch=0,
            grid=(F // tk,),
            in_specs=[
                pl.BlockSpec((N, tk), lambda k: (0, k)),
                pl.BlockSpec((tk, Hd), lambda k: (k, 0)),   # streamed & pipelined
                pl.BlockSpec((1, Hd), lambda k: (0, 0)),
                pl.BlockSpec((Hd, O), lambda k: (0, 0)),
                pl.BlockSpec((1, O), lambda k: (0, 0)),
            ],
            out_specs=pl.BlockSpec((N, O), lambda k: (0, 0)),
            scratch_shapes=[pltpu.VMEM((N, Hd), jnp.float32)],
        ),
        compiler_params=pltpu.CompilerParams(
            dimension_semantics=("arbitrary",)),
    )(feat, w1, b1_row, w2, b2_row)


# ----------------------------------------------------------------------------
# Parameter preparation (one-time re-layout) and the full forward pass.
# ----------------------------------------------------------------------------
def prepare_params(params, H, W):
    C1 = params["conv1_w"].shape[-1]             # 32
    C2 = params["conv2_w"].shape[-1]             # 64
    hq, wq = H // 4, W // 4
    F = C2 * hq * wq
    nh = params["fc1_w"].shape[1]                # 100
    hd = 128                                     # pad hidden dim to lane multiple
    assert params["fc1_w"].shape[0] == F

    # Banded conv1 weights: B1[kh, j, col(w,c)] = w1[kh, j-w+1, 0, c] within the
    # band (SAME padding folded in).  Columns are ordered (w-parity, w//2, c) so
    # the 2x2 W-pool in the kernel is an aligned half/half max.
    w1c = np.asarray(params["conv1_w"], np.float32)       # (3, 3, 1, C1) HWIO
    b1c = np.asarray(params["conv1_b"], np.float32)
    wp = W // 2
    band = np.zeros((3, W, W * C1), np.float32)
    for kh in range(3):
        for kw in range(3):
            for w in range(W):
                j = w + kw - 1
                if 0 <= j < W:
                    c0 = ((w % 2) * wp + w // 2) * C1
                    band[kh, j, c0:c0 + C1] = w1c[kh, kw, 0, :]
    b1_lane = np.tile(b1c, W).reshape(1, W * C1)

    w2_flat = params["conv2_w"].reshape(9 * C1, C2)       # rows (kh, kw, ci)
    b2_row = params["conv2_b"].reshape(1, C2)

    # fc1 rows: torch flattens NCHW (c,h,w); the kernels emit NHWC (h,w,c).
    fc1 = params["fc1_w"].reshape(C2, hq, wq, nh).transpose(1, 2, 0, 3).reshape(F, nh)
    fc1 = jnp.pad(fc1, ((0, 0), (0, hd - nh)))
    fb1 = jnp.pad(params["fc1_b"], (0, hd - nh)).reshape(1, hd)
    fc2 = jnp.pad(params["fc2_w"], ((0, hd - nh), (0, 0)))  # zero rows: exact
    fb2 = params["fc2_b"].reshape(1, -1)

    return dict(b1_band=jnp.asarray(band), b1_lane=jnp.asarray(b1_lane),
                w2_flat=w2_flat, b2_row=b2_row,
                fc1_w=fc1, fc1_b=fb1, fc2_w=fc2, fc2_b=fb2)


def landmark_forward(x_nchw, prepared):
    x = x_nchw[:, 0, :, :]                     # squeeze Cin=1 -> (N, H, W)
    feat3 = conv_block_fused(x, prepared["b1_band"], prepared["b1_lane"],
                             prepared["w2_flat"], prepared["b2_row"])
    feat = feat3.reshape(feat3.shape[0], -1)   # NHWC flatten (fc1 pre-permuted)
    return mlp_head(feat, prepared["fc1_w"], prepared["fc1_b"],
                    prepared["fc2_w"], prepared["fc2_b"])


# ----------------------------------------------------------------------------
# Parameters (PyTorch layout/ordering) and a pure-JAX reference for checking.
# ----------------------------------------------------------------------------
def init_params(key, H, W):
    F = 64 * (H // 4) * (W // 4)               # fc1_input_size (scaled)
    ks = jax.random.split(key, 8)

    def u(k, shape, fan_in):
        bound = 1.0 / jnp.sqrt(jnp.float32(fan_in))
        return jax.random.uniform(k, shape, jnp.float32, -bound, bound)

    return dict(
        conv1_w=u(ks[0], (3, 3, 1, 32), 9),
        conv1_b=u(ks[1], (32,), 9),
        conv2_w=u(ks[2], (3, 3, 32, 64), 9 * 32),
        conv2_b=u(ks[3], (64,), 9 * 32),
        fc1_w=u(ks[4], (F, 100), F),           # rows in torch's NCHW-flatten order
        fc1_b=u(ks[5], (100,), F),
        fc2_w=u(ks[6], (100, 8), 100),
        fc2_b=u(ks[7], (8,), 100),
    )


def reference_forward(x_nchw, params):
    x = jnp.transpose(x_nchw, (0, 2, 3, 1))

    def conv_block(x, w, b):
        y = lax.conv_general_dilated(
            x, w, (1, 1), "SAME",
            dimension_numbers=("NHWC", "HWIO", "NHWC"),
            precision=lax.Precision.HIGHEST)
        y = jax.nn.relu(y + b)
        return lax.reduce_window(y, -jnp.inf, lax.max,
                                 (1, 2, 2, 1), (1, 2, 2, 1), "VALID")

    x = conv_block(x, params["conv1_w"], params["conv1_b"])
    x = conv_block(x, params["conv2_w"], params["conv2_b"])
    feat = jnp.transpose(x, (0, 3, 1, 2)).reshape(x.shape[0], -1)  # NCHW flatten
    h = jax.nn.relu(jnp.dot(feat, params["fc1_w"],
                            precision=lax.Precision.HIGHEST) + params["fc1_b"])
    return jnp.dot(h, params["fc2_w"],
                   precision=lax.Precision.HIGHEST) + params["fc2_b"]


if __name__ == "__main__":
    key = jax.random.PRNGKey(0)
    kx, kp = jax.random.split(key)
    N, H, W = 2, 32, 32                        # scaled (original model: 256x256)
    x = jax.random.normal(kx, (N, 1, H, W), jnp.float32)   # NCHW, like PyTorch
    params = init_params(kp, H, W)
    prepared = prepare_params(params, H, W)

    out = jax.jit(landmark_forward)(x, prepared)
    out = jax.block_until_ready(out)

    ref = reference_forward(x, params)
    assert out.shape == (N, 8), out.shape
    max_err = float(jnp.max(jnp.abs(out - ref)))
    assert jnp.allclose(out, ref, rtol=1e-3, atol=1e-3), max_err
    print("KERNEL_OK")
</pallas_src>

<mosaic_0001>
module attributes {stable_mosaic.version = 11 : i64} {
  func.func @_fused_conv_kernel(%arg0: i32, %arg1: memref<1x32x32xf32, #tpu.memory_space<vmem>>, %arg2: memref<3x32x1024xf32, #tpu.memory_space<vmem>>, %arg3: memref<1x1024xf32, #tpu.memory_space<vmem>>, %arg4: memref<288x64xf32, #tpu.memory_space<vmem>>, %arg5: memref<1x64xf32, #tpu.memory_space<vmem>>, %arg6: memref<1x8x512xf32, #tpu.memory_space<vmem>>, %arg7: memref<18x18x32xf32, #tpu.memory_space<vmem>>) attributes {dimension_semantics = [#tpu.dimension_semantics<parallel>], iteration_bounds = array<i64: 2>, scalar_prefetch = 0 : i64, scratch_operands = 1 : i64, tpu.core_type = #tpu.core_type<tc>, window_params = [{transform_indices = @transform_0, window_bounds = array<i64: 1, 32, 32>}, {pipeline_mode = #tpu.pipeline_mode<synchronous>, transform_indices = @transform_1, window_bounds = array<i64: 3, 32, 1024>}, {pipeline_mode = #tpu.pipeline_mode<synchronous>, transform_indices = @transform_2, window_bounds = array<i64: 1, 1024>}, {pipeline_mode = #tpu.pipeline_mode<synchronous>, transform_indices = @transform_3, window_bounds = array<i64: 288, 64>}, {pipeline_mode = #tpu.pipeline_mode<synchronous>, transform_indices = @transform_4, window_bounds = array<i64: 1, 64>}, {transform_indices = @transform_5, window_bounds = array<i64: 1, 8, 512>}]} {
    %c0 = arith.constant 0 : index
    %c0_0 = arith.constant 0 : index
    %c0_1 = arith.constant 0 : index
    %0 = vector.load %arg1[%c0, %c0_0, %c0_1] : memref<1x32x32xf32, #tpu.memory_space<vmem>>, vector<1x32x32xf32>
    %1 = vector.shape_cast %0 : vector<1x32x32xf32> to vector<32x32xf32>
    %cst = arith.constant 0.000000e+00 : f32
    %2 = vector.broadcast %cst : f32 to vector<1x32xf32>
    %3 = vector.extract_strided_slice %1 {offsets = [0, 0], sizes = [31, 32], strides = [1, 1]} : vector<32x32xf32> to vector<31x32xf32>
    %4 = tpu.concatenate %2, %3 in 0 : vector<1x32xf32>, vector<31x32xf32> -> vector<32x32xf32>
    %5 = vector.extract_strided_slice %1 {offsets = [1, 0], sizes = [31, 32], strides = [1, 1]} : vector<32x32xf32> to vector<31x32xf32>
    %6 = tpu.concatenate %5, %2 in 0 : vector<31x32xf32>, vector<1x32xf32> -> vector<32x32xf32>
    %c0_2 = arith.constant 0 : index
    %c0_3 = arith.constant 0 : index
    %c0_4 = arith.constant 0 : index
    %7 = vector.load %arg2[%c0_2, %c0_3, %c0_4] : memref<3x32x1024xf32, #tpu.memory_space<vmem>>, vector<1x32x1024xf32>
    %8 = vector.shape_cast %7 : vector<1x32x1024xf32> to vector<32x1024xf32>
    %cst_5 = arith.constant dense<0.000000e+00> : vector<32x1024xf32>
    %9 = tpu.matmul %4, %8, %cst_5 {dimension_numbers = #tpu.dot_dimension_numbers<[1], [0], [0], [1], [0, 0, 1, 1], [], []>} : vector<32x32xf32>, vector<32x1024xf32>, vector<32x1024xf32> -> vector<32x1024xf32>
    %c1 = arith.constant 1 : index
    %c0_6 = arith.constant 0 : index
    %c0_7 = arith.constant 0 : index
    %10 = vector.load %arg2[%c1, %c0_6, %c0_7] : memref<3x32x1024xf32, #tpu.memory_space<vmem>>, vector<1x32x1024xf32>
    %11 = vector.shape_cast %10 : vector<1x32x1024xf32> to vector<32x1024xf32>
    %cst_8 = arith.constant dense<0.000000e+00> : vector<32x1024xf32>
    %12 = tpu.matmul %1, %11, %cst_8 {dimension_numbers = #tpu.dot_dimension_numbers<[1], [0], [0], [1], [0, 0, 1, 1], [], []>} : vector<32x32xf32>, vector<32x1024xf32>, vector<32x1024xf32> -> vector<32x1024xf32>
    %13 = arith.addf %9, %12 : vector<32x1024xf32>
    %c2 = arith.constant 2 : index
    %c0_9 = arith.constant 0 : index
    %c0_10 = arith.constant 0 : index
    %14 = vector.load %arg2[%c2, %c0_9, %c0_10] : memref<3x32x1024xf32, #tpu.memory_space<vmem>>, vector<1x32x1024xf32>
    %15 = vector.shape_cast %14 : vector<1x32x1024xf32> to vector<32x1024xf32>
    %cst_11 = arith.constant dense<0.000000e+00> : vector<32x1024xf32>
    %16 = tpu.matmul %6, %15, %cst_11 {dimension_numbers = #tpu.dot_dimension_numbers<[1], [0], [0], [1], [0, 0, 1, 1], [], []>} : vector<32x32xf32>, vector<32x1024xf32>, vector<32x1024xf32> -> vector<32x1024xf32>
    %17 = arith.addf %13, %16 : vector<32x1024xf32>
    %c0_12 = arith.constant 0 : index
    %c0_13 = arith.constant 0 : index
    %18 = vector.load %arg3[%c0_12, %c0_13] : memref<1x1024xf32, #tpu.memory_space<vmem>>, vector<1x1024xf32>
    %19 = vector.broadcast %18 : vector<1x1024xf32> to vector<32x1024xf32>
    %20 = arith.addf %17, %19 : vector<32x1024xf32>
    %cst_14 = arith.constant 0.000000e+00 : f32
    %21 = vector.broadcast %cst_14 : f32 to vector<32x1024xf32>
    %22 = arith.maximumf %20, %21 : vector<32x1024xf32>
    %23 = vector.extract_strided_slice %22 {offsets = [0, 0], sizes = [32, 512], strides = [1, 1]} : vector<32x1024xf32> to vector<32x512xf32>
    %24 = vector.extract_strided_slice %22 {offsets = [0, 512], sizes = [32, 512], strides = [1, 1]} : vector<32x1024xf32> to vector<32x512xf32>
    %25 = arith.maximumf %23, %24 : vector<32x512xf32>
    %26 = vector.shape_cast %25 : vector<32x512xf32> to vector<16x2x512xf32>
    %27 = vector.extract_strided_slice %26 {offsets = [0, 0, 0], sizes = [16, 1, 512], strides = [1, 1, 1]} : vector<16x2x512xf32> to vector<16x1x512xf32>
    %28 = vector.shape_cast %27 : vector<16x1x512xf32> to vector<16x512xf32>
    %29 = vector.extract_strided_slice %26 {offsets = [0, 1, 0], sizes = [16, 1, 512], strides = [1, 1, 1]} : vector<16x2x512xf32> to vector<16x1x512xf32>
    %30 = vector.shape_cast %29 : vector<16x1x512xf32> to vector<16x512xf32>
    %31 = arith.maximumf %28, %30 : vector<16x512xf32>
    %cst_15 = arith.constant 0.000000e+00 : f32
    %32 = vector.broadcast %cst_15 : f32 to vector<18x32xf32>
    %cst_16 = arith.constant 0.000000e+00 : f32
    %33 = vector.broadcast %cst_16 : f32 to vector<16x1x32xf32>
    %c0_17 = arith.constant 0 : index
    %c0_18 = arith.constant 0 : index
    %c0_19 = arith.constant 0 : index
    %34 = vector.load %arg7[%c0_17, %c0_18, %c0_19] : memref<18x18x32xf32, #tpu.memory_space<vmem>>, vector<1x18x32xf32>
    %35 = vector.shape_cast %34 : vector<1x18x32xf32> to vector<18x32xf32>
    %36 = vector.shape_cast %32 : vector<18x32xf32> to vector<1x18x32xf32>
    tpu.vector_store %arg7[%c0_17, %c0_18, %c0_19], %36 {strides = array<i32>} : memref<18x18x32xf32, #tpu.memory_space<vmem>>, vector<1x18x32xf32>,
    %c17 = arith.constant 17 : index
    %c0_20 = arith.constant 0 : index
    %c0_21 = arith.constant 0 : index
    %37 = vector.load %arg7[%c17, %c0_20, %c0_21] : memref<18x18x32xf32, #tpu.memory_space<vmem>>, vector<1x18x32xf32>
    %38 = vector.shape_cast %37 : vector<1x18x32xf32> to vector<18x32xf32>
    %39 = vector.shape_cast %32 : vector<18x32xf32> to vector<1x18x32xf32>
    tpu.vector_store %arg7[%c17, %c0_20, %c0_21], %39 {strides = array<i32>} : memref<18x18x32xf32, #tpu.memory_space<vmem>>, vector<1x18x32xf32>,
    %40 = vector.shape_cast %31 : vector<16x512xf32> to vector<16x16x32xf32>
    %41 = tpu.concatenate %33, %40, %33 in 1 : vector<16x1x32xf32>, vector<16x16x32xf32>, vector<16x1x32xf32> -> vector<16x18x32xf32>
    %c1_22 = arith.constant 1 : index
    %c0_23 = arith.constant 0 : index
    %c0_24 = arith.constant 0 : index
    %42 = vector.load %arg7[%c1_22, %c0_23, %c0_24] : memref<18x18x32xf32, #tpu.memory_space<vmem>>, vector<16x18x32xf32>
    tpu.vector_store %arg7[%c1_22, %c0_23, %c0_24], %41 {strides = array<i32>} : memref<18x18x32xf32, #tpu.memory_space<vmem>>, vector<16x18x32xf32>,
    %cst_25 = arith.constant 0.000000e+00 : f32
    %43 = vector.broadcast %cst_25 : f32 to vector<128x64xf32>
    %c0_26 = arith.constant 0 : index
    %c0_27 = arith.constant 0 : index
    %c0_28 = arith.constant 0 : index
    %44 = vector.load %arg7[%c0_26, %c0_27, %c0_28] : memref<18x18x32xf32, #tpu.memory_space<vmem>>, vector<8x16x32xf32>
    %c0_29 = arith.constant 0 : index
    %c0_30 = arith.constant 0 : index
    %45 = vector.load %arg4[%c0_29, %c0_30] : memref<288x64xf32, #tpu.memory_space<vmem>>, vector<32x64xf32>
    %46 = vector.shape_cast %44 : vector<8x16x32xf32> to vector<128x32xf32>
    %cst_31 = arith.constant dense<0.000000e+00> : vector<128x64xf32>
    %47 = tpu.matmul %46, %45, %cst_31 {dimension_numbers = #tpu.dot_dimension_numbers<[1], [0], [0], [1], [0, 0, 1, 1], [], []>} : vector<128x32xf32>, vector<32x64xf32>, vector<128x64xf32> -> vector<128x64xf32>
    %48 = arith.addf %43, %47 : vector<128x64xf32>
    %c0_32 = arith.constant 0 : index
    %c1_33 = arith.constant 1 : index
    %c0_34 = arith.constant 0 : index
    %49 = vector.load %arg7[%c0_32, %c1_33, %c0_34] : memref<18x18x32xf32, #tpu.memory_space<vmem>>, vector<8x16x32xf32>
    %c32 = arith.constant 32 : index
    %c0_35 = arith.constant 0 : index
    %50 = vector.load %arg4[%c32, %c0_35] : memref<288x64xf32, #tpu.memory_space<vmem>>, vector<32x64xf32>
    %51 = vector.shape_cast %49 : vector<8x16x32xf32> to vector<128x32xf32>
    %cst_36 = arith.constant dense<0.000000e+00> : vector<128x64xf32>
    %52 = tpu.matmul %51, %50, %cst_36 {dimension_numbers = #tpu.dot_dimension_numbers<[1], [0], [0], [1], [0, 0, 1, 1], [], []>} : vector<128x32xf32>, vector<32x64xf32>, vector<128x64xf32> -> vector<128x64xf32>
    %53 = arith.addf %48, %52 : vector<128x64xf32>
    %c0_37 = arith.constant 0 : index
    %c2_38 = arith.constant 2 : index
    %c0_39 = arith.constant 0 : index
    %54 = vector.load %arg7[%c0_37, %c2_38, %c0_39] : memref<18x18x32xf32, #tpu.memory_space<vmem>>, vector<8x16x32xf32>
    %c64 = arith.constant 64 : index
    %c0_40 = arith.constant 0 : index
    %55 = vector.load %arg4[%c64, %c0_40] : memref<288x64xf32, #tpu.memory_space<vmem>>, vector<32x64xf32>
    %56 = vector.shape_cast %54 : vector<8x16x32xf32> to vector<128x32xf32>
    %cst_41 = arith.constant dense<0.000000e+00> : vector<128x64xf32>
    %57 = tpu.matmul %56, %55, %cst_41 {dimension_numbers = #tpu.dot_dimension_numbers<[1], [0], [0], [1], [0, 0, 1, 1], [], []>} : vector<128x32xf32>, vector<32x64xf32>, vector<128x64xf32> -> vector<128x64xf32>
    %58 = arith.addf %53, %57 : vector<128x64xf32>
    %c1_42 = arith.constant 1 : index
    %c0_43 = arith.constant 0 : index
    %c0_44 = arith.constant 0 : index
    %59 = vector.load %arg7[%c1_42, %c0_43, %c0_44] : memref<18x18x32xf32, #tpu.memory_space<vmem>>, vector<8x16x32xf32>
    %c96 = arith.constant 96 : index
    %c0_45 = arith.constant 0 : index
    %60 = vector.load %arg4[%c96, %c0_45] : memref<288x64xf32, #tpu.memory_space<vmem>>, vector<32x64xf32>
    %61 = vector.shape_cast %59 : vector<8x16x32xf32> to vector<128x32xf32>
    %cst_46 = arith.constant dense<0.000000e+00> : vector<128x64xf32>
    %62 = tpu.matmul %61, %60, %cst_46 {dimension_numbers = #tpu.dot_dimension_numbers<[1], [0], [0], [1], [0, 0, 1, 1], [], []>} : vector<128x32xf32>, vector<32x64xf32>, vector<128x64xf32> -> vector<128x64xf32>
    %63 = arith.addf %58, %62 : vector<128x64xf32>
    %c1_47 = arith.constant 1 : index
    %c1_48 = arith.constant 1 : index
    %c0_49 = arith.constant 0 : index
    %64 = vector.load %arg7[%c1_47, %c1_48, %c0_49] : memref<18x18x32xf32, #tpu.memory_space<vmem>>, vector<8x16x32xf32>
    %c128 = arith.constant 128 : index
    %c0_50 = arith.constant 0 : index
    %65 = vector.load %arg4[%c128, %c0_50] : memref<288x64xf32, #tpu.memory_space<vmem>>, vector<32x64xf32>
    %66 = vector.shape_cast %64 : vector<8x16x32xf32> to vector<128x32xf32>
    %cst_51 = arith.constant dense<0.000000e+00> : vector<128x64xf32>
    %67 = tpu.matmul %66, %65, %cst_51 {dimension_numbers = #tpu.dot_dimension_numbers<[1], [0], [0], [1], [0, 0, 1, 1], [], []>} : vector<128x32xf32>, vector<32x64xf32>, vector<128x64xf32> -> vector<128x64xf32>
    %68 = arith.addf %63, %67 : vector<128x64xf32>
    %c1_52 = arith.constant 1 : index
    %c2_53 = arith.constant 2 : index
    %c0_54 = arith.constant 0 : index
    %69 = vector.load %arg7[%c1_52, %c2_53, %c0_54] : memref<18x18x32xf32, #tpu.memory_space<vmem>>, vector<8x16x32xf32>
    %c160 = arith.constant 160 : index
    %c0_55 = arith.constant 0 : index
    %70 = vector.load %arg4[%c160, %c0_55] : memref<288x64xf32, #tpu.memory_space<vmem>>, vector<32x64xf32>
    %71 = vector.shape_cast %69 : vector<8x16x32xf32> to vector<128x32xf32>
    %cst_56 = arith.constant dense<0.000000e+00> : vector<128x64xf32>
    %72 = tpu.matmul %71, %70, %cst_56 {dimension_numbers = #tpu.dot_dimension_numbers<[1], [0], [0], [1], [0, 0, 1, 1], [], []>} : vector<128x32xf32>, vector<32x64xf32>, vector<128x64xf32> -> vector<128x64xf32>
    %73 = arith.addf %68, %72 : vector<128x64xf32>
    %c2_57 = arith.constant 2 : index
    %c0_58 = arith.constant 0 : index
    %c0_59 = arith.constant 0 : index
    %74 = vector.load %arg7[%c2_57, %c0_58, %c0_59] : memref<18x18x32xf32, #tpu.memory_space<vmem>>, vector<8x16x32xf32>
    %c192 = arith.constant 192 : index
    %c0_60 = arith.constant 0 : index
    %75 = vector.load %arg4[%c192, %c0_60] : memref<288x64xf32, #tpu.memory_space<vmem>>, vector<32x64xf32>
    %76 = vector.shape_cast %74 : vector<8x16x32xf32> to vector<128x32xf32>
    %cst_61 = arith.constant dense<0.000000e+00> : vector<128x64xf32>
    %77 = tpu.matmul %76, %75, %cst_61 {dimension_numbers = #tpu.dot_dimension_numbers<[1], [0], [0], [1], [0, 0, 1, 1], [], []>} : vector<128x32xf32>, vector<32x64xf32>, vector<128x64xf32> -> vector<128x64xf32>
    %78 = arith.addf %73, %77 : vector<128x64xf32>
    %c2_62 = arith.constant 2 : index
    %c1_63 = arith.constant 1 : index
    %c0_64 = arith.constant 0 : index
    %79 = vector.load %arg7[%c2_62, %c1_63, %c0_64] : memref<18x18x32xf32, #tpu.memory_space<vmem>>, vector<8x16x32xf32>
    %c224 = arith.constant 224 : index
    %c0_65 = arith.constant 0 : index
    %80 = vector.load %arg4[%c224, %c0_65] : memref<288x64xf32, #tpu.memory_space<vmem>>, vector<32x64xf32>
    %81 = vector.shape_cast %79 : vector<8x16x32xf32> to vector<128x32xf32>
    %cst_66 = arith.constant dense<0.000000e+00> : vector<128x64xf32>
    %82 = tpu.matmul %81, %80, %cst_66 {dimension_numbers = #tpu.dot_dimension_numbers<[1], [0], [0], [1], [0, 0, 1, 1], [], []>} : vector<128x32xf32>, vector<32x64xf32>, vector<128x64xf32> -> vector<128x64xf32>
    %83 = arith.addf %78, %82 : vector<128x64xf32>
    %c2_67 = arith.constant 2 : index
    %c2_68 = arith.constant 2 : index
    %c0_69 = arith.constant 0 : index
    %84 = vector.load %arg7[%c2_67, %c2_68, %c0_69] : memref<18x18x32xf32, #tpu.memory_space<vmem>>, vector<8x16x32xf32>
    %c256 = arith.constant 256 : index
    %c0_70 = arith.constant 0 : index
    %85 = vector.load %arg4[%c256, %c0_70] : memref<288x64xf32, #tpu.memory_space<vmem>>, vector<32x64xf32>
    %86 = vector.shape_cast %84 : vector<8x16x32xf32> to vector<128x32xf32>
    %cst_71 = arith.constant dense<0.000000e+00> : vector<128x64xf32>
    %87 = tpu.matmul %86, %85, %cst_71 {dimension_numbers = #tpu.dot_dimension_numbers<[1], [0], [0], [1], [0, 0, 1, 1], [], []>} : vector<128x32xf32>, vector<32x64xf32>, vector<128x64xf32> -> vector<128x64xf32>
    %88 = arith.addf %83, %87 : vector<128x64xf32>
    %c0_72 = arith.constant 0 : index
    %c0_73 = arith.constant 0 : index
    %89 = vector.load %arg5[%c0_72, %c0_73] : memref<1x64xf32, #tpu.memory_space<vmem>>, vector<1x64xf32>
    %90 = vector.broadcast %89 : vector<1x64xf32> to vector<128x64xf32>
    %91 = arith.addf %88, %90 : vector<128x64xf32>
    %cst_74 = arith.constant 0.000000e+00 : f32
    %92 = vector.broadcast %cst_74 : f32 to vector<128x64xf32>
    %93 = arith.maximumf %91, %92 : vector<128x64xf32>
    %94 = vector.shape_cast %93 : vector<128x64xf32> to vector<64x2x64xf32>
    %95 = vector.extract_strided_slice %94 {offsets = [0, 0, 0], sizes = [64, 1, 64], strides = [1, 1, 1]} : vector<64x2x64xf32> to vector<64x1x64xf32>
    %96 = vector.shape_cast %95 : vector<64x1x64xf32> to vector<64x64xf32>
    %97 = vector.extract_strided_slice %94 {offsets = [0, 1, 0], sizes = [64, 1, 64], strides = [1, 1, 1]} : vector<64x2x64xf32> to vector<64x1x64xf32>
    %98 = vector.shape_cast %97 : vector<64x1x64xf32> to vector<64x64xf32>
    %99 = arith.maximumf %96, %98 : vector<64x64xf32>
    %100 = vector.shape_cast %99 : vector<64x64xf32> to vector<4x2x8x64xf32>
    %101 = vector.extract_strided_slice %100 {offsets = [0, 0, 0, 0], sizes = [4, 1, 8, 64], strides = [1, 1, 1, 1]} : vector<4x2x8x64xf32> to vector<4x1x8x64xf32>
    %102 = vector.shape_cast %101 : vector<4x1x8x64xf32> to vector<4x8x64xf32>
    %103 = vector.extract_strided_slice %100 {offsets = [0, 1, 0, 0], sizes = [4, 1, 8, 64], strides = [1, 1, 1, 1]} : vector<4x2x8x64xf32> to vector<4x1x8x64xf32>
    %104 = vector.shape_cast %103 : vector<4x1x8x64xf32> to vector<4x8x64xf32>
    %105 = arith.maximumf %102, %104 : vector<4x8x64xf32>
    %106 = vector.shape_cast %105 : vector<4x8x64xf32> to vector<4x512xf32>
    %c0_75 = arith.constant 0 : index
    %c0_76 = arith.constant 0 : index
    %c0_77 = arith.constant 0 : index
    %107 = vector.load %arg6[%c0_75, %c0_76, %c0_77] : memref<1x8x512xf32, #tpu.memory_space<vmem>>, vector<1x4x512xf32>
    %108 = vector.shape_cast %107 : vector<1x4x512xf32> to vector<4x512xf32>
    %109 = vector.shape_cast %106 : vector<4x512xf32> to vector<1x4x512xf32>
    tpu.vector_store %arg6[%c0_75, %c0_76, %c0_77], %109 {strides = array<i32>} : memref<1x8x512xf32, #tpu.memory_space<vmem>>, vector<1x4x512xf32>,
    %cst_78 = arith.constant 0.000000e+00 : f32
    %110 = vector.broadcast %cst_78 : f32 to vector<128x64xf32>
    %c8 = arith.constant 8 : index
    %c0_79 = arith.constant 0 : index
    %c0_80 = arith.constant 0 : index
    %111 = vector.load %arg7[%c8, %c0_79, %c0_80] : memref<18x18x32xf32, #tpu.memory_space<vmem>>, vector<8x16x32xf32>
    %c0_81 = arith.constant 0 : index
    %c0_82 = arith.constant 0 : index
    %112 = vector.load %arg4[%c0_81, %c0_82] : memref<288x64xf32, #tpu.memory_space<vmem>>, vector<32x64xf32>
    %113 = vector.shape_cast %111 : vector<8x16x32xf32> to vector<128x32xf32>
    %cst_83 = arith.constant dense<0.000000e+00> : vector<128x64xf32>
    %114 = tpu.matmul %113, %112, %cst_83 {dimension_numbers = #tpu.dot_dimension_numbers<[1], [0], [0], [1], [0, 0, 1, 1], [], []>} : vector<128x32xf32>, vector<32x64xf32>, vector<128x64xf32> -> vector<128x64xf32>
    %115 = arith.addf %110, %114 : vector<128x64xf32>
    %c8_84 = arith.constant 8 : index
    %c1_85 = arith.constant 1 : index
    %c0_86 = arith.constant 0 : index
    %116 = vector.load %arg7[%c8_84, %c1_85, %c0_86] : memref<18x18x32xf32, #tpu.memory_space<vmem>>, vector<8x16x32xf32>
    %c32_87 = arith.constant 32 : index
    %c0_88 = arith.constant 0 : index
    %117 = vector.load %arg4[%c32_87, %c0_88] : memref<288x64xf32, #tpu.memory_space<vmem>>, vector<32x64xf32>
    %118 = vector.shape_cast %116 : vector<8x16x32xf32> to vector<128x32xf32>
    %cst_89 = arith.constant dense<0.000000e+00> : vector<128x64xf32>
    %119 = tpu.matmul %118, %117, %cst_89 {dimension_numbers = #tpu.dot_dimension_numbers<[1], [0], [0], [1], [0, 0, 1, 1], [], []>} : vector<128x32xf32>, vector<32x64xf32>, vector<128x64xf32> -> vector<128x64xf32>
    %120 = arith.addf %115, %119 : vector<128x64xf32>
    %c8_90 = arith.constant 8 : index
    %c2_91 = arith.constant 2 : index
    %c0_92 = arith.constant 0 : index
    %121 = vector.load %arg7[%c8_90, %c2_91, %c0_92] : memref<18x18x32xf32, #tpu.memory_space<vmem>>, vector<8x16x32xf32>
    %c64_93 = arith.constant 64 : index
    %c0_94 = arith.constant 0 : index
    %122 = vector.load %arg4[%c64_93, %c0_94] : memref<288x64xf32, #tpu.memory_space<vmem>>, vector<32x64xf32>
    %123 = vector.shape_cast %121 : vector<8x16x32xf32> to vector<128x32xf32>
    %cst_95 = arith.constant dense<0.000000e+00> : vector<128x64xf32>
    %124 = tpu.matmul %123, %122, %cst_95 {dimension_numbers = #tpu.dot_dimension_numbers<[1], [0], [0], [1], [0, 0, 1, 1], [], []>} : vector<128x32xf32>, vector<32x64xf32>, vector<128x64xf32> -> vector<128x64xf32>
    %125 = arith.addf %120, %124 : vector<128x64xf32>
    %c9 = arith.constant 9 : index
    %c0_96 = arith.constant 0 : index
    %c0_97 = arith.constant 0 : index
    %126 = vector.load %arg7[%c9, %c0_96, %c0_97] : memref<18x18x32xf32, #tpu.memory_space<vmem>>, vector<8x16x32xf32>
    %c96_98 = arith.constant 96 : index
    %c0_99 = arith.constant 0 : index
    %127 = vector.load %arg4[%c96_98, %c0_99] : memref<288x64xf32, #tpu.memory_space<vmem>>, vector<32x64xf32>
    %128 = vector.shape_cast %126 : vector<8x16x32xf32> to vector<128x32xf32>
    %cst_100 = arith.constant dense<0.000000e+00> : vector<128x64xf32>
    %129 = tpu.matmul %128, %127, %cst_100 {dimension_numbers = #tpu.dot_dimension_numbers<[1], [0], [0], [1], [0, 0, 1, 1], [], []>} : vector<128x32xf32>, vector<32x64xf32>, vector<128x64xf32> -> vector<128x64xf32>
    %130 = arith.addf %125, %129 : vector<128x64xf32>
    %c9_101 = arith.constant 9 : index
    %c1_102 = arith.constant 1 : index
    %c0_103 = arith.constant 0 : index
    %131 = vector.load %arg7[%c9_101, %c1_102, %c0_103] : memref<18x18x32xf32, #tpu.memory_space<vmem>>, vector<8x16x32xf32>
    %c128_104 = arith.constant 128 : index
    %c0_105 = arith.constant 0 : index
    %132 = vector.load %arg4[%c128_104, %c0_105] : memref<288x64xf32, #tpu.memory_space<vmem>>, vector<32x64xf32>
    %133 = vector.shape_cast %131 : vector<8x16x32xf32> to vector<128x32xf32>
    %cst_106 = arith.constant dense<0.000000e+00> : vector<128x64xf32>
    %134 = tpu.matmul %133, %132, %cst_106 {dimension_numbers = #tpu.dot_dimension_numbers<[1], [0], [0], [1], [0, 0, 1, 1], [], []>} : vector<128x32xf32>, vector<32x64xf32>, vector<128x64xf32> -> vector<128x64xf32>
    %135 = arith.addf %130, %134 : vector<128x64xf32>
    %c9_107 = arith.constant 9 : index
    %c2_108 = arith.constant 2 : index
    %c0_109 = arith.constant 0 : index
    %136 = vector.load %arg7[%c9_107, %c2_108, %c0_109] : memref<18x18x32xf32, #tpu.memory_space<vmem>>, vector<8x16x32xf32>
    %c160_110 = arith.constant 160 : index
    %c0_111 = arith.constant 0 : index
    %137 = vector.load %arg4[%c160_110, %c0_111] : memref<288x64xf32, #tpu.memory_space<vmem>>, vector<32x64xf32>
    %138 = vector.shape_cast %136 : vector<8x16x32xf32> to vector<128x32xf32>
    %cst_112 = arith.constant dense<0.000000e+00> : vector<128x64xf32>
    %139 = tpu.matmul %138, %137, %cst_112 {dimension_numbers = #tpu.dot_dimension_numbers<[1], [0], [0], [1], [0, 0, 1, 1], [], []>} : vector<128x32xf32>, vector<32x64xf32>, vector<128x64xf32> -> vector<128x64xf32>
    %140 = arith.addf %135, %139 : vector<128x64xf32>
    %c10 = arith.constant 10 : index
    %c0_113 = arith.constant 0 : index
    %c0_114 = arith.constant 0 : index
    %141 = vector.load %arg7[%c10, %c0_113, %c0_114] : memref<18x18x32xf32, #tpu.memory_space<vmem>>, vector<8x16x32xf32>
    %c192_115 = arith.constant 192 : index
    %c0_116 = arith.constant 0 : index
    %142 = vector.load %arg4[%c192_115, %c0_116] : memref<288x64xf32, #tpu.memory_space<vmem>>, vector<32x64xf32>
    %143 = vector.shape_cast %141 : vector<8x16x32xf32> to vector<128x32xf32>
    %cst_117 = arith.constant dense<0.000000e+00> : vector<128x64xf32>
    %144 = tpu.matmul %143, %142, %cst_117 {dimension_numbers = #tpu.dot_dimension_numbers<[1], [0], [0], [1], [0, 0, 1, 1], [], []>} : vector<128x32xf32>, vector<32x64xf32>, vector<128x64xf32> -> vector<128x64xf32>
    %145 = arith.addf %140, %144 : vector<128x64xf32>
    %c10_118 = arith.constant 10 : index
    %c1_119 = arith.constant 1 : index
    %c0_120 = arith.constant 0 : index
    %146 = vector.load %arg7[%c10_118, %c1_119, %c0_120] : memref<18x18x32xf32, #tpu.memory_space<vmem>>, vector<8x16x32xf32>
    %c224_121 = arith.constant 224 : index
    %c0_122 = arith.constant 0 : index
    %147 = vector.load %arg4[%c224_121, %c0_122] : memref<288x64xf32, #tpu.memory_space<vmem>>, vector<32x64xf32>
    %148 = vector.shape_cast %146 : vector<8x16x32xf32> to vector<128x32xf32>
    %cst_123 = arith.constant dense<0.000000e+00> : vector<128x64xf32>
    %149 = tpu.matmul %148, %147, %cst_123 {dimension_numbers = #tpu.dot_dimension_numbers<[1], [0], [0], [1], [0, 0, 1, 1], [], []>} : vector<128x32xf32>, vector<32x64xf32>, vector<128x64xf32> -> vector<128x64xf32>
    %150 = arith.addf %145, %149 : vector<128x64xf32>
    %c10_124 = arith.constant 10 : index
    %c2_125 = arith.constant 2 : index
    %c0_126 = arith.constant 0 : index
    %151 = vector.load %arg7[%c10_124, %c2_125, %c0_126] : memref<18x18x32xf32, #tpu.memory_space<vmem>>, vector<8x16x32xf32>
    %c256_127 = arith.constant 256 : index
    %c0_128 = arith.constant 0 : index
    %152 = vector.load %arg4[%c256_127, %c0_128] : memref<288x64xf32, #tpu.memory_space<vmem>>, vector<32x64xf32>
    %153 = vector.shape_cast %151 : vector<8x16x32xf32> to vector<128x32xf32>
    %cst_129 = arith.constant dense<0.000000e+00> : vector<128x64xf32>
    %154 = tpu.matmul %153, %152, %cst_129 {dimension_numbers = #tpu.dot_dimension_numbers<[1], [0], [0], [1], [0, 0, 1, 1], [], []>} : vector<128x32xf32>, vector<32x64xf32>, vector<128x64xf32> -> vector<128x64xf32>
    %155 = arith.addf %150, %154 : vector<128x64xf32>
    %c0_130 = arith.constant 0 : index
    %c0_131 = arith.constant 0 : index
    %156 = vector.load %arg5[%c0_130, %c0_131] : memref<1x64xf32, #tpu.memory_space<vmem>>, vector<1x64xf32>
    %157 = vector.broadcast %156 : vector<1x64xf32> to vector<128x64xf32>
    %158 = arith.addf %155, %157 : vector<128x64xf32>
    %cst_132 = arith.constant 0.000000e+00 : f32
    %159 = vector.broadcast %cst_132 : f32 to vector<128x64xf32>
    %160 = arith.maximumf %158, %159 : vector<128x64xf32>
    %161 = vector.shape_cast %160 : vector<128x64xf32> to vector<64x2x64xf32>
    %162 = vector.extract_strided_slice %161 {offsets = [0, 0, 0], sizes = [64, 1, 64], strides = [1, 1, 1]} : vector<64x2x64xf32> to vector<64x1x64xf32>
    %163 = vector.shape_cast %162 : vector<64x1x64xf32> to vector<64x64xf32>
    %164 = vector.extract_strided_slice %161 {offsets = [0, 1, 0], sizes = [64, 1, 64], strides = [1, 1, 1]} : vector<64x2x64xf32> to vector<64x1x64xf32>
    %165 = vector.shape_cast %164 : vector<64x1x64xf32> to vector<64x64xf32>
    %166 = arith.maximumf %163, %165 : vector<64x64xf32>
    %167 = vector.shape_cast %166 : vector<64x64xf32> to vector<4x2x8x64xf32>
    %168 = vector.extract_strided_slice %167 {offsets = [0, 0, 0, 0], sizes = [4, 1, 8, 64], strides = [1, 1, 1, 1]} : vector<4x2x8x64xf32> to vector<4x1x8x64xf32>
    %169 = vector.shape_cast %168 : vector<4x1x8x64xf32> to vector<4x8x64xf32>
    %170 = vector.extract_strided_slice %167 {offsets = [0, 1, 0, 0], sizes = [4, 1, 8, 64], strides = [1, 1, 1, 1]} : vector<4x2x8x64xf32> to vector<4x1x8x64xf32>
    %171 = vector.shape_cast %170 : vector<4x1x8x64xf32> to vector<4x8x64xf32>
    %172 = arith.maximumf %169, %171 : vector<4x8x64xf32>
    %173 = vector.shape_cast %172 : vector<4x8x64xf32> to vector<4x512xf32>
    %c0_133 = arith.constant 0 : index
    %c4 = arith.constant 4 : index
    %c0_134 = arith.constant 0 : index
    %174 = vector.load %arg6[%c0_133, %c4, %c0_134] : memref<1x8x512xf32, #tpu.memory_space<vmem>>, vector<1x4x512xf32>
    %175 = vector.shape_cast %174 : vector<1x4x512xf32> to vector<4x512xf32>
    %176 = vector.shape_cast %173 : vector<4x512xf32> to vector<1x4x512xf32>
    tpu.vector_store %arg6[%c0_133, %c4, %c0_134], %176 {strides = array<i32>} : memref<1x8x512xf32, #tpu.memory_space<vmem>>, vector<1x4x512xf32>,
    return
  }
  func.func @transform_0(%arg0: i32) -> (i32, i32, i32) {
    %c0_i32 = arith.constant 0 : i32
    %c0_i32_0 = arith.constant 0 : i32
    %c0_i32_1 = arith.constant 0 : i32
    return %arg0, %c0_i32, %c0_i32_0 : i32, i32, i32
  }
  func.func @transform_1(%arg0: i32) -> (i32, i32, i32) {
    %c0_i32 = arith.constant 0 : i32
    %c0_i32_0 = arith.constant 0 : i32
    %c0_i32_1 = arith.constant 0 : i32
    %c0_i32_2 = arith.constant 0 : i32
    return %c0_i32, %c0_i32_0, %c0_i32_1 : i32, i32, i32
  }
  func.func @transform_2(%arg0: i32) -> (i32, i32) {
    %c0_i32 = arith.constant 0 : i32
    %c0_i32_0 = arith.constant 0 : i32
    %c0_i32_1 = arith.constant 0 : i32
    return %c0_i32, %c0_i32_0 : i32, i32
  }
  func.func @transform_3(%arg0: i32) -> (i32, i32) {
    %c0_i32 = arith.constant 0 : i32
    %c0_i32_0 = arith.constant 0 : i32
    %c0_i32_1 = arith.constant 0 : i32
    return %c0_i32, %c0_i32_0 : i32, i32
  }
  func.func @transform_4(%arg0: i32) -> (i32, i32) {
    %c0_i32 = arith.constant 0 : i32
    %c0_i32_0 = arith.constant 0 : i32
    %c0_i32_1 = arith.constant 0 : i32
    return %c0_i32, %c0_i32_0 : i32, i32
  }
  func.func @transform_5(%arg0: i32) -> (i32, i32, i32) {
    %c0_i32 = arith.constant 0 : i32
    %c0_i32_0 = arith.constant 0 : i32
    %c0_i32_1 = arith.constant 0 : i32
    return %arg0, %c0_i32, %c0_i32_0 : i32, i32, i32
  }
}

module attributes {stable_mosaic.version = 11 : i64} {
  func.func @_mlp_head_kernel(%arg0: i32, %arg1: memref<2x1024xf32, #tpu.memory_space<vmem>>, %arg2: memref<1024x128xf32, #tpu.memory_space<vmem>>, %arg3: memref<1x128xf32, #tpu.memory_space<vmem>>, %arg4: memref<128x8xf32, #tpu.memory_space<vmem>>, %arg5: memref<1x8xf32, #tpu.memory_space<vmem>>, %arg6: memref<2x8xf32, #tpu.memory_space<vmem>>, %arg7: memref<2x128xf32, #tpu.memory_space<vmem>>) attributes {dimension_semantics = [#tpu.dimension_semantics<arbitrary>], iteration_bounds = array<i64: 4>, scalar_prefetch = 0 : i64, scratch_operands = 1 : i64, tpu.core_type = #tpu.core_type<tc>, window_params = [{transform_indices = @transform_0, window_bounds = array<i64: 2, 1024>}, {transform_indices = @transform_1, window_bounds = array<i64: 1024, 128>}, {pipeline_mode = #tpu.pipeline_mode<synchronous>, transform_indices = @transform_2, window_bounds = array<i64: 1, 128>}, {pipeline_mode = #tpu.pipeline_mode<synchronous>, transform_indices = @transform_3, window_bounds = array<i64: 128, 8>}, {pipeline_mode = #tpu.pipeline_mode<synchronous>, transform_indices = @transform_4, window_bounds = array<i64: 1, 8>}, {pipeline_mode = #tpu.pipeline_mode<synchronous>, transform_indices = @transform_5, window_bounds = array<i64: 2, 8>}]} {
    %c0_i32 = arith.constant 0 : i32
    %0 = arith.cmpi eq, %arg0, %c0_i32 : i32
    %1 = arith.extui %0 : i1 to i32
    %c0_i32_0 = arith.constant 0 : i32
    %2 = arith.cmpi ne, %1, %c0_i32_0 : i32
    scf.if %2 {
      %cst_9 = arith.constant 0.000000e+00 : f32
      %12 = vector.broadcast %cst_9 : f32 to vector<2x128xf32>
      %c0_10 = arith.constant 0 : index
      %c0_11 = arith.constant 0 : index
      %13 = vector.load %arg7[%c0_10, %c0_11] : memref<2x128xf32, #tpu.memory_space<vmem>>, vector<2x128xf32>
      tpu.vector_store %arg7[%c0_10, %c0_11], %12 {strides = array<i32>} : memref<2x128xf32, #tpu.memory_space<vmem>>, vector<2x128xf32>,
    } else {
    }
    %c0 = arith.constant 0 : index
    %c0_1 = arith.constant 0 : index
    %3 = vector.load %arg7[%c0, %c0_1] : memref<2x128xf32, #tpu.memory_space<vmem>>, vector<2x128xf32>
    %c0_2 = arith.constant 0 : index
    %c0_3 = arith.constant 0 : index
    %4 = vector.load %arg1[%c0_2, %c0_3] : memref<2x1024xf32, #tpu.memory_space<vmem>>, vector<2x1024xf32>
    %c0_4 = arith.constant 0 : index
    %c0_5 = arith.constant 0 : index
    %5 = vector.load %arg2[%c0_4, %c0_5] : memref<1024x128xf32, #tpu.memory_space<vmem>>, vector<1024x128xf32>
    %cst = arith.constant dense<0.000000e+00> : vector<2x128xf32>
    %6 = tpu.matmul %4, %5, %cst {dimension_numbers = #tpu.dot_dimension_numbers<[1], [0], [0], [1], [0, 0, 1, 1], [], []>} : vector<2x1024xf32>, vector<1024x128xf32>, vector<2x128xf32> -> vector<2x128xf32>
    %7 = arith.addf %3, %6 : vector<2x128xf32>
    %c0_6 = arith.constant 0 : index
    %c0_7 = arith.constant 0 : index
    %8 = vector.load %arg7[%c0_6, %c0_7] : memref<2x128xf32, #tpu.memory_space<vmem>>, vector<2x128xf32>
    tpu.vector_store %arg7[%c0_6, %c0_7], %7 {strides = array<i32>} : memref<2x128xf32, #tpu.memory_space<vmem>>, vector<2x128xf32>,
    %c3_i32 = arith.constant 3 : i32
    %9 = arith.cmpi eq, %arg0, %c3_i32 : i32
    %10 = arith.extui %9 : i1 to i32
    %c0_i32_8 = arith.constant 0 : i32
    %11 = arith.cmpi ne, %10, %c0_i32_8 : i32
    scf.if %11 {
      %c0_9 = arith.constant 0 : index
      %c0_10 = arith.constant 0 : index
      %12 = vector.load %arg7[%c0_9, %c0_10] : memref<2x128xf32, #tpu.memory_space<vmem>>, vector<2x128xf32>
      %c0_11 = arith.constant 0 : index
      %c0_12 = arith.constant 0 : index
      %13 = vector.load %arg3[%c0_11, %c0_12] : memref<1x128xf32, #tpu.memory_space<vmem>>, vector<1x128xf32>
      %14 = vector.broadcast %13 : vector<1x128xf32> to vector<2x128xf32>
      %15 = arith.addf %12, %14 : vector<2x128xf32>
      %cst_13 = arith.constant 0.000000e+00 : f32
      %16 = vector.broadcast %cst_13 : f32 to vector<2x128xf32>
      %17 = arith.maximumf %15, %16 : vector<2x128xf32>
      %c0_14 = arith.constant 0 : index
      %c0_15 = arith.constant 0 : index
      %18 = vector.load %arg4[%c0_14, %c0_15] : memref<128x8xf32, #tpu.memory_space<vmem>>, vector<128x8xf32>
      %cst_16 = arith.constant dense<0.000000e+00> : vector<2x8xf32>
      %19 = tpu.matmul %17, %18, %cst_16 {dimension_numbers = #tpu.dot_dimension_numbers<[1], [0], [0], [1], [0, 0, 1, 1], [], []>} : vector<2x128xf32>, vector<128x8xf32>, vector<2x8xf32> -> vector<2x8xf32>
      %c0_17 = arith.constant 0 : index
      %c0_18 = arith.constant 0 : index
      %20 = vector.load %arg5[%c0_17, %c0_18] : memref<1x8xf32, #tpu.memory_space<vmem>>, vector<1x8xf32>
      %21 = vector.broadcast %20 : vector<1x8xf32> to vector<2x8xf32>
      %22 = arith.addf %19, %21 : vector<2x8xf32>
      %c0_19 = arith.constant 0 : index
      %c0_20 = arith.constant 0 : index
      %23 = vector.load %arg6[%c0_19, %c0_20] : memref<2x8xf32, #tpu.memory_space<vmem>>, vector<2x8xf32>
      tpu.vector_store %arg6[%c0_19, %c0_20], %22 {strides = array<i32>} : memref<2x8xf32, #tpu.memory_space<vmem>>, vector<2x8xf32>,
    } else {
    }
    return
  }
  func.func @transform_0(%arg0: i32) -> (i32, i32) {
    %c0_i32 = arith.constant 0 : i32
    %c0_i32_0 = arith.constant 0 : i32
    return %c0_i32, %arg0 : i32, i32
  }
  func.func @transform_1(%arg0: i32) -> (i32, i32) {
    %c0_i32 = arith.constant 0 : i32
    %c0_i32_0 = arith.constant 0 : i32
    return %arg0, %c0_i32 : i32, i32
  }
  func.func @transform_2(%arg0: i32) -> (i32, i32) {
    %c0_i32 = arith.constant 0 : i32
    %c0_i32_0 = arith.constant 0 : i32
    %c0_i32_1 = arith.constant 0 : i32
    return %c0_i32, %c0_i32_0 : i32, i32
  }
  func.func @transform_3(%arg0: i32) -> (i32, i32) {
    %c0_i32 = arith.constant 0 : i32
    %c0_i32_0 = arith.constant 0 : i32
    %c0_i32_1 = arith.constant 0 : i32
    return %c0_i32, %c0_i32_0 : i32, i32
  }
  func.func @transform_4(%arg0: i32) -> (i32, i32) {
    %c0_i32 = arith.constant 0 : i32
    %c0_i32_0 = arith.constant 0 : i32
    %c0_i32_1 = arith.constant 0 : i32
    return %c0_i32, %c0_i32_0 : i32, i32
  }
  func.func @transform_5(%arg0: i32) -> (i32, i32) {
    %c0_i32 = arith.constant 0 : i32
    %c0_i32_0 = arith.constant 0 : i32
    %c0_i32_1 = arith.constant 0 : i32
    return %c0_i32, %c0_i32_0 : i32, i32
  }
}

</mosaic_0001>

<llo_original>
// kernel: landmark_forward.3
$region0: #{landmark_forward.3}
  #allocation0 [shape = 'u32[]', space=smem, size = 0x4, offset = 0x4, fixed_abs, tag = 'smem constant byte address 0x4 - core index']
  #allocation1 [shape = 'u32[72,128]{1,0:T(1,128)}', space=vmem, size = 0x9000, scoped, tag = 'internal scratch']
  #allocation2 [shape = 'f32[2,128]{1,0:T(2,128)}', space=vmem, size = 0x400, scoped, tag = 'scratch operand']
  %s0 = inlined_call_operand.vmem [shape: f32[2,4096], index: 0, kind: input, shape index: {}]
  %s1 = inlined_call_operand.hbm [shape: f32[4096,128], index: 1, kind: input, shape index: {}]
  %s2 = inlined_call_operand.hbm [shape: f32[1,128], index: 2, kind: input, shape index: {}]
  %s3 = inlined_call_operand.vmem [shape: f32[128,8], index: 3, kind: input, shape index: {}]
  %s4 = inlined_call_operand.hbm [shape: f32[1,8], index: 4, kind: input, shape index: {}]
  %s5 = inlined_call_operand.hbm [shape: f32[2,8], index: 5, kind: output, shape index: {}]
  %s6 = sld [smem:[#allocation0]]
  $region73: #{landmark_forward.3} parent=0
    _
  %s8 = ssub.s32 1, %s6
  %s9 = scalar_select 0, %s8, %s6
  $region1: #{landmark_forward.3} parent=0
    #allocation3 [shape = 'u8[1048576]{0}', space=vmem, size = 0x100000, scoped, tag = 'input window, operand 1']
    #allocation4 [shape = 's32[2]{0}', space=sflag, size = 0x8, scoped, tag = 'scoped memory for landmark_forward.3']
    #allocation5 [shape = 's32[2]{0}', space=sflag, size = 0x8, scoped, tag = 'scoped memory for landmark_forward.3']
    #allocation6 [shape = 'u8[512]{0}', space=vmem, size = 0x400, scoped, tag = 'input window, operand 2, single buffered']
    #allocation7 [shape = 's32[1]{0}', space=sflag, size = 0x4, scoped, tag = 'scoped memory for landmark_forward.3']
    #allocation8 [shape = 'u8[512]{0}', space=vmem, size = 0x400, scoped, tag = 'input window, operand 4, single buffered']
    #allocation9 [shape = 'u8[1024]{0}', space=vmem, size = 0x400, scoped, tag = 'output window, operand 0, single buffered']
    %10 = vsyncpa [#allocation4], 0
    %s11 = scalar_lea.sflag [#allocation4], 1
    %12 = vsyncpa %s11, 0
    %13 = vsyncpa [#allocation7], 0
    %14 = vsyncpa [#allocation5], 0
    loop: start=0, step=1, limit=6
    $region2: #{landmark_forward.3} parent=1 // loop_pre_header
      _
    $region3: #{landmark_forward.3} parent=1 // loop_header
      %s16 = sphi 0, %s20
      %p17 = scmp.ge.s32.totalorder %s16, 6
      %s26 = sphi 0, %s28
      %s29 = sphi 0, %s26
      %s30 = sphi 0, %s29
      %s46 = sphi 0, %s30
      %s52 = sphi 0, %s54
      %s55 = sphi 0, %s52
      %s56 = sphi 0, %s55
      %s72 = sphi 0, %s56
      %s76 = sphi 0, %s76
      %s78 = sphi 0, %s76
      %s79 = sphi 0, %s78
      %s93 = sphi 0, %s79
      %s97 = sphi 0, %s97
      %s99 = sphi 0, %s97
      %s100 = sphi 0, %s99
      %s114 = sphi 0, %s100
      %s118 = sphi 0, %s118
      %s120 = sphi 0, %s118
      %s121 = sphi 0, %s120
      %s135 = sphi 0, %s121
      %s139 = sphi 0, %s139
      %s141 = sphi 0, %s139
      %s142 = sphi 0, %s141
      %s156 = sphi 0, %s142
    $region4: #{landmark_forward.3} parent=1 // loop_header_branch
      %19 = sbr.rel (%p17) target = $region8
    $region5: #{landmark_forward.3} parent=1 // loop_body
      %s21 = ssub.s32 %s16, 1
      %s22 = ssub.s32 %s16, 2
      %s23 = sadd.s32 %s16, 1
      %s24 = ssub.s32 %s16, %s23
      %p25 = scmp.eq.s32.totalorder %s24, 0
      %s27 = sadd.s32 %s26, 1
      %s28 = scalar_select %p25, %s26, %s27
      %p31 = pneg %p25
      %p32 = scmp.eq.s32.totalorder %s16, 3
      %p33 = por %p31, %p32
      %p34 = scmp.ne.s32.totalorder %s26, %s29
      %p35 = scmp.eq.s32.totalorder %s16, 0
      %p36 = por %p34, %p35
      %p37 = scmp.ne.s32.totalorder %s26, %s29
      %p38 = scmp.eq.s32.totalorder %s21, 3
      %p39 = por %p37, %p38
      %p40 = scmp.ne.s32.totalorder %s29, %s30
      %p41 = scmp.eq.s32.totalorder %s21, 0
      %p42 = por %p40, %p41
      %p43 = scmp.ne.s32.totalorder %s29, %s30
      %p44 = scmp.eq.s32.totalorder %s22, 3
      %p45 = por %p43, %p44
      %p47 = scmp.ne.s32.totalorder %s30, %s46
      %p48 = scmp.eq.s32.totalorder %s22, 0
      %p49 = por %p47, %p48
      %s50 = ssub.s32 %s16, %s23
      %p51 = scmp.eq.s32.totalorder %s50, 0
      %s53 = sadd.s32 %s52, 1
      %s54 = scalar_select %p51, %s52, %s53
      %p57 = pneg %p51
      %p58 = scmp.eq.s32.totalorder %s16, 3
      %p59 = por %p57, %p58
      %p60 = scmp.ne.s32.totalorder %s52, %s55
      %p61 = scmp.eq.s32.totalorder %s16, 0
      %p62 = por %p60, %p61
      %p63 = scmp.ne.s32.totalorder %s52, %s55
      %p64 = scmp.eq.s32.totalorder %s21, 3
      %p65 = por %p63, %p64
      %p66 = scmp.ne.s32.totalorder %s55, %s56
      %p67 = scmp.eq.s32.totalorder %s21, 0
      %p68 = por %p66, %p67
      %p69 = scmp.ne.s32.totalorder %s55, %s56
      %p70 = scmp.eq.s32.totalorder %s22, 3
      %p71 = por %p69, %p70
      %p73 = scmp.ne.s32.totalorder %s56, %s72
      %p74 = scmp.eq.s32.totalorder %s22, 0
      %p75 = por %p73, %p74
      %s77 = sadd.s32 %s76, 1
      %p80 = scmp.eq.s32.totalorder %s16, 3
      %p81 = scmp.ne.s32.totalorder %s76, %s78
      %p82 = scmp.eq.s32.totalorder %s16, 0
      %p83 = por %p81, %p82
      %p84 = scmp.ne.s32.totalorder %s76, %s78
      %p85 = scmp.eq.s32.totalorder %s21, 3
      %p86 = por %p84, %p85
      %p87 = scmp.ne.s32.totalorder %s78, %s79
      %p88 = scmp.eq.s32.totalorder %s21, 0
      %p89 = por %p87, %p88
      %p90 = scmp.ne.s32.totalorder %s78, %s79
      %p91 = scmp.eq.s32.totalorder %s22, 3
      %p92 = por %p90, %p91
      %p94 = scmp.ne.s32.totalorder %s79, %s93
      %p95 = scmp.eq.s32.totalorder %s22, 0
      %p96 = por %p94, %p95
      %s98 = sadd.s32 %s97, 1
      %p101 = scmp.eq.s32.totalorder %s16, 3
      %p102 = scmp.ne.s32.totalorder %s97, %s99
      %p103 = scmp.eq.s32.totalorder %s16, 0
      %p104 = por %p102, %p103
      %p105 = scmp.ne.s32.totalorder %s97, %s99
      %p106 = scmp.eq.s32.totalorder %s21, 3
      %p107 = por %p105, %p106
      %p108 = scmp.ne.s32.totalorder %s99, %s100
      %p109 = scmp.eq.s32.totalorder %s21, 0
      %p110 = por %p108, %p109
      %p111 = scmp.ne.s32.totalorder %s99, %s100
      %p112 = scmp.eq.s32.totalorder %s22, 3
      %p113 = por %p111, %p112
      %p115 = scmp.ne.s32.totalorder %s100, %s114
      %p116 = scmp.eq.s32.totalorder %s22, 0
      %p117 = por %p115, %p116
      %s119 = sadd.s32 %s118, 1
      %p122 = scmp.eq.s32.totalorder %s16, 3
      %p123 = scmp.ne.s32.totalorder %s118, %s120
      %p124 = scmp.eq.s32.totalorder %s16, 0
      %p125 = por %p123, %p124
      %p126 = scmp.ne.s32.totalorder %s118, %s120
      %p127 = scmp.eq.s32.totalorder %s21, 3
      %p128 = por %p126, %p127
      %p129 = scmp.ne.s32.totalorder %s120, %s121
      %p130 = scmp.eq.s32.totalorder %s21, 0
      %p131 = por %p129, %p130
      %p132 = scmp.ne.s32.totalorder %s120, %s121
      %p133 = scmp.eq.s32.totalorder %s22, 3
      %p134 = por %p132, %p133
      %p136 = scmp.ne.s32.totalorder %s121, %s135
      %p137 = scmp.eq.s32.totalorder %s22, 0
      %p138 = por %p136, %p137
      %s140 = sadd.s32 %s139, 1
      %p143 = scmp.eq.s32.totalorder %s16, 3
      %p144 = scmp.ne.s32.totalorder %s139, %s141
      %p145 = scmp.eq.s32.totalorder %s16, 0
      %p146 = por %p144, %p145
      %p147 = scmp.ne.s32.totalorder %s139, %s141
      %p148 = scmp.eq.s32.totalorder %s21, 3
      %p149 = por %p147, %p148
      %p150 = scmp.ne.s32.totalorder %s141, %s142
      %p151 = scmp.eq.s32.totalorder %s21, 0
      %p152 = por %p150, %p151
      %p153 = scmp.ne.s32.totalorder %s141, %s142
      %p154 = scmp.eq.s32.totalorder %s22, 3
      %p155 = por %p153, %p154
      %p157 = scmp.ne.s32.totalorder %s142, %s156
      %p158 = scmp.eq.s32.totalorder %s22, 0
      %p159 = por %p157, %p158
      %p160 = scmp.le.s32.totalorder 1, %s16
      %p161 = scmp.lt.s32.totalorder %s16, 5
      %p162 = pnand %p160, %p161
      %p163 = pneg %p162
      // Predicated region
      $region9: #{landmark_forward.3} parent=5 // pred_check
        _
      $region10: #{landmark_forward.3} parent=5 // pred_check_branch
        %165 = sbr.rel (%p162) target = $region12
      $region11: #{landmark_forward.3} parent=5 // pred_region
        %s166 = ssub.s32 %s16, 1
        // Predicated region
        $region13: #{landmark_forward.3} parent=11 // pred_check
          %p167 = pneg %p89
        $region14: #{landmark_forward.3} parent=11 // pred_check_branch
          %169 = sbr.rel (%p167) target = $region16
        $region15: #{landmark_forward.3} parent=11 // pred_region
          %171 = vsyncadd [#allocation7], 0
          %s173 = sshll.u32 %s2, 4
          %s174 = int_to_ptr.hbm [resolvable:$true] %s173
          %s175 = sshll.u32 [#allocation6], 4
          %s176 = int_to_ptr.vmem [resolvable:$true] %s175
          %178 = dma.hbm_to_vmem [thread:$0]  %s174, 16, %s176, [#allocation7]
        $region16: #{landmark_forward.3} parent=11 // pred_fallthru
          _
        // Predicated region
        $region17: #{landmark_forward.3} parent=11 // pred_check
          %p179 = pneg %p110
        $region18: #{landmark_forward.3} parent=11 // pred_check_branch
          %181 = sbr.rel (%p179) target = $region20
        $region19: #{landmark_forward.3} parent=11 // pred_region
          _
        $region20: #{landmark_forward.3} parent=11 // pred_fallthru
          _
        // Predicated region
        $region21: #{landmark_forward.3} parent=11 // pred_check
          %p182 = pneg %p131
        $region22: #{landmark_forward.3} parent=11 // pred_check_branch
          %184 = sbr.rel (%p182) target = $region24
        $region23: #{landmark_forward.3} parent=11 // pred_region
          %186 = vsyncadd [#allocation7], 0
          %s188 = sshll.u32 %s4, 4
          %s189 = int_to_ptr.hbm [resolvable:$true] %s188
          %s190 = sshll.u32 [#allocation8], 4
          %s191 = int_to_ptr.vmem [resolvable:$true] %s190
          %193 = dma.hbm_to_vmem [thread:$0]  %s189, 16, %s191, [#allocation7]
        $region24: #{landmark_forward.3} parent=11 // pred_fallthru
          _
      $region12: #{landmark_forward.3} parent=5 // pred_fallthru
        _
      %p194 = scmp.lt.s32.totalorder %s16, 4
      // Predicated region
      $region25: #{landmark_forward.3} parent=5 // pred_check
        %p195 = pneg %p194
      $region26: #{landmark_forward.3} parent=5 // pred_check_branch
        %197 = sbr.rel (%p195) target = $region28
      $region27: #{landmark_forward.3} parent=5 // pred_region
        // Predicated region
        $region29: #{landmark_forward.3} parent=27 // pred_check
          %p198 = pneg %p36
        $region30: #{landmark_forward.3} parent=27 // pred_check_branch
          %200 = sbr.rel (%p198) target = $region32
        $region31: #{landmark_forward.3} parent=27 // pred_region
          %s201 = smul.u32 8, %s16
          %p202 = scmp.lt.s32.totalorder %s201, 31
          %s203 = scalar_select %p202, %s201, 31
          %s204 = smul.addr %s203, 2
          %s205 = scalar_lea.vmem %s0, %s204
          %s206 = smul.u32 8, %s16
        $region32: #{landmark_forward.3} parent=27 // pred_fallthru
          _
        // Predicated region
        $region33: #{landmark_forward.3} parent=27 // pred_check
          %p207 = pneg %p62
        $region34: #{landmark_forward.3} parent=27 // pred_check_branch
          %209 = sbr.rel (%p207) target = $region36
        $region35: #{landmark_forward.3} parent=27 // pred_region
          %s210 = sand.u32 %s52, 1
          %s211 = scalar_lea.sflag [#allocation4], %s210
          %s212 = sand.u32 %s52, 1
          %s213 = smul.addr %s212, 1024
          %s214 = scalar_lea.vmem [#allocation3], %s213
          %s215 = smul.u32 128, %s16
          %217 = vsyncadd %s211, 0
          %s218 = smul.addr %s215, 8
          %s219 = scalar_lea.hbm %s1, %s218
          %s220 = sshll.u32 %s219, 4
          %s221 = int_to_ptr.hbm [resolvable:$true] %s220
          %s222 = sshll.u32 %s214, 4
          %s223 = int_to_ptr.vmem [resolvable:$true] %s222
          %228 = dma.hbm_to_vmem [thread:$0]  %s221, 16384, %s223, %s211, 128, 128, 8
        $region36: #{landmark_forward.3} parent=27 // pred_fallthru
          _
      $region28: #{landmark_forward.3} parent=5 // pred_fallthru
        _
      %p229 = scmp.le.s32.totalorder 1, %s16
      %p230 = scmp.lt.s32.totalorder %s16, 5
      %p231 = pnand %p229, %p230
      %p232 = pneg %p231
      // Predicated region
      $region37: #{landmark_forward.3} parent=5 // pred_check
        _
      $region38: #{landmark_forward.3} parent=5 // pred_check_branch
        %234 = sbr.rel (%p231) target = $region40
      $region39: #{landmark_forward.3} parent=5 // pred_region
        %s235 = ssub.s32 %s16, 1
        %s236 = sand.u32 %s55, 1
        %s237 = scalar_lea.sflag [#allocation4], %s236
        %s238 = sand.u32 %s55, 1
        %s239 = smul.addr %s238, 1024
        %s240 = scalar_lea.vmem [#allocation3], %s239
        // Predicated region
        $region41: #{landmark_forward.3} parent=39 // pred_check
          %p241 = pneg %p68
        $region42: #{landmark_forward.3} parent=39 // pred_check_branch
          %243 = sbr.rel (%p241) target = $region44
        $region43: #{landmark_forward.3} parent=39 // pred_region
          %245 = dma.done %s237, 16384
        $region44: #{landmark_forward.3} parent=39 // pred_fallthru
          _
        // Predicated region
        $region45: #{landmark_forward.3} parent=39 // pred_check
          %p246 = pneg %p89
        $region46: #{landmark_forward.3} parent=39 // pred_check_branch
          %248 = sbr.rel (%p246) target = $region48
        $region47: #{landmark_forward.3} parent=39 // pred_region
          %250 = dma.done [#allocation7], 16
        $region48: #{landmark_forward.3} parent=39 // pred_fallthru
          _
        // Predicated region
        $region49: #{landmark_forward.3} parent=39 // pred_check
          %p251 = pneg %p131
        $region50: #{landmark_forward.3} parent=39 // pred_check_branch
          %253 = sbr.rel (%p251) target = $region52
        $region51: #{landmark_forward.3} parent=39 // pred_region
          %255 = dma.done [#allocation7], 16
        $region52: #{landmark_forward.3} parent=39 // pred_fallthru
          _
        %s256 = smul.u32 8, %s21
        %p257 = scmp.lt.s32.totalorder %s256, 31
        %s258 = scalar_select %p257, %s256, 31
        %s259 = smul.addr %s258, 2
        %s260 = scalar_lea.vmem %s0, %s259
        %p261 = pneg %p42
        %p262 = pneg %p39
        %s263 = sand.u32 %s55, 1
        %s264 = scalar_lea.sflag [#allocation4], %s263
        %s265 = sand.u32 %s55, 1
        %s266 = smul.addr %s265, 1024
        %s267 = scalar_lea.vmem [#allocation3], %s266
        %p268 = pneg %p68
        %p269 = pneg %p65
        %p270 = pneg %p89
        %p271 = pneg %p86
        %p272 = pneg %p110
        %p273 = pneg %p107
        %p274 = pneg %p131
        %p275 = pneg %p128
        %p276 = pneg %p152
        %p277 = pneg %p149
        %s278 = smul.u32 8, %s21
        %p279 = scmp.lt.s32.totalorder %s278, 31
        %s280 = scalar_select %p279, %s278, 31
        %s281 = smul.addr %s280, 2
        %s282 = scalar_lea.vmem %s0, %s281
        %s283 = smul.u32 8, %s21
        %s284 = smul.u32 128, %s21
        %p285 = scmp.eq.s32.totalorder %s21, 0
        // Predicated region
        $region53: #{landmark_forward.3} parent=39 // pred_check
          %p286 = pneg %p285
        $region54: #{landmark_forward.3} parent=39 // pred_check_branch
          %288 = sbr.rel (%p286) target = $region56
        $region55: #{landmark_forward.3} parent=39 // pred_region
          %289 = vst [vmem:[#allocation2] sm:$0x3] 0.0
        $region56: #{landmark_forward.3} parent=39 // pred_fallthru
          _
        %v290 = vld [vmem:[#allocation2] sm:$0x3]
        %v291 = vld [vmem:[%s282] sm:$0xff]
        %v292 = vld [vmem:[%s282 + $0x8] sm:$0xff]
        %v293 = vld [vmem:[%s240] sm:$0xff]
        %v294 = vld [vmem:[%s240 + $0x8] sm:$0xff]
        %v295 = vld [vmem:[%s240 + $0x10] sm:$0xff]
        %v296 = vld [vmem:[%s240 + $0x18] sm:$0xff]
        %v297 = vld [vmem:[%s240 + $0x20] sm:$0xff]
        %v298 = vld [vmem:[%s240 + $0x28] sm:$0xff]
        %v299 = vld [vmem:[%s240 + $0x30] sm:$0xff]
        %v300 = vld [vmem:[%s240 + $0x38] sm:$0xff]
        %v301 = vld [vmem:[%s240 + $0x40] sm:$0xff]
        %v302 = vld [vmem:[%s240 + $0x48] sm:$0xff]
        %v303 = vld [vmem:[%s240 + $0x50] sm:$0xff]
        %v304 = vld [vmem:[%s240 + $0x58] sm:$0xff]
        %v305 = vld [vmem:[%s240 + $0x60] sm:$0xff]
        %v306 = vld [vmem:[%s240 + $0x68] sm:$0xff]
        %v307 = vld [vmem:[%s240 + $0x70] sm:$0xff]
        %v308 = vld [vmem:[%s240 + $0x78] sm:$0xff]
        %v309 = vld [vmem:[%s240 + $0x80] sm:$0xff]
        %v310 = vld [vmem:[%s240 + $0x88] sm:$0xff]
        %v311 = vld [vmem:[%s240 + $0x90] sm:$0xff]
        %v312 = vld [vmem:[%s240 + $0x98] sm:$0xff]
        %v313 = vld [vmem:[%s240 + $0xa0] sm:$0xff]
        %v314 = vld [vmem:[%s240 + $0xa8] sm:$0xff]
        %v315 = vld [vmem:[%s240 + $0xb0] sm:$0xff]
        %v316 = vld [vmem:[%s240 + $0xb8] sm:$0xff]
        %v317 = vld [vmem:[%s240 + $0xc0] sm:$0xff]
        %v318 = vld [vmem:[%s240 + $0xc8] sm:$0xff]
        %v319 = vld [vmem:[%s240 + $0xd0] sm:$0xff]
        %v320 = vld [vmem:[%s240 + $0xd8] sm:$0xff]
        %v321 = vld [vmem:[%s240 + $0xe0] sm:$0xff]
        %v322 = vld [vmem:[%s240 + $0xe8] sm:$0xff]
        %v323 = vld [vmem:[%s240 + $0xf0] sm:$0xff]
        %v324 = vld [vmem:[%s240 + $0xf8] sm:$0xff]
        %v325 = vld [vmem:[%s240 + $0x100] sm:$0xff]
        %v326 = vld [vmem:[%s240 + $0x108] sm:$0xff]
        %v327 = vld [vmem:[%s240 + $0x110] sm:$0xff]
        %v328 = vld [vmem:[%s240 + $0x118] sm:$0xff]
        %v329 = vld [vmem:[%s240 + $0x120] sm:$0xff]
        %v330 = vld [vmem:[%s240 + $0x128] sm:$0xff]
        %v331 = vld [vmem:[%s240 + $0x130] sm:$0xff]
        %v332 = vld [vmem:[%s240 + $0x138] sm:$0xff]
        %v333 = vld [vmem:[%s240 + $0x140] sm:$0xff]
        %v334 = vld [vmem:[%s240 + $0x148] sm:$0xff]
        %v335 = vld [vmem:[%s240 + $0x150] sm:$0xff]
        %v336 = vld [vmem:[%s240 + $0x158] sm:$0xff]
        %v337 = vld [vmem:[%s240 + $0x160] sm:$0xff]
        %v338 = vld [vmem:[%s240 + $0x168] sm:$0xff]
        %v339 = vld [vmem:[%s240 + $0x170] sm:$0xff]
        %v340 = vld [vmem:[%s240 + $0x178] sm:$0xff]
        %v341 = vld [vmem:[%s240 + $0x180] sm:$0xff]
        %v342 = vld [vmem:[%s240 + $0x188] sm:$0xff]
        %v343 = vld [vmem:[%s240 + $0x190] sm:$0xff]
        %v344 = vld [vmem:[%s240 + $0x198] sm:$0xff]
        %v345 = vld [vmem:[%s240 + $0x1a0] sm:$0xff]
        %v346 = vld [vmem:[%s240 + $0x1a8] sm:$0xff]
        %v347 = vld [vmem:[%s240 + $0x1b0] sm:$0xff]
        %v348 = vld [vmem:[%s240 + $0x1b8] sm:$0xff]
        %v349 = vld [vmem:[%s240 + $0x1c0] sm:$0xff]
        %v350 = vld [vmem:[%s240 + $0x1c8] sm:$0xff]
        %v351 = vld [vmem:[%s240 + $0x1d0] sm:$0xff]
        %v352 = vld [vmem:[%s240 + $0x1d8] sm:$0xff]
        %v353 = vld [vmem:[%s240 + $0x1e0] sm:$0xff]
        %v354 = vld [vmem:[%s240 + $0x1e8] sm:$0xff]
        %v355 = vld [vmem:[%s240 + $0x1f0] sm:$0xff]
        %v356 = vld [vmem:[%s240 + $0x1f8] sm:$0xff]
        %v357 = vld [vmem:[%s240 + $0x200] sm:$0xff]
        %v358 = vld [vmem:[%s240 + $0x208] sm:$0xff]
        %v359 = vld [vmem:[%s240 + $0x210] sm:$0xff]
        %v360 = vld [vmem:[%s240 + $0x218] sm:$0xff]
        %v361 = vld [vmem:[%s240 + $0x220] sm:$0xff]
        %v362 = vld [vmem:[%s240 + $0x228] sm:$0xff]
        %v363 = vld [vmem:[%s240 + $0x230] sm:$0xff]
        %v364 = vld [vmem:[%s240 + $0x238] sm:$0xff]
        %v365 = vld [vmem:[%s240 + $0x240] sm:$0xff]
        %v366 = vld [vmem:[%s240 + $0x248] sm:$0xff]
        %v367 = vld [vmem:[%s240 + $0x250] sm:$0xff]
        %v368 = vld [vmem:[%s240 + $0x258] sm:$0xff]
        %v369 = vld [vmem:[%s240 + $0x260] sm:$0xff]
        %v370 = vld [vmem:[%s240 + $0x268] sm:$0xff]
        %v371 = vld [vmem:[%s240 + $0x270] sm:$0xff]
        %v372 = vld [vmem:[%s240 + $0x278] sm:$0xff]
        %v373 = vld [vmem:[%s240 + $0x280] sm:$0xff]
        %v374 = vld [vmem:[%s240 + $0x288] sm:$0xff]
        %v375 = vld [vmem:[%s240 + $0x290] sm:$0xff]
        %v376 = vld [vmem:[%s240 + $0x298] sm:$0xff]
        %v377 = vld [vmem:[%s240 + $0x2a0] sm:$0xff]
        %v378 = vld [vmem:[%s240 + $0x2a8] sm:$0xff]
        %v379 = vld [vmem:[%s240 + $0x2b0] sm:$0xff]
        %v380 = vld [vmem:[%s240 + $0x2b8] sm:$0xff]
        %v381 = vld [vmem:[%s240 + $0x2c0] sm:$0xff]
        %v382 = vld [vmem:[%s240 + $0x2c8] sm:$0xff]
        %v383 = vld [vmem:[%s240 + $0x2d0] sm:$0xff]
        %v384 = vld [vmem:[%s240 + $0x2d8] sm:$0xff]
        %v385 = vld [vmem:[%s240 + $0x2e0] sm:$0xff]
        %v386 = vld [vmem:[%s240 + $0x2e8] sm:$0xff]
        %v387 = vld [vmem:[%s240 + $0x2f0] sm:$0xff]
        %v388 = vld [vmem:[%s240 + $0x2f8] sm:$0xff]
        %v389 = vld [vmem:[%s240 + $0x300] sm:$0xff]
        %v390 = vld [vmem:[%s240 + $0x308] sm:$0xff]
        %v391 = vld [vmem:[%s240 + $0x310] sm:$0xff]
        %v392 = vld [vmem:[%s240 + $0x318] sm:$0xff]
        %v393 = vld [vmem:[%s240 + $0x320] sm:$0xff]
        %v394 = vld [vmem:[%s240 + $0x328] sm:$0xff]
        %v395 = vld [vmem:[%s240 + $0x330] sm:$0xff]
        %v396 = vld [vmem:[%s240 + $0x338] sm:$0xff]
        %v397 = vld [vmem:[%s240 + $0x340] sm:$0xff]
        %v398 = vld [vmem:[%s240 + $0x348] sm:$0xff]
        %v399 = vld [vmem:[%s240 + $0x350] sm:$0xff]
        %v400 = vld [vmem:[%s240 + $0x358] sm:$0xff]
        %v401 = vld [vmem:[%s240 + $0x360] sm:$0xff]
        %v402 = vld [vmem:[%s240 + $0x368] sm:$0xff]
        %v403 = vld [vmem:[%s240 + $0x370] sm:$0xff]
        %v404 = vld [vmem:[%s240 + $0x378] sm:$0xff]
        %v405 = vld [vmem:[%s240 + $0x380] sm:$0xff]
        %v406 = vld [vmem:[%s240 + $0x388] sm:$0xff]
        %v407 = vld [vmem:[%s240 + $0x390] sm:$0xff]
        %v408 = vld [vmem:[%s240 + $0x398] sm:$0xff]
        %v409 = vld [vmem:[%s240 + $0x3a0] sm:$0xff]
        %v410 = vld [vmem:[%s240 + $0x3a8] sm:$0xff]
        %v411 = vld [vmem:[%s240 + $0x3b0] sm:$0xff]
        %v412 = vld [vmem:[%s240 + $0x3b8] sm:$0xff]
        %v413 = vld [vmem:[%s240 + $0x3c0] sm:$0xff]
        %v414 = vld [vmem:[%s240 + $0x3c8] sm:$0xff]
        %v415 = vld [vmem:[%s240 + $0x3d0] sm:$0xff]
        %v416 = vld [vmem:[%s240 + $0x3d8] sm:$0xff]
        %v417 = vld [vmem:[%s240 + $0x3e0] sm:$0xff]
        %v418 = vld [vmem:[%s240 + $0x3e8] sm:$0xff]
        %v419 = vld [vmem:[%s240 + $0x3f0] sm:$0xff]
        %v420 = vld [vmem:[%s240 + $0x3f8] sm:$0xff]
        %423 = vst [vmem:[#allocation1] ss:$4 sm:$0xff] %v291
        %s424 = scalar_lea.vmem [#allocation1], 32
        %425 = vst [vmem:[%s424] ss:$4 sm:$0xff] %v292
        %v426 = vld.sshfl [vmem:[#allocation1] sm:$0xff pattern:$0x73625140]
        %v427 = vld.sshfl [vmem:[#allocation1 + $0x8] sm:$0xff pattern:$0x73625140]
        %v428 = vld.sshfl [vmem:[#allocation1 + $0x10] sm:$0xff pattern:$0x73625140]
        %v429 = vld.sshfl [vmem:[#allocation1 + $0x18] sm:$0xff pattern:$0x73625140]
        %v430 = vld.sshfl [vmem:[#allocation1 + $0x20] sm:$0xff pattern:$0x73625140]
        %v431 = vld.sshfl [vmem:[#allocation1 + $0x28] sm:$0xff pattern:$0x73625140]
        %v432 = vld.sshfl [vmem:[#allocation1 + $0x30] sm:$0xff pattern:$0x73625140]
        %v433 = vld.sshfl [vmem:[#allocation1 + $0x38] sm:$0xff pattern:$0x73625140]
        %442 = vmatpush.msra.mxu0 %v308
        %443 = vmatpush.msra.mxu0 %v307
        %444 = vmatpush.msra.mxu0 %v306
        %445 = vmatpush.msra.mxu0 %v305
        %446 = vmatpush.msra.mxu0 %v304
        %447 = vmatpush.msra.mxu0 %v303
        %448 = vmatpush.msra.mxu0 %v302
        %449 = vmatpush.msra.mxu0 %v301
        %450 = vmatpush.msra.mxu0 %v300
        %451 = vmatpush.msra.mxu0 %v299
        %452 = vmatpush.msra.mxu0 %v298
        %453 = vmatpush.msra.mxu0 %v297
        %454 = vmatpush.msra.mxu0 %v296
        %455 = vmatpush.msra.mxu0 %v295
        %456 = vmatpush.msra.mxu0 %v294
        %457 = vmatpush.msra.mxu0 %v293
        %458 = vmatmul.f32.gmra.mxu0 %v426
        %v459 = vpop.f32.mrf.mxu0
        %v460 = vadd.f32 0.0, %v459
        %461 = vdwg.mxu0
        %462 = vmatpush.msra.mxu0 %v324
        %463 = vmatpush.msra.mxu0 %v323
        %464 = vmatpush.msra.mxu0 %v322
        %465 = vmatpush.msra.mxu0 %v321
        %466 = vmatpush.msra.mxu0 %v320
        %467 = vmatpush.msra.mxu0 %v319
        %468 = vmatpush.msra.mxu0 %v318
        %469 = vmatpush.msra.mxu0 %v317
        %470 = vmatpush.msra.mxu0 %v316
        %471 = vmatpush.msra.mxu0 %v315
        %472 = vmatpush.msra.mxu0 %v314
        %473 = vmatpush.msra.mxu0 %v313
        %474 = vmatpush.msra.mxu0 %v312
        %475 = vmatpush.msra.mxu0 %v311
        %476 = vmatpush.msra.mxu0 %v310
        %477 = vmatpush.msra.mxu0 %v309
        %478 = vmatmul.f32.gmra.mxu0 %v427
        %v479 = vpop.f32.mrf.mxu0
        %v480 = vadd.f32 %v460, %v479
        %481 = vdwg.mxu0
        %482 = vmatpush.msra.mxu0 %v340
        %483 = vmatpush.msra.mxu0 %v339
        %484 = vmatpush.msra.mxu0 %v338
        %485 = vmatpush.msra.mxu0 %v337
        %486 = vmatpush.msra.mxu0 %v336
        %487 = vmatpush.msra.mxu0 %v335
        %488 = vmatpush.msra.mxu0 %v334
        %489 = vmatpush.msra.mxu0 %v333
        %490 = vmatpush.msra.mxu0 %v332
        %491 = vmatpush.msra.mxu0 %v331
        %492 = vmatpush.msra.mxu0 %v330
        %493 = vmatpush.msra.mxu0 %v329
        %494 = vmatpush.msra.mxu0 %v328
        %495 = vmatpush.msra.mxu0 %v327
        %496 = vmatpush.msra.mxu0 %v326
        %497 = vmatpush.msra.mxu0 %v325
        %498 = vmatmul.f32.gmra.mxu0 %v428
        %v499 = vpop.f32.mrf.mxu0
        %v500 = vadd.f32 %v480, %v499
        %501 = vdwg.mxu0
        %502 = vmatpush.msra.mxu0 %v356
        %503 = vmatpush.msra.mxu0 %v355
        %504 = vmatpush.msra.mxu0 %v354
        %505 = vmatpush.msra.mxu0 %v353
        %506 = vmatpush.msra.mxu0 %v352
        %507 = vmatpush.msra.mxu0 %v351
        %508 = vmatpush.msra.mxu0 %v350
        %509 = vmatpush.msra.mxu0 %v349
        %510 = vmatpush.msra.mxu0 %v348
        %511 = vmatpush.msra.mxu0 %v347
        %512 = vmatpush.msra.mxu0 %v346
        %513 = vmatpush.msra.mxu0 %v345
        %514 = vmatpush.msra.mxu0 %v344
        %515 = vmatpush.msra.mxu0 %v343
        %516 = vmatpush.msra.mxu0 %v342
        %517 = vmatpush.msra.mxu0 %v341
        %518 = vmatmul.f32.gmra.mxu0 %v429
        %v519 = vpop.f32.mrf.mxu0
        %v520 = vadd.f32 %v500, %v519
        %521 = vdwg.mxu0
        %522 = vmatpush.msra.mxu0 %v372
        %523 = vmatpush.msra.mxu0 %v371
        %524 = vmatpush.msra.mxu0 %v370
        %525 = vmatpush.msra.mxu0 %v369
        %526 = vmatpush.msra.mxu0 %v368
        %527 = vmatpush.msra.mxu0 %v367
        %528 = vmatpush.msra.mxu0 %v366
        %529 = vmatpush.msra.mxu0 %v365
        %530 = vmatpush.msra.mxu0 %v364
        %531 = vmatpush.msra.mxu0 %v363
        %532 = vmatpush.msra.mxu0 %v362
        %533 = vmatpush.msra.mxu0 %v361
        %534 = vmatpush.msra.mxu0 %v360
        %535 = vmatpush.msra.mxu0 %v359
        %536 = vmatpush.msra.mxu0 %v358
        %537 = vmatpush.msra.mxu0 %v357
        %538 = vmatmul.f32.gmra.mxu0 %v430
        %v539 = vpop.f32.mrf.mxu0
        %v540 = vadd.f32 %v520, %v539
        %541 = vdwg.mxu0
        %542 = vmatpush.msra.mxu0 %v388
        %543 = vmatpush.msra.mxu0 %v387
        %544 = vmatpush.msra.mxu0 %v386
        %545 = vmatpush.msra.mxu0 %v385
        %546 = vmatpush.msra.mxu0 %v384
        %547 = vmatpush.msra.mxu0 %v383
        %548 = vmatpush.msra.mxu0 %v382
        %549 = vmatpush.msra.mxu0 %v381
        %550 = vmatpush.msra.mxu0 %v380
        %551 = vmatpush.msra.mxu0 %v379
        %552 = vmatpush.msra.mxu0 %v378
        %553 = vmatpush.msra.mxu0 %v377
        %554 = vmatpush.msra.mxu0 %v376
        %555 = vmatpush.msra.mxu0 %v375
        %556 = vmatpush.msra.mxu0 %v374
        %557 = vmatpush.msra.mxu0 %v373
        %558 = vmatmul.f32.gmra.mxu0 %v431
        %v559 = vpop.f32.mrf.mxu0
        %v560 = vadd.f32 %v540, %v559
        %561 = vdwg.mxu0
        %562 = vmatpush.msra.mxu0 %v404
        %563 = vmatpush.msra.mxu0 %v403
        %564 = vmatpush.msra.mxu0 %v402
        %565 = vmatpush.msra.mxu0 %v401
        %566 = vmatpush.msra.mxu0 %v400
        %567 = vmatpush.msra.mxu0 %v399
        %568 = vmatpush.msra.mxu0 %v398
        %569 = vmatpush.msra.mxu0 %v397
        %570 = vmatpush.msra.mxu0 %v396
        %571 = vmatpush.msra.mxu0 %v395
        %572 = vmatpush.msra.mxu0 %v394
        %573 = vmatpush.msra.mxu0 %v393
        %574 = vmatpush.msra.mxu0 %v392
        %575 = vmatpush.msra.mxu0 %v391
        %576 = vmatpush.msra.mxu0 %v390
        %577 = vmatpush.msra.mxu0 %v389
        %578 = vmatmul.f32.gmra.mxu0 %v432
        %v579 = vpop.f32.mrf.mxu0
        %v580 = vadd.f32 %v560, %v579
        %581 = vdwg.mxu0
        %582 = vmatpush.msra.mxu0 %v420
        %583 = vmatpush.msra.mxu0 %v419
        %584 = vmatpush.msra.mxu0 %v418
        %585 = vmatpush.msra.mxu0 %v417
        %586 = vmatpush.msra.mxu0 %v416
        %587 = vmatpush.msra.mxu0 %v415
        %588 = vmatpush.msra.mxu0 %v414
        %589 = vmatpush.msra.mxu0 %v413
        %590 = vmatpush.msra.mxu0 %v412
        %591 = vmatpush.msra.mxu0 %v411
        %592 = vmatpush.msra.mxu0 %v410
        %593 = vmatpush.msra.mxu0 %v409
        %594 = vmatpush.msra.mxu0 %v408
        %595 = vmatpush.msra.mxu0 %v407
        %596 = vmatpush.msra.mxu0 %v406
        %597 = vmatpush.msra.mxu0 %v405
        %598 = vmatmul.f32.gmra.mxu0 %v433
        %v599 = vpop.f32.mrf.mxu0
        %v600 = vadd.f32 %v580, %v599
        %601 = vdwg.mxu0
        %v602 = vadd.f32 %v290, %v600
        %603 = vst [vmem:[#allocation2] sm:$0x3] %v602
        %p604 = scmp.eq.s32.totalorder %s21, 3
        // Predicated region
        $region57: #{landmark_forward.3} parent=39 // pred_check
          %p605 = pneg %p604
        $region58: #{landmark_forward.3} parent=39 // pred_check_branch
          %607 = sbr.rel (%p605) target = $region60
        $region59: #{landmark_forward.3} parent=39 // pred_region
          %v608 = vld [vmem:[#allocation2] sm:$0x3]
          %v609 = vld [vmem:[#allocation6] sm:$0x1]
          %v611 = vperm.slane %v609, 0
          %v613 = vadd.f32 %v608, %v611
          %v614 = vmax.f32 %v613, 0.0
          %v615 = vld [vmem:[%s3] sm:$0xff]
          %v616 = vld [vmem:[%s3 + $0x8] sm:$0xff]
          %v617 = vld [vmem:[%s3 + $0x10] sm:$0xff]
          %v618 = vld [vmem:[%s3 + $0x18] sm:$0xff]
          %v619 = vld [vmem:[%s3 + $0x20] sm:$0xff]
          %v620 = vld [vmem:[%s3 + $0x28] sm:$0xff]
          %v621 = vld [vmem:[%s3 + $0x30] sm:$0xff]
          %v622 = vld [vmem:[%s3 + $0x38] sm:$0xff]
          %v623 = vld [vmem:[%s3 + $0x40] sm:$0xff]
          %v624 = vld [vmem:[%s3 + $0x48] sm:$0xff]
          %v625 = vld [vmem:[%s3 + $0x50] sm:$0xff]
          %v626 = vld [vmem:[%s3 + $0x58] sm:$0xff]
          %v627 = vld [vmem:[%s3 + $0x60] sm:$0xff]
          %v628 = vld [vmem:[%s3 + $0x68] sm:$0xff]
          %v629 = vld [vmem:[%s3 + $0x70] sm:$0xff]
          %v630 = vld [vmem:[%s3 + $0x78] sm:$0xff]
          %v631 = vld [vmem:[#allocation8] sm:$0x1]
          %v633 = vperm.slane %v631, 0
          %635 = vmatpush.msra.mxu0 %v630
          %636 = vmatpush.msra.mxu0 %v629
          %637 = vmatpush.msra.mxu0 %v628
          %638 = vmatpush.msra.mxu0 %v627
          %639 = vmatpush.msra.mxu0 %v626
          %640 = vmatpush.msra.mxu0 %v625
          %641 = vmatpush.msra.mxu0 %v624
          %642 = vmatpush.msra.mxu0 %v623
          %643 = vmatpush.msra.mxu0 %v622
          %644 = vmatpush.msra.mxu0 %v621
          %645 = vmatpush.msra.mxu0 %v620
          %646 = vmatpush.msra.mxu0 %v619
          %647 = vmatpush.msra.mxu0 %v618
          %648 = vmatpush.msra.mxu0 %v617
          %649 = vmatpush.msra.mxu0 %v616
          %650 = vmatpush.msra.mxu0 %v615
          %651 = vmatmul.f32.gmra.mxu0 %v614
          %v652 = vpop.f32.mrf.mxu0
          %v653 = vadd.f32 %v633, %v652
          %654 = vdwg.mxu0
          %vm655 = vcmask 58368
          %656 = vst.msk [vmem:[#allocation9] sm:$0x3] %vm655, %v653
        $region60: #{landmark_forward.3} parent=39 // pred_fallthru
          _
        // Predicated region
        $region61: #{landmark_forward.3} parent=39 // pred_check
          %p657 = pneg %p149
        $region62: #{landmark_forward.3} parent=39 // pred_check_branch
          %659 = sbr.rel (%p657) target = $region64
        $region63: #{landmark_forward.3} parent=39 // pred_region
          %661 = vsyncadd [#allocation5], 0
          %s663 = sshll.u32 [#allocation9], 4
          %s664 = int_to_ptr.vmem [resolvable:$true] %s663
          %s665 = sshll.u32 %s5, 4
          %s666 = int_to_ptr.hbm [resolvable:$true] %s665
          %668 = dma.vmem_to_hbm [thread:$0]  %s664, 32, %s666, [#allocation5]
        $region64: #{landmark_forward.3} parent=39 // pred_fallthru
          _
        // Predicated region
        $region65: #{landmark_forward.3} parent=39 // pred_check
          %p669 = pneg %p149
        $region66: #{landmark_forward.3} parent=39 // pred_check_branch
          %671 = sbr.rel (%p669) target = $region68
        $region67: #{landmark_forward.3} parent=39 // pred_region
          %673 = dma.done [#allocation5], 32
        $region68: #{landmark_forward.3} parent=39 // pred_fallthru
          _
      $region40: #{landmark_forward.3} parent=5 // pred_fallthru
        _
      %p674 = scmp.le.s32.totalorder 2, %s16
      // Predicated region
      $region69: #{landmark_forward.3} parent=5 // pred_check
        %p675 = pneg %p674
      $region70: #{landmark_forward.3} parent=5 // pred_check_branch
        %677 = sbr.rel (%p675) target = $region72
      $region71: #{landmark_forward.3} parent=5 // pred_region
        %s678 = ssub.s32 %s16, 2
      $region72: #{landmark_forward.3} parent=5 // pred_fallthru
        _
    $region6: #{landmark_forward.3} parent=1 // loop_footer
      %s20 = sadd.s32 1, %s16
    $region7: #{landmark_forward.3} parent=1 // loop_footer_branch
      %15 = sbr.rel target = $region3
    $region8: #{landmark_forward.3} parent=1 // loop_exit
      _
    %679 = vsyncpa [#allocation4], 1
    %s680 = scalar_lea.sflag [#allocation4], 1
    %681 = vsyncpa %s680, 1
    %682 = vsyncpa [#allocation7], 1
    %683 = vsyncpa [#allocation5], 1
    %s684 = scalar_lea.sflag [#allocation5], 1
    %685 = vsyncpa %s684, 1

// kernel: landmark_forward.2
$region0: #{landmark_forward.2}
  #allocation0 [shape = 'u32[]', space=smem, size = 0x4, offset = 0x4, fixed_abs, tag = 'smem constant byte address 0x4 - core index']
  #allocation1 [shape = 'u32[72,128]{1,0:T(1,128)}', space=vmem, size = 0x9000, scoped, tag = 'internal scratch']
  #allocation2 [shape = 'f32[18,18,32]{2,1,0:T(8,128)}', space=vmem, size = 0x36000, scoped, tag = 'scratch operand']
  %s0 = inlined_call_operand.hbm [shape: f32[2,32,32], index: 0, kind: input, shape index: {}]
  %s1 = inlined_call_operand.hbm [shape: f32[3,32,1024], index: 1, kind: input, shape index: {}]
  %s2 = inlined_call_operand.hbm [shape: f32[1,1024], index: 2, kind: input, shape index: {}]
  %s3 = inlined_call_operand.vmem [shape: f32[288,64], index: 3, kind: input, shape index: {}]
  %s4 = inlined_call_operand.hbm [shape: f32[1,64], index: 4, kind: input, shape index: {}]
  %s5 = inlined_call_operand.vmem [shape: f32[2,8,512], index: 5, kind: output, shape index: {}]
  %s6 = sld [smem:[#allocation0]]
  $region69: #{landmark_forward.2} parent=0
    _
  %s8 = ssub.s32 1, %s6
  %s9 = scalar_select 0, %s8, %s6
  $region1: #{landmark_forward.2} parent=0
    #allocation3 [shape = 'u8[32768]{0}', space=vmem, size = 0x8000, scoped, tag = 'input window, operand 0']
    #allocation4 [shape = 's32[2]{0}', space=sflag, size = 0x8, scoped, tag = 'scoped memory for landmark_forward.2']
    #allocation5 [shape = 'u8[393216]{0}', space=vmem, size = 0x60000, scoped, tag = 'input window, operand 1, single buffered']
    #allocation6 [shape = 's32[1]{0}', space=sflag, size = 0x4, scoped, tag = 'scoped memory for landmark_forward.2']
    #allocation7 [shape = 'u8[4096]{0}', space=vmem, size = 0x1000, scoped, tag = 'input window, operand 2, single buffered']
    #allocation8 [shape = 'u8[512]{0}', space=vmem, size = 0x400, scoped, tag = 'input window, operand 4, single buffered']
    #allocation9 [shape = 's32[1]{0}', space=sflag, size = 0x4, scoped, tag = 'scoped memory for landmark_forward.2']
    %10 = vsyncpa [#allocation4], 0
    %s11 = scalar_lea.sflag [#allocation4], 1
    %12 = vsyncpa %s11, 0
    %13 = vsyncpa [#allocation6], 0
    %14 = vsyncpa [#allocation9], 0
    loop: start=0, step=1, limit=4
    $region2: #{landmark_forward.2} parent=1 // loop_pre_header
      _
    $region3: #{landmark_forward.2} parent=1 // loop_header
      %s16 = sphi 0, %s20
      %p17 = scmp.ge.s32.totalorder %s16, 4
      %s26 = sphi 0, %s28
      %s29 = sphi 0, %s26
      %s30 = sphi 0, %s29
      %s46 = sphi 0, %s30
      %s50 = sphi 0, %s50
      %s52 = sphi 0, %s50
      %s53 = sphi 0, %s52
      %s67 = sphi 0, %s53
      %s71 = sphi 0, %s71
      %s73 = sphi 0, %s71
      %s74 = sphi 0, %s73
      %s88 = sphi 0, %s74
      %s92 = sphi 0, %s92
      %s94 = sphi 0, %s92
      %s95 = sphi 0, %s94
      %s109 = sphi 0, %s95
      %s113 = sphi 0, %s113
      %s115 = sphi 0, %s113
      %s116 = sphi 0, %s115
      %s130 = sphi 0, %s116
      %s136 = sphi 0, %s138
      %s139 = sphi 0, %s136
      %s140 = sphi 0, %s139
      %s156 = sphi 0, %s140
    $region4: #{landmark_forward.2} parent=1 // loop_header_branch
      %19 = sbr.rel (%p17) target = $region8
    $region5: #{landmark_forward.2} parent=1 // loop_body
      %s21 = ssub.s32 %s16, 1
      %s22 = ssub.s32 %s16, 2
      %s23 = sadd.s32 %s16, 1
      %s24 = ssub.s32 %s16, %s23
      %p25 = scmp.eq.s32.totalorder %s24, 0
      %s27 = sadd.s32 %s26, 1
      %s28 = scalar_select %p25, %s26, %s27
      %p31 = pneg %p25
      %p32 = scmp.eq.s32.totalorder %s16, 1
      %p33 = por %p31, %p32
      %p34 = scmp.ne.s32.totalorder %s26, %s29
      %p35 = scmp.eq.s32.totalorder %s16, 0
      %p36 = por %p34, %p35
      %p37 = scmp.ne.s32.totalorder %s26, %s29
      %p38 = scmp.eq.s32.totalorder %s21, 1
      %p39 = por %p37, %p38
      %p40 = scmp.ne.s32.totalorder %s29, %s30
      %p41 = scmp.eq.s32.totalorder %s21, 0
      %p42 = por %p40, %p41
      %p43 = scmp.ne.s32.totalorder %s29, %s30
      %p44 = scmp.eq.s32.totalorder %s22, 1
      %p45 = por %p43, %p44
      %p47 = scmp.ne.s32.totalorder %s30, %s46
      %p48 = scmp.eq.s32.totalorder %s22, 0
      %p49 = por %p47, %p48
      %s51 = sadd.s32 %s50, 1
      %p54 = scmp.eq.s32.totalorder %s16, 1
      %p55 = scmp.ne.s32.totalorder %s50, %s52
      %p56 = scmp.eq.s32.totalorder %s16, 0
      %p57 = por %p55, %p56
      %p58 = scmp.ne.s32.totalorder %s50, %s52
      %p59 = scmp.eq.s32.totalorder %s21, 1
      %p60 = por %p58, %p59
      %p61 = scmp.ne.s32.totalorder %s52, %s53
      %p62 = scmp.eq.s32.totalorder %s21, 0
      %p63 = por %p61, %p62
      %p64 = scmp.ne.s32.totalorder %s52, %s53
      %p65 = scmp.eq.s32.totalorder %s22, 1
      %p66 = por %p64, %p65
      %p68 = scmp.ne.s32.totalorder %s53, %s67
      %p69 = scmp.eq.s32.totalorder %s22, 0
      %p70 = por %p68, %p69
      %s72 = sadd.s32 %s71, 1
      %p75 = scmp.eq.s32.totalorder %s16, 1
      %p76 = scmp.ne.s32.totalorder %s71, %s73
      %p77 = scmp.eq.s32.totalorder %s16, 0
      %p78 = por %p76, %p77
      %p79 = scmp.ne.s32.totalorder %s71, %s73
      %p80 = scmp.eq.s32.totalorder %s21, 1
      %p81 = por %p79, %p80
      %p82 = scmp.ne.s32.totalorder %s73, %s74
      %p83 = scmp.eq.s32.totalorder %s21, 0
      %p84 = por %p82, %p83
      %p85 = scmp.ne.s32.totalorder %s73, %s74
      %p86 = scmp.eq.s32.totalorder %s22, 1
      %p87 = por %p85, %p86
      %p89 = scmp.ne.s32.totalorder %s74, %s88
      %p90 = scmp.eq.s32.totalorder %s22, 0
      %p91 = por %p89, %p90
      %s93 = sadd.s32 %s92, 1
      %p96 = scmp.eq.s32.totalorder %s16, 1
      %p97 = scmp.ne.s32.totalorder %s92, %s94
      %p98 = scmp.eq.s32.totalorder %s16, 0
      %p99 = por %p97, %p98
      %p100 = scmp.ne.s32.totalorder %s92, %s94
      %p101 = scmp.eq.s32.totalorder %s21, 1
      %p102 = por %p100, %p101
      %p103 = scmp.ne.s32.totalorder %s94, %s95
      %p104 = scmp.eq.s32.totalorder %s21, 0
      %p105 = por %p103, %p104
      %p106 = scmp.ne.s32.totalorder %s94, %s95
      %p107 = scmp.eq.s32.totalorder %s22, 1
      %p108 = por %p106, %p107
      %p110 = scmp.ne.s32.totalorder %s95, %s109
      %p111 = scmp.eq.s32.totalorder %s22, 0
      %p112 = por %p110, %p111
      %s114 = sadd.s32 %s113, 1
      %p117 = scmp.eq.s32.totalorder %s16, 1
      %p118 = scmp.ne.s32.totalorder %s113, %s115
      %p119 = scmp.eq.s32.totalorder %s16, 0
      %p120 = por %p118, %p119
      %p121 = scmp.ne.s32.totalorder %s113, %s115
      %p122 = scmp.eq.s32.totalorder %s21, 1
      %p123 = por %p121, %p122
      %p124 = scmp.ne.s32.totalorder %s115, %s116
      %p125 = scmp.eq.s32.totalorder %s21, 0
      %p126 = por %p124, %p125
      %p127 = scmp.ne.s32.totalorder %s115, %s116
      %p128 = scmp.eq.s32.totalorder %s22, 1
      %p129 = por %p127, %p128
      %p131 = scmp.ne.s32.totalorder %s116, %s130
      %p132 = scmp.eq.s32.totalorder %s22, 0
      %p133 = por %p131, %p132
      %s134 = ssub.s32 %s16, %s23
      %p135 = scmp.eq.s32.totalorder %s134, 0
      %s137 = sadd.s32 %s136, 1
      %s138 = scalar_select %p135, %s136, %s137
      %p141 = pneg %p135
      %p142 = scmp.eq.s32.totalorder %s16, 1
      %p143 = por %p141, %p142
      %p144 = scmp.ne.s32.totalorder %s136, %s139
      %p145 = scmp.eq.s32.totalorder %s16, 0
      %p146 = por %p144, %p145
      %p147 = scmp.ne.s32.totalorder %s136, %s139
      %p148 = scmp.eq.s32.totalorder %s21, 1
      %p149 = por %p147, %p148
      %p150 = scmp.ne.s32.totalorder %s139, %s140
      %p151 = scmp.eq.s32.totalorder %s21, 0
      %p152 = por %p150, %p151
      %p153 = scmp.ne.s32.totalorder %s139, %s140
      %p154 = scmp.eq.s32.totalorder %s22, 1
      %p155 = por %p153, %p154
      %p157 = scmp.ne.s32.totalorder %s140, %s156
      %p158 = scmp.eq.s32.totalorder %s22, 0
      %p159 = por %p157, %p158
      %p160 = scmp.le.s32.totalorder 1, %s16
      %p161 = scmp.lt.s32.totalorder %s16, 3
      %p162 = pnand %p160, %p161
      %p163 = pneg %p162
      // Predicated region
      $region9: #{landmark_forward.2} parent=5 // pred_check
        _
      $region10: #{landmark_forward.2} parent=5 // pred_check_branch
        %165 = sbr.rel (%p162) target = $region12
      $region11: #{landmark_forward.2} parent=5 // pred_region
        %s166 = ssub.s32 %s16, 1
        // Predicated region
        $region13: #{landmark_forward.2} parent=11 // pred_check
          %p167 = pneg %p63
        $region14: #{landmark_forward.2} parent=11 // pred_check_branch
          %169 = sbr.rel (%p167) target = $region16
        $region15: #{landmark_forward.2} parent=11 // pred_region
          %171 = vsyncadd [#allocation6], 0
          %s172 = sshll.u32 %s1, 4
          %s173 = int_to_ptr.hbm [resolvable:$true] %s172
          %s174 = sshll.u32 [#allocation5], 4
          %s175 = int_to_ptr.vmem [resolvable:$true] %s174
          %180 = dma.hbm_to_vmem [thread:$0]  %s173, 12288, %s175, [#allocation6], 1024, 1024, 64
        $region16: #{landmark_forward.2} parent=11 // pred_fallthru
          _
        // Predicated region
        $region17: #{landmark_forward.2} parent=11 // pred_check
          %p181 = pneg %p84
        $region18: #{landmark_forward.2} parent=11 // pred_check_branch
          %183 = sbr.rel (%p181) target = $region20
        $region19: #{landmark_forward.2} parent=11 // pred_region
          %185 = vsyncadd [#allocation6], 0
          %s187 = sshll.u32 %s2, 4
          %s188 = int_to_ptr.hbm [resolvable:$true] %s187
          %s189 = sshll.u32 [#allocation7], 4
          %s190 = int_to_ptr.vmem [resolvable:$true] %s189
          %192 = dma.hbm_to_vmem [thread:$0]  %s188, 128, %s190, [#allocation6]
        $region20: #{landmark_forward.2} parent=11 // pred_fallthru
          _
        // Predicated region
        $region21: #{landmark_forward.2} parent=11 // pred_check
          %p193 = pneg %p105
        $region22: #{landmark_forward.2} parent=11 // pred_check_branch
          %195 = sbr.rel (%p193) target = $region24
        $region23: #{landmark_forward.2} parent=11 // pred_region
          _
        $region24: #{landmark_forward.2} parent=11 // pred_fallthru
          _
        // Predicated region
        $region25: #{landmark_forward.2} parent=11 // pred_check
          %p196 = pneg %p126
        $region26: #{landmark_forward.2} parent=11 // pred_check_branch
          %198 = sbr.rel (%p196) target = $region28
        $region27: #{landmark_forward.2} parent=11 // pred_region
          %200 = vsyncadd [#allocation9], 0
          %s202 = sshll.u32 %s4, 4
          %s203 = int_to_ptr.hbm [resolvable:$true] %s202
          %s204 = sshll.u32 [#allocation8], 4
          %s205 = int_to_ptr.vmem [resolvable:$true] %s204
          %207 = dma.hbm_to_vmem [thread:$0]  %s203, 16, %s205, [#allocation9]
        $region28: #{landmark_forward.2} parent=11 // pred_fallthru
          _
      $region12: #{landmark_forward.2} parent=5 // pred_fallthru
        _
      %p208 = scmp.lt.s32.totalorder %s16, 2
      // Predicated region
      $region29: #{landmark_forward.2} parent=5 // pred_check
        %p209 = pneg %p208
      $region30: #{landmark_forward.2} parent=5 // pred_check_branch
        %211 = sbr.rel (%p209) target = $region32
      $region31: #{landmark_forward.2} parent=5 // pred_region
        // Predicated region
        $region33: #{landmark_forward.2} parent=31 // pred_check
          %p212 = pneg %p36
        $region34: #{landmark_forward.2} parent=31 // pred_check_branch
          %214 = sbr.rel (%p212) target = $region36
        $region35: #{landmark_forward.2} parent=31 // pred_region
          %s215 = sand.u32 %s26, 1
          %s216 = scalar_lea.sflag [#allocation4], %s215
          %s217 = sand.u32 %s26, 1
          %s218 = smul.addr %s217, 32
          %s219 = scalar_lea.vmem [#allocation3], %s218
          %221 = vsyncadd %s216, 0
          %s222 = smul.addr %s16, 4
          %s223 = smul.addr %s222, 8
          %s224 = scalar_lea.hbm %s0, %s223
          %s225 = sshll.u32 %s224, 4
          %s226 = int_to_ptr.hbm [resolvable:$true] %s225
          %s227 = sshll.u32 %s219, 4
          %s228 = int_to_ptr.vmem [resolvable:$true] %s227
          %233 = dma.hbm_to_vmem [thread:$0]  %s226, 512, %s228, %s216, 128, 128, 8
        $region36: #{landmark_forward.2} parent=31 // pred_fallthru
          _
      $region32: #{landmark_forward.2} parent=5 // pred_fallthru
        _
      %p234 = scmp.le.s32.totalorder 1, %s16
      %p235 = scmp.lt.s32.totalorder %s16, 3
      %p236 = pnand %p234, %p235
      %p237 = pneg %p236
      // Predicated region
      $region37: #{landmark_forward.2} parent=5 // pred_check
        _
      $region38: #{landmark_forward.2} parent=5 // pred_check_branch
        %239 = sbr.rel (%p236) target = $region40
      $region39: #{landmark_forward.2} parent=5 // pred_region
        %s240 = ssub.s32 %s16, 1
        %s241 = sand.u32 %s29, 1
        %s242 = scalar_lea.sflag [#allocation4], %s241
        %s243 = sand.u32 %s29, 1
        %s244 = smul.addr %s243, 32
        %s245 = scalar_lea.vmem [#allocation3], %s244
        // Predicated region
        $region41: #{landmark_forward.2} parent=39 // pred_check
          %p246 = pneg %p42
        $region42: #{landmark_forward.2} parent=39 // pred_check_branch
          %248 = sbr.rel (%p246) target = $region44
        $region43: #{landmark_forward.2} parent=39 // pred_region
          %250 = dma.done %s242, 512
        $region44: #{landmark_forward.2} parent=39 // pred_fallthru
          _
        // Predicated region
        $region45: #{landmark_forward.2} parent=39 // pred_check
          %p251 = pneg %p63
        $region46: #{landmark_forward.2} parent=39 // pred_check_branch
          %253 = sbr.rel (%p251) target = $region48
        $region47: #{landmark_forward.2} parent=39 // pred_region
          %255 = dma.done [#allocation6], 12288
        $region48: #{landmark_forward.2} parent=39 // pred_fallthru
          _
        // Predicated region
        $region49: #{landmark_forward.2} parent=39 // pred_check
          %p256 = pneg %p84
        $region50: #{landmark_forward.2} parent=39 // pred_check_branch
          %258 = sbr.rel (%p256) target = $region52
        $region51: #{landmark_forward.2} parent=39 // pred_region
          %260 = dma.done [#allocation6], 128
        $region52: #{landmark_forward.2} parent=39 // pred_fallthru
          _
        // Predicated region
        $region53: #{landmark_forward.2} parent=39 // pred_check
          %p261 = pneg %p126
        $region54: #{landmark_forward.2} parent=39 // pred_check_branch
          %263 = sbr.rel (%p261) target = $region56
        $region55: #{landmark_forward.2} parent=39 // pred_region
          %265 = dma.done [#allocation9], 16
        $region56: #{landmark_forward.2} parent=39 // pred_fallthru
          _
        %s266 = sand.u32 %s29, 1
        %s267 = scalar_lea.sflag [#allocation4], %s266
        %s268 = sand.u32 %s29, 1
        %s269 = smul.addr %s268, 32
        %s270 = scalar_lea.vmem [#allocation3], %s269
        %p271 = pneg %p42
        %p272 = pneg %p39
        %p273 = pneg %p63
        %p274 = pneg %p60
        %p275 = pneg %p84
        %p276 = pneg %p81
        %p277 = pneg %p105
        %p278 = pneg %p102
        %p279 = pneg %p126
        %p280 = pneg %p123
        %p281 = pneg %p152
        %p282 = pneg %p149
        %p283 = scmp.lt.s32.totalorder %s21, 1
        %s284 = scalar_select %p283, %s21, 1
        %s285 = smul.addr %s284, 4
        %s286 = smul.addr %s285, 8
        %s287 = scalar_lea.vmem %s5, %s286
        %p288 = scmp.lt.s32.totalorder %s21, 1
        %s289 = scalar_select %p288, %s21, 1
        %s290 = smul.addr %s289, 4
        %s291 = smul.addr %s290, 8
        %s292 = scalar_lea.vmem %s5, %s291
        %v293 = vld [vmem:[%s245] sm:$0xff]
        %v294 = vld [vmem:[%s245 + $0x8] sm:$0xff]
        %v295 = vld [vmem:[%s245 + $0x10] sm:$0xff]
        %v296 = vld [vmem:[%s245 + $0x18] sm:$0xff]
        %vm301 = vcmask 1040384
        %v302 = vrot.slane %v293, 7
        %v303 = vrot.slane %v294, 7
        %v304 = vsel %vm301, %v302, %v303
        %v305 = vrot.slane %v295, 7
        %v306 = vsel %vm301, %v303, %v305
        %v307 = vrot.slane %v296, 7
        %v308 = vsel %vm301, %v305, %v307
        %v310 = vsel %vm301, 0.0, %v302
        %vm311 = vcmask 1046528
        %v312 = vrot.slane %v293, 1
        %v313 = vrot.slane %v294, 1
        %v314 = vsel %vm311, %v312, %v313
        %v315 = vrot.slane %v295, 1
        %v316 = vsel %vm311, %v313, %v315
        %v317 = vrot.slane %v296, 1
        %v318 = vsel %vm311, %v315, %v317
        %v320 = vsel %vm311, %v317, 0.0
        %v321 = vld [vmem:[#allocation5] sm:$0xff]
        %v322 = vld [vmem:[#allocation5 + $0x8] sm:$0xff]
        %v323 = vld [vmem:[#allocation5 + $0x10] sm:$0xff]
        %v324 = vld [vmem:[#allocation5 + $0x18] sm:$0xff]
        %v325 = vld [vmem:[#allocation5 + $0x20] sm:$0xff]
        %v326 = vld [vmem:[#allocation5 + $0x28] sm:$0xff]
        %v327 = vld [vmem:[#allocation5 + $0x30] sm:$0xff]
        %v328 = vld [vmem:[#allocation5 + $0x38] sm:$0xff]
        %v329 = vld [vmem:[#allocation5 + $0x40] sm:$0xff]
        %v330 = vld [vmem:[#allocation5 + $0x48] sm:$0xff]
        %v331 = vld [vmem:[#allocation5 + $0x50] sm:$0xff]
        %v332 = vld [vmem:[#allocation5 + $0x58] sm:$0xff]
        %v333 = vld [vmem:[#allocation5 + $0x60] sm:$0xff]
        %v334 = vld [vmem:[#allocation5 + $0x68] sm:$0xff]
        %v335 = vld [vmem:[#allocation5 + $0x70] sm:$0xff]
        %v336 = vld [vmem:[#allocation5 + $0x78] sm:$0xff]
        %v337 = vld [vmem:[#allocation5 + $0x80] sm:$0xff]
        %v338 = vld [vmem:[#allocation5 + $0x88] sm:$0xff]
        %v339 = vld [vmem:[#allocation5 + $0x90] sm:$0xff]
        %v340 = vld [vmem:[#allocation5 + $0x98] sm:$0xff]
        %v341 = vld [vmem:[#allocation5 + $0xa0] sm:$0xff]
        %v342 = vld [vmem:[#allocation5 + $0xa8] sm:$0xff]
        %v343 = vld [vmem:[#allocation5 + $0xb0] sm:$0xff]
        %v344 = vld [vmem:[#allocation5 + $0xb8] sm:$0xff]
        %v345 = vld [vmem:[#allocation5 + $0xc0] sm:$0xff]
        %v346 = vld [vmem:[#allocation5 + $0xc8] sm:$0xff]
        %v347 = vld [vmem:[#allocation5 + $0xd0] sm:$0xff]
        %v348 = vld [vmem:[#allocation5 + $0xd8] sm:$0xff]
        %v349 = vld [vmem:[#allocation5 + $0xe0] sm:$0xff]
        %v350 = vld [vmem:[#allocation5 + $0xe8] sm:$0xff]
        %v351 = vld [vmem:[#allocation5 + $0xf0] sm:$0xff]
        %v352 = vld [vmem:[#allocation5 + $0xf8] sm:$0xff]
        %s353 = scalar_lea.vmem [#allocation5], 256
        %v354 = vld [vmem:[%s353] sm:$0xff]
        %v355 = vld [vmem:[%s353 + $0x8] sm:$0xff]
        %v356 = vld [vmem:[%s353 + $0x10] sm:$0xff]
        %v357 = vld [vmem:[%s353 + $0x18] sm:$0xff]
        %v358 = vld [vmem:[%s353 + $0x20] sm:$0xff]
        %v359 = vld [vmem:[%s353 + $0x28] sm:$0xff]
        %v360 = vld [vmem:[%s353 + $0x30] sm:$0xff]
        %v361 = vld [vmem:[%s353 + $0x38] sm:$0xff]
        %v362 = vld [vmem:[%s353 + $0x40] sm:$0xff]
        %v363 = vld [vmem:[%s353 + $0x48] sm:$0xff]
        %v364 = vld [vmem:[%s353 + $0x50] sm:$0xff]
        %v365 = vld [vmem:[%s353 + $0x58] sm:$0xff]
        %v366 = vld [vmem:[%s353 + $0x60] sm:$0xff]
        %v367 = vld [vmem:[%s353 + $0x68] sm:$0xff]
        %v368 = vld [vmem:[%s353 + $0x70] sm:$0xff]
        %v369 = vld [vmem:[%s353 + $0x78] sm:$0xff]
        %v370 = vld [vmem:[%s353 + $0x80] sm:$0xff]
        %v371 = vld [vmem:[%s353 + $0x88] sm:$0xff]
        %v372 = vld [vmem:[%s353 + $0x90] sm:$0xff]
        %v373 = vld [vmem:[%s353 + $0x98] sm:$0xff]
        %v374 = vld [vmem:[%s353 + $0xa0] sm:$0xff]
        %v375 = vld [vmem:[%s353 + $0xa8] sm:$0xff]
        %v376 = vld [vmem:[%s353 + $0xb0] sm:$0xff]
        %v377 = vld [vmem:[%s353 + $0xb8] sm:$0xff]
        %v378 = vld [vmem:[%s353 + $0xc0] sm:$0xff]
        %v379 = vld [vmem:[%s353 + $0xc8] sm:$0xff]
        %v380 = vld [vmem:[%s353 + $0xd0] sm:$0xff]
        %v381 = vld [vmem:[%s353 + $0xd8] sm:$0xff]
        %v382 = vld [vmem:[%s353 + $0xe0] sm:$0xff]
        %v383 = vld [vmem:[%s353 + $0xe8] sm:$0xff]
        %v384 = vld [vmem:[%s353 + $0xf0] sm:$0xff]
        %v385 = vld [vmem:[%s353 + $0xf8] sm:$0xff]
        %vm386 = vcmask 261120
        %v387 = vsel %vm386, %v293, 0
        %v389 = vsel %vm386, %v294, 0
        %v391 = vsel %vm386, %v295, 0
        %v393 = vsel %vm386, %v296, 0
        %395 = vmatpush.msra.mxu0 0.0
        %396 = vmatpush.msra.mxu0 0.0
        %397 = vmatpush.msra.mxu0 0.0
        %398 = vmatpush.msra.mxu0 0.0
        %399 = vmatpush.msra.mxu0 0.0
        %400 = vmatpush.msra.mxu0 0.0
        %401 = vmatpush.msra.mxu0 0.0
        %402 = vmatpush.msra.mxu0 0.0
        %403 = vmatpush.msra.mxu0 0.0
        %404 = vmatpush.msra.mxu0 0.0
        %405 = vmatpush.msra.mxu0 0.0
        %406 = vmatpush.msra.mxu0 0.0
        %407 = vmatpush.msra.mxu0 %v378
        %408 = vmatpush.msra.mxu0 %v370
        %409 = vmatpush.msra.mxu0 %v362
        %410 = vmatpush.msra.mxu0 %v354
        %411 = vmatmul.f32.gmra.mxu0 %v387
        %v412 = vpop.f32.mrf.mxu0
        %v413 = vadd.f32 0.0, %v412
        %414 = vmatmul.f32.gmra.mxu0 %v389
        %v415 = vpop.f32.mrf.mxu0
        %v416 = vadd.f32 0.0, %v415
        %417 = vmatmul.f32.gmra.mxu0 %v391
        %v418 = vpop.f32.mrf.mxu0
        %v419 = vadd.f32 0.0, %v418
        %420 = vmatmul.f32.gmra.mxu0 %v393
        %v421 = vpop.f32.mrf.mxu0
        %v422 = vadd.f32 0.0, %v421
        %423 = vdwg.mxu0
        %424 = vmatpush.msra.mxu0 0.0
        %425 = vmatpush.msra.mxu0 0.0
        %426 = vmatpush.msra.mxu0 0.0
        %427 = vmatpush.msra.mxu0 0.0
        %428 = vmatpush.msra.mxu0 0.0
        %429 = vmatpush.msra.mxu0 0.0
        %430 = vmatpush.msra.mxu0 0.0
        %431 = vmatpush.msra.mxu0 0.0
        %432 = vmatpush.msra.mxu0 0.0
        %433 = vmatpush.msra.mxu0 0.0
        %434 = vmatpush.msra.mxu0 0.0
        %435 = vmatpush.msra.mxu0 0.0
        %436 = vmatpush.msra.mxu0 %v379
        %437 = vmatpush.msra.mxu0 %v371
        %438 = vmatpush.msra.mxu0 %v363
        %439 = vmatpush.msra.mxu0 %v355
        %440 = vmatmul.f32.gmra.mxu0 %v387
        %v441 = vpop.f32.mrf.mxu0
        %v442 = vadd.f32 0.0, %v441
        %443 = vmatmul.f32.gmra.mxu0 %v389
        %v444 = vpop.f32.mrf.mxu0
        %v445 = vadd.f32 0.0, %v444
        %446 = vmatmul.f32.gmra.mxu0 %v391
        %v447 = vpop.f32.mrf.mxu0
        %v448 = vadd.f32 0.0, %v447
        %449 = vmatmul.f32.gmra.mxu0 %v393
        %v450 = vpop.f32.mrf.mxu0
        %v451 = vadd.f32 0.0, %v450
        %452 = vdwg.mxu0
        %453 = vmatpush.msra.mxu0 0.0
        %454 = vmatpush.msra.mxu0 0.0
        %455 = vmatpush.msra.mxu0 0.0
        %456 = vmatpush.msra.mxu0 0.0
        %457 = vmatpush.msra.mxu0 0.0
        %458 = vmatpush.msra.mxu0 0.0
        %459 = vmatpush.msra.mxu0 0.0
        %460 = vmatpush.msra.mxu0 0.0
        %461 = vmatpush.msra.mxu0 0.0
        %462 = vmatpush.msra.mxu0 0.0
        %463 = vmatpush.msra.mxu0 0.0
        %464 = vmatpush.msra.mxu0 0.0
        %465 = vmatpush.msra.mxu0 %v380
        %466 = vmatpush.msra.mxu0 %v372
        %467 = vmatpush.msra.mxu0 %v364
        %468 = vmatpush.msra.mxu0 %v356
        %469 = vmatmul.f32.gmra.mxu0 %v387
        %v470 = vpop.f32.mrf.mxu0
        %v471 = vadd.f32 0.0, %v470
        %472 = vmatmul.f32.gmra.mxu0 %v389
        %v473 = vpop.f32.mrf.mxu0
        %v474 = vadd.f32 0.0, %v473
        %475 = vmatmul.f32.gmra.mxu0 %v391
        %v476 = vpop.f32.mrf.mxu0
        %v477 = vadd.f32 0.0, %v476
        %478 = vmatmul.f32.gmra.mxu0 %v393
        %v479 = vpop.f32.mrf.mxu0
        %v480 = vadd.f32 0.0, %v479
        %481 = vdwg.mxu0
        %482 = vmatpush.msra.mxu0 0.0
        %483 = vmatpush.msra.mxu0 0.0
        %484 = vmatpush.msra.mxu0 0.0
        %485 = vmatpush.msra.mxu0 0.0
        %486 = vmatpush.msra.mxu0 0.0
        %487 = vmatpush.msra.mxu0 0.0
        %488 = vmatpush.msra.mxu0 0.0
        %489 = vmatpush.msra.mxu0 0.0
        %490 = vmatpush.msra.mxu0 0.0
        %491 = vmatpush.msra.mxu0 0.0
        %492 = vmatpush.msra.mxu0 0.0
        %493 = vmatpush.msra.mxu0 0.0
        %494 = vmatpush.msra.mxu0 %v381
        %495 = vmatpush.msra.mxu0 %v373
        %496 = vmatpush.msra.mxu0 %v365
        %497 = vmatpush.msra.mxu0 %v357
        %498 = vmatmul.f32.gmra.mxu0 %v387
        %v499 = vpop.f32.mrf.mxu0
        %v500 = vadd.f32 0.0, %v499
        %501 = vmatmul.f32.gmra.mxu0 %v389
        %v502 = vpop.f32.mrf.mxu0
        %v503 = vadd.f32 0.0, %v502
        %504 = vmatmul.f32.gmra.mxu0 %v391
        %v505 = vpop.f32.mrf.mxu0
        %v506 = vadd.f32 0.0, %v505
        %507 = vmatmul.f32.gmra.mxu0 %v393
        %v508 = vpop.f32.mrf.mxu0
        %v509 = vadd.f32 0.0, %v508
        %510 = vdwg.mxu0
        %511 = vmatpush.msra.mxu0 0.0
        %512 = vmatpush.msra.mxu0 0.0
        %513 = vmatpush.msra.mxu0 0.0
        %514 = vmatpush.msra.mxu0 0.0
        %515 = vmatpush.msra.mxu0 0.0
        %516 = vmatpush.msra.mxu0 0.0
        %517 = vmatpush.msra.mxu0 0.0
        %518 = vmatpush.msra.mxu0 0.0
        %519 = vmatpush.msra.mxu0 0.0
        %520 = vmatpush.msra.mxu0 0.0
        %521 = vmatpush.msra.mxu0 0.0
        %522 = vmatpush.msra.mxu0 0.0
        %523 = vmatpush.msra.mxu0 %v382
        %524 = vmatpush.msra.mxu0 %v374
        %525 = vmatpush.msra.mxu0 %v366
        %526 = vmatpush.msra.mxu0 %v358
        %527 = vmatmul.f32.gmra.mxu0 %v387
        %v528 = vpop.f32.mrf.mxu0
        %v529 = vadd.f32 0.0, %v528
        %530 = vmatmul.f32.gmra.mxu0 %v389
        %v531 = vpop.f32.mrf.mxu0
        %v532 = vadd.f32 0.0, %v531
        %533 = vmatmul.f32.gmra.mxu0 %v391
        %v534 = vpop.f32.mrf.mxu0
        %v535 = vadd.f32 0.0, %v534
        %536 = vmatmul.f32.gmra.mxu0 %v393
        %v537 = vpop.f32.mrf.mxu0
        %v538 = vadd.f32 0.0, %v537
        %539 = vdwg.mxu0
        %540 = vmatpush.msra.mxu0 0.0
        %541 = vmatpush.msra.mxu0 0.0
        %542 = vmatpush.msra.mxu0 0.0
        %543 = vmatpush.msra.mxu0 0.0
        %544 = vmatpush.msra.mxu0 0.0
        %545 = vmatpush.msra.mxu0 0.0
        %546 = vmatpush.msra.mxu0 0.0
        %547 = vmatpush.msra.mxu0 0.0
        %548 = vmatpush.msra.mxu0 0.0
        %549 = vmatpush.msra.mxu0 0.0
        %550 = vmatpush.msra.mxu0 0.0
        %551 = vmatpush.msra.mxu0 0.0
        %552 = vmatpush.msra.mxu0 %v383
        %553 = vmatpush.msra.mxu0 %v375
        %554 = vmatpush.msra.mxu0 %v367
        %555 = vmatpush.msra.mxu0 %v359
        %556 = vmatmul.f32.gmra.mxu0 %v387
        %v557 = vpop.f32.mrf.mxu0
        %v558 = vadd.f32 0.0, %v557
        %559 = vmatmul.f32.gmra.mxu0 %v389
        %v560 = vpop.f32.mrf.mxu0
        %v561 = vadd.f32 0.0, %v560
        %562 = vmatmul.f32.gmra.mxu0 %v391
        %v563 = vpop.f32.mrf.mxu0
        %v564 = vadd.f32 0.0, %v563
        %565 = vmatmul.f32.gmra.mxu0 %v393
        %v566 = vpop.f32.mrf.mxu0
        %v567 = vadd.f32 0.0, %v566
        %568 = vdwg.mxu0
        %569 = vmatpush.msra.mxu0 0.0
        %570 = vmatpush.msra.mxu0 0.0
        %571 = vmatpush.msra.mxu0 0.0
        %572 = vmatpush.msra.mxu0 0.0
        %573 = vmatpush.msra.mxu0 0.0
        %574 = vmatpush.msra.mxu0 0.0
        %575 = vmatpush.msra.mxu0 0.0
        %576 = vmatpush.msra.mxu0 0.0
        %577 = vmatpush.msra.mxu0 0.0
        %578 = vmatpush.msra.mxu0 0.0
        %579 = vmatpush.msra.mxu0 0.0
        %580 = vmatpush.msra.mxu0 0.0
        %581 = vmatpush.msra.mxu0 %v384
        %582 = vmatpush.msra.mxu0 %v376
        %583 = vmatpush.msra.mxu0 %v368
        %584 = vmatpush.msra.mxu0 %v360
        %585 = vmatmul.f32.gmra.mxu0 %v387
        %v586 = vpop.f32.mrf.mxu0
        %v587 = vadd.f32 0.0, %v586
        %588 = vmatmul.f32.gmra.mxu0 %v389
        %v589 = vpop.f32.mrf.mxu0
        %v590 = vadd.f32 0.0, %v589
        %591 = vmatmul.f32.gmra.mxu0 %v391
        %v592 = vpop.f32.mrf.mxu0
        %v593 = vadd.f32 0.0, %v592
        %594 = vmatmul.f32.gmra.mxu0 %v393
        %v595 = vpop.f32.mrf.mxu0
        %v596 = vadd.f32 0.0, %v595
        %597 = vdwg.mxu0
        %598 = vmatpush.msra.mxu0 0.0
        %599 = vmatpush.msra.mxu0 0.0
        %600 = vmatpush.msra.mxu0 0.0
        %601 = vmatpush.msra.mxu0 0.0
        %602 = vmatpush.msra.mxu0 0.0
        %603 = vmatpush.msra.mxu0 0.0
        %604 = vmatpush.msra.mxu0 0.0
        %605 = vmatpush.msra.mxu0 0.0
        %606 = vmatpush.msra.mxu0 0.0
        %607 = vmatpush.msra.mxu0 0.0
        %608 = vmatpush.msra.mxu0 0.0
        %609 = vmatpush.msra.mxu0 0.0
        %610 = vmatpush.msra.mxu0 %v385
        %611 = vmatpush.msra.mxu0 %v377
        %612 = vmatpush.msra.mxu0 %v369
        %613 = vmatpush.msra.mxu0 %v361
        %614 = vmatmul.f32.gmra.mxu0 %v387
        %v615 = vpop.f32.mrf.mxu0
        %v616 = vadd.f32 0.0, %v615
        %617 = vmatmul.f32.gmra.mxu0 %v389
        %v618 = vpop.f32.mrf.mxu0
        %v619 = vadd.f32 0.0, %v618
        %620 = vmatmul.f32.gmra.mxu0 %v391
        %v621 = vpop.f32.mrf.mxu0
        %v622 = vadd.f32 0.0, %v621
        %623 = vmatmul.f32.gmra.mxu0 %v393
        %v624 = vpop.f32.mrf.mxu0
        %v625 = vadd.f32 0.0, %v624
        %626 = vdwg.mxu0
        %v628 = vsel %vm386, %v310, 0
        %v630 = vsel %vm386, %v304, 0
        %v632 = vsel %vm386, %v306, 0
        %v634 = vsel %vm386, %v308, 0
        %636 = vmatpush.msra.mxu0 0.0
        %637 = vmatpush.msra.mxu0 0.0
        %638 = vmatpush.msra.mxu0 0.0
        %639 = vmatpush.msra.mxu0 0.0
        %640 = vmatpush.msra.mxu0 0.0
        %641 = vmatpush.msra.mxu0 0.0
        %642 = vmatpush.msra.mxu0 0.0
        %643 = vmatpush.msra.mxu0 0.0
        %644 = vmatpush.msra.mxu0 0.0
        %645 = vmatpush.msra.mxu0 0.0
        %646 = vmatpush.msra.mxu0 0.0
        %647 = vmatpush.msra.mxu0 0.0
        %648 = vmatpush.msra.mxu0 %v345
        %649 = vmatpush.msra.mxu0 %v337
        %650 = vmatpush.msra.mxu0 %v329
        %651 = vmatpush.msra.mxu0 %v321
        %652 = vmatmul.f32.gmra.mxu0 %v628
        %v653 = vpop.f32.mrf.mxu0
        %v654 = vadd.f32 %v413, %v653
        %655 = vmatmul.f32.gmra.mxu0 %v630
        %v656 = vpop.f32.mrf.mxu0
        %v657 = vadd.f32 %v416, %v656
        %658 = vmatmul.f32.gmra.mxu0 %v632
        %v659 = vpop.f32.mrf.mxu0
        %v660 = vadd.f32 %v419, %v659
        %661 = vmatmul.f32.gmra.mxu0 %v634
        %v662 = vpop.f32.mrf.mxu0
        %v663 = vadd.f32 %v422, %v662
        %664 = vdwg.mxu0
        %665 = vmatpush.msra.mxu0 0.0
        %666 = vmatpush.msra.mxu0 0.0
        %667 = vmatpush.msra.mxu0 0.0
        %668 = vmatpush.msra.mxu0 0.0
        %669 = vmatpush.msra.mxu0 0.0
        %670 = vmatpush.msra.mxu0 0.0
        %671 = vmatpush.msra.mxu0 0.0
        %672 = vmatpush.msra.mxu0 0.0
        %673 = vmatpush.msra.mxu0 0.0
        %674 = vmatpush.msra.mxu0 0.0
        %675 = vmatpush.msra.mxu0 0.0
        %676 = vmatpush.msra.mxu0 0.0
        %677 = vmatpush.msra.mxu0 %v346
        %678 = vmatpush.msra.mxu0 %v338
        %679 = vmatpush.msra.mxu0 %v330
        %680 = vmatpush.msra.mxu0 %v322
        %681 = vmatmul.f32.gmra.mxu0 %v628
        %v682 = vpop.f32.mrf.mxu0
        %v683 = vadd.f32 %v442, %v682
        %684 = vmatmul.f32.gmra.mxu0 %v630
        %v685 = vpop.f32.mrf.mxu0
        %v686 = vadd.f32 %v445, %v685
        %687 = vmatmul.f32.gmra.mxu0 %v632
        %v688 = vpop.f32.mrf.mxu0
        %v689 = vadd.f32 %v448, %v688
        %690 = vmatmul.f32.gmra.mxu0 %v634
        %v691 = vpop.f32.mrf.mxu0
        %v692 = vadd.f32 %v451, %v691
        %693 = vdwg.mxu0
        %694 = vmatpush.msra.mxu0 0.0
        %695 = vmatpush.msra.mxu0 0.0
        %696 = vmatpush.msra.mxu0 0.0
        %697 = vmatpush.msra.mxu0 0.0
        %698 = vmatpush.msra.mxu0 0.0
        %699 = vmatpush.msra.mxu0 0.0
        %700 = vmatpush.msra.mxu0 0.0
        %701 = vmatpush.msra.mxu0 0.0
        %702 = vmatpush.msra.mxu0 0.0
        %703 = vmatpush.msra.mxu0 0.0
        %704 = vmatpush.msra.mxu0 0.0
        %705 = vmatpush.msra.mxu0 0.0
        %706 = vmatpush.msra.mxu0 %v347
        %707 = vmatpush.msra.mxu0 %v339
        %708 = vmatpush.msra.mxu0 %v331
        %709 = vmatpush.msra.mxu0 %v323
        %710 = vmatmul.f32.gmra.mxu0 %v628
        %v711 = vpop.f32.mrf.mxu0
        %v712 = vadd.f32 %v471, %v711
        %713 = vmatmul.f32.gmra.mxu0 %v630
        %v714 = vpop.f32.mrf.mxu0
        %v715 = vadd.f32 %v474, %v714
        %716 = vmatmul.f32.gmra.mxu0 %v632
        %v717 = vpop.f32.mrf.mxu0
        %v718 = vadd.f32 %v477, %v717
        %719 = vmatmul.f32.gmra.mxu0 %v634
        %v720 = vpop.f32.mrf.mxu0
        %v721 = vadd.f32 %v480, %v720
        %722 = vdwg.mxu0
        %723 = vmatpush.msra.mxu0 0.0
        %724 = vmatpush.msra.mxu0 0.0
        %725 = vmatpush.msra.mxu0 0.0
        %726 = vmatpush.msra.mxu0 0.0
        %727 = vmatpush.msra.mxu0 0.0
        %728 = vmatpush.msra.mxu0 0.0
        %729 = vmatpush.msra.mxu0 0.0
        %730 = vmatpush.msra.mxu0 0.0
        %731 = vmatpush.msra.mxu0 0.0
        %732 = vmatpush.msra.mxu0 0.0
        %733 = vmatpush.msra.mxu0 0.0
        %734 = vmatpush.msra.mxu0 0.0
        %735 = vmatpush.msra.mxu0 %v348
        %736 = vmatpush.msra.mxu0 %v340
        %737 = vmatpush.msra.mxu0 %v332
        %738 = vmatpush.msra.mxu0 %v324
        %739 = vmatmul.f32.gmra.mxu0 %v628
        %v740 = vpop.f32.mrf.mxu0
        %v741 = vadd.f32 %v500, %v740
        %742 = vmatmul.f32.gmra.mxu0 %v630
        %v743 = vpop.f32.mrf.mxu0
        %v744 = vadd.f32 %v503, %v743
        %745 = vmatmul.f32.gmra.mxu0 %v632
        %v746 = vpop.f32.mrf.mxu0
        %v747 = vadd.f32 %v506, %v746
        %748 = vmatmul.f32.gmra.mxu0 %v634
        %v749 = vpop.f32.mrf.mxu0
        %v750 = vadd.f32 %v509, %v749
        %751 = vdwg.mxu0
        %752 = vmatpush.msra.mxu0 0.0
        %753 = vmatpush.msra.mxu0 0.0
        %754 = vmatpush.msra.mxu0 0.0
        %755 = vmatpush.msra.mxu0 0.0
        %756 = vmatpush.msra.mxu0 0.0
        %757 = vmatpush.msra.mxu0 0.0
        %758 = vmatpush.msra.mxu0 0.0
        %759 = vmatpush.msra.mxu0 0.0
        %760 = vmatpush.msra.mxu0 0.0
        %761 = vmatpush.msra.mxu0 0.0
        %762 = vmatpush.msra.mxu0 0.0
        %763 = vmatpush.msra.mxu0 0.0
        %764 = vmatpush.msra.mxu0 %v349
        %765 = vmatpush.msra.mxu0 %v341
        %766 = vmatpush.msra.mxu0 %v333
        %767 = vmatpush.msra.mxu0 %v325
        %768 = vmatmul.f32.gmra.mxu0 %v628
        %v769 = vpop.f32.mrf.mxu0
        %v770 = vadd.f32 %v529, %v769
        %771 = vmatmul.f32.gmra.mxu0 %v630
        %v772 = vpop.f32.mrf.mxu0
        %v773 = vadd.f32 %v532, %v772
        %774 = vmatmul.f32.gmra.mxu0 %v632
        %v775 = vpop.f32.mrf.mxu0
        %v776 = vadd.f32 %v535, %v775
        %777 = vmatmul.f32.gmra.mxu0 %v634
        %v778 = vpop.f32.mrf.mxu0
        %v779 = vadd.f32 %v538, %v778
        %780 = vdwg.mxu0
        %781 = vmatpush.msra.mxu0 0.0
        %782 = vmatpush.msra.mxu0 0.0
        %783 = vmatpush.msra.mxu0 0.0
        %784 = vmatpush.msra.mxu0 0.0
        %785 = vmatpush.msra.mxu0 0.0
        %786 = vmatpush.msra.mxu0 0.0
        %787 = vmatpush.msra.mxu0 0.0
        %788 = vmatpush.msra.mxu0 0.0
        %789 = vmatpush.msra.mxu0 0.0
        %790 = vmatpush.msra.mxu0 0.0
        %791 = vmatpush.msra.mxu0 0.0
        %792 = vmatpush.msra.mxu0 0.0
        %793 = vmatpush.msra.mxu0 %v350
        %794 = vmatpush.msra.mxu0 %v342
        %795 = vmatpush.msra.mxu0 %v334
        %796 = vmatpush.msra.mxu0 %v326
        %797 = vmatmul.f32.gmra.mxu0 %v628
        %v798 = vpop.f32.mrf.mxu0
        %v799 = vadd.f32 %v558, %v798
        %800 = vmatmul.f32.gmra.mxu0 %v630
        %v801 = vpop.f32.mrf.mxu0
        %v802 = vadd.f32 %v561, %v801
        %803 = vmatmul.f32.gmra.mxu0 %v632
        %v804 = vpop.f32.mrf.mxu0
        %v805 = vadd.f32 %v564, %v804
        %806 = vmatmul.f32.gmra.mxu0 %v634
        %v807 = vpop.f32.mrf.mxu0
        %v808 = vadd.f32 %v567, %v807
        %809 = vdwg.mxu0
        %810 = vmatpush.msra.mxu0 0.0
        %811 = vmatpush.msra.mxu0 0.0
        %812 = vmatpush.msra.mxu0 0.0
        %813 = vmatpush.msra.mxu0 0.0
        %814 = vmatpush.msra.mxu0 0.0
        %815 = vmatpush.msra.mxu0 0.0
        %816 = vmatpush.msra.mxu0 0.0
        %817 = vmatpush.msra.mxu0 0.0
        %818 = vmatpush.msra.mxu0 0.0
        %819 = vmatpush.msra.mxu0 0.0
        %820 = vmatpush.msra.mxu0 0.0
        %821 = vmatpush.msra.mxu0 0.0
        %822 = vmatpush.msra.mxu0 %v351
        %823 = vmatpush.msra.mxu0 %v343
        %824 = vmatpush.msra.mxu0 %v335
        %825 = vmatpush.msra.mxu0 %v327
        %826 = vmatmul.f32.gmra.mxu0 %v628
        %v827 = vpop.f32.mrf.mxu0
        %v828 = vadd.f32 %v587, %v827
        %829 = vmatmul.f32.gmra.mxu0 %v630
        %v830 = vpop.f32.mrf.mxu0
        %v831 = vadd.f32 %v590, %v830
        %832 = vmatmul.f32.gmra.mxu0 %v632
        %v833 = vpop.f32.mrf.mxu0
        %v834 = vadd.f32 %v593, %v833
        %835 = vmatmul.f32.gmra.mxu0 %v634
        %v836 = vpop.f32.mrf.mxu0
        %v837 = vadd.f32 %v596, %v836
        %838 = vdwg.mxu0
        %839 = vmatpush.msra.mxu0 0.0
        %840 = vmatpush.msra.mxu0 0.0
        %841 = vmatpush.msra.mxu0 0.0
        %842 = vmatpush.msra.mxu0 0.0
        %843 = vmatpush.msra.mxu0 0.0
        %844 = vmatpush.msra.mxu0 0.0
        %845 = vmatpush.msra.mxu0 0.0
        %846 = vmatpush.msra.mxu0 0.0
        %847 = vmatpush.msra.mxu0 0.0
        %848 = vmatpush.msra.mxu0 0.0
        %849 = vmatpush.msra.mxu0 0.0
        %850 = vmatpush.msra.mxu0 0.0
        %851 = vmatpush.msra.mxu0 %v352
        %852 = vmatpush.msra.mxu0 %v344
        %853 = vmatpush.msra.mxu0 %v336
        %854 = vmatpush.msra.mxu0 %v328
        %855 = vmatmul.f32.gmra.mxu0 %v628
        %v856 = vpop.f32.mrf.mxu0
        %v857 = vadd.f32 %v616, %v856
        %858 = vmatmul.f32.gmra.mxu0 %v630
        %v859 = vpop.f32.mrf.mxu0
        %v860 = vadd.f32 %v619, %v859
        %861 = vmatmul.f32.gmra.mxu0 %v632
        %v862 = vpop.f32.mrf.mxu0
        %v863 = vadd.f32 %v622, %v862
        %864 = vmatmul.f32.gmra.mxu0 %v634
        %v865 = vpop.f32.mrf.mxu0
        %v866 = vadd.f32 %v625, %v865
        %867 = vdwg.mxu0
        %s868 = scalar_lea.vmem [#allocation5], 512
        %v869 = vld [vmem:[%s868] sm:$0xff]
        %v870 = vld [vmem:[%s868 + $0x8] sm:$0xff]
        %v871 = vld [vmem:[%s868 + $0x10] sm:$0xff]
        %v872 = vld [vmem:[%s868 + $0x18] sm:$0xff]
        %v873 = vld [vmem:[%s868 + $0x20] sm:$0xff]
        %v874 = vld [vmem:[%s868 + $0x28] sm:$0xff]
        %v875 = vld [vmem:[%s868 + $0x30] sm:$0xff]
        %v876 = vld [vmem:[%s868 + $0x38] sm:$0xff]
        %v877 = vld [vmem:[%s868 + $0x40] sm:$0xff]
        %v878 = vld [vmem:[%s868 + $0x48] sm:$0xff]
        %v879 = vld [vmem:[%s868 + $0x50] sm:$0xff]
        %v880 = vld [vmem:[%s868 + $0x58] sm:$0xff]
        %v881 = vld [vmem:[%s868 + $0x60] sm:$0xff]
        %v882 = vld [vmem:[%s868 + $0x68] sm:$0xff]
        %v883 = vld [vmem:[%s868 + $0x70] sm:$0xff]
        %v884 = vld [vmem:[%s868 + $0x78] sm:$0xff]
        %v885 = vld [vmem:[%s868 + $0x80] sm:$0xff]
        %v886 = vld [vmem:[%s868 + $0x88] sm:$0xff]
        %v887 = vld [vmem:[%s868 + $0x90] sm:$0xff]
        %v888 = vld [vmem:[%s868 + $0x98] sm:$0xff]
        %v889 = vld [vmem:[%s868 + $0xa0] sm:$0xff]
        %v890 = vld [vmem:[%s868 + $0xa8] sm:$0xff]
        %v891 = vld [vmem:[%s868 + $0xb0] sm:$0xff]
        %v892 = vld [vmem:[%s868 + $0xb8] sm:$0xff]
        %v893 = vld [vmem:[%s868 + $0xc0] sm:$0xff]
        %v894 = vld [vmem:[%s868 + $0xc8] sm:$0xff]
        %v895 = vld [vmem:[%s868 + $0xd0] sm:$0xff]
        %v896 = vld [vmem:[%s868 + $0xd8] sm:$0xff]
        %v897 = vld [vmem:[%s868 + $0xe0] sm:$0xff]
        %v898 = vld [vmem:[%s868 + $0xe8] sm:$0xff]
        %v899 = vld [vmem:[%s868 + $0xf0] sm:$0xff]
        %v900 = vld [vmem:[%s868 + $0xf8] sm:$0xff]
        %v901 = vsel %vm386, %v314, 0
        %v903 = vsel %vm386, %v316, 0
        %v905 = vsel %vm386, %v318, 0
        %v908 = vsel %vm386, %v320, 0
        %910 = vmatpush.msra.mxu0 0.0
        %911 = vmatpush.msra.mxu0 0.0
        %912 = vmatpush.msra.mxu0 0.0
        %913 = vmatpush.msra.mxu0 0.0
        %914 = vmatpush.msra.mxu0 0.0
        %915 = vmatpush.msra.mxu0 0.0
        %916 = vmatpush.msra.mxu0 0.0
        %917 = vmatpush.msra.mxu0 0.0
        %918 = vmatpush.msra.mxu0 0.0
        %919 = vmatpush.msra.mxu0 0.0
        %920 = vmatpush.msra.mxu0 0.0
        %921 = vmatpush.msra.mxu0 0.0
        %922 = vmatpush.msra.mxu0 %v893
        %923 = vmatpush.msra.mxu0 %v885
        %924 = vmatpush.msra.mxu0 %v877
        %925 = vmatpush.msra.mxu0 %v869
        %926 = vmatmul.f32.gmra.mxu0 %v901
        %v927 = vpop.f32.mrf.mxu0
        %v928 = vadd.f32 0.0, %v927
        %929 = vmatmul.f32.gmra.mxu0 %v903
        %v930 = vpop.f32.mrf.mxu0
        %v931 = vadd.f32 0.0, %v930
        %932 = vmatmul.f32.gmra.mxu0 %v905
        %v933 = vpop.f32.mrf.mxu0
        %v934 = vadd.f32 0.0, %v933
        %935 = vmatmul.f32.gmra.mxu0 %v908
        %v936 = vpop.f32.mrf.mxu0
        %v937 = vadd.f32 0.0, %v936
        %938 = vdwg.mxu0
        %939 = vmatpush.msra.mxu0 0.0
        %940 = vmatpush.msra.mxu0 0.0
        %941 = vmatpush.msra.mxu0 0.0
        %942 = vmatpush.msra.mxu0 0.0
        %943 = vmatpush.msra.mxu0 0.0
        %944 = vmatpush.msra.mxu0 0.0
        %945 = vmatpush.msra.mxu0 0.0
        %946 = vmatpush.msra.mxu0 0.0
        %947 = vmatpush.msra.mxu0 0.0
        %948 = vmatpush.msra.mxu0 0.0
        %949 = vmatpush.msra.mxu0 0.0
        %950 = vmatpush.msra.mxu0 0.0
        %951 = vmatpush.msra.mxu0 %v894
        %952 = vmatpush.msra.mxu0 %v886
        %953 = vmatpush.msra.mxu0 %v878
        %954 = vmatpush.msra.mxu0 %v870
        %955 = vmatmul.f32.gmra.mxu0 %v901
        %v956 = vpop.f32.mrf.mxu0
        %v957 = vadd.f32 0.0, %v956
        %958 = vmatmul.f32.gmra.mxu0 %v903
        %v959 = vpop.f32.mrf.mxu0
        %v960 = vadd.f32 0.0, %v959
        %961 = vmatmul.f32.gmra.mxu0 %v905
        %v962 = vpop.f32.mrf.mxu0
        %v963 = vadd.f32 0.0, %v962
        %964 = vmatmul.f32.gmra.mxu0 %v908
        %v965 = vpop.f32.mrf.mxu0
        %v966 = vadd.f32 0.0, %v965
        %967 = vdwg.mxu0
        %968 = vmatpush.msra.mxu0 0.0
        %969 = vmatpush.msra.mxu0 0.0
        %970 = vmatpush.msra.mxu0 0.0
        %971 = vmatpush.msra.mxu0 0.0
        %972 = vmatpush.msra.mxu0 0.0
        %973 = vmatpush.msra.mxu0 0.0
        %974 = vmatpush.msra.mxu0 0.0
        %975 = vmatpush.msra.mxu0 0.0
        %976 = vmatpush.msra.mxu0 0.0
        %977 = vmatpush.msra.mxu0 0.0
        %978 = vmatpush.msra.mxu0 0.0
        %979 = vmatpush.msra.mxu0 0.0
        %980 = vmatpush.msra.mxu0 %v895
        %981 = vmatpush.msra.mxu0 %v887
        %982 = vmatpush.msra.mxu0 %v879
        %983 = vmatpush.msra.mxu0 %v871
        %984 = vmatmul.f32.gmra.mxu0 %v901
        %v985 = vpop.f32.mrf.mxu0
        %v986 = vadd.f32 0.0, %v985
        %987 = vmatmul.f32.gmra.mxu0 %v903
        %v988 = vpop.f32.mrf.mxu0
        %v989 = vadd.f32 0.0, %v988
        %990 = vmatmul.f32.gmra.mxu0 %v905
        %v991 = vpop.f32.mrf.mxu0
        %v992 = vadd.f32 0.0, %v991
        %993 = vmatmul.f32.gmra.mxu0 %v908
        %v994 = vpop.f32.mrf.mxu0
        %v995 = vadd.f32 0.0, %v994
        %996 = vdwg.mxu0
        %997 = vmatpush.msra.mxu0 0.0
        %998 = vmatpush.msra.mxu0 0.0
        %999 = vmatpush.msra.mxu0 0.0
        %1000 = vmatpush.msra.mxu0 0.0
        %1001 = vmatpush.msra.mxu0 0.0
        %1002 = vmatpush.msra.mxu0 0.0
        %1003 = vmatpush.msra.mxu0 0.0
        %1004 = vmatpush.msra.mxu0 0.0
        %1005 = vmatpush.msra.mxu0 0.0
        %1006 = vmatpush.msra.mxu0 0.0
        %1007 = vmatpush.msra.mxu0 0.0
        %1008 = vmatpush.msra.mxu0 0.0
        %1009 = vmatpush.msra.mxu0 %v896
        %1010 = vmatpush.msra.mxu0 %v888
        %1011 = vmatpush.msra.mxu0 %v880
        %1012 = vmatpush.msra.mxu0 %v872
        %1013 = vmatmul.f32.gmra.mxu0 %v901
        %v1014 = vpop.f32.mrf.mxu0
        %v1015 = vadd.f32 0.0, %v1014
        %1016 = vmatmul.f32.gmra.mxu0 %v903
        %v1017 = vpop.f32.mrf.mxu0
        %v1018 = vadd.f32 0.0, %v1017
        %1019 = vmatmul.f32.gmra.mxu0 %v905
        %v1020 = vpop.f32.mrf.mxu0
        %v1021 = vadd.f32 0.0, %v1020
        %1022 = vmatmul.f32.gmra.mxu0 %v908
        %v1023 = vpop.f32.mrf.mxu0
        %v1024 = vadd.f32 0.0, %v1023
        %1025 = vdwg.mxu0
        %1026 = vmatpush.msra.mxu0 0.0
        %1027 = vmatpush.msra.mxu0 0.0
        %1028 = vmatpush.msra.mxu0 0.0
        %1029 = vmatpush.msra.mxu0 0.0
        %1030 = vmatpush.msra.mxu0 0.0
        %1031 = vmatpush.msra.mxu0 0.0
        %1032 = vmatpush.msra.mxu0 0.0
        %1033 = vmatpush.msra.mxu0 0.0
        %1034 = vmatpush.msra.mxu0 0.0
        %1035 = vmatpush.msra.mxu0 0.0
        %1036 = vmatpush.msra.mxu0 0.0
        %1037 = vmatpush.msra.mxu0 0.0
        %1038 = vmatpush.msra.mxu0 %v897
        %1039 = vmatpush.msra.mxu0 %v889
        %1040 = vmatpush.msra.mxu0 %v881
        %1041 = vmatpush.msra.mxu0 %v873
        %1042 = vmatmul.f32.gmra.mxu0 %v901
        %v1043 = vpop.f32.mrf.mxu0
        %v1044 = vadd.f32 0.0, %v1043
        %1045 = vmatmul.f32.gmra.mxu0 %v903
        %v1046 = vpop.f32.mrf.mxu0
        %v1047 = vadd.f32 0.0, %v1046
        %1048 = vmatmul.f32.gmra.mxu0 %v905
        %v1049 = vpop.f32.mrf.mxu0
        %v1050 = vadd.f32 0.0, %v1049
        %1051 = vmatmul.f32.gmra.mxu0 %v908
        %v1052 = vpop.f32.mrf.mxu0
        %v1053 = vadd.f32 0.0, %v1052
        %1054 = vdwg.mxu0
        %1055 = vmatpush.msra.mxu0 0.0
        %1056 = vmatpush.msra.mxu0 0.0
        %1057 = vmatpush.msra.mxu0 0.0
        %1058 = vmatpush.msra.mxu0 0.0
        %1059 = vmatpush.msra.mxu0 0.0
        %1060 = vmatpush.msra.mxu0 0.0
        %1061 = vmatpush.msra.mxu0 0.0
        %1062 = vmatpush.msra.mxu0 0.0
        %1063 = vmatpush.msra.mxu0 0.0
        %1064 = vmatpush.msra.mxu0 0.0
        %1065 = vmatpush.msra.mxu0 0.0
        %1066 = vmatpush.msra.mxu0 0.0
        %1067 = vmatpush.msra.mxu0 %v898
        %1068 = vmatpush.msra.mxu0 %v890
        %1069 = vmatpush.msra.mxu0 %v882
        %1070 = vmatpush.msra.mxu0 %v874
        %1071 = vmatmul.f32.gmra.mxu0 %v901
        %v1072 = vpop.f32.mrf.mxu0
        %v1073 = vadd.f32 0.0, %v1072
        %1074 = vmatmul.f32.gmra.mxu0 %v903
        %v1075 = vpop.f32.mrf.mxu0
        %v1076 = vadd.f32 0.0, %v1075
        %1077 = vmatmul.f32.gmra.mxu0 %v905
        %v1078 = vpop.f32.mrf.mxu0
        %v1079 = vadd.f32 0.0, %v1078
        %1080 = vmatmul.f32.gmra.mxu0 %v908
        %v1081 = vpop.f32.mrf.mxu0
        %v1082 = vadd.f32 0.0, %v1081
        %1083 = vdwg.mxu0
        %1084 = vmatpush.msra.mxu0 0.0
        %1085 = vmatpush.msra.mxu0 0.0
        %1086 = vmatpush.msra.mxu0 0.0
        %1087 = vmatpush.msra.mxu0 0.0
        %1088 = vmatpush.msra.mxu0 0.0
        %1089 = vmatpush.msra.mxu0 0.0
        %1090 = vmatpush.msra.mxu0 0.0
        %1091 = vmatpush.msra.mxu0 0.0
        %1092 = vmatpush.msra.mxu0 0.0
        %1093 = vmatpush.msra.mxu0 0.0
        %1094 = vmatpush.msra.mxu0 0.0
        %1095 = vmatpush.msra.mxu0 0.0
        %1096 = vmatpush.msra.mxu0 %v899
        %1097 = vmatpush.msra.mxu0 %v891
        %1098 = vmatpush.msra.mxu0 %v883
        %1099 = vmatpush.msra.mxu0 %v875
        %1100 = vmatmul.f32.gmra.mxu0 %v901
        %v1101 = vpop.f32.mrf.mxu0
        %v1102 = vadd.f32 0.0, %v1101
        %1103 = vmatmul.f32.gmra.mxu0 %v903
        %v1104 = vpop.f32.mrf.mxu0
        %v1105 = vadd.f32 0.0, %v1104
        %1106 = vmatmul.f32.gmra.mxu0 %v905
        %v1107 = vpop.f32.mrf.mxu0
        %v1108 = vadd.f32 0.0, %v1107
        %1109 = vmatmul.f32.gmra.mxu0 %v908
        %v1110 = vpop.f32.mrf.mxu0
        %v1111 = vadd.f32 0.0, %v1110
        %1112 = vdwg.mxu0
        %1113 = vmatpush.msra.mxu0 0.0
        %1114 = vmatpush.msra.mxu0 0.0
        %1115 = vmatpush.msra.mxu0 0.0
        %1116 = vmatpush.msra.mxu0 0.0
        %1117 = vmatpush.msra.mxu0 0.0
        %1118 = vmatpush.msra.mxu0 0.0
        %1119 = vmatpush.msra.mxu0 0.0
        %1120 = vmatpush.msra.mxu0 0.0
        %1121 = vmatpush.msra.mxu0 0.0
        %1122 = vmatpush.msra.mxu0 0.0
        %1123 = vmatpush.msra.mxu0 0.0
        %1124 = vmatpush.msra.mxu0 0.0
        %1125 = vmatpush.msra.mxu0 %v900
        %1126 = vmatpush.msra.mxu0 %v892
        %1127 = vmatpush.msra.mxu0 %v884
        %1128 = vmatpush.msra.mxu0 %v876
        %1129 = vmatmul.f32.gmra.mxu0 %v901
        %v1130 = vpop.f32.mrf.mxu0
        %v1131 = vadd.f32 0.0, %v1130
        %1132 = vmatmul.f32.gmra.mxu0 %v903
        %v1133 = vpop.f32.mrf.mxu0
        %v1134 = vadd.f32 0.0, %v1133
        %1135 = vmatmul.f32.gmra.mxu0 %v905
        %v1136 = vpop.f32.mrf.mxu0
        %v1137 = vadd.f32 0.0, %v1136
        %1138 = vmatmul.f32.gmra.mxu0 %v908
        %v1139 = vpop.f32.mrf.mxu0
        %v1140 = vadd.f32 0.0, %v1139
        %1141 = vdwg.mxu0
        %v1142 = vadd.f32 %v654, %v928
        %v1143 = vadd.f32 %v683, %v957
        %v1144 = vadd.f32 %v712, %v986
        %v1145 = vadd.f32 %v741, %v1015
        %v1146 = vadd.f32 %v770, %v1044
        %v1147 = vadd.f32 %v799, %v1073
        %v1148 = vadd.f32 %v828, %v1102
        %v1149 = vadd.f32 %v857, %v1131
        %v1150 = vadd.f32 %v657, %v931
        %v1151 = vadd.f32 %v686, %v960
        %v1152 = vadd.f32 %v715, %v989
        %v1153 = vadd.f32 %v744, %v1018
        %v1154 = vadd.f32 %v773, %v1047
        %v1155 = vadd.f32 %v802, %v1076
        %v1156 = vadd.f32 %v831, %v1105
        %v1157 = vadd.f32 %v860, %v1134
        %v1158 = vadd.f32 %v660, %v934
        %v1159 = vadd.f32 %v689, %v963
        %v1160 = vadd.f32 %v718, %v992
        %v1161 = vadd.f32 %v747, %v1021
        %v1162 = vadd.f32 %v776, %v1050
        %v1163 = vadd.f32 %v805, %v1079
        %v1164 = vadd.f32 %v834, %v1108
        %v1165 = vadd.f32 %v863, %v1137
        %v1166 = vadd.f32 %v663, %v937
        %v1167 = vadd.f32 %v692, %v966
        %v1168 = vadd.f32 %v721, %v995
        %v1169 = vadd.f32 %v750, %v1024
        %v1170 = vadd.f32 %v779, %v1053
        %v1171 = vadd.f32 %v808, %v1082
        %v1172 = vadd.f32 %v837, %v1111
        %v1173 = vadd.f32 %v866, %v1140
        %v1174 = vld [vmem:[#allocation7] sm:$0xff]
        %v1176 = vperm.slane %v1174, 0
        %v1177 = vperm.slane %v1174, 1
        %v1178 = vperm.slane %v1174, 2
        %v1179 = vperm.slane %v1174, 3
        %v1180 = vperm.slane %v1174, 4
        %v1181 = vperm.slane %v1174, 5
        %v1182 = vperm.slane %v1174, 6
        %v1183 = vperm.slane %v1174, 7
        %v1192 = vadd.f32 %v1142, %v1176
        %v1193 = vadd.f32 %v1143, %v1177
        %v1194 = vadd.f32 %v1144, %v1178
        %v1195 = vadd.f32 %v1145, %v1179
        %v1196 = vadd.f32 %v1146, %v1180
        %v1197 = vadd.f32 %v1147, %v1181
        %v1198 = vadd.f32 %v1148, %v1182
        %v1199 = vadd.f32 %v1149, %v1183
        %v1200 = vadd.f32 %v1150, %v1176
        %v1201 = vadd.f32 %v1151, %v1177
        %v1202 = vadd.f32 %v1152, %v1178
        %v1203 = vadd.f32 %v1153, %v1179
        %v1204 = vadd.f32 %v1154, %v1180
        %v1205 = vadd.f32 %v1155, %v1181
        %v1206 = vadd.f32 %v1156, %v1182
        %v1207 = vadd.f32 %v1157, %v1183
        %v1208 = vadd.f32 %v1158, %v1176
        %v1209 = vadd.f32 %v1159, %v1177
        %v1210 = vadd.f32 %v1160, %v1178
        %v1211 = vadd.f32 %v1161, %v1179
        %v1212 = vadd.f32 %v1162, %v1180
        %v1213 = vadd.f32 %v1163, %v1181
        %v1214 = vadd.f32 %v1164, %v1182
        %v1215 = vadd.f32 %v1165, %v1183
        %v1216 = vadd.f32 %v1166, %v1176
        %v1217 = vadd.f32 %v1167, %v1177
        %v1218 = vadd.f32 %v1168, %v1178
        %v1219 = vadd.f32 %v1169, %v1179
        %v1220 = vadd.f32 %v1170, %v1180
        %v1221 = vadd.f32 %v1171, %v1181
        %v1222 = vadd.f32 %v1172, %v1182
        %v1223 = vadd.f32 %v1173, %v1183
        %v1224 = vmax.f32 %v1192, 0.0
        %v1225 = vmax.f32 %v1193, 0.0
        %v1226 = vmax.f32 %v1194, 0.0
        %v1227 = vmax.f32 %v1195, 0.0
        %v1228 = vmax.f32 %v1196, 0.0
        %v1229 = vmax.f32 %v1197, 0.0
        %v1230 = vmax.f32 %v1198, 0.0
        %v1231 = vmax.f32 %v1199, 0.0
        %v1232 = vmax.f32 %v1200, 0.0
        %v1233 = vmax.f32 %v1201, 0.0
        %v1234 = vmax.f32 %v1202, 0.0
        %v1235 = vmax.f32 %v1203, 0.0
        %v1236 = vmax.f32 %v1204, 0.0
        %v1237 = vmax.f32 %v1205, 0.0
        %v1238 = vmax.f32 %v1206, 0.0
        %v1239 = vmax.f32 %v1207, 0.0
        %v1240 = vmax.f32 %v1208, 0.0
        %v1241 = vmax.f32 %v1209, 0.0
        %v1242 = vmax.f32 %v1210, 0.0
        %v1243 = vmax.f32 %v1211, 0.0
        %v1244 = vmax.f32 %v1212, 0.0
        %v1245 = vmax.f32 %v1213, 0.0
        %v1246 = vmax.f32 %v1214, 0.0
        %v1247 = vmax.f32 %v1215, 0.0
        %v1248 = vmax.f32 %v1216, 0.0
        %v1249 = vmax.f32 %v1217, 0.0
        %v1250 = vmax.f32 %v1218, 0.0
        %v1251 = vmax.f32 %v1219, 0.0
        %v1252 = vmax.f32 %v1220, 0.0
        %v1253 = vmax.f32 %v1221, 0.0
        %v1254 = vmax.f32 %v1222, 0.0
        %v1255 = vmax.f32 %v1223, 0.0
        %v1256 = vmax.f32 %v1224, %v1228
        %v1257 = vmax.f32 %v1225, %v1229
        %v1258 = vmax.f32 %v1226, %v1230
        %v1259 = vmax.f32 %v1227, %v1231
        %v1260 = vmax.f32 %v1232, %v1236
        %v1261 = vmax.f32 %v1233, %v1237
        %v1262 = vmax.f32 %v1234, %v1238
        %v1263 = vmax.f32 %v1235, %v1239
        %v1264 = vmax.f32 %v1240, %v1244
        %v1265 = vmax.f32 %v1241, %v1245
        %v1266 = vmax.f32 %v1242, %v1246
        %v1267 = vmax.f32 %v1243, %v1247
        %v1268 = vmax.f32 %v1248, %v1252
        %v1269 = vmax.f32 %v1249, %v1253
        %v1270 = vmax.f32 %v1250, %v1254
        %v1271 = vmax.f32 %v1251, %v1255
        %v1288 = vrot.slane %v1257, 6
        %v1289 = vrot.slane %v1258, 4
        %v1290 = vrot.slane %v1259, 2
        %v1291 = vrot.slane %v1261, 6
        %v1292 = vrot.slane %v1262, 4
        %v1293 = vrot.slane %v1263, 2
        %v1294 = vrot.slane %v1265, 6
        %v1295 = vrot.slane %v1266, 4
        %v1296 = vrot.slane %v1267, 2
        %v1297 = vrot.slane %v1269, 6
        %v1298 = vrot.slane %v1270, 4
        %v1299 = vrot.slane %v1271, 2
        %vm1300 = vcmask 1041408
        %v1301 = vsel %vm1300, %v1256, %v1288
        %vm1302 = vcmask 1045508
        %v1303 = vsel %vm1302, %v1289, %v1290
        %vm1304 = vcmask 1043456
        %v1305 = vsel %vm1304, %v1301, %v1303
        %vm1306 = vcmask 1043458
        %v1307 = vsel %vm1306, %v1256, %v1288
        %vm1308 = vcmask 1045504
        %v1309 = vsel %vm1308, %v1290, %v1289
        %vm1310 = vcmask 1045506
        %v1311 = vsel %vm1310, %v1307, %v1309
        %v1312 = vrot.slane %v1311, 2
        %v1313 = vsel %vm1302, %v1256, %v1288
        %v1314 = vsel %vm1300, %v1289, %v1290
        %v1315 = vsel %vm1304, %v1314, %v1313
        %v1316 = vrot.slane %v1315, 4
        %v1317 = vsel %vm1308, %v1288, %v1256
        %v1318 = vsel %vm1306, %v1289, %v1290
        %v1319 = vsel %vm1310, %v1318, %v1317
        %v1320 = vrot.slane %v1319, 6
        %v1321 = vsel %vm1300, %v1260, %v1291
        %v1322 = vsel %vm1302, %v1292, %v1293
        %v1323 = vsel %vm1304, %v1321, %v1322
        %v1324 = vsel %vm1306, %v1260, %v1291
        %v1325 = vsel %vm1308, %v1293, %v1292
        %v1326 = vsel %vm1310, %v1324, %v1325
        %v1327 = vrot.slane %v1326, 2
        %v1328 = vsel %vm1302, %v1260, %v1291
        %v1329 = vsel %vm1300, %v1292, %v1293
        %v1330 = vsel %vm1304, %v1329, %v1328
        %v1331 = vrot.slane %v1330, 4
        %v1332 = vsel %vm1308, %v1291, %v1260
        %v1333 = vsel %vm1306, %v1292, %v1293
        %v1334 = vsel %vm1310, %v1333, %v1332
        %v1335 = vrot.slane %v1334, 6
        %v1336 = vsel %vm1300, %v1264, %v1294
        %v1337 = vsel %vm1302, %v1295, %v1296
        %v1338 = vsel %vm1304, %v1336, %v1337
        %v1339 = vsel %vm1306, %v1264, %v1294
        %v1340 = vsel %vm1308, %v1296, %v1295
        %v1341 = vsel %vm1310, %v1339, %v1340
        %v1342 = vrot.slane %v1341, 2
        %v1343 = vsel %vm1302, %v1264, %v1294
        %v1344 = vsel %vm1300, %v1295, %v1296
        %v1345 = vsel %vm1304, %v1344, %v1343
        %v1346 = vrot.slane %v1345, 4
        %v1347 = vsel %vm1308, %v1294, %v1264
        %v1348 = vsel %vm1306, %v1295, %v1296
        %v1349 = vsel %vm1310, %v1348, %v1347
        %v1350 = vrot.slane %v1349, 6
        %v1351 = vsel %vm1300, %v1268, %v1297
        %v1352 = vsel %vm1302, %v1298, %v1299
        %v1353 = vsel %vm1304, %v1351, %v1352
        %v1354 = vsel %vm1306, %v1268, %v1297
        %v1355 = vsel %vm1308, %v1299, %v1298
        %v1356 = vsel %vm1310, %v1354, %v1355
        %v1357 = vrot.slane %v1356, 2
        %v1358 = vsel %vm1302, %v1268, %v1297
        %v1359 = vsel %vm1300, %v1298, %v1299
        %v1360 = vsel %vm1304, %v1359, %v1358
        %v1361 = vrot.slane %v1360, 4
        %v1362 = vsel %vm1308, %v1297, %v1268
        %v1363 = vsel %vm1306, %v1298, %v1299
        %v1364 = vsel %vm1310, %v1363, %v1362
        %v1365 = vrot.slane %v1364, 6
        %v1382 = vrot.slane %v1305, 7
        %v1383 = vrot.slane %v1382, 2
        %v1384 = vrot.slane %v1312, 7
        %v1385 = vrot.slane %v1384, 2
        %v1386 = vrot.slane %v1316, 7
        %v1387 = vrot.slane %v1386, 2
        %v1388 = vrot.slane %v1320, 7
        %v1389 = vrot.slane %v1388, 2
        %v1390 = vrot.slane %v1323, 7
        %v1391 = vrot.slane %v1390, 2
        %v1392 = vrot.slane %v1327, 7
        %v1393 = vrot.slane %v1392, 2
        %v1394 = vrot.slane %v1331, 7
        %v1395 = vrot.slane %v1394, 2
        %v1396 = vrot.slane %v1335, 7
        %v1397 = vrot.slane %v1396, 2
        %v1398 = vrot.slane %v1338, 7
        %v1399 = vrot.slane %v1398, 2
        %v1400 = vrot.slane %v1342, 7
        %v1401 = vrot.slane %v1400, 2
        %v1402 = vrot.slane %v1346, 7
        %v1403 = vrot.slane %v1402, 2
        %v1404 = vrot.slane %v1350, 7
        %v1405 = vrot.slane %v1404, 2
        %v1406 = vrot.slane %v1353, 7
        %v1407 = vrot.slane %v1406, 2
        %v1408 = vrot.slane %v1357, 7
        %v1409 = vrot.slane %v1408, 2
        %v1410 = vrot.slane %v1361, 7
        %v1411 = vrot.slane %v1410, 2
        %v1412 = vrot.slane %v1365, 7
        %v1413 = vrot.slane %v1412, 2
        %v1430 = vmax.f32 %v1305, %v1383
        %v1431 = vmax.f32 %v1312, %v1385
        %v1432 = vmax.f32 %v1316, %v1387
        %v1433 = vmax.f32 %v1320, %v1389
        %v1434 = vmax.f32 %v1323, %v1391
        %v1435 = vmax.f32 %v1327, %v1393
        %v1436 = vmax.f32 %v1331, %v1395
        %v1437 = vmax.f32 %v1335, %v1397
        %v1438 = vmax.f32 %v1338, %v1399
        %v1439 = vmax.f32 %v1342, %v1401
        %v1440 = vmax.f32 %v1346, %v1403
        %v1441 = vmax.f32 %v1350, %v1405
        %v1442 = vmax.f32 %v1353, %v1407
        %v1443 = vmax.f32 %v1357, %v1409
        %v1444 = vmax.f32 %v1361, %v1411
        %v1445 = vmax.f32 %v1365, %v1413
        %1446 = vst.msk [vmem:[#allocation2] sm:$0xff] %vm386, 0.0
        %1447 = vst.msk [vmem:[#allocation2 + $0x8] sm:$0xff] %vm386, 0.0
        %vm1448 = vcmask 254976
        %1449 = vst.msk [vmem:[#allocation2 + $0x10] sm:$0x3] %vm1448, 0.0
        %s1450 = scalar_lea.vmem [#allocation2], 408
        %1451 = vst.msk [vmem:[%s1450] sm:$0xff] %vm386, 0.0
        %1452 = vst.msk [vmem:[%s1450 + $0x8] sm:$0xff] %vm386, 0.0
        %1453 = vst.msk [vmem:[%s1450 + $0x10] sm:$0x3] %vm1448, 0.0
        %v1470 = vrot.slane %v1430, 2
        %v1471 = vrot.slane %v1431, 2
        %v1472 = vrot.slane %v1432, 2
        %v1473 = vrot.slane %v1433, 2
        %v1474 = vrot.slane %v1434, 2
        %v1475 = vrot.slane %v1435, 2
        %v1476 = vrot.slane %v1436, 2
        %v1477 = vrot.slane %v1437, 2
        %v1478 = vrot.slane %v1438, 2
        %v1479 = vrot.slane %v1439, 2
        %v1480 = vrot.slane %v1440, 2
        %v1481 = vrot.slane %v1441, 2
        %v1482 = vrot.slane %v1442, 2
        %v1483 = vrot.slane %v1443, 2
        %v1484 = vrot.slane %v1444, 2
        %v1485 = vrot.slane %v1445, 2
        %1486 = vrot.lane.b32.xlu0 %v1430, 96
        %v1487 = vpop.permute.xlu0 %1486
        %1488 = vrot.lane.b32.xlu0 %v1431, 96
        %v1489 = vpop.permute.xlu0 %1488
        %1490 = vrot.lane.b32.xlu0 %v1432, 96
        %v1491 = vpop.permute.xlu0 %1490
        %1492 = vrot.lane.b32.xlu0 %v1433, 96
        %v1493 = vpop.permute.xlu0 %1492
        %1494 = vrot.lane.b32.xlu0 %v1434, 96
        %v1495 = vpop.permute.xlu0 %1494
        %1496 = vrot.lane.b32.xlu0 %v1435, 96
        %v1497 = vpop.permute.xlu0 %1496
        %1498 = vrot.lane.b32.xlu0 %v1436, 96
        %v1499 = vpop.permute.xlu0 %1498
        %1500 = vrot.lane.b32.xlu0 %v1437, 96
        %v1501 = vpop.permute.xlu0 %1500
        %1502 = vrot.lane.b32.xlu0 %v1438, 96
        %v1503 = vpop.permute.xlu0 %1502
        %1504 = vrot.lane.b32.xlu0 %v1439, 96
        %v1505 = vpop.permute.xlu0 %1504
        %1506 = vrot.lane.b32.xlu0 %v1440, 96
        %v1507 = vpop.permute.xlu0 %1506
        %1508 = vrot.lane.b32.xlu0 %v1441, 96
        %v1509 = vpop.permute.xlu0 %1508
        %1510 = vrot.lane.b32.xlu0 %v1442, 96
        %v1511 = vpop.permute.xlu0 %1510
        %1512 = vrot.lane.b32.xlu0 %v1443, 96
        %v1513 = vpop.permute.xlu0 %1512
        %1514 = vrot.lane.b32.xlu0 %v1444, 96
        %v1515 = vpop.permute.xlu0 %1514
        %1516 = vrot.lane.b32.xlu0 %v1445, 96
        %v1517 = vpop.permute.xlu0 %1516
        %v1518 = vrot.slane %v1487, 2
        %v1519 = vrot.slane %v1489, 2
        %v1520 = vrot.slane %v1491, 2
        %v1521 = vrot.slane %v1493, 2
        %v1522 = vrot.slane %v1495, 2
        %v1523 = vrot.slane %v1497, 2
        %v1524 = vrot.slane %v1499, 2
        %v1525 = vrot.slane %v1501, 2
        %v1526 = vrot.slane %v1503, 2
        %v1527 = vrot.slane %v1505, 2
        %v1528 = vrot.slane %v1507, 2
        %v1529 = vrot.slane %v1509, 2
        %v1530 = vrot.slane %v1511, 2
        %v1531 = vrot.slane %v1513, 2
        %v1532 = vrot.slane %v1515, 2
        %v1533 = vrot.slane %v1517, 2
        %1534 = vrot.lane.b32.xlu0 %v1430, 64
        %v1535 = vpop.permute.xlu0 %1534
        %1536 = vrot.lane.b32.xlu0 %v1431, 64
        %v1537 = vpop.permute.xlu0 %1536
        %1538 = vrot.lane.b32.xlu0 %v1432, 64
        %v1539 = vpop.permute.xlu0 %1538
        %1540 = vrot.lane.b32.xlu0 %v1433, 64
        %v1541 = vpop.permute.xlu0 %1540
        %1542 = vrot.lane.b32.xlu0 %v1434, 64
        %v1543 = vpop.permute.xlu0 %1542
        %1544 = vrot.lane.b32.xlu0 %v1435, 64
        %v1545 = vpop.permute.xlu0 %1544
        %1546 = vrot.lane.b32.xlu0 %v1436, 64
        %v1547 = vpop.permute.xlu0 %1546
        %1548 = vrot.lane.b32.xlu0 %v1437, 64
        %v1549 = vpop.permute.xlu0 %1548
        %1550 = vrot.lane.b32.xlu0 %v1438, 64
        %v1551 = vpop.permute.xlu0 %1550
        %1552 = vrot.lane.b32.xlu0 %v1439, 64
        %v1553 = vpop.permute.xlu0 %1552
        %1554 = vrot.lane.b32.xlu0 %v1440, 64
        %v1555 = vpop.permute.xlu0 %1554
        %1556 = vrot.lane.b32.xlu0 %v1441, 64
        %v1557 = vpop.permute.xlu0 %1556
        %1558 = vrot.lane.b32.xlu0 %v1442, 64
        %v1559 = vpop.permute.xlu0 %1558
        %1560 = vrot.lane.b32.xlu0 %v1443, 64
        %v1561 = vpop.permute.xlu0 %1560
        %1562 = vrot.lane.b32.xlu0 %v1444, 64
        %v1563 = vpop.permute.xlu0 %1562
        %1564 = vrot.lane.b32.xlu0 %v1445, 64
        %v1565 = vpop.permute.xlu0 %1564
        %v1566 = vrot.slane %v1535, 2
        %v1567 = vrot.slane %v1537, 2
        %v1568 = vrot.slane %v1539, 2
        %v1569 = vrot.slane %v1541, 2
        %v1570 = vrot.slane %v1543, 2
        %v1571 = vrot.slane %v1545, 2
        %v1572 = vrot.slane %v1547, 2
        %v1573 = vrot.slane %v1549, 2
        %v1574 = vrot.slane %v1551, 2
        %v1575 = vrot.slane %v1553, 2
        %v1576 = vrot.slane %v1555, 2
        %v1577 = vrot.slane %v1557, 2
        %v1578 = vrot.slane %v1559, 2
        %v1579 = vrot.slane %v1561, 2
        %v1580 = vrot.slane %v1563, 2
        %v1581 = vrot.slane %v1565, 2
        %1582 = vrot.lane.b32.xlu0 %v1430, 32
        %v1583 = vpop.permute.xlu0 %1582
        %1584 = vrot.lane.b32.xlu0 %v1431, 32
        %v1585 = vpop.permute.xlu0 %1584
        %1586 = vrot.lane.b32.xlu0 %v1432, 32
        %v1587 = vpop.permute.xlu0 %1586
        %1588 = vrot.lane.b32.xlu0 %v1433, 32
        %v1589 = vpop.permute.xlu0 %1588
        %1590 = vrot.lane.b32.xlu0 %v1434, 32
        %v1591 = vpop.permute.xlu0 %1590
        %1592 = vrot.lane.b32.xlu0 %v1435, 32
        %v1593 = vpop.permute.xlu0 %1592
        %1594 = vrot.lane.b32.xlu0 %v1436, 32
        %v1595 = vpop.permute.xlu0 %1594
        %1596 = vrot.lane.b32.xlu0 %v1437, 32
        %v1597 = vpop.permute.xlu0 %1596
        %1598 = vrot.lane.b32.xlu0 %v1438, 32
        %v1599 = vpop.permute.xlu0 %1598
        %1600 = vrot.lane.b32.xlu0 %v1439, 32
        %v1601 = vpop.permute.xlu0 %1600
        %1602 = vrot.lane.b32.xlu0 %v1440, 32
        %v1603 = vpop.permute.xlu0 %1602
        %1604 = vrot.lane.b32.xlu0 %v1441, 32
        %v1605 = vpop.permute.xlu0 %1604
        %1606 = vrot.lane.b32.xlu0 %v1442, 32
        %v1607 = vpop.permute.xlu0 %1606
        %1608 = vrot.lane.b32.xlu0 %v1443, 32
        %v1609 = vpop.permute.xlu0 %1608
        %1610 = vrot.lane.b32.xlu0 %v1444, 32
        %v1611 = vpop.permute.xlu0 %1610
        %1612 = vrot.lane.b32.xlu0 %v1445, 32
        %v1613 = vpop.permute.xlu0 %1612
        %v1614 = vrot.slane %v1583, 2
        %v1615 = vrot.slane %v1585, 2
        %v1616 = vrot.slane %v1587, 2
        %v1617 = vrot.slane %v1589, 2
        %v1618 = vrot.slane %v1591, 2
        %v1619 = vrot.slane %v1593, 2
        %v1620 = vrot.slane %v1595, 2
        %v1621 = vrot.slane %v1597, 2
        %v1622 = vrot.slane %v1599, 2
        %v1623 = vrot.slane %v1601, 2
        %v1624 = vrot.slane %v1603, 2
        %v1625 = vrot.slane %v1605, 2
        %v1626 = vrot.slane %v1607, 2
        %v1627 = vrot.slane %v1609, 2
        %v1628 = vrot.slane %v1611, 2
        %v1629 = vrot.slane %v1613, 2
        %v1630 = vrot.slane %v1430, 4
        %v1631 = vrot.slane %v1431, 4
        %v1632 = vrot.slane %v1432, 4
        %v1633 = vrot.slane %v1433, 4
        %v1634 = vrot.slane %v1434, 4
        %v1635 = vrot.slane %v1435, 4
        %v1636 = vrot.slane %v1436, 4
        %v1637 = vrot.slane %v1437, 4
        %v1638 = vrot.slane %v1438, 4
        %v1639 = vrot.slane %v1439, 4
        %v1640 = vrot.slane %v1440, 4
        %v1641 = vrot.slane %v1441, 4
        %v1642 = vrot.slane %v1442, 4
        %v1643 = vrot.slane %v1443, 4
        %v1644 = vrot.slane %v1444, 4
        %v1645 = vrot.slane %v1445, 4
        %v1646 = vrot.slane %v1487, 4
        %v1647 = vrot.slane %v1489, 4
        %v1648 = vrot.slane %v1491, 4
        %v1649 = vrot.slane %v1493, 4
        %v1650 = vrot.slane %v1495, 4
        %v1651 = vrot.slane %v1497, 4
        %v1652 = vrot.slane %v1499, 4
        %v1653 = vrot.slane %v1501, 4
        %v1654 = vrot.slane %v1503, 4
        %v1655 = vrot.slane %v1505, 4
        %v1656 = vrot.slane %v1507, 4
        %v1657 = vrot.slane %v1509, 4
        %v1658 = vrot.slane %v1511, 4
        %v1659 = vrot.slane %v1513, 4
        %v1660 = vrot.slane %v1515, 4
        %v1661 = vrot.slane %v1517, 4
        %v1662 = vrot.slane %v1535, 4
        %v1663 = vrot.slane %v1537, 4
        %v1664 = vrot.slane %v1539, 4
        %v1665 = vrot.slane %v1541, 4
        %v1666 = vrot.slane %v1543, 4
        %v1667 = vrot.slane %v1545, 4
        %v1668 = vrot.slane %v1547, 4
        %v1669 = vrot.slane %v1549, 4
        %v1670 = vrot.slane %v1551, 4
        %v1671 = vrot.slane %v1553, 4
        %v1672 = vrot.slane %v1555, 4
        %v1673 = vrot.slane %v1557, 4
        %v1674 = vrot.slane %v1559, 4
        %v1675 = vrot.slane %v1561, 4
        %v1676 = vrot.slane %v1563, 4
        %v1677 = vrot.slane %v1565, 4
        %v1678 = vrot.slane %v1583, 4
        %v1679 = vrot.slane %v1585, 4
        %v1680 = vrot.slane %v1587, 4
        %v1681 = vrot.slane %v1589, 4
        %v1682 = vrot.slane %v1591, 4
        %v1683 = vrot.slane %v1593, 4
        %v1684 = vrot.slane %v1595, 4
        %v1685 = vrot.slane %v1597, 4
        %v1686 = vrot.slane %v1599, 4
        %v1687 = vrot.slane %v1601, 4
        %v1688 = vrot.slane %v1603, 4
        %v1689 = vrot.slane %v1605, 4
        %v1690 = vrot.slane %v1607, 4
        %v1691 = vrot.slane %v1609, 4
        %v1692 = vrot.slane %v1611, 4
        %v1693 = vrot.slane %v1613, 4
        %v1694 = vrot.slane %v1430, 6
        %v1695 = vrot.slane %v1431, 6
        %v1696 = vrot.slane %v1432, 6
        %v1697 = vrot.slane %v1433, 6
        %v1698 = vrot.slane %v1434, 6
        %v1699 = vrot.slane %v1435, 6
        %v1700 = vrot.slane %v1436, 6
        %v1701 = vrot.slane %v1437, 6
        %v1702 = vrot.slane %v1438, 6
        %v1703 = vrot.slane %v1439, 6
        %v1704 = vrot.slane %v1440, 6
        %v1705 = vrot.slane %v1441, 6
        %v1706 = vrot.slane %v1442, 6
        %v1707 = vrot.slane %v1443, 6
        %v1708 = vrot.slane %v1444, 6
        %v1709 = vrot.slane %v1445, 6
        %v1710 = vrot.slane %v1487, 6
        %v1711 = vrot.slane %v1489, 6
        %v1712 = vrot.slane %v1491, 6
        %v1713 = vrot.slane %v1493, 6
        %v1714 = vrot.slane %v1495, 6
        %v1715 = vrot.slane %v1497, 6
        %v1716 = vrot.slane %v1499, 6
        %v1717 = vrot.slane %v1501, 6
        %v1718 = vrot.slane %v1503, 6
        %v1719 = vrot.slane %v1505, 6
        %v1720 = vrot.slane %v1507, 6
        %v1721 = vrot.slane %v1509, 6
        %v1722 = vrot.slane %v1511, 6
        %v1723 = vrot.slane %v1513, 6
        %v1724 = vrot.slane %v1515, 6
        %v1725 = vrot.slane %v1517, 6
        %v1726 = vrot.slane %v1535, 6
        %v1727 = vrot.slane %v1537, 6
        %v1728 = vrot.slane %v1539, 6
        %v1729 = vrot.slane %v1541, 6
        %v1730 = vrot.slane %v1543, 6
        %v1731 = vrot.slane %v1545, 6
        %v1732 = vrot.slane %v1547, 6
        %v1733 = vrot.slane %v1549, 6
        %v1734 = vrot.slane %v1551, 6
        %v1735 = vrot.slane %v1553, 6
        %v1736 = vrot.slane %v1555, 6
        %v1737 = vrot.slane %v1557, 6
        %v1738 = vrot.slane %v1559, 6
        %v1739 = vrot.slane %v1561, 6
        %v1740 = vrot.slane %v1563, 6
        %v1741 = vrot.slane %v1565, 6
        %v1742 = vrot.slane %v1583, 6
        %v1743 = vrot.slane %v1585, 6
        %v1744 = vrot.slane %v1587, 6
        %v1745 = vrot.slane %v1589, 6
        %v1746 = vrot.slane %v1591, 6
        %v1747 = vrot.slane %v1593, 6
        %v1748 = vrot.slane %v1595, 6
        %v1749 = vrot.slane %v1597, 6
        %v1750 = vrot.slane %v1599, 6
        %v1751 = vrot.slane %v1601, 6
        %v1752 = vrot.slane %v1603, 6
        %v1753 = vrot.slane %v1605, 6
        %v1754 = vrot.slane %v1607, 6
        %v1755 = vrot.slane %v1609, 6
        %v1756 = vrot.slane %v1611, 6
        %v1757 = vrot.slane %v1613, 6
        %vm1758 = vcmask 1044484
        %v1759 = vsel %vm1758, %v1430, %v1430
        %vm1760 = vcmask 1046534
        %v1761 = vsel %vm1760, %v1430, %v1759
        %v1762 = vrot.slane %v1431, 7
        %vm1763 = vcmask 1041409
        %v1764 = vsel %vm1763, %v1762, %v1761
        %vm1765 = vcmask 1043459
        %v1766 = vsel %vm1765, %v1762, %v1764
        %vm1767 = vcmask 1045509
        %v1768 = vsel %vm1767, %v1762, %v1766
        %vm1769 = vcmask 1047559
        %v1770 = vsel %vm1769, %v1762, %v1768
        %v1771 = vsel %vm1758, %v1432, %v1432
        %v1772 = vsel %vm1760, %v1432, %v1771
        %v1773 = vrot.slane %v1433, 7
        %v1774 = vsel %vm1763, %v1773, %v1772
        %v1775 = vsel %vm1765, %v1773, %v1774
        %v1776 = vsel %vm1767, %v1773, %v1775
        %v1777 = vsel %vm1769, %v1773, %v1776
        %v1778 = vsel %vm1758, %v1434, %v1434
        %v1779 = vsel %vm1760, %v1434, %v1778
        %v1780 = vrot.slane %v1435, 7
        %v1781 = vsel %vm1763, %v1780, %v1779
        %v1782 = vsel %vm1765, %v1780, %v1781
        %v1783 = vsel %vm1767, %v1780, %v1782
        %v1784 = vsel %vm1769, %v1780, %v1783
        %v1785 = vsel %vm1758, %v1436, %v1436
        %v1786 = vsel %vm1760, %v1436, %v1785
        %v1787 = vrot.slane %v1437, 7
        %v1788 = vsel %vm1763, %v1787, %v1786
        %v1789 = vsel %vm1765, %v1787, %v1788
        %v1790 = vsel %vm1767, %v1787, %v1789
        %v1791 = vsel %vm1769, %v1787, %v1790
        %v1792 = vsel %vm1758, %v1438, %v1438
        %v1793 = vsel %vm1760, %v1438, %v1792
        %v1794 = vrot.slane %v1439, 7
        %v1795 = vsel %vm1763, %v1794, %v1793
        %v1796 = vsel %vm1765, %v1794, %v1795
        %v1797 = vsel %vm1767, %v1794, %v1796
        %v1798 = vsel %vm1769, %v1794, %v1797
        %v1799 = vsel %vm1758, %v1440, %v1440
        %v1800 = vsel %vm1760, %v1440, %v1799
        %v1801 = vrot.slane %v1441, 7
        %v1802 = vsel %vm1763, %v1801, %v1800
        %v1803 = vsel %vm1765, %v1801, %v1802
        %v1804 = vsel %vm1767, %v1801, %v1803
        %v1805 = vsel %vm1769, %v1801, %v1804
        %v1806 = vsel %vm1758, %v1442, %v1442
        %v1807 = vsel %vm1760, %v1442, %v1806
        %v1808 = vrot.slane %v1443, 7
        %v1809 = vsel %vm1763, %v1808, %v1807
        %v1810 = vsel %vm1765, %v1808, %v1809
        %v1811 = vsel %vm1767, %v1808, %v1810
        %v1812 = vsel %vm1769, %v1808, %v1811
        %v1813 = vsel %vm1758, %v1444, %v1444
        %v1814 = vsel %vm1760, %v1444, %v1813
        %v1815 = vrot.slane %v1445, 7
        %v1816 = vsel %vm1763, %v1815, %v1814
        %v1817 = vsel %vm1765, %v1815, %v1816
        %v1818 = vsel %vm1767, %v1815, %v1817
        %v1819 = vsel %vm1769, %v1815, %v1818
        %v1820 = vsel %vm1758, %v1487, %v1487
        %v1821 = vsel %vm1760, %v1487, %v1820
        %v1822 = vrot.slane %v1489, 7
        %v1823 = vsel %vm1763, %v1822, %v1821
        %v1824 = vsel %vm1765, %v1822, %v1823
        %v1825 = vsel %vm1767, %v1822, %v1824
        %v1826 = vsel %vm1769, %v1822, %v1825
        %v1827 = vsel %vm1758, %v1491, %v1491
        %v1828 = vsel %vm1760, %v1491, %v1827
        %v1829 = vrot.slane %v1493, 7
        %v1830 = vsel %vm1763, %v1829, %v1828
        %v1831 = vsel %vm1765, %v1829, %v1830
        %v1832 = vsel %vm1767, %v1829, %v1831
        %v1833 = vsel %vm1769, %v1829, %v1832
        %v1834 = vsel %vm1758, %v1495, %v1495
        %v1835 = vsel %vm1760, %v1495, %v1834
        %v1836 = vrot.slane %v1497, 7
        %v1837 = vsel %vm1763, %v1836, %v1835
        %v1838 = vsel %vm1765, %v1836, %v1837
        %v1839 = vsel %vm1767, %v1836, %v1838
        %v1840 = vsel %vm1769, %v1836, %v1839
        %v1841 = vsel %vm1758, %v1499, %v1499
        %v1842 = vsel %vm1760, %v1499, %v1841
        %v1843 = vrot.slane %v1501, 7
        %v1844 = vsel %vm1763, %v1843, %v1842
        %v1845 = vsel %vm1765, %v1843, %v1844
        %v1846 = vsel %vm1767, %v1843, %v1845
        %v1847 = vsel %vm1769, %v1843, %v1846
        %v1848 = vsel %vm1758, %v1503, %v1503
        %v1849 = vsel %vm1760, %v1503, %v1848
        %v1850 = vrot.slane %v1505, 7
        %v1851 = vsel %vm1763, %v1850, %v1849
        %v1852 = vsel %vm1765, %v1850, %v1851
        %v1853 = vsel %vm1767, %v1850, %v1852
        %v1854 = vsel %vm1769, %v1850, %v1853
        %v1855 = vsel %vm1758, %v1507, %v1507
        %v1856 = vsel %vm1760, %v1507, %v1855
        %v1857 = vrot.slane %v1509, 7
        %v1858 = vsel %vm1763, %v1857, %v1856
        %v1859 = vsel %vm1765, %v1857, %v1858
        %v1860 = vsel %vm1767, %v1857, %v1859
        %v1861 = vsel %vm1769, %v1857, %v1860
        %v1862 = vsel %vm1758, %v1511, %v1511
        %v1863 = vsel %vm1760, %v1511, %v1862
        %v1864 = vrot.slane %v1513, 7
        %v1865 = vsel %vm1763, %v1864, %v1863
        %v1866 = vsel %vm1765, %v1864, %v1865
        %v1867 = vsel %vm1767, %v1864, %v1866
        %v1868 = vsel %vm1769, %v1864, %v1867
        %v1869 = vsel %vm1758, %v1515, %v1515
        %v1870 = vsel %vm1760, %v1515, %v1869
        %v1871 = vrot.slane %v1517, 7
        %v1872 = vsel %vm1763, %v1871, %v1870
        %v1873 = vsel %vm1765, %v1871, %v1872
        %v1874 = vsel %vm1767, %v1871, %v1873
        %v1875 = vsel %vm1769, %v1871, %v1874
        %v1876 = vsel %vm1758, %v1535, %v1535
        %v1877 = vsel %vm1760, %v1535, %v1876
        %v1878 = vrot.slane %v1537, 7
        %v1879 = vsel %vm1763, %v1878, %v1877
        %v1880 = vsel %vm1765, %v1878, %v1879
        %v1881 = vsel %vm1767, %v1878, %v1880
        %v1882 = vsel %vm1769, %v1878, %v1881
        %v1883 = vsel %vm1758, %v1539, %v1539
        %v1884 = vsel %vm1760, %v1539, %v1883
        %v1885 = vrot.slane %v1541, 7
        %v1886 = vsel %vm1763, %v1885, %v1884
        %v1887 = vsel %vm1765, %v1885, %v1886
        %v1888 = vsel %vm1767, %v1885, %v1887
        %v1889 = vsel %vm1769, %v1885, %v1888
        %v1890 = vsel %vm1758, %v1543, %v1543
        %v1891 = vsel %vm1760, %v1543, %v1890
        %v1892 = vrot.slane %v1545, 7
        %v1893 = vsel %vm1763, %v1892, %v1891
        %v1894 = vsel %vm1765, %v1892, %v1893
        %v1895 = vsel %vm1767, %v1892, %v1894
        %v1896 = vsel %vm1769, %v1892, %v1895
        %v1897 = vsel %vm1758, %v1547, %v1547
        %v1898 = vsel %vm1760, %v1547, %v1897
        %v1899 = vrot.slane %v1549, 7
        %v1900 = vsel %vm1763, %v1899, %v1898
        %v1901 = vsel %vm1765, %v1899, %v1900
        %v1902 = vsel %vm1767, %v1899, %v1901
        %v1903 = vsel %vm1769, %v1899, %v1902
        %v1904 = vsel %vm1758, %v1551, %v1551
        %v1905 = vsel %vm1760, %v1551, %v1904
        %v1906 = vrot.slane %v1553, 7
        %v1907 = vsel %vm1763, %v1906, %v1905
        %v1908 = vsel %vm1765, %v1906, %v1907
        %v1909 = vsel %vm1767, %v1906, %v1908
        %v1910 = vsel %vm1769, %v1906, %v1909
        %v1911 = vsel %vm1758, %v1555, %v1555
        %v1912 = vsel %vm1760, %v1555, %v1911
        %v1913 = vrot.slane %v1557, 7
        %v1914 = vsel %vm1763, %v1913, %v1912
        %v1915 = vsel %vm1765, %v1913, %v1914
        %v1916 = vsel %vm1767, %v1913, %v1915
        %v1917 = vsel %vm1769, %v1913, %v1916
        %v1918 = vsel %vm1758, %v1559, %v1559
        %v1919 = vsel %vm1760, %v1559, %v1918
        %v1920 = vrot.slane %v1561, 7
        %v1921 = vsel %vm1763, %v1920, %v1919
        %v1922 = vsel %vm1765, %v1920, %v1921
        %v1923 = vsel %vm1767, %v1920, %v1922
        %v1924 = vsel %vm1769, %v1920, %v1923
        %v1925 = vsel %vm1758, %v1563, %v1563
        %v1926 = vsel %vm1760, %v1563, %v1925
        %v1927 = vrot.slane %v1565, 7
        %v1928 = vsel %vm1763, %v1927, %v1926
        %v1929 = vsel %vm1765, %v1927, %v1928
        %v1930 = vsel %vm1767, %v1927, %v1929
        %v1931 = vsel %vm1769, %v1927, %v1930
        %v1932 = vsel %vm1758, %v1583, %v1583
        %v1933 = vsel %vm1760, %v1583, %v1932
        %v1934 = vrot.slane %v1585, 7
        %v1935 = vsel %vm1763, %v1934, %v1933
        %v1936 = vsel %vm1765, %v1934, %v1935
        %v1937 = vsel %vm1767, %v1934, %v1936
        %v1938 = vsel %vm1769, %v1934, %v1937
        %v1939 = vsel %vm1758, %v1587, %v1587
        %v1940 = vsel %vm1760, %v1587, %v1939
        %v1941 = vrot.slane %v1589, 7
        %v1942 = vsel %vm1763, %v1941, %v1940
        %v1943 = vsel %vm1765, %v1941, %v1942
        %v1944 = vsel %vm1767, %v1941, %v1943
        %v1945 = vsel %vm1769, %v1941, %v1944
        %v1946 = vsel %vm1758, %v1591, %v1591
        %v1947 = vsel %vm1760, %v1591, %v1946
        %v1948 = vrot.slane %v1593, 7
        %v1949 = vsel %vm1763, %v1948, %v1947
        %v1950 = vsel %vm1765, %v1948, %v1949
        %v1951 = vsel %vm1767, %v1948, %v1950
        %v1952 = vsel %vm1769, %v1948, %v1951
        %v1953 = vsel %vm1758, %v1595, %v1595
        %v1954 = vsel %vm1760, %v1595, %v1953
        %v1955 = vrot.slane %v1597, 7
        %v1956 = vsel %vm1763, %v1955, %v1954
        %v1957 = vsel %vm1765, %v1955, %v1956
        %v1958 = vsel %vm1767, %v1955, %v1957
        %v1959 = vsel %vm1769, %v1955, %v1958
        %v1960 = vsel %vm1758, %v1599, %v1599
        %v1961 = vsel %vm1760, %v1599, %v1960
        %v1962 = vrot.slane %v1601, 7
        %v1963 = vsel %vm1763, %v1962, %v1961
        %v1964 = vsel %vm1765, %v1962, %v1963
        %v1965 = vsel %vm1767, %v1962, %v1964
        %v1966 = vsel %vm1769, %v1962, %v1965
        %v1967 = vsel %vm1758, %v1603, %v1603
        %v1968 = vsel %vm1760, %v1603, %v1967
        %v1969 = vrot.slane %v1605, 7
        %v1970 = vsel %vm1763, %v1969, %v1968
        %v1971 = vsel %vm1765, %v1969, %v1970
        %v1972 = vsel %vm1767, %v1969, %v1971
        %v1973 = vsel %vm1769, %v1969, %v1972
        %v1974 = vsel %vm1758, %v1607, %v1607
        %v1975 = vsel %vm1760, %v1607, %v1974
        %v1976 = vrot.slane %v1609, 7
        %v1977 = vsel %vm1763, %v1976, %v1975
        %v1978 = vsel %vm1765, %v1976, %v1977
        %v1979 = vsel %vm1767, %v1976, %v1978
        %v1980 = vsel %vm1769, %v1976, %v1979
        %v1981 = vsel %vm1758, %v1611, %v1611
        %v1982 = vsel %vm1760, %v1611, %v1981
        %v1983 = vrot.slane %v1613, 7
        %v1984 = vsel %vm1763, %v1983, %v1982
        %v1985 = vsel %vm1765, %v1983, %v1984
        %v1986 = vsel %vm1767, %v1983, %v1985
        %v1987 = vsel %vm1769, %v1983, %v1986
        %v1988 = vsel %vm1758, %v1470, %v1470
        %v1989 = vsel %vm1760, %v1470, %v1988
        %v1990 = vrot.slane %v1471, 7
        %v1991 = vsel %vm1763, %v1990, %v1989
        %v1992 = vsel %vm1765, %v1990, %v1991
        %v1993 = vsel %vm1767, %v1990, %v1992
        %v1994 = vsel %vm1769, %v1990, %v1993
        %v1995 = vsel %vm1758, %v1472, %v1472
        %v1996 = vsel %vm1760, %v1472, %v1995
        %v1997 = vrot.slane %v1473, 7
        %v1998 = vsel %vm1763, %v1997, %v1996
        %v1999 = vsel %vm1765, %v1997, %v1998
        %v2000 = vsel %vm1767, %v1997, %v1999
        %v2001 = vsel %vm1769, %v1997, %v2000
        %v2002 = vsel %vm1758, %v1474, %v1474
        %v2003 = vsel %vm1760, %v1474, %v2002
        %v2004 = vrot.slane %v1475, 7
        %v2005 = vsel %vm1763, %v2004, %v2003
        %v2006 = vsel %vm1765, %v2004, %v2005
        %v2007 = vsel %vm1767, %v2004, %v2006
        %v2008 = vsel %vm1769, %v2004, %v2007
        %v2009 = vsel %vm1758, %v1476, %v1476
        %v2010 = vsel %vm1760, %v1476, %v2009
        %v2011 = vrot.slane %v1477, 7
        %v2012 = vsel %vm1763, %v2011, %v2010
        %v2013 = vsel %vm1765, %v2011, %v2012
        %v2014 = vsel %vm1767, %v2011, %v2013
        %v2015 = vsel %vm1769, %v2011, %v2014
        %v2016 = vsel %vm1758, %v1478, %v1478
        %v2017 = vsel %vm1760, %v1478, %v2016
        %v2018 = vrot.slane %v1479, 7
        %v2019 = vsel %vm1763, %v2018, %v2017
        %v2020 = vsel %vm1765, %v2018, %v2019
        %v2021 = vsel %vm1767, %v2018, %v2020
        %v2022 = vsel %vm1769, %v2018, %v2021
        %v2023 = vsel %vm1758, %v1480, %v1480
        %v2024 = vsel %vm1760, %v1480, %v2023
        %v2025 = vrot.slane %v1481, 7
        %v2026 = vsel %vm1763, %v2025, %v2024
        %v2027 = vsel %vm1765, %v2025, %v2026
        %v2028 = vsel %vm1767, %v2025, %v2027
        %v2029 = vsel %vm1769, %v2025, %v2028
        %v2030 = vsel %vm1758, %v1482, %v1482
        %v2031 = vsel %vm1760, %v1482, %v2030
        %v2032 = vrot.slane %v1483, 7
        %v2033 = vsel %vm1763, %v2032, %v2031
        %v2034 = vsel %vm1765, %v2032, %v2033
        %v2035 = vsel %vm1767, %v2032, %v2034
        %v2036 = vsel %vm1769, %v2032, %v2035
        %v2037 = vsel %vm1758, %v1484, %v1484
        %v2038 = vsel %vm1760, %v1484, %v2037
        %v2039 = vrot.slane %v1485, 7
        %v2040 = vsel %vm1763, %v2039, %v2038
        %v2041 = vsel %vm1765, %v2039, %v2040
        %v2042 = vsel %vm1767, %v2039, %v2041
        %v2043 = vsel %vm1769, %v2039, %v2042
        %v2044 = vsel %vm1758, %v1518, %v1518
        %v2045 = vsel %vm1760, %v1518, %v2044
        %v2046 = vrot.slane %v1519, 7
        %v2047 = vsel %vm1763, %v2046, %v2045
        %v2048 = vsel %vm1765, %v2046, %v2047
        %v2049 = vsel %vm1767, %v2046, %v2048
        %v2050 = vsel %vm1769, %v2046, %v2049
        %v2051 = vsel %vm1758, %v1520, %v1520
        %v2052 = vsel %vm1760, %v1520, %v2051
        %v2053 = vrot.slane %v1521, 7
        %v2054 = vsel %vm1763, %v2053, %v2052
        %v2055 = vsel %vm1765, %v2053, %v2054
        %v2056 = vsel %vm1767, %v2053, %v2055
        %v2057 = vsel %vm1769, %v2053, %v2056
        %v2058 = vsel %vm1758, %v1522, %v1522
        %v2059 = vsel %vm1760, %v1522, %v2058
        %v2060 = vrot.slane %v1523, 7
        %v2061 = vsel %vm1763, %v2060, %v2059
        %v2062 = vsel %vm1765, %v2060, %v2061
        %v2063 = vsel %vm1767, %v2060, %v2062
        %v2064 = vsel %vm1769, %v2060, %v2063
        %v2065 = vsel %vm1758, %v1524, %v1524
        %v2066 = vsel %vm1760, %v1524, %v2065
        %v2067 = vrot.slane %v1525, 7
        %v2068 = vsel %vm1763, %v2067, %v2066
        %v2069 = vsel %vm1765, %v2067, %v2068
        %v2070 = vsel %vm1767, %v2067, %v2069
        %v2071 = vsel %vm1769, %v2067, %v2070
        %v2072 = vsel %vm1758, %v1526, %v1526
        %v2073 = vsel %vm1760, %v1526, %v2072
        %v2074 = vrot.slane %v1527, 7
        %v2075 = vsel %vm1763, %v2074, %v2073
        %v2076 = vsel %vm1765, %v2074, %v2075
        %v2077 = vsel %vm1767, %v2074, %v2076
        %v2078 = vsel %vm1769, %v2074, %v2077
        %v2079 = vsel %vm1758, %v1528, %v1528
        %v2080 = vsel %vm1760, %v1528, %v2079
        %v2081 = vrot.slane %v1529, 7
        %v2082 = vsel %vm1763, %v2081, %v2080
        %v2083 = vsel %vm1765, %v2081, %v2082
        %v2084 = vsel %vm1767, %v2081, %v2083
        %v2085 = vsel %vm1769, %v2081, %v2084
        %v2086 = vsel %vm1758, %v1530, %v1530
        %v2087 = vsel %vm1760, %v1530, %v2086
        %v2088 = vrot.slane %v1531, 7
        %v2089 = vsel %vm1763, %v2088, %v2087
        %v2090 = vsel %vm1765, %v2088, %v2089
        %v2091 = vsel %vm1767, %v2088, %v2090
        %v2092 = vsel %vm1769, %v2088, %v2091
        %v2093 = vsel %vm1758, %v1532, %v1532
        %v2094 = vsel %vm1760, %v1532, %v2093
        %v2095 = vrot.slane %v1533, 7
        %v2096 = vsel %vm1763, %v2095, %v2094
        %v2097 = vsel %vm1765, %v2095, %v2096
        %v2098 = vsel %vm1767, %v2095, %v2097
        %v2099 = vsel %vm1769, %v2095, %v2098
        %v2100 = vsel %vm1758, %v1566, %v1566
        %v2101 = vsel %vm1760, %v1566, %v2100
        %v2102 = vrot.slane %v1567, 7
        %v2103 = vsel %vm1763, %v2102, %v2101
        %v2104 = vsel %vm1765, %v2102, %v2103
        %v2105 = vsel %vm1767, %v2102, %v2104
        %v2106 = vsel %vm1769, %v2102, %v2105
        %v2107 = vsel %vm1758, %v1568, %v1568
        %v2108 = vsel %vm1760, %v1568, %v2107
        %v2109 = vrot.slane %v1569, 7
        %v2110 = vsel %vm1763, %v2109, %v2108
        %v2111 = vsel %vm1765, %v2109, %v2110
        %v2112 = vsel %vm1767, %v2109, %v2111
        %v2113 = vsel %vm1769, %v2109, %v2112
        %v2114 = vsel %vm1758, %v1570, %v1570
        %v2115 = vsel %vm1760, %v1570, %v2114
        %v2116 = vrot.slane %v1571, 7
        %v2117 = vsel %vm1763, %v2116, %v2115
        %v2118 = vsel %vm1765, %v2116, %v2117
        %v2119 = vsel %vm1767, %v2116, %v2118
        %v2120 = vsel %vm1769, %v2116, %v2119
        %v2121 = vsel %vm1758, %v1572, %v1572
        %v2122 = vsel %vm1760, %v1572, %v2121
        %v2123 = vrot.slane %v1573, 7
        %v2124 = vsel %vm1763, %v2123, %v2122
        %v2125 = vsel %vm1765, %v2123, %v2124
        %v2126 = vsel %vm1767, %v2123, %v2125
        %v2127 = vsel %vm1769, %v2123, %v2126
        %v2128 = vsel %vm1758, %v1574, %v1574
        %v2129 = vsel %vm1760, %v1574, %v2128
        %v2130 = vrot.slane %v1575, 7
        %v2131 = vsel %vm1763, %v2130, %v2129
        %v2132 = vsel %vm1765, %v2130, %v2131
        %v2133 = vsel %vm1767, %v2130, %v2132
        %v2134 = vsel %vm1769, %v2130, %v2133
        %v2135 = vsel %vm1758, %v1576, %v1576
        %v2136 = vsel %vm1760, %v1576, %v2135
        %v2137 = vrot.slane %v1577, 7
        %v2138 = vsel %vm1763, %v2137, %v2136
        %v2139 = vsel %vm1765, %v2137, %v2138
        %v2140 = vsel %vm1767, %v2137, %v2139
        %v2141 = vsel %vm1769, %v2137, %v2140
        %v2142 = vsel %vm1758, %v1578, %v1578
        %v2143 = vsel %vm1760, %v1578, %v2142
        %v2144 = vrot.slane %v1579, 7
        %v2145 = vsel %vm1763, %v2144, %v2143
        %v2146 = vsel %vm1765, %v2144, %v2145
        %v2147 = vsel %vm1767, %v2144, %v2146
        %v2148 = vsel %vm1769, %v2144, %v2147
        %v2149 = vsel %vm1758, %v1580, %v1580
        %v2150 = vsel %vm1760, %v1580, %v2149
        %v2151 = vrot.slane %v1581, 7
        %v2152 = vsel %vm1763, %v2151, %v2150
        %v2153 = vsel %vm1765, %v2151, %v2152
        %v2154 = vsel %vm1767, %v2151, %v2153
        %v2155 = vsel %vm1769, %v2151, %v2154
        %v2156 = vsel %vm1758, %v1614, %v1614
        %v2157 = vsel %vm1760, %v1614, %v2156
        %v2158 = vrot.slane %v1615, 7
        %v2159 = vsel %vm1763, %v2158, %v2157
        %v2160 = vsel %vm1765, %v2158, %v2159
        %v2161 = vsel %vm1767, %v2158, %v2160
        %v2162 = vsel %vm1769, %v2158, %v2161
        %v2163 = vsel %vm1758, %v1616, %v1616
        %v2164 = vsel %vm1760, %v1616, %v2163
        %v2165 = vrot.slane %v1617, 7
        %v2166 = vsel %vm1763, %v2165, %v2164
        %v2167 = vsel %vm1765, %v2165, %v2166
        %v2168 = vsel %vm1767, %v2165, %v2167
        %v2169 = vsel %vm1769, %v2165, %v2168
        %v2170 = vsel %vm1758, %v1618, %v1618
        %v2171 = vsel %vm1760, %v1618, %v2170
        %v2172 = vrot.slane %v1619, 7
        %v2173 = vsel %vm1763, %v2172, %v2171
        %v2174 = vsel %vm1765, %v2172, %v2173
        %v2175 = vsel %vm1767, %v2172, %v2174
        %v2176 = vsel %vm1769, %v2172, %v2175
        %v2177 = vsel %vm1758, %v1620, %v1620
        %v2178 = vsel %vm1760, %v1620, %v2177
        %v2179 = vrot.slane %v1621, 7
        %v2180 = vsel %vm1763, %v2179, %v2178
        %v2181 = vsel %vm1765, %v2179, %v2180
        %v2182 = vsel %vm1767, %v2179, %v2181
        %v2183 = vsel %vm1769, %v2179, %v2182
        %v2184 = vsel %vm1758, %v1622, %v1622
        %v2185 = vsel %vm1760, %v1622, %v2184
        %v2186 = vrot.slane %v1623, 7
        %v2187 = vsel %vm1763, %v2186, %v2185
        %v2188 = vsel %vm1765, %v2186, %v2187
        %v2189 = vsel %vm1767, %v2186, %v2188
        %v2190 = vsel %vm1769, %v2186, %v2189
        %v2191 = vsel %vm1758, %v1624, %v1624
        %v2192 = vsel %vm1760, %v1624, %v2191
        %v2193 = vrot.slane %v1625, 7
        %v2194 = vsel %vm1763, %v2193, %v2192
        %v2195 = vsel %vm1765, %v2193, %v2194
        %v2196 = vsel %vm1767, %v2193, %v2195
        %v2197 = vsel %vm1769, %v2193, %v2196
        %v2198 = vsel %vm1758, %v1626, %v1626
        %v2199 = vsel %vm1760, %v1626, %v2198
        %v2200 = vrot.slane %v1627, 7
        %v2201 = vsel %vm1763, %v2200, %v2199
        %v2202 = vsel %vm1765, %v2200, %v2201
        %v2203 = vsel %vm1767, %v2200, %v2202
        %v2204 = vsel %vm1769, %v2200, %v2203
        %v2205 = vsel %vm1758, %v1628, %v1628
        %v2206 = vsel %vm1760, %v1628, %v2205
        %v2207 = vrot.slane %v1629, 7
        %v2208 = vsel %vm1763, %v2207, %v2206
        %v2209 = vsel %vm1765, %v2207, %v2208
        %v2210 = vsel %vm1767, %v2207, %v2209
        %v2211 = vsel %vm1769, %v2207, %v2210
        %v2212 = vsel %vm1758, %v1630, %v1630
        %v2213 = vsel %vm1760, %v1630, %v2212
        %v2214 = vrot.slane %v1631, 7
        %v2215 = vsel %vm1763, %v2214, %v2213
        %v2216 = vsel %vm1765, %v2214, %v2215
        %v2217 = vsel %vm1767, %v2214, %v2216
        %v2218 = vsel %vm1769, %v2214, %v2217
        %v2219 = vsel %vm1758, %v1632, %v1632
        %v2220 = vsel %vm1760, %v1632, %v2219
        %v2221 = vrot.slane %v1633, 7
        %v2222 = vsel %vm1763, %v2221, %v2220
        %v2223 = vsel %vm1765, %v2221, %v2222
        %v2224 = vsel %vm1767, %v2221, %v2223
        %v2225 = vsel %vm1769, %v2221, %v2224
        %v2226 = vsel %vm1758, %v1634, %v1634
        %v2227 = vsel %vm1760, %v1634, %v2226
        %v2228 = vrot.slane %v1635, 7
        %v2229 = vsel %vm1763, %v2228, %v2227
        %v2230 = vsel %vm1765, %v2228, %v2229
        %v2231 = vsel %vm1767, %v2228, %v2230
        %v2232 = vsel %vm1769, %v2228, %v2231
        %v2233 = vsel %vm1758, %v1636, %v1636
        %v2234 = vsel %vm1760, %v1636, %v2233
        %v2235 = vrot.slane %v1637, 7
        %v2236 = vsel %vm1763, %v2235, %v2234
        %v2237 = vsel %vm1765, %v2235, %v2236
        %v2238 = vsel %vm1767, %v2235, %v2237
        %v2239 = vsel %vm1769, %v2235, %v2238
        %v2240 = vsel %vm1758, %v1638, %v1638
        %v2241 = vsel %vm1760, %v1638, %v2240
        %v2242 = vrot.slane %v1639, 7
        %v2243 = vsel %vm1763, %v2242, %v2241
        %v2244 = vsel %vm1765, %v2242, %v2243
        %v2245 = vsel %vm1767, %v2242, %v2244
        %v2246 = vsel %vm1769, %v2242, %v2245
        %v2247 = vsel %vm1758, %v1640, %v1640
        %v2248 = vsel %vm1760, %v1640, %v2247
        %v2249 = vrot.slane %v1641, 7
        %v2250 = vsel %vm1763, %v2249, %v2248
        %v2251 = vsel %vm1765, %v2249, %v2250
        %v2252 = vsel %vm1767, %v2249, %v2251
        %v2253 = vsel %vm1769, %v2249, %v2252
        %v2254 = vsel %vm1758, %v1642, %v1642
        %v2255 = vsel %vm1760, %v1642, %v2254
        %v2256 = vrot.slane %v1643, 7
        %v2257 = vsel %vm1763, %v2256, %v2255
        %v2258 = vsel %vm1765, %v2256, %v2257
        %v2259 = vsel %vm1767, %v2256, %v2258
        %v2260 = vsel %vm1769, %v2256, %v2259
        %v2261 = vsel %vm1758, %v1644, %v1644
        %v2262 = vsel %vm1760, %v1644, %v2261
        %v2263 = vrot.slane %v1645, 7
        %v2264 = vsel %vm1763, %v2263, %v2262
        %v2265 = vsel %vm1765, %v2263, %v2264
        %v2266 = vsel %vm1767, %v2263, %v2265
        %v2267 = vsel %vm1769, %v2263, %v2266
        %v2268 = vsel %vm1758, %v1646, %v1646
        %v2269 = vsel %vm1760, %v1646, %v2268
        %v2270 = vrot.slane %v1647, 7
        %v2271 = vsel %vm1763, %v2270, %v2269
        %v2272 = vsel %vm1765, %v2270, %v2271
        %v2273 = vsel %vm1767, %v2270, %v2272
        %v2274 = vsel %vm1769, %v2270, %v2273
        %v2275 = vsel %vm1758, %v1648, %v1648
        %v2276 = vsel %vm1760, %v1648, %v2275
        %v2277 = vrot.slane %v1649, 7
        %v2278 = vsel %vm1763, %v2277, %v2276
        %v2279 = vsel %vm1765, %v2277, %v2278
        %v2280 = vsel %vm1767, %v2277, %v2279
        %v2281 = vsel %vm1769, %v2277, %v2280
        %v2282 = vsel %vm1758, %v1650, %v1650
        %v2283 = vsel %vm1760, %v1650, %v2282
        %v2284 = vrot.slane %v1651, 7
        %v2285 = vsel %vm1763, %v2284, %v2283
        %v2286 = vsel %vm1765, %v2284, %v2285
        %v2287 = vsel %vm1767, %v2284, %v2286
        %v2288 = vsel %vm1769, %v2284, %v2287
        %v2289 = vsel %vm1758, %v1652, %v1652
        %v2290 = vsel %vm1760, %v1652, %v2289
        %v2291 = vrot.slane %v1653, 7
        %v2292 = vsel %vm1763, %v2291, %v2290
        %v2293 = vsel %vm1765, %v2291, %v2292
        %v2294 = vsel %vm1767, %v2291, %v2293
        %v2295 = vsel %vm1769, %v2291, %v2294
        %v2296 = vsel %vm1758, %v1654, %v1654
        %v2297 = vsel %vm1760, %v1654, %v2296
        %v2298 = vrot.slane %v1655, 7
        %v2299 = vsel %vm1763, %v2298, %v2297
        %v2300 = vsel %vm1765, %v2298, %v2299
        %v2301 = vsel %vm1767, %v2298, %v2300
        %v2302 = vsel %vm1769, %v2298, %v2301
        %v2303 = vsel %vm1758, %v1656, %v1656
        %v2304 = vsel %vm1760, %v1656, %v2303
        %v2305 = vrot.slane %v1657, 7
        %v2306 = vsel %vm1763, %v2305, %v2304
        %v2307 = vsel %vm1765, %v2305, %v2306
        %v2308 = vsel %vm1767, %v2305, %v2307
        %v2309 = vsel %vm1769, %v2305, %v2308
        %v2310 = vsel %vm1758, %v1658, %v1658
        %v2311 = vsel %vm1760, %v1658, %v2310
        %v2312 = vrot.slane %v1659, 7
        %v2313 = vsel %vm1763, %v2312, %v2311
        %v2314 = vsel %vm1765, %v2312, %v2313
        %v2315 = vsel %vm1767, %v2312, %v2314
        %v2316 = vsel %vm1769, %v2312, %v2315
        %v2317 = vsel %vm1758, %v1660, %v1660
        %v2318 = vsel %vm1760, %v1660, %v2317
        %v2319 = vrot.slane %v1661, 7
        %v2320 = vsel %vm1763, %v2319, %v2318
        %v2321 = vsel %vm1765, %v2319, %v2320
        %v2322 = vsel %vm1767, %v2319, %v2321
        %v2323 = vsel %vm1769, %v2319, %v2322
        %v2324 = vsel %vm1758, %v1662, %v1662
        %v2325 = vsel %vm1760, %v1662, %v2324
        %v2326 = vrot.slane %v1663, 7
        %v2327 = vsel %vm1763, %v2326, %v2325
        %v2328 = vsel %vm1765, %v2326, %v2327
        %v2329 = vsel %vm1767, %v2326, %v2328
        %v2330 = vsel %vm1769, %v2326, %v2329
        %v2331 = vsel %vm1758, %v1664, %v1664
        %v2332 = vsel %vm1760, %v1664, %v2331
        %v2333 = vrot.slane %v1665, 7
        %v2334 = vsel %vm1763, %v2333, %v2332
        %v2335 = vsel %vm1765, %v2333, %v2334
        %v2336 = vsel %vm1767, %v2333, %v2335
        %v2337 = vsel %vm1769, %v2333, %v2336
        %v2338 = vsel %vm1758, %v1666, %v1666
        %v2339 = vsel %vm1760, %v1666, %v2338
        %v2340 = vrot.slane %v1667, 7
        %v2341 = vsel %vm1763, %v2340, %v2339
        %v2342 = vsel %vm1765, %v2340, %v2341
        %v2343 = vsel %vm1767, %v2340, %v2342
        %v2344 = vsel %vm1769, %v2340, %v2343
        %v2345 = vsel %vm1758, %v1668, %v1668
        %v2346 = vsel %vm1760, %v1668, %v2345
        %v2347 = vrot.slane %v1669, 7
        %v2348 = vsel %vm1763, %v2347, %v2346
        %v2349 = vsel %vm1765, %v2347, %v2348
        %v2350 = vsel %vm1767, %v2347, %v2349
        %v2351 = vsel %vm1769, %v2347, %v2350
        %v2352 = vsel %vm1758, %v1670, %v1670
        %v2353 = vsel %vm1760, %v1670, %v2352
        %v2354 = vrot.slane %v1671, 7
        %v2355 = vsel %vm1763, %v2354, %v2353
        %v2356 = vsel %vm1765, %v2354, %v2355
        %v2357 = vsel %vm1767, %v2354, %v2356
        %v2358 = vsel %vm1769, %v2354, %v2357
        %v2359 = vsel %vm1758, %v1672, %v1672
        %v2360 = vsel %vm1760, %v1672, %v2359
        %v2361 = vrot.slane %v1673, 7
        %v2362 = vsel %vm1763, %v2361, %v2360
        %v2363 = vsel %vm1765, %v2361, %v2362
        %v2364 = vsel %vm1767, %v2361, %v2363
        %v2365 = vsel %vm1769, %v2361, %v2364
        %v2366 = vsel %vm1758, %v1674, %v1674
        %v2367 = vsel %vm1760, %v1674, %v2366
        %v2368 = vrot.slane %v1675, 7
        %v2369 = vsel %vm1763, %v2368, %v2367
        %v2370 = vsel %vm1765, %v2368, %v2369
        %v2371 = vsel %vm1767, %v2368, %v2370
        %v2372 = vsel %vm1769, %v2368, %v2371
        %v2373 = vsel %vm1758, %v1676, %v1676
        %v2374 = vsel %vm1760, %v1676, %v2373
        %v2375 = vrot.slane %v1677, 7
        %v2376 = vsel %vm1763, %v2375, %v2374
        %v2377 = vsel %vm1765, %v2375, %v2376
        %v2378 = vsel %vm1767, %v2375, %v2377
        %v2379 = vsel %vm1769, %v2375, %v2378
        %v2380 = vsel %vm1758, %v1678, %v1678
        %v2381 = vsel %vm1760, %v1678, %v2380
        %v2382 = vrot.slane %v1679, 7
        %v2383 = vsel %vm1763, %v2382, %v2381
        %v2384 = vsel %vm1765, %v2382, %v2383
        %v2385 = vsel %vm1767, %v2382, %v2384
        %v2386 = vsel %vm1769, %v2382, %v2385
        %v2387 = vsel %vm1758, %v1680, %v1680
        %v2388 = vsel %vm1760, %v1680, %v2387
        %v2389 = vrot.slane %v1681, 7
        %v2390 = vsel %vm1763, %v2389, %v2388
        %v2391 = vsel %vm1765, %v2389, %v2390
        %v2392 = vsel %vm1767, %v2389, %v2391
        %v2393 = vsel %vm1769, %v2389, %v2392
        %v2394 = vsel %vm1758, %v1682, %v1682
        %v2395 = vsel %vm1760, %v1682, %v2394
        %v2396 = vrot.slane %v1683, 7
        %v2397 = vsel %vm1763, %v2396, %v2395
        %v2398 = vsel %vm1765, %v2396, %v2397
        %v2399 = vsel %vm1767, %v2396, %v2398
        %v2400 = vsel %vm1769, %v2396, %v2399
        %v2401 = vsel %vm1758, %v1684, %v1684
        %v2402 = vsel %vm1760, %v1684, %v2401
        %v2403 = vrot.slane %v1685, 7
        %v2404 = vsel %vm1763, %v2403, %v2402
        %v2405 = vsel %vm1765, %v2403, %v2404
        %v2406 = vsel %vm1767, %v2403, %v2405
        %v2407 = vsel %vm1769, %v2403, %v2406
        %v2408 = vsel %vm1758, %v1686, %v1686
        %v2409 = vsel %vm1760, %v1686, %v2408
        %v2410 = vrot.slane %v1687, 7
        %v2411 = vsel %vm1763, %v2410, %v2409
        %v2412 = vsel %vm1765, %v2410, %v2411
        %v2413 = vsel %vm1767, %v2410, %v2412
        %v2414 = vsel %vm1769, %v2410, %v2413
        %v2415 = vsel %vm1758, %v1688, %v1688
        %v2416 = vsel %vm1760, %v1688, %v2415
        %v2417 = vrot.slane %v1689, 7
        %v2418 = vsel %vm1763, %v2417, %v2416
        %v2419 = vsel %vm1765, %v2417, %v2418
        %v2420 = vsel %vm1767, %v2417, %v2419
        %v2421 = vsel %vm1769, %v2417, %v2420
        %v2422 = vsel %vm1758, %v1690, %v1690
        %v2423 = vsel %vm1760, %v1690, %v2422
        %v2424 = vrot.slane %v1691, 7
        %v2425 = vsel %vm1763, %v2424, %v2423
        %v2426 = vsel %vm1765, %v2424, %v2425
        %v2427 = vsel %vm1767, %v2424, %v2426
        %v2428 = vsel %vm1769, %v2424, %v2427
        %v2429 = vsel %vm1758, %v1692, %v1692
        %v2430 = vsel %vm1760, %v1692, %v2429
        %v2431 = vrot.slane %v1693, 7
        %v2432 = vsel %vm1763, %v2431, %v2430
        %v2433 = vsel %vm1765, %v2431, %v2432
        %v2434 = vsel %vm1767, %v2431, %v2433
        %v2435 = vsel %vm1769, %v2431, %v2434
        %v2436 = vsel %vm1758, %v1694, %v1694
        %v2437 = vsel %vm1760, %v1694, %v2436
        %v2438 = vrot.slane %v1695, 7
        %v2439 = vsel %vm1763, %v2438, %v2437
        %v2440 = vsel %vm1765, %v2438, %v2439
        %v2441 = vsel %vm1767, %v2438, %v2440
        %v2442 = vsel %vm1769, %v2438, %v2441
        %v2443 = vsel %vm1758, %v1696, %v1696
        %v2444 = vsel %vm1760, %v1696, %v2443
        %v2445 = vrot.slane %v1697, 7
        %v2446 = vsel %vm1763, %v2445, %v2444
        %v2447 = vsel %vm1765, %v2445, %v2446
        %v2448 = vsel %vm1767, %v2445, %v2447
        %v2449 = vsel %vm1769, %v2445, %v2448
        %v2450 = vsel %vm1758, %v1698, %v1698
        %v2451 = vsel %vm1760, %v1698, %v2450
        %v2452 = vrot.slane %v1699, 7
        %v2453 = vsel %vm1763, %v2452, %v2451
        %v2454 = vsel %vm1765, %v2452, %v2453
        %v2455 = vsel %vm1767, %v2452, %v2454
        %v2456 = vsel %vm1769, %v2452, %v2455
        %v2457 = vsel %vm1758, %v1700, %v1700
        %v2458 = vsel %vm1760, %v1700, %v2457
        %v2459 = vrot.slane %v1701, 7
        %v2460 = vsel %vm1763, %v2459, %v2458
        %v2461 = vsel %vm1765, %v2459, %v2460
        %v2462 = vsel %vm1767, %v2459, %v2461
        %v2463 = vsel %vm1769, %v2459, %v2462
        %v2464 = vsel %vm1758, %v1702, %v1702
        %v2465 = vsel %vm1760, %v1702, %v2464
        %v2466 = vrot.slane %v1703, 7
        %v2467 = vsel %vm1763, %v2466, %v2465
        %v2468 = vsel %vm1765, %v2466, %v2467
        %v2469 = vsel %vm1767, %v2466, %v2468
        %v2470 = vsel %vm1769, %v2466, %v2469
        %v2471 = vsel %vm1758, %v1704, %v1704
        %v2472 = vsel %vm1760, %v1704, %v2471
        %v2473 = vrot.slane %v1705, 7
        %v2474 = vsel %vm1763, %v2473, %v2472
        %v2475 = vsel %vm1765, %v2473, %v2474
        %v2476 = vsel %vm1767, %v2473, %v2475
        %v2477 = vsel %vm1769, %v2473, %v2476
        %v2478 = vsel %vm1758, %v1706, %v1706
        %v2479 = vsel %vm1760, %v1706, %v2478
        %v2480 = vrot.slane %v1707, 7
        %v2481 = vsel %vm1763, %v2480, %v2479
        %v2482 = vsel %vm1765, %v2480, %v2481
        %v2483 = vsel %vm1767, %v2480, %v2482
        %v2484 = vsel %vm1769, %v2480, %v2483
        %v2485 = vsel %vm1758, %v1708, %v1708
        %v2486 = vsel %vm1760, %v1708, %v2485
        %v2487 = vrot.slane %v1709, 7
        %v2488 = vsel %vm1763, %v2487, %v2486
        %v2489 = vsel %vm1765, %v2487, %v2488
        %v2490 = vsel %vm1767, %v2487, %v2489
        %v2491 = vsel %vm1769, %v2487, %v2490
        %v2492 = vsel %vm1758, %v1710, %v1710
        %v2493 = vsel %vm1760, %v1710, %v2492
        %v2494 = vrot.slane %v1711, 7
        %v2495 = vsel %vm1763, %v2494, %v2493
        %v2496 = vsel %vm1765, %v2494, %v2495
        %v2497 = vsel %vm1767, %v2494, %v2496
        %v2498 = vsel %vm1769, %v2494, %v2497
        %v2499 = vsel %vm1758, %v1712, %v1712
        %v2500 = vsel %vm1760, %v1712, %v2499
        %v2501 = vrot.slane %v1713, 7
        %v2502 = vsel %vm1763, %v2501, %v2500
        %v2503 = vsel %vm1765, %v2501, %v2502
        %v2504 = vsel %vm1767, %v2501, %v2503
        %v2505 = vsel %vm1769, %v2501, %v2504
        %v2506 = vsel %vm1758, %v1714, %v1714
        %v2507 = vsel %vm1760, %v1714, %v2506
        %v2508 = vrot.slane %v1715, 7
        %v2509 = vsel %vm1763, %v2508, %v2507
        %v2510 = vsel %vm1765, %v2508, %v2509
        %v2511 = vsel %vm1767, %v2508, %v2510
        %v2512 = vsel %vm1769, %v2508, %v2511
        %v2513 = vsel %vm1758, %v1716, %v1716
        %v2514 = vsel %vm1760, %v1716, %v2513
        %v2515 = vrot.slane %v1717, 7
        %v2516 = vsel %vm1763, %v2515, %v2514
        %v2517 = vsel %vm1765, %v2515, %v2516
        %v2518 = vsel %vm1767, %v2515, %v2517
        %v2519 = vsel %vm1769, %v2515, %v2518
        %v2520 = vsel %vm1758, %v1718, %v1718
        %v2521 = vsel %vm1760, %v1718, %v2520
        %v2522 = vrot.slane %v1719, 7
        %v2523 = vsel %vm1763, %v2522, %v2521
        %v2524 = vsel %vm1765, %v2522, %v2523
        %v2525 = vsel %vm1767, %v2522, %v2524
        %v2526 = vsel %vm1769, %v2522, %v2525
        %v2527 = vsel %vm1758, %v1720, %v1720
        %v2528 = vsel %vm1760, %v1720, %v2527
        %v2529 = vrot.slane %v1721, 7
        %v2530 = vsel %vm1763, %v2529, %v2528
        %v2531 = vsel %vm1765, %v2529, %v2530
        %v2532 = vsel %vm1767, %v2529, %v2531
        %v2533 = vsel %vm1769, %v2529, %v2532
        %v2534 = vsel %vm1758, %v1722, %v1722
        %v2535 = vsel %vm1760, %v1722, %v2534
        %v2536 = vrot.slane %v1723, 7
        %v2537 = vsel %vm1763, %v2536, %v2535
        %v2538 = vsel %vm1765, %v2536, %v2537
        %v2539 = vsel %vm1767, %v2536, %v2538
        %v2540 = vsel %vm1769, %v2536, %v2539
        %v2541 = vsel %vm1758, %v1724, %v1724
        %v2542 = vsel %vm1760, %v1724, %v2541
        %v2543 = vrot.slane %v1725, 7
        %v2544 = vsel %vm1763, %v2543, %v2542
        %v2545 = vsel %vm1765, %v2543, %v2544
        %v2546 = vsel %vm1767, %v2543, %v2545
        %v2547 = vsel %vm1769, %v2543, %v2546
        %v2548 = vsel %vm1758, %v1726, %v1726
        %v2549 = vsel %vm1760, %v1726, %v2548
        %v2550 = vrot.slane %v1727, 7
        %v2551 = vsel %vm1763, %v2550, %v2549
        %v2552 = vsel %vm1765, %v2550, %v2551
        %v2553 = vsel %vm1767, %v2550, %v2552
        %v2554 = vsel %vm1769, %v2550, %v2553
        %v2555 = vsel %vm1758, %v1728, %v1728
        %v2556 = vsel %vm1760, %v1728, %v2555
        %v2557 = vrot.slane %v1729, 7
        %v2558 = vsel %vm1763, %v2557, %v2556
        %v2559 = vsel %vm1765, %v2557, %v2558
        %v2560 = vsel %vm1767, %v2557, %v2559
        %v2561 = vsel %vm1769, %v2557, %v2560
        %v2562 = vsel %vm1758, %v1730, %v1730
        %v2563 = vsel %vm1760, %v1730, %v2562
        %v2564 = vrot.slane %v1731, 7
        %v2565 = vsel %vm1763, %v2564, %v2563
        %v2566 = vsel %vm1765, %v2564, %v2565
        %v2567 = vsel %vm1767, %v2564, %v2566
        %v2568 = vsel %vm1769, %v2564, %v2567
        %v2569 = vsel %vm1758, %v1732, %v1732
        %v2570 = vsel %vm1760, %v1732, %v2569
        %v2571 = vrot.slane %v1733, 7
        %v2572 = vsel %vm1763, %v2571, %v2570
        %v2573 = vsel %vm1765, %v2571, %v2572
        %v2574 = vsel %vm1767, %v2571, %v2573
        %v2575 = vsel %vm1769, %v2571, %v2574
        %v2576 = vsel %vm1758, %v1734, %v1734
        %v2577 = vsel %vm1760, %v1734, %v2576
        %v2578 = vrot.slane %v1735, 7
        %v2579 = vsel %vm1763, %v2578, %v2577
        %v2580 = vsel %vm1765, %v2578, %v2579
        %v2581 = vsel %vm1767, %v2578, %v2580
        %v2582 = vsel %vm1769, %v2578, %v2581
        %v2583 = vsel %vm1758, %v1736, %v1736
        %v2584 = vsel %vm1760, %v1736, %v2583
        %v2585 = vrot.slane %v1737, 7
        %v2586 = vsel %vm1763, %v2585, %v2584
        %v2587 = vsel %vm1765, %v2585, %v2586
        %v2588 = vsel %vm1767, %v2585, %v2587
        %v2589 = vsel %vm1769, %v2585, %v2588
        %v2590 = vsel %vm1758, %v1738, %v1738
        %v2591 = vsel %vm1760, %v1738, %v2590
        %v2592 = vrot.slane %v1739, 7
        %v2593 = vsel %vm1763, %v2592, %v2591
        %v2594 = vsel %vm1765, %v2592, %v2593
        %v2595 = vsel %vm1767, %v2592, %v2594
        %v2596 = vsel %vm1769, %v2592, %v2595
        %v2597 = vsel %vm1758, %v1740, %v1740
        %v2598 = vsel %vm1760, %v1740, %v2597
        %v2599 = vrot.slane %v1741, 7
        %v2600 = vsel %vm1763, %v2599, %v2598
        %v2601 = vsel %vm1765, %v2599, %v2600
        %v2602 = vsel %vm1767, %v2599, %v2601
        %v2603 = vsel %vm1769, %v2599, %v2602
        %v2604 = vsel %vm1758, %v1742, %v1742
        %v2605 = vsel %vm1760, %v1742, %v2604
        %v2606 = vrot.slane %v1743, 7
        %v2607 = vsel %vm1763, %v2606, %v2605
        %v2608 = vsel %vm1765, %v2606, %v2607
        %v2609 = vsel %vm1767, %v2606, %v2608
        %v2610 = vsel %vm1769, %v2606, %v2609
        %v2611 = vsel %vm1758, %v1744, %v1744
        %v2612 = vsel %vm1760, %v1744, %v2611
        %v2613 = vrot.slane %v1745, 7
        %v2614 = vsel %vm1763, %v2613, %v2612
        %v2615 = vsel %vm1765, %v2613, %v2614
        %v2616 = vsel %vm1767, %v2613, %v2615
        %v2617 = vsel %vm1769, %v2613, %v2616
        %v2618 = vsel %vm1758, %v1746, %v1746
        %v2619 = vsel %vm1760, %v1746, %v2618
        %v2620 = vrot.slane %v1747, 7
        %v2621 = vsel %vm1763, %v2620, %v2619
        %v2622 = vsel %vm1765, %v2620, %v2621
        %v2623 = vsel %vm1767, %v2620, %v2622
        %v2624 = vsel %vm1769, %v2620, %v2623
        %v2625 = vsel %vm1758, %v1748, %v1748
        %v2626 = vsel %vm1760, %v1748, %v2625
        %v2627 = vrot.slane %v1749, 7
        %v2628 = vsel %vm1763, %v2627, %v2626
        %v2629 = vsel %vm1765, %v2627, %v2628
        %v2630 = vsel %vm1767, %v2627, %v2629
        %v2631 = vsel %vm1769, %v2627, %v2630
        %v2632 = vsel %vm1758, %v1750, %v1750
        %v2633 = vsel %vm1760, %v1750, %v2632
        %v2634 = vrot.slane %v1751, 7
        %v2635 = vsel %vm1763, %v2634, %v2633
        %v2636 = vsel %vm1765, %v2634, %v2635
        %v2637 = vsel %vm1767, %v2634, %v2636
        %v2638 = vsel %vm1769, %v2634, %v2637
        %v2639 = vsel %vm1758, %v1752, %v1752
        %v2640 = vsel %vm1760, %v1752, %v2639
        %v2641 = vrot.slane %v1753, 7
        %v2642 = vsel %vm1763, %v2641, %v2640
        %v2643 = vsel %vm1765, %v2641, %v2642
        %v2644 = vsel %vm1767, %v2641, %v2643
        %v2645 = vsel %vm1769, %v2641, %v2644
        %v2646 = vsel %vm1758, %v1754, %v1754
        %v2647 = vsel %vm1760, %v1754, %v2646
        %v2648 = vrot.slane %v1755, 7
        %v2649 = vsel %vm1763, %v2648, %v2647
        %v2650 = vsel %vm1765, %v2648, %v2649
        %v2651 = vsel %vm1767, %v2648, %v2650
        %v2652 = vsel %vm1769, %v2648, %v2651
        %v2653 = vsel %vm1758, %v1756, %v1756
        %v2654 = vsel %vm1760, %v1756, %v2653
        %v2655 = vrot.slane %v1757, 7
        %v2656 = vsel %vm1763, %v2655, %v2654
        %v2657 = vsel %vm1765, %v2655, %v2656
        %v2658 = vsel %vm1767, %v2655, %v2657
        %v2659 = vsel %vm1769, %v2655, %v2658
        %v2788 = vrot.slane %v1826, 4
        %vm2789 = vcmask 1047556
        %v2790 = vsel %vm2789, %v2788, %v1770
        %v2792 = vunpack.c.l.s4 1934713408
        %v2793 = vunpack.c.0.s8 %v2792
        %v2794 = vperm.slane %v2790, %v2793
        %v2795 = vrot.slane %v2794, 4
        %v2796 = vsel %vm2789, 0.0, %v2795
        %v2797 = vrot.slane %v1938, 4
        %v2798 = vsel %vm2789, %v2797, %v1882
        %v2800 = vunpack.c.l.s4 1934713408
        %v2801 = vunpack.c.0.s8 %v2800
        %v2802 = vperm.slane %v2798, %v2801
        %v2803 = vrot.slane %v2802, 4
        %v2804 = vsel %vm2789, 0.0, %v2803
        %v2805 = vrot.slane %v2050, 4
        %v2806 = vsel %vm2789, %v2805, %v1994
        %v2808 = vunpack.c.l.s4 1934713408
        %v2809 = vunpack.c.0.s8 %v2808
        %v2810 = vperm.slane %v2806, %v2809
        %v2811 = vrot.slane %v2810, 4
        %v2812 = vsel %vm2789, 0.0, %v2811
        %v2813 = vrot.slane %v2162, 4
        %v2814 = vsel %vm2789, %v2813, %v2106
        %v2816 = vunpack.c.l.s4 1934713408
        %v2817 = vunpack.c.0.s8 %v2816
        %v2818 = vperm.slane %v2814, %v2817
        %v2819 = vrot.slane %v2818, 4
        %v2820 = vsel %vm2789, 0.0, %v2819
        %v2821 = vrot.slane %v2274, 4
        %v2822 = vsel %vm2789, %v2821, %v2218
        %v2824 = vunpack.c.l.s4 1934713408
        %v2825 = vunpack.c.0.s8 %v2824
        %v2826 = vperm.slane %v2822, %v2825
        %v2827 = vrot.slane %v2826, 4
        %v2828 = vsel %vm2789, 0.0, %v2827
        %v2829 = vrot.slane %v2386, 4
        %v2830 = vsel %vm2789, %v2829, %v2330
        %v2832 = vunpack.c.l.s4 1934713408
        %v2833 = vunpack.c.0.s8 %v2832
        %v2834 = vperm.slane %v2830, %v2833
        %v2835 = vrot.slane %v2834, 4
        %v2836 = vsel %vm2789, 0.0, %v2835
        %v2837 = vrot.slane %v2498, 4
        %v2838 = vsel %vm2789, %v2837, %v2442
        %v2840 = vunpack.c.l.s4 1934713408
        %v2841 = vunpack.c.0.s8 %v2840
        %v2842 = vperm.slane %v2838, %v2841
        %v2843 = vrot.slane %v2842, 4
        %v2844 = vsel %vm2789, 0.0, %v2843
        %v2845 = vrot.slane %v2610, 4
        %v2846 = vsel %vm2789, %v2845, %v2554
        %v2848 = vunpack.c.l.s4 1934713408
        %v2849 = vunpack.c.0.s8 %v2848
        %v2850 = vperm.slane %v2846, %v2849
        %v2851 = vrot.slane %v2850, 4
        %v2852 = vsel %vm2789, 0.0, %v2851
        %v2853 = vrot.slane %v1833, 4
        %v2854 = vsel %vm2789, %v2853, %v1777
        %v2856 = vunpack.c.l.s4 1934713408
        %v2857 = vunpack.c.0.s8 %v2856
        %v2858 = vperm.slane %v2854, %v2857
        %v2859 = vrot.slane %v2858, 4
        %v2860 = vsel %vm2789, 0.0, %v2859
        %v2861 = vrot.slane %v1945, 4
        %v2862 = vsel %vm2789, %v2861, %v1889
        %v2864 = vunpack.c.l.s4 1934713408
        %v2865 = vunpack.c.0.s8 %v2864
        %v2866 = vperm.slane %v2862, %v2865
        %v2867 = vrot.slane %v2866, 4
        %v2868 = vsel %vm2789, 0.0, %v2867
        %v2869 = vrot.slane %v2057, 4
        %v2870 = vsel %vm2789, %v2869, %v2001
        %v2872 = vunpack.c.l.s4 1934713408
        %v2873 = vunpack.c.0.s8 %v2872
        %v2874 = vperm.slane %v2870, %v2873
        %v2875 = vrot.slane %v2874, 4
        %v2876 = vsel %vm2789, 0.0, %v2875
        %v2877 = vrot.slane %v2169, 4
        %v2878 = vsel %vm2789, %v2877, %v2113
        %v2880 = vunpack.c.l.s4 1934713408
        %v2881 = vunpack.c.0.s8 %v2880
        %v2882 = vperm.slane %v2878, %v2881
        %v2883 = vrot.slane %v2882, 4
        %v2884 = vsel %vm2789, 0.0, %v2883
        %v2885 = vrot.slane %v2281, 4
        %v2886 = vsel %vm2789, %v2885, %v2225
        %v2888 = vunpack.c.l.s4 1934713408
        %v2889 = vunpack.c.0.s8 %v2888
        %v2890 = vperm.slane %v2886, %v2889
        %v2891 = vrot.slane %v2890, 4
        %v2892 = vsel %vm2789, 0.0, %v2891
        %v2893 = vrot.slane %v2393, 4
        %v2894 = vsel %vm2789, %v2893, %v2337
        %v2896 = vunpack.c.l.s4 1934713408
        %v2897 = vunpack.c.0.s8 %v2896
        %v2898 = vperm.slane %v2894, %v2897
        %v2899 = vrot.slane %v2898, 4
        %v2900 = vsel %vm2789, 0.0, %v2899
        %v2901 = vrot.slane %v2505, 4
        %v2902 = vsel %vm2789, %v2901, %v2449
        %v2904 = vunpack.c.l.s4 1934713408
        %v2905 = vunpack.c.0.s8 %v2904
        %v2906 = vperm.slane %v2902, %v2905
        %v2907 = vrot.slane %v2906, 4
        %v2908 = vsel %vm2789, 0.0, %v2907
        %v2909 = vrot.slane %v2617, 4
        %v2910 = vsel %vm2789, %v2909, %v2561
        %v2912 = vunpack.c.l.s4 1934713408
        %v2913 = vunpack.c.0.s8 %v2912
        %v2914 = vperm.slane %v2910, %v2913
        %v2915 = vrot.slane %v2914, 4
        %v2916 = vsel %vm2789, 0.0, %v2915
        %v2917 = vrot.slane %v1840, 4
        %v2918 = vsel %vm2789, %v2917, %v1784
        %v2920 = vunpack.c.l.s4 1934713408
        %v2921 = vunpack.c.0.s8 %v2920
        %v2922 = vperm.slane %v2918, %v2921
        %v2923 = vrot.slane %v2922, 4
        %v2924 = vsel %vm2789, 0.0, %v2923
        %v2925 = vrot.slane %v1952, 4
        %v2926 = vsel %vm2789, %v2925, %v1896
        %v2928 = vunpack.c.l.s4 1934713408
        %v2929 = vunpack.c.0.s8 %v2928
        %v2930 = vperm.slane %v2926, %v2929
        %v2931 = vrot.slane %v2930, 4
        %v2932 = vsel %vm2789, 0.0, %v2931
        %v2933 = vrot.slane %v2064, 4
        %v2934 = vsel %vm2789, %v2933, %v2008
        %v2936 = vunpack.c.l.s4 1934713408
        %v2937 = vunpack.c.0.s8 %v2936
        %v2938 = vperm.slane %v2934, %v2937
        %v2939 = vrot.slane %v2938, 4
        %v2940 = vsel %vm2789, 0.0, %v2939
        %v2941 = vrot.slane %v2176, 4
        %v2942 = vsel %vm2789, %v2941, %v2120
        %v2944 = vunpack.c.l.s4 1934713408
        %v2945 = vunpack.c.0.s8 %v2944
        %v2946 = vperm.slane %v2942, %v2945
        %v2947 = vrot.slane %v2946, 4
        %v2948 = vsel %vm2789, 0.0, %v2947
        %v2949 = vrot.slane %v2288, 4
        %v2950 = vsel %vm2789, %v2949, %v2232
        %v2952 = vunpack.c.l.s4 1934713408
        %v2953 = vunpack.c.0.s8 %v2952
        %v2954 = vperm.slane %v2950, %v2953
        %v2955 = vrot.slane %v2954, 4
        %v2956 = vsel %vm2789, 0.0, %v2955
        %v2957 = vrot.slane %v2400, 4
        %v2958 = vsel %vm2789, %v2957, %v2344
        %v2960 = vunpack.c.l.s4 1934713408
        %v2961 = vunpack.c.0.s8 %v2960
        %v2962 = vperm.slane %v2958, %v2961
        %v2963 = vrot.slane %v2962, 4
        %v2964 = vsel %vm2789, 0.0, %v2963
        %v2965 = vrot.slane %v2512, 4
        %v2966 = vsel %vm2789, %v2965, %v2456
        %v2968 = vunpack.c.l.s4 1934713408
        %v2969 = vunpack.c.0.s8 %v2968
        %v2970 = vperm.slane %v2966, %v2969
        %v2971 = vrot.slane %v2970, 4
        %v2972 = vsel %vm2789, 0.0, %v2971
        %v2973 = vrot.slane %v2624, 4
        %v2974 = vsel %vm2789, %v2973, %v2568
        %v2976 = vunpack.c.l.s4 1934713408
        %v2977 = vunpack.c.0.s8 %v2976
        %v2978 = vperm.slane %v2974, %v2977
        %v2979 = vrot.slane %v2978, 4
        %v2980 = vsel %vm2789, 0.0, %v2979
        %v2981 = vrot.slane %v1847, 4
        %v2982 = vsel %vm2789, %v2981, %v1791
        %v2984 = vunpack.c.l.s4 1934713408
        %v2985 = vunpack.c.0.s8 %v2984
        %v2986 = vperm.slane %v2982, %v2985
        %v2987 = vrot.slane %v2986, 4
        %v2988 = vsel %vm2789, 0.0, %v2987
        %v2989 = vrot.slane %v1959, 4
        %v2990 = vsel %vm2789, %v2989, %v1903
        %v2992 = vunpack.c.l.s4 1934713408
        %v2993 = vunpack.c.0.s8 %v2992
        %v2994 = vperm.slane %v2990, %v2993
        %v2995 = vrot.slane %v2994, 4
        %v2996 = vsel %vm2789, 0.0, %v2995
        %v2997 = vrot.slane %v2071, 4
        %v2998 = vsel %vm2789, %v2997, %v2015
        %v3000 = vunpack.c.l.s4 1934713408
        %v3001 = vunpack.c.0.s8 %v3000
        %v3002 = vperm.slane %v2998, %v3001
        %v3003 = vrot.slane %v3002, 4
        %v3004 = vsel %vm2789, 0.0, %v3003
        %v3005 = vrot.slane %v2183, 4
        %v3006 = vsel %vm2789, %v3005, %v2127
        %v3008 = vunpack.c.l.s4 1934713408
        %v3009 = vunpack.c.0.s8 %v3008
        %v3010 = vperm.slane %v3006, %v3009
        %v3011 = vrot.slane %v3010, 4
        %v3012 = vsel %vm2789, 0.0, %v3011
        %v3013 = vrot.slane %v2295, 4
        %v3014 = vsel %vm2789, %v3013, %v2239
        %v3016 = vunpack.c.l.s4 1934713408
        %v3017 = vunpack.c.0.s8 %v3016
        %v3018 = vperm.slane %v3014, %v3017
        %v3019 = vrot.slane %v3018, 4
        %v3020 = vsel %vm2789, 0.0, %v3019
        %v3021 = vrot.slane %v2407, 4
        %v3022 = vsel %vm2789, %v3021, %v2351
        %v3024 = vunpack.c.l.s4 1934713408
        %v3025 = vunpack.c.0.s8 %v3024
        %v3026 = vperm.slane %v3022, %v3025
        %v3027 = vrot.slane %v3026, 4
        %v3028 = vsel %vm2789, 0.0, %v3027
        %v3029 = vrot.slane %v2519, 4
        %v3030 = vsel %vm2789, %v3029, %v2463
        %v3032 = vunpack.c.l.s4 1934713408
        %v3033 = vunpack.c.0.s8 %v3032
        %v3034 = vperm.slane %v3030, %v3033
        %v3035 = vrot.slane %v3034, 4
        %v3036 = vsel %vm2789, 0.0, %v3035
        %v3037 = vrot.slane %v2631, 4
        %v3038 = vsel %vm2789, %v3037, %v2575
        %v3040 = vunpack.c.l.s4 1934713408
        %v3041 = vunpack.c.0.s8 %v3040
        %v3042 = vperm.slane %v3038, %v3041
        %v3043 = vrot.slane %v3042, 4
        %v3044 = vsel %vm2789, 0.0, %v3043
        %v3045 = vrot.slane %v1854, 4
        %v3046 = vsel %vm2789, %v3045, %v1798
        %v3048 = vunpack.c.l.s4 1934713408
        %v3049 = vunpack.c.0.s8 %v3048
        %v3050 = vperm.slane %v3046, %v3049
        %v3051 = vrot.slane %v3050, 4
        %v3052 = vsel %vm2789, 0.0, %v3051
        %v3053 = vrot.slane %v1966, 4
        %v3054 = vsel %vm2789, %v3053, %v1910
        %v3056 = vunpack.c.l.s4 1934713408
        %v3057 = vunpack.c.0.s8 %v3056
        %v3058 = vperm.slane %v3054, %v3057
        %v3059 = vrot.slane %v3058, 4
        %v3060 = vsel %vm2789, 0.0, %v3059
        %v3061 = vrot.slane %v2078, 4
        %v3062 = vsel %vm2789, %v3061, %v2022
        %v3064 = vunpack.c.l.s4 1934713408
        %v3065 = vunpack.c.0.s8 %v3064
        %v3066 = vperm.slane %v3062, %v3065
        %v3067 = vrot.slane %v3066, 4
        %v3068 = vsel %vm2789, 0.0, %v3067
        %v3069 = vrot.slane %v2190, 4
        %v3070 = vsel %vm2789, %v3069, %v2134
        %v3072 = vunpack.c.l.s4 1934713408
        %v3073 = vunpack.c.0.s8 %v3072
        %v3074 = vperm.slane %v3070, %v3073
        %v3075 = vrot.slane %v3074, 4
        %v3076 = vsel %vm2789, 0.0, %v3075
        %v3077 = vrot.slane %v2302, 4
        %v3078 = vsel %vm2789, %v3077, %v2246
        %v3080 = vunpack.c.l.s4 1934713408
        %v3081 = vunpack.c.0.s8 %v3080
        %v3082 = vperm.slane %v3078, %v3081
        %v3083 = vrot.slane %v3082, 4
        %v3084 = vsel %vm2789, 0.0, %v3083
        %v3085 = vrot.slane %v2414, 4
        %v3086 = vsel %vm2789, %v3085, %v2358
        %v3088 = vunpack.c.l.s4 1934713408
        %v3089 = vunpack.c.0.s8 %v3088
        %v3090 = vperm.slane %v3086, %v3089
        %v3091 = vrot.slane %v3090, 4
        %v3092 = vsel %vm2789, 0.0, %v3091
        %v3093 = vrot.slane %v2526, 4
        %v3094 = vsel %vm2789, %v3093, %v2470
        %v3096 = vunpack.c.l.s4 1934713408
        %v3097 = vunpack.c.0.s8 %v3096
        %v3098 = vperm.slane %v3094, %v3097
        %v3099 = vrot.slane %v3098, 4
        %v3100 = vsel %vm2789, 0.0, %v3099
        %v3101 = vrot.slane %v2638, 4
        %v3102 = vsel %vm2789, %v3101, %v2582
        %v3104 = vunpack.c.l.s4 1934713408
        %v3105 = vunpack.c.0.s8 %v3104
        %v3106 = vperm.slane %v3102, %v3105
        %v3107 = vrot.slane %v3106, 4
        %v3108 = vsel %vm2789, 0.0, %v3107
        %v3109 = vrot.slane %v1861, 4
        %v3110 = vsel %vm2789, %v3109, %v1805
        %v3112 = vunpack.c.l.s4 1934713408
        %v3113 = vunpack.c.0.s8 %v3112
        %v3114 = vperm.slane %v3110, %v3113
        %v3115 = vrot.slane %v3114, 4
        %v3116 = vsel %vm2789, 0.0, %v3115
        %v3117 = vrot.slane %v1973, 4
        %v3118 = vsel %vm2789, %v3117, %v1917
        %v3120 = vunpack.c.l.s4 1934713408
        %v3121 = vunpack.c.0.s8 %v3120
        %v3122 = vperm.slane %v3118, %v3121
        %v3123 = vrot.slane %v3122, 4
        %v3124 = vsel %vm2789, 0.0, %v3123
        %v3125 = vrot.slane %v2085, 4
        %v3126 = vsel %vm2789, %v3125, %v2029
        %v3128 = vunpack.c.l.s4 1934713408
        %v3129 = vunpack.c.0.s8 %v3128
        %v3130 = vperm.slane %v3126, %v3129
        %v3131 = vrot.slane %v3130, 4
        %v3132 = vsel %vm2789, 0.0, %v3131
        %v3133 = vrot.slane %v2197, 4
        %v3134 = vsel %vm2789, %v3133, %v2141
        %v3136 = vunpack.c.l.s4 1934713408
        %v3137 = vunpack.c.0.s8 %v3136
        %v3138 = vperm.slane %v3134, %v3137
        %v3139 = vrot.slane %v3138, 4
        %v3140 = vsel %vm2789, 0.0, %v3139
        %v3141 = vrot.slane %v2309, 4
        %v3142 = vsel %vm2789, %v3141, %v2253
        %v3144 = vunpack.c.l.s4 1934713408
        %v3145 = vunpack.c.0.s8 %v3144
        %v3146 = vperm.slane %v3142, %v3145
        %v3147 = vrot.slane %v3146, 4
        %v3148 = vsel %vm2789, 0.0, %v3147
        %v3149 = vrot.slane %v2421, 4
        %v3150 = vsel %vm2789, %v3149, %v2365
        %v3152 = vunpack.c.l.s4 1934713408
        %v3153 = vunpack.c.0.s8 %v3152
        %v3154 = vperm.slane %v3150, %v3153
        %v3155 = vrot.slane %v3154, 4
        %v3156 = vsel %vm2789, 0.0, %v3155
        %v3157 = vrot.slane %v2533, 4
        %v3158 = vsel %vm2789, %v3157, %v2477
        %v3160 = vunpack.c.l.s4 1934713408
        %v3161 = vunpack.c.0.s8 %v3160
        %v3162 = vperm.slane %v3158, %v3161
        %v3163 = vrot.slane %v3162, 4
        %v3164 = vsel %vm2789, 0.0, %v3163
        %v3165 = vrot.slane %v2645, 4
        %v3166 = vsel %vm2789, %v3165, %v2589
        %v3168 = vunpack.c.l.s4 1934713408
        %v3169 = vunpack.c.0.s8 %v3168
        %v3170 = vperm.slane %v3166, %v3169
        %v3171 = vrot.slane %v3170, 4
        %v3172 = vsel %vm2789, 0.0, %v3171
        %v3173 = vrot.slane %v1868, 4
        %v3174 = vsel %vm2789, %v3173, %v1812
        %v3176 = vunpack.c.l.s4 1934713408
        %v3177 = vunpack.c.0.s8 %v3176
        %v3178 = vperm.slane %v3174, %v3177
        %v3179 = vrot.slane %v3178, 4
        %v3180 = vsel %vm2789, 0.0, %v3179
        %v3181 = vrot.slane %v1980, 4
        %v3182 = vsel %vm2789, %v3181, %v1924
        %v3184 = vunpack.c.l.s4 1934713408
        %v3185 = vunpack.c.0.s8 %v3184
        %v3186 = vperm.slane %v3182, %v3185
        %v3187 = vrot.slane %v3186, 4
        %v3188 = vsel %vm2789, 0.0, %v3187
        %v3189 = vrot.slane %v2092, 4
        %v3190 = vsel %vm2789, %v3189, %v2036
        %v3192 = vunpack.c.l.s4 1934713408
        %v3193 = vunpack.c.0.s8 %v3192
        %v3194 = vperm.slane %v3190, %v3193
        %v3195 = vrot.slane %v3194, 4
        %v3196 = vsel %vm2789, 0.0, %v3195
        %v3197 = vrot.slane %v2204, 4
        %v3198 = vsel %vm2789, %v3197, %v2148
        %v3200 = vunpack.c.l.s4 1934713408
        %v3201 = vunpack.c.0.s8 %v3200
        %v3202 = vperm.slane %v3198, %v3201
        %v3203 = vrot.slane %v3202, 4
        %v3204 = vsel %vm2789, 0.0, %v3203
        %v3205 = vrot.slane %v2316, 4
        %v3206 = vsel %vm2789, %v3205, %v2260
        %v3208 = vunpack.c.l.s4 1934713408
        %v3209 = vunpack.c.0.s8 %v3208
        %v3210 = vperm.slane %v3206, %v3209
        %v3211 = vrot.slane %v3210, 4
        %v3212 = vsel %vm2789, 0.0, %v3211
        %v3213 = vrot.slane %v2428, 4
        %v3214 = vsel %vm2789, %v3213, %v2372
        %v3216 = vunpack.c.l.s4 1934713408
        %v3217 = vunpack.c.0.s8 %v3216
        %v3218 = vperm.slane %v3214, %v3217
        %v3219 = vrot.slane %v3218, 4
        %v3220 = vsel %vm2789, 0.0, %v3219
        %v3221 = vrot.slane %v2540, 4
        %v3222 = vsel %vm2789, %v3221, %v2484
        %v3224 = vunpack.c.l.s4 1934713408
        %v3225 = vunpack.c.0.s8 %v3224
        %v3226 = vperm.slane %v3222, %v3225
        %v3227 = vrot.slane %v3226, 4
        %v3228 = vsel %vm2789, 0.0, %v3227
        %v3229 = vrot.slane %v2652, 4
        %v3230 = vsel %vm2789, %v3229, %v2596
        %v3232 = vunpack.c.l.s4 1934713408
        %v3233 = vunpack.c.0.s8 %v3232
        %v3234 = vperm.slane %v3230, %v3233
        %v3235 = vrot.slane %v3234, 4
        %v3236 = vsel %vm2789, 0.0, %v3235
        %v3237 = vrot.slane %v1875, 4
        %v3238 = vsel %vm2789, %v3237, %v1819
        %v3240 = vunpack.c.l.s4 1934713408
        %v3241 = vunpack.c.0.s8 %v3240
        %v3242 = vperm.slane %v3238, %v3241
        %v3243 = vrot.slane %v3242, 4
        %v3244 = vsel %vm2789, 0.0, %v3243
        %v3245 = vrot.slane %v1987, 4
        %v3246 = vsel %vm2789, %v3245, %v1931
        %v3248 = vunpack.c.l.s4 1934713408
        %v3249 = vunpack.c.0.s8 %v3248
        %v3250 = vperm.slane %v3246, %v3249
        %v3251 = vrot.slane %v3250, 4
        %v3252 = vsel %vm2789, 0.0, %v3251
        %v3253 = vrot.slane %v2099, 4
        %v3254 = vsel %vm2789, %v3253, %v2043
        %v3256 = vunpack.c.l.s4 1934713408
        %v3257 = vunpack.c.0.s8 %v3256
        %v3258 = vperm.slane %v3254, %v3257
        %v3259 = vrot.slane %v3258, 4
        %v3260 = vsel %vm2789, 0.0, %v3259
        %v3261 = vrot.slane %v2211, 4
        %v3262 = vsel %vm2789, %v3261, %v2155
        %v3264 = vunpack.c.l.s4 1934713408
        %v3265 = vunpack.c.0.s8 %v3264
        %v3266 = vperm.slane %v3262, %v3265
        %v3267 = vrot.slane %v3266, 4
        %v3268 = vsel %vm2789, 0.0, %v3267
        %v3269 = vrot.slane %v2323, 4
        %v3270 = vsel %vm2789, %v3269, %v2267
        %v3272 = vunpack.c.l.s4 1934713408
        %v3273 = vunpack.c.0.s8 %v3272
        %v3274 = vperm.slane %v3270, %v3273
        %v3275 = vrot.slane %v3274, 4
        %v3276 = vsel %vm2789, 0.0, %v3275
        %v3277 = vrot.slane %v2435, 4
        %v3278 = vsel %vm2789, %v3277, %v2379
        %v3280 = vunpack.c.l.s4 1934713408
        %v3281 = vunpack.c.0.s8 %v3280
        %v3282 = vperm.slane %v3278, %v3281
        %v3283 = vrot.slane %v3282, 4
        %v3284 = vsel %vm2789, 0.0, %v3283
        %v3285 = vrot.slane %v2547, 4
        %v3286 = vsel %vm2789, %v3285, %v2491
        %v3288 = vunpack.c.l.s4 1934713408
        %v3289 = vunpack.c.0.s8 %v3288
        %v3290 = vperm.slane %v3286, %v3289
        %v3291 = vrot.slane %v3290, 4
        %v3292 = vsel %vm2789, 0.0, %v3291
        %v3293 = vrot.slane %v2659, 4
        %v3294 = vsel %vm2789, %v3293, %v2603
        %v3296 = vunpack.c.l.s4 1934713408
        %v3297 = vunpack.c.0.s8 %v3296
        %v3298 = vperm.slane %v3294, %v3297
        %v3299 = vrot.slane %v3298, 4
        %v3300 = vsel %vm2789, 0.0, %v3299
        %3429 = vst [vmem:[#allocation1] ss:$4 sm:$0xff] %v2794
        %s3430 = scalar_lea.vmem [#allocation1], 1
        %3431 = vst [vmem:[%s3430] ss:$4 sm:$0xff] %v2802
        %s3432 = scalar_lea.vmem [#allocation1], 2
        %3433 = vst [vmem:[%s3432] ss:$4 sm:$0xff] %v2810
        %s3434 = scalar_lea.vmem [#allocation1], 3
        %3435 = vst [vmem:[%s3434] ss:$4 sm:$0xff] %v2818
        %s3436 = scalar_lea.vmem [#allocation1], 32
        %3437 = vst [vmem:[%s3436] ss:$4 sm:$0xff] %v2826
        %s3438 = scalar_lea.vmem [#allocation1], 33
        %3439 = vst [vmem:[%s3438] ss:$4 sm:$0xff] %v2834
        %s3440 = scalar_lea.vmem [#allocation1], 34
        %3441 = vst [vmem:[%s3440] ss:$4 sm:$0xff] %v2842
        %s3442 = scalar_lea.vmem [#allocation1], 35
        %3443 = vst [vmem:[%s3442] ss:$4 sm:$0xff] %v2850
        %v3444 = vld.sshfl [vmem:[#allocation1] sm:$0xff pattern:$0x73625140]
        %v3445 = vld.sshfl [vmem:[#allocation1 + $0x20] sm:$0xff pattern:$0x73625140]
        %3446 = vst [vmem:[#allocation1] ss:$4 sm:$0xff] %v2796
        %3447 = vst [vmem:[%s3430] ss:$4 sm:$0xff] %v2804
        %3448 = vst [vmem:[%s3432] ss:$4 sm:$0xff] %v2812
        %3449 = vst [vmem:[%s3434] ss:$4 sm:$0xff] %v2820
        %3450 = vst [vmem:[%s3436] ss:$4 sm:$0xff] %v2828
        %3451 = vst [vmem:[%s3438] ss:$4 sm:$0xff] %v2836
        %3452 = vst [vmem:[%s3440] ss:$4 sm:$0xff] %v2844
        %3453 = vst [vmem:[%s3442] ss:$4 sm:$0xff] %v2852
        %v3454 = vld.sshfl [vmem:[#allocation1] sm:$0xff pattern:$0x73625140]
        %v3455 = vld.sshfl [vmem:[#allocation1 + $0x20] sm:$0xff pattern:$0x73625140]
        %3456 = vst [vmem:[#allocation1] ss:$4 sm:$0xff] %v2858
        %3457 = vst [vmem:[%s3430] ss:$4 sm:$0xff] %v2866
        %3458 = vst [vmem:[%s3432] ss:$4 sm:$0xff] %v2874
        %3459 = vst [vmem:[%s3434] ss:$4 sm:$0xff] %v2882
        %3460 = vst [vmem:[%s3436] ss:$4 sm:$0xff] %v2890
        %3461 = vst [vmem:[%s3438] ss:$4 sm:$0xff] %v2898
        %3462 = vst [vmem:[%s3440] ss:$4 sm:$0xff] %v2906
        %3463 = vst [vmem:[%s3442] ss:$4 sm:$0xff] %v2914
        %v3464 = vld.sshfl [vmem:[#allocation1] sm:$0xff pattern:$0x73625140]
        %v3465 = vld.sshfl [vmem:[#allocation1 + $0x20] sm:$0xff pattern:$0x73625140]
        %3466 = vst [vmem:[#allocation1] ss:$4 sm:$0xff] %v2860
        %3467 = vst [vmem:[%s3430] ss:$4 sm:$0xff] %v2868
        %3468 = vst [vmem:[%s3432] ss:$4 sm:$0xff] %v2876
        %3469 = vst [vmem:[%s3434] ss:$4 sm:$0xff] %v2884
        %3470 = vst [vmem:[%s3436] ss:$4 sm:$0xff] %v2892
        %3471 = vst [vmem:[%s3438] ss:$4 sm:$0xff] %v2900
        %3472 = vst [vmem:[%s3440] ss:$4 sm:$0xff] %v2908
        %3473 = vst [vmem:[%s3442] ss:$4 sm:$0xff] %v2916
        %v3474 = vld.sshfl [vmem:[#allocation1] sm:$0xff pattern:$0x73625140]
        %v3475 = vld.sshfl [vmem:[#allocation1 + $0x20] sm:$0xff pattern:$0x73625140]
        %3476 = vst [vmem:[#allocation1] ss:$4 sm:$0xff] %v2922
        %3477 = vst [vmem:[%s3430] ss:$4 sm:$0xff] %v2930
        %3478 = vst [vmem:[%s3432] ss:$4 sm:$0xff] %v2938
        %3479 = vst [vmem:[%s3434] ss:$4 sm:$0xff] %v2946
        %3480 = vst [vmem:[%s3436] ss:$4 sm:$0xff] %v2954
        %3481 = vst [vmem:[%s3438] ss:$4 sm:$0xff] %v2962
        %3482 = vst [vmem:[%s3440] ss:$4 sm:$0xff] %v2970
        %3483 = vst [vmem:[%s3442] ss:$4 sm:$0xff] %v2978
        %v3484 = vld.sshfl [vmem:[#allocation1] sm:$0xff pattern:$0x73625140]
        %v3485 = vld.sshfl [vmem:[#allocation1 + $0x20] sm:$0xff pattern:$0x73625140]
        %3486 = vst [vmem:[#allocation1] ss:$4 sm:$0xff] %v2924
        %3487 = vst [vmem:[%s3430] ss:$4 sm:$0xff] %v2932
        %3488 = vst [vmem:[%s3432] ss:$4 sm:$0xff] %v2940
        %3489 = vst [vmem:[%s3434] ss:$4 sm:$0xff] %v2948
        %3490 = vst [vmem:[%s3436] ss:$4 sm:$0xff] %v2956
        %3491 = vst [vmem:[%s3438] ss:$4 sm:$0xff] %v2964
        %3492 = vst [vmem:[%s3440] ss:$4 sm:$0xff] %v2972
        %3493 = vst [vmem:[%s3442] ss:$4 sm:$0xff] %v2980
        %v3494 = vld.sshfl [vmem:[#allocation1] sm:$0xff pattern:$0x73625140]
        %v3495 = vld.sshfl [vmem:[#allocation1 + $0x20] sm:$0xff pattern:$0x73625140]
        %3496 = vst [vmem:[#allocation1] ss:$4 sm:$0xff] %v2986
        %3497 = vst [vmem:[%s3430] ss:$4 sm:$0xff] %v2994
        %3498 = vst [vmem:[%s3432] ss:$4 sm:$0xff] %v3002
        %3499 = vst [vmem:[%s3434] ss:$4 sm:$0xff] %v3010
        %3500 = vst [vmem:[%s3436] ss:$4 sm:$0xff] %v3018
        %3501 = vst [vmem:[%s3438] ss:$4 sm:$0xff] %v3026
        %3502 = vst [vmem:[%s3440] ss:$4 sm:$0xff] %v3034
        %3503 = vst [vmem:[%s3442] ss:$4 sm:$0xff] %v3042
        %v3504 = vld.sshfl [vmem:[#allocation1] sm:$0xff pattern:$0x73625140]
        %v3505 = vld.sshfl [vmem:[#allocation1 + $0x20] sm:$0xff pattern:$0x73625140]
        %3506 = vst [vmem:[#allocation1] ss:$4 sm:$0xff] %v2988
        %3507 = vst [vmem:[%s3430] ss:$4 sm:$0xff] %v2996
        %3508 = vst [vmem:[%s3432] ss:$4 sm:$0xff] %v3004
        %3509 = vst [vmem:[%s3434] ss:$4 sm:$0xff] %v3012
        %3510 = vst [vmem:[%s3436] ss:$4 sm:$0xff] %v3020
        %3511 = vst [vmem:[%s3438] ss:$4 sm:$0xff] %v3028
        %3512 = vst [vmem:[%s3440] ss:$4 sm:$0xff] %v3036
        %3513 = vst [vmem:[%s3442] ss:$4 sm:$0xff] %v3044
        %v3514 = vld.sshfl [vmem:[#allocation1] sm:$0xff pattern:$0x73625140]
        %v3515 = vld.sshfl [vmem:[#allocation1 + $0x20] sm:$0xff pattern:$0x73625140]
        %3516 = vst [vmem:[#allocation1] ss:$4 sm:$0xff] %v3050
        %3517 = vst [vmem:[%s3430] ss:$4 sm:$0xff] %v3058
        %3518 = vst [vmem:[%s3432] ss:$4 sm:$0xff] %v3066
        %3519 = vst [vmem:[%s3434] ss:$4 sm:$0xff] %v3074
        %3520 = vst [vmem:[%s3436] ss:$4 sm:$0xff] %v3082
        %3521 = vst [vmem:[%s3438] ss:$4 sm:$0xff] %v3090
        %3522 = vst [vmem:[%s3440] ss:$4 sm:$0xff] %v3098
        %3523 = vst [vmem:[%s3442] ss:$4 sm:$0xff] %v3106
        %v3524 = vld.sshfl [vmem:[#allocation1] sm:$0xff pattern:$0x73625140]
        %v3525 = vld.sshfl [vmem:[#allocation1 + $0x20] sm:$0xff pattern:$0x73625140]
        %3526 = vst [vmem:[#allocation1] ss:$4 sm:$0xff] %v3052
        %3527 = vst [vmem:[%s3430] ss:$4 sm:$0xff] %v3060
        %3528 = vst [vmem:[%s3432] ss:$4 sm:$0xff] %v3068
        %3529 = vst [vmem:[%s3434] ss:$4 sm:$0xff] %v3076
        %3530 = vst [vmem:[%s3436] ss:$4 sm:$0xff] %v3084
        %3531 = vst [vmem:[%s3438] ss:$4 sm:$0xff] %v3092
        %3532 = vst [vmem:[%s3440] ss:$4 sm:$0xff] %v3100
        %3533 = vst [vmem:[%s3442] ss:$4 sm:$0xff] %v3108
        %v3534 = vld.sshfl [vmem:[#allocation1] sm:$0xff pattern:$0x73625140]
        %v3535 = vld.sshfl [vmem:[#allocation1 + $0x20] sm:$0xff pattern:$0x73625140]
        %3536 = vst [vmem:[#allocation1] ss:$4 sm:$0xff] %v3114
        %3537 = vst [vmem:[%s3430] ss:$4 sm:$0xff] %v3122
        %3538 = vst [vmem:[%s3432] ss:$4 sm:$0xff] %v3130
        %3539 = vst [vmem:[%s3434] ss:$4 sm:$0xff] %v3138
        %3540 = vst [vmem:[%s3436] ss:$4 sm:$0xff] %v3146
        %3541 = vst [vmem:[%s3438] ss:$4 sm:$0xff] %v3154
        %3542 = vst [vmem:[%s3440] ss:$4 sm:$0xff] %v3162
        %3543 = vst [vmem:[%s3442] ss:$4 sm:$0xff] %v3170
        %v3544 = vld.sshfl [vmem:[#allocation1] sm:$0xff pattern:$0x73625140]
        %v3545 = vld.sshfl [vmem:[#allocation1 + $0x20] sm:$0xff pattern:$0x73625140]
        %3546 = vst [vmem:[#allocation1] ss:$4 sm:$0xff] %v3116
        %3547 = vst [vmem:[%s3430] ss:$4 sm:$0xff] %v3124
        %3548 = vst [vmem:[%s3432] ss:$4 sm:$0xff] %v3132
        %3549 = vst [vmem:[%s3434] ss:$4 sm:$0xff] %v3140
        %3550 = vst [vmem:[%s3436] ss:$4 sm:$0xff] %v3148
        %3551 = vst [vmem:[%s3438] ss:$4 sm:$0xff] %v3156
        %3552 = vst [vmem:[%s3440] ss:$4 sm:$0xff] %v3164
        %3553 = vst [vmem:[%s3442] ss:$4 sm:$0xff] %v3172
        %v3554 = vld.sshfl [vmem:[#allocation1] sm:$0xff pattern:$0x73625140]
        %v3555 = vld.sshfl [vmem:[#allocation1 + $0x20] sm:$0xff pattern:$0x73625140]
        %3556 = vst [vmem:[#allocation1] ss:$4 sm:$0xff] %v3178
        %3557 = vst [vmem:[%s3430] ss:$4 sm:$0xff] %v3186
        %3558 = vst [vmem:[%s3432] ss:$4 sm:$0xff] %v3194
        %3559 = vst [vmem:[%s3434] ss:$4 sm:$0xff] %v3202
        %3560 = vst [vmem:[%s3436] ss:$4 sm:$0xff] %v3210
        %3561 = vst [vmem:[%s3438] ss:$4 sm:$0xff] %v3218
        %3562 = vst [vmem:[%s3440] ss:$4 sm:$0xff] %v3226
        %3563 = vst [vmem:[%s3442] ss:$4 sm:$0xff] %v3234
        %v3564 = vld.sshfl [vmem:[#allocation1] sm:$0xff pattern:$0x73625140]
        %v3565 = vld.sshfl [vmem:[#allocation1 + $0x20] sm:$0xff pattern:$0x73625140]
        %3566 = vst [vmem:[#allocation1] ss:$4 sm:$0xff] %v3180
        %3567 = vst [vmem:[%s3430] ss:$4 sm:$0xff] %v3188
        %3568 = vst [vmem:[%s3432] ss:$4 sm:$0xff] %v3196
        %3569 = vst [vmem:[%s3434] ss:$4 sm:$0xff] %v3204
        %3570 = vst [vmem:[%s3436] ss:$4 sm:$0xff] %v3212
        %3571 = vst [vmem:[%s3438] ss:$4 sm:$0xff] %v3220
        %3572 = vst [vmem:[%s3440] ss:$4 sm:$0xff] %v3228
        %3573 = vst [vmem:[%s3442] ss:$4 sm:$0xff] %v3236
        %v3574 = vld.sshfl [vmem:[#allocation1] sm:$0xff pattern:$0x73625140]
        %v3575 = vld.sshfl [vmem:[#allocation1 + $0x20] sm:$0xff pattern:$0x73625140]
        %3576 = vst [vmem:[#allocation1] ss:$4 sm:$0xff] %v3242
        %3577 = vst [vmem:[%s3430] ss:$4 sm:$0xff] %v3250
        %3578 = vst [vmem:[%s3432] ss:$4 sm:$0xff] %v3258
        %3579 = vst [vmem:[%s3434] ss:$4 sm:$0xff] %v3266
        %3580 = vst [vmem:[%s3436] ss:$4 sm:$0xff] %v3274
        %3581 = vst [vmem:[%s3438] ss:$4 sm:$0xff] %v3282
        %3582 = vst [vmem:[%s3440] ss:$4 sm:$0xff] %v3290
        %3583 = vst [vmem:[%s3442] ss:$4 sm:$0xff] %v3298
        %v3584 = vld.sshfl [vmem:[#allocation1] sm:$0xff pattern:$0x73625140]
        %v3585 = vld.sshfl [vmem:[#allocation1 + $0x20] sm:$0xff pattern:$0x73625140]
        %3586 = vst [vmem:[#allocation1] ss:$4 sm:$0xff] %v3244
        %3587 = vst [vmem:[%s3430] ss:$4 sm:$0xff] %v3252
        %3588 = vst [vmem:[%s3432] ss:$4 sm:$0xff] %v3260
        %3589 = vst [vmem:[%s3434] ss:$4 sm:$0xff] %v3268
        %3590 = vst [vmem:[%s3436] ss:$4 sm:$0xff] %v3276
        %3591 = vst [vmem:[%s3438] ss:$4 sm:$0xff] %v3284
        %3592 = vst [vmem:[%s3440] ss:$4 sm:$0xff] %v3292
        %3593 = vst [vmem:[%s3442] ss:$4 sm:$0xff] %v3300
        %v3594 = vld.sshfl [vmem:[#allocation1] sm:$0xff pattern:$0x73625140]
        %v3595 = vld.sshfl [vmem:[#allocation1 + $0x20] sm:$0xff pattern:$0x73625140]
        %v3596 = vrot.slane %v3444, 7
        %v3597 = vrot.slane %v3445, 7
        %v3598 = vsel %vm301, %v3596, %v3597
        %v3599 = vrot.slane %v3454, 7
        %v3600 = vrot.slane %v3455, 7
        %v3601 = vsel %vm301, %v3599, %v3600
        %v3602 = vrot.slane %v3464, 7
        %v3603 = vrot.slane %v3465, 7
        %v3604 = vsel %vm301, %v3602, %v3603
        %v3605 = vrot.slane %v3474, 7
        %v3606 = vrot.slane %v3475, 7
        %v3607 = vsel %vm301, %v3605, %v3606
        %v3608 = vrot.slane %v3484, 7
        %v3609 = vrot.slane %v3485, 7
        %v3610 = vsel %vm301, %v3608, %v3609
        %v3611 = vrot.slane %v3494, 7
        %v3612 = vrot.slane %v3495, 7
        %v3613 = vsel %vm301, %v3611, %v3612
        %v3614 = vrot.slane %v3504, 7
        %v3615 = vrot.slane %v3505, 7
        %v3616 = vsel %vm301, %v3614, %v3615
        %v3617 = vrot.slane %v3514, 7
        %v3618 = vrot.slane %v3515, 7
        %v3619 = vsel %vm301, %v3617, %v3618
        %v3620 = vrot.slane %v3524, 7
        %v3621 = vrot.slane %v3525, 7
        %v3622 = vsel %vm301, %v3620, %v3621
        %v3623 = vrot.slane %v3534, 7
        %v3624 = vrot.slane %v3535, 7
        %v3625 = vsel %vm301, %v3623, %v3624
        %v3626 = vrot.slane %v3544, 7
        %v3627 = vrot.slane %v3545, 7
        %v3628 = vsel %vm301, %v3626, %v3627
        %v3629 = vrot.slane %v3554, 7
        %v3630 = vrot.slane %v3555, 7
        %v3631 = vsel %vm301, %v3629, %v3630
        %v3632 = vrot.slane %v3564, 7
        %v3633 = vrot.slane %v3565, 7
        %v3634 = vsel %vm301, %v3632, %v3633
        %v3635 = vrot.slane %v3574, 7
        %v3636 = vrot.slane %v3575, 7
        %v3637 = vsel %vm301, %v3635, %v3636
        %v3638 = vrot.slane %v3584, 7
        %v3639 = vrot.slane %v3585, 7
        %v3640 = vsel %vm301, %v3638, %v3639
        %v3641 = vrot.slane %v3594, 7
        %v3642 = vrot.slane %v3595, 7
        %v3643 = vsel %vm301, %v3641, %v3642
        %v3692 = vsel %vm301, 0.0, %v3596
        %v3693 = vsel %vm301, 0.0, %v3599
        %v3694 = vsel %vm301, 0.0, %v3602
        %v3695 = vsel %vm301, 0.0, %v3605
        %v3696 = vsel %vm301, 0.0, %v3608
        %v3697 = vsel %vm301, 0.0, %v3611
        %v3698 = vsel %vm301, 0.0, %v3614
        %v3699 = vsel %vm301, 0.0, %v3617
        %v3700 = vsel %vm301, 0.0, %v3620
        %v3701 = vsel %vm301, 0.0, %v3623
        %v3702 = vsel %vm301, 0.0, %v3626
        %v3703 = vsel %vm301, 0.0, %v3629
        %v3704 = vsel %vm301, 0.0, %v3632
        %v3705 = vsel %vm301, 0.0, %v3635
        %v3706 = vsel %vm301, 0.0, %v3638
        %v3707 = vsel %vm301, 0.0, %v3641
        %v3708 = vsel %vm301, %v3597, 0.0
        %v3709 = vsel %vm301, %v3600, 0.0
        %v3710 = vsel %vm301, %v3603, 0.0
        %v3711 = vsel %vm301, %v3606, 0.0
        %v3712 = vsel %vm301, %v3609, 0.0
        %v3713 = vsel %vm301, %v3612, 0.0
        %v3714 = vsel %vm301, %v3615, 0.0
        %v3715 = vsel %vm301, %v3618, 0.0
        %v3716 = vsel %vm301, %v3621, 0.0
        %v3717 = vsel %vm301, %v3624, 0.0
        %v3718 = vsel %vm301, %v3627, 0.0
        %v3719 = vsel %vm301, %v3630, 0.0
        %v3720 = vsel %vm301, %v3633, 0.0
        %v3721 = vsel %vm301, %v3636, 0.0
        %v3722 = vsel %vm301, %v3639, 0.0
        %v3723 = vsel %vm301, %v3642, 0.0
        %s3724 = scalar_lea.vmem [#allocation2], 24
        %3725 = vst.msk [vmem:[%s3724] sm:$0xff] %vm386, %v3692
        %3726 = vst.msk [vmem:[%s3724 + $0x8] sm:$0xff] %vm386, %v3598
        %3727 = vst.msk [vmem:[%s3724 + $0x10] sm:$0x3] %vm1448, %v3708
        %3728 = vst.msk [vmem:[%s3724 + $0x18] sm:$0xff] %vm386, %v3693
        %3729 = vst.msk [vmem:[%s3724 + $0x20] sm:$0xff] %vm386, %v3601
        %3730 = vst.msk [vmem:[%s3724 + $0x28] sm:$0x3] %vm1448, %v3709
        %3731 = vst.msk [vmem:[%s3724 + $0x30] sm:$0xff] %vm386, %v3694
        %3732 = vst.msk [vmem:[%s3724 + $0x38] sm:$0xff] %vm386, %v3604
        %3733 = vst.msk [vmem:[%s3724 + $0x40] sm:$0x3] %vm1448, %v3710
        %3734 = vst.msk [vmem:[%s3724 + $0x48] sm:$0xff] %vm386, %v3695
        %3735 = vst.msk [vmem:[%s3724 + $0x50] sm:$0xff] %vm386, %v3607
        %3736 = vst.msk [vmem:[%s3724 + $0x58] sm:$0x3] %vm1448, %v3711
        %3737 = vst.msk [vmem:[%s3724 + $0x60] sm:$0xff] %vm386, %v3696
        %3738 = vst.msk [vmem:[%s3724 + $0x68] sm:$0xff] %vm386, %v3610
        %3739 = vst.msk [vmem:[%s3724 + $0x70] sm:$0x3] %vm1448, %v3712
        %3740 = vst.msk [vmem:[%s3724 + $0x78] sm:$0xff] %vm386, %v3697
        %3741 = vst.msk [vmem:[%s3724 + $0x80] sm:$0xff] %vm386, %v3613
        %3742 = vst.msk [vmem:[%s3724 + $0x88] sm:$0x3] %vm1448, %v3713
        %3743 = vst.msk [vmem:[%s3724 + $0x90] sm:$0xff] %vm386, %v3698
        %3744 = vst.msk [vmem:[%s3724 + $0x98] sm:$0xff] %vm386, %v3616
        %3745 = vst.msk [vmem:[%s3724 + $0xa0] sm:$0x3] %vm1448, %v3714
        %3746 = vst.msk [vmem:[%s3724 + $0xa8] sm:$0xff] %vm386, %v3699
        %3747 = vst.msk [vmem:[%s3724 + $0xb0] sm:$0xff] %vm386, %v3619
        %3748 = vst.msk [vmem:[%s3724 + $0xb8] sm:$0x3] %vm1448, %v3715
        %3749 = vst.msk [vmem:[%s3724 + $0xc0] sm:$0xff] %vm386, %v3700
        %3750 = vst.msk [vmem:[%s3724 + $0xc8] sm:$0xff] %vm386, %v3622
        %3751 = vst.msk [vmem:[%s3724 + $0xd0] sm:$0x3] %vm1448, %v3716
        %3752 = vst.msk [vmem:[%s3724 + $0xd8] sm:$0xff] %vm386, %v3701
        %3753 = vst.msk [vmem:[%s3724 + $0xe0] sm:$0xff] %vm386, %v3625
        %3754 = vst.msk [vmem:[%s3724 + $0xe8] sm:$0x3] %vm1448, %v3717
        %3755 = vst.msk [vmem:[%s3724 + $0xf0] sm:$0xff] %vm386, %v3702
        %3756 = vst.msk [vmem:[%s3724 + $0xf8] sm:$0xff] %vm386, %v3628
        %3757 = vst.msk [vmem:[%s3724 + $0x100] sm:$0x3] %vm1448, %v3718
        %3758 = vst.msk [vmem:[%s3724 + $0x108] sm:$0xff] %vm386, %v3703
        %3759 = vst.msk [vmem:[%s3724 + $0x110] sm:$0xff] %vm386, %v3631
        %3760 = vst.msk [vmem:[%s3724 + $0x118] sm:$0x3] %vm1448, %v3719
        %3761 = vst.msk [vmem:[%s3724 + $0x120] sm:$0xff] %vm386, %v3704
        %3762 = vst.msk [vmem:[%s3724 + $0x128] sm:$0xff] %vm386, %v3634
        %3763 = vst.msk [vmem:[%s3724 + $0x130] sm:$0x3] %vm1448, %v3720
        %3764 = vst.msk [vmem:[%s3724 + $0x138] sm:$0xff] %vm386, %v3705
        %3765 = vst.msk [vmem:[%s3724 + $0x140] sm:$0xff] %vm386, %v3637
        %3766 = vst.msk [vmem:[%s3724 + $0x148] sm:$0x3] %vm1448, %v3721
        %3767 = vst.msk [vmem:[%s3724 + $0x150] sm:$0xff] %vm386, %v3706
        %3768 = vst.msk [vmem:[%s3724 + $0x158] sm:$0xff] %vm386, %v3640
        %3769 = vst.msk [vmem:[%s3724 + $0x160] sm:$0x3] %vm1448, %v3722
        %3770 = vst.msk [vmem:[%s3724 + $0x168] sm:$0xff] %vm386, %v3707
        %3771 = vst.msk [vmem:[%s3724 + $0x170] sm:$0xff] %vm386, %v3643
        %3772 = vst.msk [vmem:[%s3724 + $0x178] sm:$0x3] %vm1448, %v3723
        %v3773 = vld [vmem:[#allocation2] sm:$0xff]
        %v3774 = vld [vmem:[#allocation2 + $0x8] sm:$0xff]
        %v3775 = vld [vmem:[#allocation2 + $0x18] sm:$0xff]
        %v3776 = vld [vmem:[#allocation2 + $0x20] sm:$0xff]
        %v3777 = vld [vmem:[#allocation2 + $0x30] sm:$0xff]
        %v3778 = vld [vmem:[#allocation2 + $0x38] sm:$0xff]
        %v3779 = vld [vmem:[#allocation2 + $0x48] sm:$0xff]
        %v3780 = vld [vmem:[#allocation2 + $0x50] sm:$0xff]
        %v3781 = vld [vmem:[#allocation2 + $0x60] sm:$0xff]
        %v3782 = vld [vmem:[#allocation2 + $0x68] sm:$0xff]
        %v3783 = vld [vmem:[#allocation2 + $0x78] sm:$0xff]
        %v3784 = vld [vmem:[#allocation2 + $0x80] sm:$0xff]
        %v3785 = vld [vmem:[#allocation2 + $0x90] sm:$0xff]
        %v3786 = vld [vmem:[#allocation2 + $0x98] sm:$0xff]
        %v3787 = vld [vmem:[#allocation2 + $0xa8] sm:$0xff]
        %v3788 = vld [vmem:[#allocation2 + $0xb0] sm:$0xff]
        %v3789 = vld [vmem:[%s3] sm:$0xff]
        %v3790 = vld [vmem:[%s3 + $0x8] sm:$0xff]
        %v3791 = vld [vmem:[%s3 + $0x10] sm:$0xff]
        %v3792 = vld [vmem:[%s3 + $0x18] sm:$0xff]
        %v3793 = vld [vmem:[#allocation2 + $0x1] sm:$0xff]
        %v3794 = vld [vmem:[#allocation2 + $0x9] sm:$0xff]
        %v3795 = vld [vmem:[#allocation2 + $0x19] sm:$0xff]
        %v3796 = vld [vmem:[#allocation2 + $0x21] sm:$0xff]
        %v3797 = vld [vmem:[#allocation2 + $0x31] sm:$0xff]
        %v3798 = vld [vmem:[#allocation2 + $0x39] sm:$0xff]
        %v3799 = vld [vmem:[#allocation2 + $0x49] sm:$0xff]
        %v3800 = vld [vmem:[#allocation2 + $0x51] sm:$0xff]
        %v3801 = vld [vmem:[#allocation2 + $0x61] sm:$0xff]
        %v3802 = vld [vmem:[#allocation2 + $0x69] sm:$0xff]
        %v3803 = vld [vmem:[#allocation2 + $0x79] sm:$0xff]
        %v3804 = vld [vmem:[#allocation2 + $0x81] sm:$0xff]
        %v3805 = vld [vmem:[#allocation2 + $0x91] sm:$0xff]
        %v3806 = vld [vmem:[#allocation2 + $0x99] sm:$0xff]
        %v3807 = vld [vmem:[#allocation2 + $0xa9] sm:$0xff]
        %v3808 = vld [vmem:[#allocation2 + $0xb1] sm:$0xff]
        %v3809 = vld [vmem:[%s3 + $0x20] sm:$0xff]
        %v3810 = vld [vmem:[%s3 + $0x28] sm:$0xff]
        %v3811 = vld [vmem:[%s3 + $0x30] sm:$0xff]
        %v3812 = vld [vmem:[%s3 + $0x38] sm:$0xff]
        %v3814 = vsel %vm386, %v3793, 0
        %v3817 = vsel %vm386, %v3794, 0
        %v3820 = vsel %vm386, %v3795, 0
        %v3823 = vsel %vm386, %v3796, 0
        %v3826 = vsel %vm386, %v3797, 0
        %v3829 = vsel %vm386, %v3798, 0
        %v3832 = vsel %vm386, %v3799, 0
        %v3835 = vsel %vm386, %v3800, 0
        %v3838 = vsel %vm386, %v3801, 0
        %v3841 = vsel %vm386, %v3802, 0
        %v3844 = vsel %vm386, %v3803, 0
        %v3847 = vsel %vm386, %v3804, 0
        %v3850 = vsel %vm386, %v3805, 0
        %v3853 = vsel %vm386, %v3806, 0
        %v3856 = vsel %vm386, %v3807, 0
        %v3859 = vsel %vm386, %v3808, 0
        %3861 = vmatpush.msra.mxu0 0.0
        %3862 = vmatpush.msra.mxu0 0.0
        %3863 = vmatpush.msra.mxu0 0.0
        %3864 = vmatpush.msra.mxu0 0.0
        %3865 = vmatpush.msra.mxu0 0.0
        %3866 = vmatpush.msra.mxu0 0.0
        %3867 = vmatpush.msra.mxu0 0.0
        %3868 = vmatpush.msra.mxu0 0.0
        %3869 = vmatpush.msra.mxu0 0.0
        %3870 = vmatpush.msra.mxu0 0.0
        %3871 = vmatpush.msra.mxu0 0.0
        %3872 = vmatpush.msra.mxu0 0.0
        %3873 = vmatpush.msra.mxu0 %v3812
        %3874 = vmatpush.msra.mxu0 %v3811
        %3875 = vmatpush.msra.mxu0 %v3810
        %3876 = vmatpush.msra.mxu0 %v3809
        %3877 = vmatmul.f32.gmra.mxu0 %v3814
        %v3878 = vpop.f32.mrf.mxu0
        %v3879 = vadd.f32 0.0, %v3878
        %3880 = vmatmul.f32.gmra.mxu0 %v3817
        %v3881 = vpop.f32.mrf.mxu0
        %v3882 = vadd.f32 0.0, %v3881
        %3883 = vmatmul.f32.gmra.mxu0 %v3820
        %v3884 = vpop.f32.mrf.mxu0
        %v3885 = vadd.f32 0.0, %v3884
        %3886 = vmatmul.f32.gmra.mxu0 %v3823
        %v3887 = vpop.f32.mrf.mxu0
        %v3888 = vadd.f32 0.0, %v3887
        %3889 = vmatmul.f32.gmra.mxu0 %v3826
        %v3890 = vpop.f32.mrf.mxu0
        %v3891 = vadd.f32 0.0, %v3890
        %3892 = vmatmul.f32.gmra.mxu0 %v3829
        %v3893 = vpop.f32.mrf.mxu0
        %v3894 = vadd.f32 0.0, %v3893
        %3895 = vmatmul.f32.gmra.mxu0 %v3832
        %v3896 = vpop.f32.mrf.mxu0
        %v3897 = vadd.f32 0.0, %v3896
        %3898 = vmatmul.f32.gmra.mxu0 %v3835
        %v3899 = vpop.f32.mrf.mxu0
        %v3900 = vadd.f32 0.0, %v3899
        %3901 = vmatmul.f32.gmra.mxu0 %v3838
        %v3902 = vpop.f32.mrf.mxu0
        %v3903 = vadd.f32 0.0, %v3902
        %3904 = vmatmul.f32.gmra.mxu0 %v3841
        %v3905 = vpop.f32.mrf.mxu0
        %v3906 = vadd.f32 0.0, %v3905
        %3907 = vmatmul.f32.gmra.mxu0 %v3844
        %v3908 = vpop.f32.mrf.mxu0
        %v3909 = vadd.f32 0.0, %v3908
        %3910 = vmatmul.f32.gmra.mxu0 %v3847
        %v3911 = vpop.f32.mrf.mxu0
        %v3912 = vadd.f32 0.0, %v3911
        %3913 = vmatmul.f32.gmra.mxu0 %v3850
        %v3914 = vpop.f32.mrf.mxu0
        %v3915 = vadd.f32 0.0, %v3914
        %3916 = vmatmul.f32.gmra.mxu0 %v3853
        %v3917 = vpop.f32.mrf.mxu0
        %v3918 = vadd.f32 0.0, %v3917
        %3919 = vmatmul.f32.gmra.mxu0 %v3856
        %v3920 = vpop.f32.mrf.mxu0
        %v3921 = vadd.f32 0.0, %v3920
        %3922 = vmatmul.f32.gmra.mxu0 %v3859
        %v3923 = vpop.f32.mrf.mxu0
        %v3924 = vadd.f32 0.0, %v3923
        %3925 = vdwg.mxu0
        %v3927 = vsel %vm386, %v3773, 0
        %v3930 = vsel %vm386, %v3774, 0
        %v3933 = vsel %vm386, %v3775, 0
        %v3936 = vsel %vm386, %v3776, 0
        %v3939 = vsel %vm386, %v3777, 0
        %v3942 = vsel %vm386, %v3778, 0
        %v3945 = vsel %vm386, %v3779, 0
        %v3948 = vsel %vm386, %v3780, 0
        %v3951 = vsel %vm386, %v3781, 0
        %v3954 = vsel %vm386, %v3782, 0
        %v3957 = vsel %vm386, %v3783, 0
        %v3960 = vsel %vm386, %v3784, 0
        %v3963 = vsel %vm386, %v3785, 0
        %v3966 = vsel %vm386, %v3786, 0
        %v3969 = vsel %vm386, %v3787, 0
        %v3972 = vsel %vm386, %v3788, 0
        %3974 = vmatpush.msra.mxu0 0.0
        %3975 = vmatpush.msra.mxu0 0.0
        %3976 = vmatpush.msra.mxu0 0.0
        %3977 = vmatpush.msra.mxu0 0.0
        %3978 = vmatpush.msra.mxu0 0.0
        %3979 = vmatpush.msra.mxu0 0.0
        %3980 = vmatpush.msra.mxu0 0.0
        %3981 = vmatpush.msra.mxu0 0.0
        %3982 = vmatpush.msra.mxu0 0.0
        %3983 = vmatpush.msra.mxu0 0.0
        %3984 = vmatpush.msra.mxu0 0.0
        %3985 = vmatpush.msra.mxu0 0.0
        %3986 = vmatpush.msra.mxu0 %v3792
        %3987 = vmatpush.msra.mxu0 %v3791
        %3988 = vmatpush.msra.mxu0 %v3790
        %3989 = vmatpush.msra.mxu0 %v3789
        %3990 = vmatmul.f32.gmra.mxu0 %v3927
        %v3991 = vpop.f32.mrf.mxu0
        %v3992 = vadd.f32 %v3879, %v3991
        %3993 = vmatmul.f32.gmra.mxu0 %v3930
        %v3994 = vpop.f32.mrf.mxu0
        %v3995 = vadd.f32 %v3882, %v3994
        %3996 = vmatmul.f32.gmra.mxu0 %v3933
        %v3997 = vpop.f32.mrf.mxu0
        %v3998 = vadd.f32 %v3885, %v3997
        %3999 = vmatmul.f32.gmra.mxu0 %v3936
        %v4000 = vpop.f32.mrf.mxu0
        %v4001 = vadd.f32 %v3888, %v4000
        %4002 = vmatmul.f32.gmra.mxu0 %v3939
        %v4003 = vpop.f32.mrf.mxu0
        %v4004 = vadd.f32 %v3891, %v4003
        %4005 = vmatmul.f32.gmra.mxu0 %v3942
        %v4006 = vpop.f32.mrf.mxu0
        %v4007 = vadd.f32 %v3894, %v4006
        %4008 = vmatmul.f32.gmra.mxu0 %v3945
        %v4009 = vpop.f32.mrf.mxu0
        %v4010 = vadd.f32 %v3897, %v4009
        %4011 = vmatmul.f32.gmra.mxu0 %v3948
        %v4012 = vpop.f32.mrf.mxu0
        %v4013 = vadd.f32 %v3900, %v4012
        %4014 = vmatmul.f32.gmra.mxu0 %v3951
        %v4015 = vpop.f32.mrf.mxu0
        %v4016 = vadd.f32 %v3903, %v4015
        %4017 = vmatmul.f32.gmra.mxu0 %v3954
        %v4018 = vpop.f32.mrf.mxu0
        %v4019 = vadd.f32 %v3906, %v4018
        %4020 = vmatmul.f32.gmra.mxu0 %v3957
        %v4021 = vpop.f32.mrf.mxu0
        %v4022 = vadd.f32 %v3909, %v4021
        %4023 = vmatmul.f32.gmra.mxu0 %v3960
        %v4024 = vpop.f32.mrf.mxu0
        %v4025 = vadd.f32 %v3912, %v4024
        %4026 = vmatmul.f32.gmra.mxu0 %v3963
        %v4027 = vpop.f32.mrf.mxu0
        %v4028 = vadd.f32 %v3915, %v4027
        %4029 = vmatmul.f32.gmra.mxu0 %v3966
        %v4030 = vpop.f32.mrf.mxu0
        %v4031 = vadd.f32 %v3918, %v4030
        %4032 = vmatmul.f32.gmra.mxu0 %v3969
        %v4033 = vpop.f32.mrf.mxu0
        %v4034 = vadd.f32 %v3921, %v4033
        %4035 = vmatmul.f32.gmra.mxu0 %v3972
        %v4036 = vpop.f32.mrf.mxu0
        %v4037 = vadd.f32 %v3924, %v4036
        %4038 = vdwg.mxu0
        %v4039 = vld [vmem:[#allocation2 + $0x2] sm:$0xff]
        %v4040 = vld [vmem:[#allocation2 + $0xa] sm:$0xff]
        %v4041 = vld [vmem:[#allocation2 + $0x1a] sm:$0xff]
        %v4042 = vld [vmem:[#allocation2 + $0x22] sm:$0xff]
        %v4043 = vld [vmem:[#allocation2 + $0x32] sm:$0xff]
        %v4044 = vld [vmem:[#allocation2 + $0x3a] sm:$0xff]
        %v4045 = vld [vmem:[#allocation2 + $0x4a] sm:$0xff]
        %v4046 = vld [vmem:[#allocation2 + $0x52] sm:$0xff]
        %v4047 = vld [vmem:[#allocation2 + $0x62] sm:$0xff]
        %v4048 = vld [vmem:[#allocation2 + $0x6a] sm:$0xff]
        %v4049 = vld [vmem:[#allocation2 + $0x7a] sm:$0xff]
        %v4050 = vld [vmem:[#allocation2 + $0x82] sm:$0xff]
        %v4051 = vld [vmem:[#allocation2 + $0x92] sm:$0xff]
        %v4052 = vld [vmem:[#allocation2 + $0x9a] sm:$0xff]
        %v4053 = vld [vmem:[#allocation2 + $0xaa] sm:$0xff]
        %v4054 = vld [vmem:[#allocation2 + $0xb2] sm:$0xff]
        %v4055 = vld [vmem:[%s3 + $0x40] sm:$0xff]
        %v4056 = vld [vmem:[%s3 + $0x48] sm:$0xff]
        %v4057 = vld [vmem:[%s3 + $0x50] sm:$0xff]
        %v4058 = vld [vmem:[%s3 + $0x58] sm:$0xff]
        %v4060 = vsel %vm386, %v4039, 0
        %v4063 = vsel %vm386, %v4040, 0
        %v4066 = vsel %vm386, %v4041, 0
        %v4069 = vsel %vm386, %v4042, 0
        %v4072 = vsel %vm386, %v4043, 0
        %v4075 = vsel %vm386, %v4044, 0
        %v4078 = vsel %vm386, %v4045, 0
        %v4081 = vsel %vm386, %v4046, 0
        %v4084 = vsel %vm386, %v4047, 0
        %v4087 = vsel %vm386, %v4048, 0
        %v4090 = vsel %vm386, %v4049, 0
        %v4093 = vsel %vm386, %v4050, 0
        %v4096 = vsel %vm386, %v4051, 0
        %v4099 = vsel %vm386, %v4052, 0
        %v4102 = vsel %vm386, %v4053, 0
        %v4105 = vsel %vm386, %v4054, 0
        %4107 = vmatpush.msra.mxu0 0.0
        %4108 = vmatpush.msra.mxu0 0.0
        %4109 = vmatpush.msra.mxu0 0.0
        %4110 = vmatpush.msra.mxu0 0.0
        %4111 = vmatpush.msra.mxu0 0.0
        %4112 = vmatpush.msra.mxu0 0.0
        %4113 = vmatpush.msra.mxu0 0.0
        %4114 = vmatpush.msra.mxu0 0.0
        %4115 = vmatpush.msra.mxu0 0.0
        %4116 = vmatpush.msra.mxu0 0.0
        %4117 = vmatpush.msra.mxu0 0.0
        %4118 = vmatpush.msra.mxu0 0.0
        %4119 = vmatpush.msra.mxu0 %v4058
        %4120 = vmatpush.msra.mxu0 %v4057
        %4121 = vmatpush.msra.mxu0 %v4056
        %4122 = vmatpush.msra.mxu0 %v4055
        %4123 = vmatmul.f32.gmra.mxu0 %v4060
        %v4124 = vpop.f32.mrf.mxu0
        %v4125 = vadd.f32 0.0, %v4124
        %4126 = vmatmul.f32.gmra.mxu0 %v4063
        %v4127 = vpop.f32.mrf.mxu0
        %v4128 = vadd.f32 0.0, %v4127
        %4129 = vmatmul.f32.gmra.mxu0 %v4066
        %v4130 = vpop.f32.mrf.mxu0
        %v4131 = vadd.f32 0.0, %v4130
        %4132 = vmatmul.f32.gmra.mxu0 %v4069
        %v4133 = vpop.f32.mrf.mxu0
        %v4134 = vadd.f32 0.0, %v4133
        %4135 = vmatmul.f32.gmra.mxu0 %v4072
        %v4136 = vpop.f32.mrf.mxu0
        %v4137 = vadd.f32 0.0, %v4136
        %4138 = vmatmul.f32.gmra.mxu0 %v4075
        %v4139 = vpop.f32.mrf.mxu0
        %v4140 = vadd.f32 0.0, %v4139
        %4141 = vmatmul.f32.gmra.mxu0 %v4078
        %v4142 = vpop.f32.mrf.mxu0
        %v4143 = vadd.f32 0.0, %v4142
        %4144 = vmatmul.f32.gmra.mxu0 %v4081
        %v4145 = vpop.f32.mrf.mxu0
        %v4146 = vadd.f32 0.0, %v4145
        %4147 = vmatmul.f32.gmra.mxu0 %v4084
        %v4148 = vpop.f32.mrf.mxu0
        %v4149 = vadd.f32 0.0, %v4148
        %4150 = vmatmul.f32.gmra.mxu0 %v4087
        %v4151 = vpop.f32.mrf.mxu0
        %v4152 = vadd.f32 0.0, %v4151
        %4153 = vmatmul.f32.gmra.mxu0 %v4090
        %v4154 = vpop.f32.mrf.mxu0
        %v4155 = vadd.f32 0.0, %v4154
        %4156 = vmatmul.f32.gmra.mxu0 %v4093
        %v4157 = vpop.f32.mrf.mxu0
        %v4158 = vadd.f32 0.0, %v4157
        %4159 = vmatmul.f32.gmra.mxu0 %v4096
        %v4160 = vpop.f32.mrf.mxu0
        %v4161 = vadd.f32 0.0, %v4160
        %4162 = vmatmul.f32.gmra.mxu0 %v4099
        %v4163 = vpop.f32.mrf.mxu0
        %v4164 = vadd.f32 0.0, %v4163
        %4165 = vmatmul.f32.gmra.mxu0 %v4102
        %v4166 = vpop.f32.mrf.mxu0
        %v4167 = vadd.f32 0.0, %v4166
        %4168 = vmatmul.f32.gmra.mxu0 %v4105
        %v4169 = vpop.f32.mrf.mxu0
        %v4170 = vadd.f32 0.0, %v4169
        %4171 = vdwg.mxu0
        %v4172 = vadd.f32 %v3992, %v4125
        %v4173 = vadd.f32 %v3995, %v4128
        %v4174 = vadd.f32 %v3998, %v4131
        %v4175 = vadd.f32 %v4001, %v4134
        %v4176 = vadd.f32 %v4004, %v4137
        %v4177 = vadd.f32 %v4007, %v4140
        %v4178 = vadd.f32 %v4010, %v4143
        %v4179 = vadd.f32 %v4013, %v4146
        %v4180 = vadd.f32 %v4016, %v4149
        %v4181 = vadd.f32 %v4019, %v4152
        %v4182 = vadd.f32 %v4022, %v4155
        %v4183 = vadd.f32 %v4025, %v4158
        %v4184 = vadd.f32 %v4028, %v4161
        %v4185 = vadd.f32 %v4031, %v4164
        %v4186 = vadd.f32 %v4034, %v4167
        %v4187 = vadd.f32 %v4037, %v4170
        %v4188 = vld [vmem:[%s3724] sm:$0xff]
        %v4189 = vld [vmem:[%s3724 + $0x8] sm:$0xff]
        %v4190 = vld [vmem:[%s3724 + $0x18] sm:$0xff]
        %v4191 = vld [vmem:[%s3724 + $0x20] sm:$0xff]
        %v4192 = vld [vmem:[%s3724 + $0x30] sm:$0xff]
        %v4193 = vld [vmem:[%s3724 + $0x38] sm:$0xff]
        %v4194 = vld [vmem:[%s3724 + $0x48] sm:$0xff]
        %v4195 = vld [vmem:[%s3724 + $0x50] sm:$0xff]
        %v4196 = vld [vmem:[%s3724 + $0x60] sm:$0xff]
        %v4197 = vld [vmem:[%s3724 + $0x68] sm:$0xff]
        %v4198 = vld [vmem:[%s3724 + $0x78] sm:$0xff]
        %v4199 = vld [vmem:[%s3724 + $0x80] sm:$0xff]
        %v4200 = vld [vmem:[%s3724 + $0x90] sm:$0xff]
        %v4201 = vld [vmem:[%s3724 + $0x98] sm:$0xff]
        %v4202 = vld [vmem:[%s3724 + $0xa8] sm:$0xff]
        %v4203 = vld [vmem:[%s3724 + $0xb0] sm:$0xff]
        %v4204 = vld [vmem:[%s3 + $0x60] sm:$0xff]
        %v4205 = vld [vmem:[%s3 + $0x68] sm:$0xff]
        %v4206 = vld [vmem:[%s3 + $0x70] sm:$0xff]
        %v4207 = vld [vmem:[%s3 + $0x78] sm:$0xff]
        %v4209 = vsel %vm386, %v4188, 0
        %v4212 = vsel %vm386, %v4189, 0
        %v4215 = vsel %vm386, %v4190, 0
        %v4218 = vsel %vm386, %v4191, 0
        %v4221 = vsel %vm386, %v4192, 0
        %v4224 = vsel %vm386, %v4193, 0
        %v4227 = vsel %vm386, %v4194, 0
        %v4230 = vsel %vm386, %v4195, 0
        %v4233 = vsel %vm386, %v4196, 0
        %v4236 = vsel %vm386, %v4197, 0
        %v4239 = vsel %vm386, %v4198, 0
        %v4242 = vsel %vm386, %v4199, 0
        %v4245 = vsel %vm386, %v4200, 0
        %v4248 = vsel %vm386, %v4201, 0
        %v4251 = vsel %vm386, %v4202, 0
        %v4254 = vsel %vm386, %v4203, 0
        %4256 = vmatpush.msra.mxu0 0.0
        %4257 = vmatpush.msra.mxu0 0.0
        %4258 = vmatpush.msra.mxu0 0.0
        %4259 = vmatpush.msra.mxu0 0.0
        %4260 = vmatpush.msra.mxu0 0.0
        %4261 = vmatpush.msra.mxu0 0.0
        %4262 = vmatpush.msra.mxu0 0.0
        %4263 = vmatpush.msra.mxu0 0.0
        %4264 = vmatpush.msra.mxu0 0.0
        %4265 = vmatpush.msra.mxu0 0.0
        %4266 = vmatpush.msra.mxu0 0.0
        %4267 = vmatpush.msra.mxu0 0.0
        %4268 = vmatpush.msra.mxu0 %v4207
        %4269 = vmatpush.msra.mxu0 %v4206
        %4270 = vmatpush.msra.mxu0 %v4205
        %4271 = vmatpush.msra.mxu0 %v4204
        %4272 = vmatmul.f32.gmra.mxu0 %v4209
        %v4273 = vpop.f32.mrf.mxu0
        %v4274 = vadd.f32 0.0, %v4273
        %4275 = vmatmul.f32.gmra.mxu0 %v4212
        %v4276 = vpop.f32.mrf.mxu0
        %v4277 = vadd.f32 0.0, %v4276
        %4278 = vmatmul.f32.gmra.mxu0 %v4215
        %v4279 = vpop.f32.mrf.mxu0
        %v4280 = vadd.f32 0.0, %v4279
        %4281 = vmatmul.f32.gmra.mxu0 %v4218
        %v4282 = vpop.f32.mrf.mxu0
        %v4283 = vadd.f32 0.0, %v4282
        %4284 = vmatmul.f32.gmra.mxu0 %v4221
        %v4285 = vpop.f32.mrf.mxu0
        %v4286 = vadd.f32 0.0, %v4285
        %4287 = vmatmul.f32.gmra.mxu0 %v4224
        %v4288 = vpop.f32.mrf.mxu0
        %v4289 = vadd.f32 0.0, %v4288
        %4290 = vmatmul.f32.gmra.mxu0 %v4227
        %v4291 = vpop.f32.mrf.mxu0
        %v4292 = vadd.f32 0.0, %v4291
        %4293 = vmatmul.f32.gmra.mxu0 %v4230
        %v4294 = vpop.f32.mrf.mxu0
        %v4295 = vadd.f32 0.0, %v4294
        %4296 = vmatmul.f32.gmra.mxu0 %v4233
        %v4297 = vpop.f32.mrf.mxu0
        %v4298 = vadd.f32 0.0, %v4297
        %4299 = vmatmul.f32.gmra.mxu0 %v4236
        %v4300 = vpop.f32.mrf.mxu0
        %v4301 = vadd.f32 0.0, %v4300
        %4302 = vmatmul.f32.gmra.mxu0 %v4239
        %v4303 = vpop.f32.mrf.mxu0
        %v4304 = vadd.f32 0.0, %v4303
        %4305 = vmatmul.f32.gmra.mxu0 %v4242
        %v4306 = vpop.f32.mrf.mxu0
        %v4307 = vadd.f32 0.0, %v4306
        %4308 = vmatmul.f32.gmra.mxu0 %v4245
        %v4309 = vpop.f32.mrf.mxu0
        %v4310 = vadd.f32 0.0, %v4309
        %4311 = vmatmul.f32.gmra.mxu0 %v4248
        %v4312 = vpop.f32.mrf.mxu0
        %v4313 = vadd.f32 0.0, %v4312
        %4314 = vmatmul.f32.gmra.mxu0 %v4251
        %v4315 = vpop.f32.mrf.mxu0
        %v4316 = vadd.f32 0.0, %v4315
        %4317 = vmatmul.f32.gmra.mxu0 %v4254
        %v4318 = vpop.f32.mrf.mxu0
        %v4319 = vadd.f32 0.0, %v4318
        %4320 = vdwg.mxu0
        %v4321 = vadd.f32 %v4172, %v4274
        %v4322 = vadd.f32 %v4173, %v4277
        %v4323 = vadd.f32 %v4174, %v4280
        %v4324 = vadd.f32 %v4175, %v4283
        %v4325 = vadd.f32 %v4176, %v4286
        %v4326 = vadd.f32 %v4177, %v4289
        %v4327 = vadd.f32 %v4178, %v4292
        %v4328 = vadd.f32 %v4179, %v4295
        %v4329 = vadd.f32 %v4180, %v4298
        %v4330 = vadd.f32 %v4181, %v4301
        %v4331 = vadd.f32 %v4182, %v4304
        %v4332 = vadd.f32 %v4183, %v4307
        %v4333 = vadd.f32 %v4184, %v4310
        %v4334 = vadd.f32 %v4185, %v4313
        %v4335 = vadd.f32 %v4186, %v4316
        %v4336 = vadd.f32 %v4187, %v4319
        %v4337 = vld [vmem:[%s3724 + $0x1] sm:$0xff]
        %v4338 = vld [vmem:[%s3724 + $0x9] sm:$0xff]
        %v4339 = vld [vmem:[%s3724 + $0x19] sm:$0xff]
        %v4340 = vld [vmem:[%s3724 + $0x21] sm:$0xff]
        %v4341 = vld [vmem:[%s3724 + $0x31] sm:$0xff]
        %v4342 = vld [vmem:[%s3724 + $0x39] sm:$0xff]
        %v4343 = vld [vmem:[%s3724 + $0x49] sm:$0xff]
        %v4344 = vld [vmem:[%s3724 + $0x51] sm:$0xff]
        %v4345 = vld [vmem:[%s3724 + $0x61] sm:$0xff]
        %v4346 = vld [vmem:[%s3724 + $0x69] sm:$0xff]
        %v4347 = vld [vmem:[%s3724 + $0x79] sm:$0xff]
        %v4348 = vld [vmem:[%s3724 + $0x81] sm:$0xff]
        %v4349 = vld [vmem:[%s3724 + $0x91] sm:$0xff]
        %v4350 = vld [vmem:[%s3724 + $0x99] sm:$0xff]
        %v4351 = vld [vmem:[%s3724 + $0xa9] sm:$0xff]
        %v4352 = vld [vmem:[%s3724 + $0xb1] sm:$0xff]
        %v4353 = vld [vmem:[%s3 + $0x80] sm:$0xff]
        %v4354 = vld [vmem:[%s3 + $0x88] sm:$0xff]
        %v4355 = vld [vmem:[%s3 + $0x90] sm:$0xff]
        %v4356 = vld [vmem:[%s3 + $0x98] sm:$0xff]
        %v4358 = vsel %vm386, %v4337, 0
        %v4361 = vsel %vm386, %v4338, 0
        %v4364 = vsel %vm386, %v4339, 0
        %v4367 = vsel %vm386, %v4340, 0
        %v4370 = vsel %vm386, %v4341, 0
        %v4373 = vsel %vm386, %v4342, 0
        %v4376 = vsel %vm386, %v4343, 0
        %v4379 = vsel %vm386, %v4344, 0
        %v4382 = vsel %vm386, %v4345, 0
        %v4385 = vsel %vm386, %v4346, 0
        %v4388 = vsel %vm386, %v4347, 0
        %v4391 = vsel %vm386, %v4348, 0
        %v4394 = vsel %vm386, %v4349, 0
        %v4397 = vsel %vm386, %v4350, 0
        %v4400 = vsel %vm386, %v4351, 0
        %v4403 = vsel %vm386, %v4352, 0
        %4405 = vmatpush.msra.mxu0 0.0
        %4406 = vmatpush.msra.mxu0 0.0
        %4407 = vmatpush.msra.mxu0 0.0
        %4408 = vmatpush.msra.mxu0 0.0
        %4409 = vmatpush.msra.mxu0 0.0
        %4410 = vmatpush.msra.mxu0 0.0
        %4411 = vmatpush.msra.mxu0 0.0
        %4412 = vmatpush.msra.mxu0 0.0
        %4413 = vmatpush.msra.mxu0 0.0
        %4414 = vmatpush.msra.mxu0 0.0
        %4415 = vmatpush.msra.mxu0 0.0
        %4416 = vmatpush.msra.mxu0 0.0
        %4417 = vmatpush.msra.mxu0 %v4356
        %4418 = vmatpush.msra.mxu0 %v4355
        %4419 = vmatpush.msra.mxu0 %v4354
        %4420 = vmatpush.msra.mxu0 %v4353
        %4421 = vmatmul.f32.gmra.mxu0 %v4358
        %v4422 = vpop.f32.mrf.mxu0
        %v4423 = vadd.f32 0.0, %v4422
        %4424 = vmatmul.f32.gmra.mxu0 %v4361
        %v4425 = vpop.f32.mrf.mxu0
        %v4426 = vadd.f32 0.0, %v4425
        %4427 = vmatmul.f32.gmra.mxu0 %v4364
        %v4428 = vpop.f32.mrf.mxu0
        %v4429 = vadd.f32 0.0, %v4428
        %4430 = vmatmul.f32.gmra.mxu0 %v4367
        %v4431 = vpop.f32.mrf.mxu0
        %v4432 = vadd.f32 0.0, %v4431
        %4433 = vmatmul.f32.gmra.mxu0 %v4370
        %v4434 = vpop.f32.mrf.mxu0
        %v4435 = vadd.f32 0.0, %v4434
        %4436 = vmatmul.f32.gmra.mxu0 %v4373
        %v4437 = vpop.f32.mrf.mxu0
        %v4438 = vadd.f32 0.0, %v4437
        %4439 = vmatmul.f32.gmra.mxu0 %v4376
        %v4440 = vpop.f32.mrf.mxu0
        %v4441 = vadd.f32 0.0, %v4440
        %4442 = vmatmul.f32.gmra.mxu0 %v4379
        %v4443 = vpop.f32.mrf.mxu0
        %v4444 = vadd.f32 0.0, %v4443
        %4445 = vmatmul.f32.gmra.mxu0 %v4382
        %v4446 = vpop.f32.mrf.mxu0
        %v4447 = vadd.f32 0.0, %v4446
        %4448 = vmatmul.f32.gmra.mxu0 %v4385
        %v4449 = vpop.f32.mrf.mxu0
        %v4450 = vadd.f32 0.0, %v4449
        %4451 = vmatmul.f32.gmra.mxu0 %v4388
        %v4452 = vpop.f32.mrf.mxu0
        %v4453 = vadd.f32 0.0, %v4452
        %4454 = vmatmul.f32.gmra.mxu0 %v4391
        %v4455 = vpop.f32.mrf.mxu0
        %v4456 = vadd.f32 0.0, %v4455
        %4457 = vmatmul.f32.gmra.mxu0 %v4394
        %v4458 = vpop.f32.mrf.mxu0
        %v4459 = vadd.f32 0.0, %v4458
        %4460 = vmatmul.f32.gmra.mxu0 %v4397
        %v4461 = vpop.f32.mrf.mxu0
        %v4462 = vadd.f32 0.0, %v4461
        %4463 = vmatmul.f32.gmra.mxu0 %v4400
        %v4464 = vpop.f32.mrf.mxu0
        %v4465 = vadd.f32 0.0, %v4464
        %4466 = vmatmul.f32.gmra.mxu0 %v4403
        %v4467 = vpop.f32.mrf.mxu0
        %v4468 = vadd.f32 0.0, %v4467
        %4469 = vdwg.mxu0
        %v4470 = vadd.f32 %v4321, %v4423
        %v4471 = vadd.f32 %v4322, %v4426
        %v4472 = vadd.f32 %v4323, %v4429
        %v4473 = vadd.f32 %v4324, %v4432
        %v4474 = vadd.f32 %v4325, %v4435
        %v4475 = vadd.f32 %v4326, %v4438
        %v4476 = vadd.f32 %v4327, %v4441
        %v4477 = vadd.f32 %v4328, %v4444
        %v4478 = vadd.f32 %v4329, %v4447
        %v4479 = vadd.f32 %v4330, %v4450
        %v4480 = vadd.f32 %v4331, %v4453
        %v4481 = vadd.f32 %v4332, %v4456
        %v4482 = vadd.f32 %v4333, %v4459
        %v4483 = vadd.f32 %v4334, %v4462
        %v4484 = vadd.f32 %v4335, %v4465
        %v4485 = vadd.f32 %v4336, %v4468
        %v4486 = vld [vmem:[%s3724 + $0x2] sm:$0xff]
        %v4487 = vld [vmem:[%s3724 + $0xa] sm:$0xff]
        %v4488 = vld [vmem:[%s3724 + $0x1a] sm:$0xff]
        %v4489 = vld [vmem:[%s3724 + $0x22] sm:$0xff]
        %v4490 = vld [vmem:[%s3724 + $0x32] sm:$0xff]
        %v4491 = vld [vmem:[%s3724 + $0x3a] sm:$0xff]
        %v4492 = vld [vmem:[%s3724 + $0x4a] sm:$0xff]
        %v4493 = vld [vmem:[%s3724 + $0x52] sm:$0xff]
        %v4494 = vld [vmem:[%s3724 + $0x62] sm:$0xff]
        %v4495 = vld [vmem:[%s3724 + $0x6a] sm:$0xff]
        %v4496 = vld [vmem:[%s3724 + $0x7a] sm:$0xff]
        %v4497 = vld [vmem:[%s3724 + $0x82] sm:$0xff]
        %v4498 = vld [vmem:[%s3724 + $0x92] sm:$0xff]
        %v4499 = vld [vmem:[%s3724 + $0x9a] sm:$0xff]
        %v4500 = vld [vmem:[%s3724 + $0xaa] sm:$0xff]
        %v4501 = vld [vmem:[%s3724 + $0xb2] sm:$0xff]
        %v4502 = vld [vmem:[%s3 + $0xa0] sm:$0xff]
        %v4503 = vld [vmem:[%s3 + $0xa8] sm:$0xff]
        %v4504 = vld [vmem:[%s3 + $0xb0] sm:$0xff]
        %v4505 = vld [vmem:[%s3 + $0xb8] sm:$0xff]
        %v4507 = vsel %vm386, %v4486, 0
        %v4510 = vsel %vm386, %v4487, 0
        %v4513 = vsel %vm386, %v4488, 0
        %v4516 = vsel %vm386, %v4489, 0
        %v4519 = vsel %vm386, %v4490, 0
        %v4522 = vsel %vm386, %v4491, 0
        %v4525 = vsel %vm386, %v4492, 0
        %v4528 = vsel %vm386, %v4493, 0
        %v4531 = vsel %vm386, %v4494, 0
        %v4534 = vsel %vm386, %v4495, 0
        %v4537 = vsel %vm386, %v4496, 0
        %v4540 = vsel %vm386, %v4497, 0
        %v4543 = vsel %vm386, %v4498, 0
        %v4546 = vsel %vm386, %v4499, 0
        %v4549 = vsel %vm386, %v4500, 0
        %v4552 = vsel %vm386, %v4501, 0
        %4554 = vmatpush.msra.mxu0 0.0
        %4555 = vmatpush.msra.mxu0 0.0
        %4556 = vmatpush.msra.mxu0 0.0
        %4557 = vmatpush.msra.mxu0 0.0
        %4558 = vmatpush.msra.mxu0 0.0
        %4559 = vmatpush.msra.mxu0 0.0
        %4560 = vmatpush.msra.mxu0 0.0
        %4561 = vmatpush.msra.mxu0 0.0
        %4562 = vmatpush.msra.mxu0 0.0
        %4563 = vmatpush.msra.mxu0 0.0
        %4564 = vmatpush.msra.mxu0 0.0
        %4565 = vmatpush.msra.mxu0 0.0
        %4566 = vmatpush.msra.mxu0 %v4505
        %4567 = vmatpush.msra.mxu0 %v4504
        %4568 = vmatpush.msra.mxu0 %v4503
        %4569 = vmatpush.msra.mxu0 %v4502
        %4570 = vmatmul.f32.gmra.mxu0 %v4507
        %v4571 = vpop.f32.mrf.mxu0
        %v4572 = vadd.f32 0.0, %v4571
        %4573 = vmatmul.f32.gmra.mxu0 %v4510
        %v4574 = vpop.f32.mrf.mxu0
        %v4575 = vadd.f32 0.0, %v4574
        %4576 = vmatmul.f32.gmra.mxu0 %v4513
        %v4577 = vpop.f32.mrf.mxu0
        %v4578 = vadd.f32 0.0, %v4577
        %4579 = vmatmul.f32.gmra.mxu0 %v4516
        %v4580 = vpop.f32.mrf.mxu0
        %v4581 = vadd.f32 0.0, %v4580
        %4582 = vmatmul.f32.gmra.mxu0 %v4519
        %v4583 = vpop.f32.mrf.mxu0
        %v4584 = vadd.f32 0.0, %v4583
        %4585 = vmatmul.f32.gmra.mxu0 %v4522
        %v4586 = vpop.f32.mrf.mxu0
        %v4587 = vadd.f32 0.0, %v4586
        %4588 = vmatmul.f32.gmra.mxu0 %v4525
        %v4589 = vpop.f32.mrf.mxu0
        %v4590 = vadd.f32 0.0, %v4589
        %4591 = vmatmul.f32.gmra.mxu0 %v4528
        %v4592 = vpop.f32.mrf.mxu0
        %v4593 = vadd.f32 0.0, %v4592
        %4594 = vmatmul.f32.gmra.mxu0 %v4531
        %v4595 = vpop.f32.mrf.mxu0
        %v4596 = vadd.f32 0.0, %v4595
        %4597 = vmatmul.f32.gmra.mxu0 %v4534
        %v4598 = vpop.f32.mrf.mxu0
        %v4599 = vadd.f32 0.0, %v4598
        %4600 = vmatmul.f32.gmra.mxu0 %v4537
        %v4601 = vpop.f32.mrf.mxu0
        %v4602 = vadd.f32 0.0, %v4601
        %4603 = vmatmul.f32.gmra.mxu0 %v4540
        %v4604 = vpop.f32.mrf.mxu0
        %v4605 = vadd.f32 0.0, %v4604
        %4606 = vmatmul.f32.gmra.mxu0 %v4543
        %v4607 = vpop.f32.mrf.mxu0
        %v4608 = vadd.f32 0.0, %v4607
        %4609 = vmatmul.f32.gmra.mxu0 %v4546
        %v4610 = vpop.f32.mrf.mxu0
        %v4611 = vadd.f32 0.0, %v4610
        %4612 = vmatmul.f32.gmra.mxu0 %v4549
        %v4613 = vpop.f32.mrf.mxu0
        %v4614 = vadd.f32 0.0, %v4613
        %4615 = vmatmul.f32.gmra.mxu0 %v4552
        %v4616 = vpop.f32.mrf.mxu0
        %v4617 = vadd.f32 0.0, %v4616
        %4618 = vdwg.mxu0
        %v4619 = vadd.f32 %v4470, %v4572
        %v4620 = vadd.f32 %v4471, %v4575
        %v4621 = vadd.f32 %v4472, %v4578
        %v4622 = vadd.f32 %v4473, %v4581
        %v4623 = vadd.f32 %v4474, %v4584
        %v4624 = vadd.f32 %v4475, %v4587
        %v4625 = vadd.f32 %v4476, %v4590
        %v4626 = vadd.f32 %v4477, %v4593
        %v4627 = vadd.f32 %v4478, %v4596
        %v4628 = vadd.f32 %v4479, %v4599
        %v4629 = vadd.f32 %v4480, %v4602
        %v4630 = vadd.f32 %v4481, %v4605
        %v4631 = vadd.f32 %v4482, %v4608
        %v4632 = vadd.f32 %v4483, %v4611
        %v4633 = vadd.f32 %v4484, %v4614
        %v4634 = vadd.f32 %v4485, %v4617
        %s4635 = scalar_lea.vmem [#allocation2], 48
        %v4636 = vld [vmem:[%s4635] sm:$0xff]
        %v4637 = vld [vmem:[%s4635 + $0x8] sm:$0xff]
        %v4638 = vld [vmem:[%s4635 + $0x18] sm:$0xff]
        %v4639 = vld [vmem:[%s4635 + $0x20] sm:$0xff]
        %v4640 = vld [vmem:[%s4635 + $0x30] sm:$0xff]
        %v4641 = vld [vmem:[%s4635 + $0x38] sm:$0xff]
        %v4642 = vld [vmem:[%s4635 + $0x48] sm:$0xff]
        %v4643 = vld [vmem:[%s4635 + $0x50] sm:$0xff]
        %v4644 = vld [vmem:[%s4635 + $0x60] sm:$0xff]
        %v4645 = vld [vmem:[%s4635 + $0x68] sm:$0xff]
        %v4646 = vld [vmem:[%s4635 + $0x78] sm:$0xff]
        %v4647 = vld [vmem:[%s4635 + $0x80] sm:$0xff]
        %v4648 = vld [vmem:[%s4635 + $0x90] sm:$0xff]
        %v4649 = vld [vmem:[%s4635 + $0x98] sm:$0xff]
        %v4650 = vld [vmem:[%s4635 + $0xa8] sm:$0xff]
        %v4651 = vld [vmem:[%s4635 + $0xb0] sm:$0xff]
        %v4652 = vld [vmem:[%s3 + $0xc0] sm:$0xff]
        %v4653 = vld [vmem:[%s3 + $0xc8] sm:$0xff]
        %v4654 = vld [vmem:[%s3 + $0xd0] sm:$0xff]
        %v4655 = vld [vmem:[%s3 + $0xd8] sm:$0xff]
        %v4657 = vsel %vm386, %v4636, 0
        %v4660 = vsel %vm386, %v4637, 0
        %v4663 = vsel %vm386, %v4638, 0
        %v4666 = vsel %vm386, %v4639, 0
        %v4669 = vsel %vm386, %v4640, 0
        %v4672 = vsel %vm386, %v4641, 0
        %v4675 = vsel %vm386, %v4642, 0
        %v4678 = vsel %vm386, %v4643, 0
        %v4681 = vsel %vm386, %v4644, 0
        %v4684 = vsel %vm386, %v4645, 0
        %v4687 = vsel %vm386, %v4646, 0
        %v4690 = vsel %vm386, %v4647, 0
        %v4693 = vsel %vm386, %v4648, 0
        %v4696 = vsel %vm386, %v4649, 0
        %v4699 = vsel %vm386, %v4650, 0
        %v4702 = vsel %vm386, %v4651, 0
        %4704 = vmatpush.msra.mxu0 0.0
        %4705 = vmatpush.msra.mxu0 0.0
        %4706 = vmatpush.msra.mxu0 0.0
        %4707 = vmatpush.msra.mxu0 0.0
        %4708 = vmatpush.msra.mxu0 0.0
        %4709 = vmatpush.msra.mxu0 0.0
        %4710 = vmatpush.msra.mxu0 0.0
        %4711 = vmatpush.msra.mxu0 0.0
        %4712 = vmatpush.msra.mxu0 0.0
        %4713 = vmatpush.msra.mxu0 0.0
        %4714 = vmatpush.msra.mxu0 0.0
        %4715 = vmatpush.msra.mxu0 0.0
        %4716 = vmatpush.msra.mxu0 %v4655
        %4717 = vmatpush.msra.mxu0 %v4654
        %4718 = vmatpush.msra.mxu0 %v4653
        %4719 = vmatpush.msra.mxu0 %v4652
        %4720 = vmatmul.f32.gmra.mxu0 %v4657
        %v4721 = vpop.f32.mrf.mxu0
        %v4722 = vadd.f32 0.0, %v4721
        %4723 = vmatmul.f32.gmra.mxu0 %v4660
        %v4724 = vpop.f32.mrf.mxu0
        %v4725 = vadd.f32 0.0, %v4724
        %4726 = vmatmul.f32.gmra.mxu0 %v4663
        %v4727 = vpop.f32.mrf.mxu0
        %v4728 = vadd.f32 0.0, %v4727
        %4729 = vmatmul.f32.gmra.mxu0 %v4666
        %v4730 = vpop.f32.mrf.mxu0
        %v4731 = vadd.f32 0.0, %v4730
        %4732 = vmatmul.f32.gmra.mxu0 %v4669
        %v4733 = vpop.f32.mrf.mxu0
        %v4734 = vadd.f32 0.0, %v4733
        %4735 = vmatmul.f32.gmra.mxu0 %v4672
        %v4736 = vpop.f32.mrf.mxu0
        %v4737 = vadd.f32 0.0, %v4736
        %4738 = vmatmul.f32.gmra.mxu0 %v4675
        %v4739 = vpop.f32.mrf.mxu0
        %v4740 = vadd.f32 0.0, %v4739
        %4741 = vmatmul.f32.gmra.mxu0 %v4678
        %v4742 = vpop.f32.mrf.mxu0
        %v4743 = vadd.f32 0.0, %v4742
        %4744 = vmatmul.f32.gmra.mxu0 %v4681
        %v4745 = vpop.f32.mrf.mxu0
        %v4746 = vadd.f32 0.0, %v4745
        %4747 = vmatmul.f32.gmra.mxu0 %v4684
        %v4748 = vpop.f32.mrf.mxu0
        %v4749 = vadd.f32 0.0, %v4748
        %4750 = vmatmul.f32.gmra.mxu0 %v4687
        %v4751 = vpop.f32.mrf.mxu0
        %v4752 = vadd.f32 0.0, %v4751
        %4753 = vmatmul.f32.gmra.mxu0 %v4690
        %v4754 = vpop.f32.mrf.mxu0
        %v4755 = vadd.f32 0.0, %v4754
        %4756 = vmatmul.f32.gmra.mxu0 %v4693
        %v4757 = vpop.f32.mrf.mxu0
        %v4758 = vadd.f32 0.0, %v4757
        %4759 = vmatmul.f32.gmra.mxu0 %v4696
        %v4760 = vpop.f32.mrf.mxu0
        %v4761 = vadd.f32 0.0, %v4760
        %4762 = vmatmul.f32.gmra.mxu0 %v4699
        %v4763 = vpop.f32.mrf.mxu0
        %v4764 = vadd.f32 0.0, %v4763
        %4765 = vmatmul.f32.gmra.mxu0 %v4702
        %v4766 = vpop.f32.mrf.mxu0
        %v4767 = vadd.f32 0.0, %v4766
        %4768 = vdwg.mxu0
        %v4769 = vadd.f32 %v4619, %v4722
        %v4770 = vadd.f32 %v4620, %v4725
        %v4771 = vadd.f32 %v4621, %v4728
        %v4772 = vadd.f32 %v4622, %v4731
        %v4773 = vadd.f32 %v4623, %v4734
        %v4774 = vadd.f32 %v4624, %v4737
        %v4775 = vadd.f32 %v4625, %v4740
        %v4776 = vadd.f32 %v4626, %v4743
        %v4777 = vadd.f32 %v4627, %v4746
        %v4778 = vadd.f32 %v4628, %v4749
        %v4779 = vadd.f32 %v4629, %v4752
        %v4780 = vadd.f32 %v4630, %v4755
        %v4781 = vadd.f32 %v4631, %v4758
        %v4782 = vadd.f32 %v4632, %v4761
        %v4783 = vadd.f32 %v4633, %v4764
        %v4784 = vadd.f32 %v4634, %v4767
        %v4785 = vld [vmem:[%s4635 + $0x1] sm:$0xff]
        %v4786 = vld [vmem:[%s4635 + $0x9] sm:$0xff]
        %v4787 = vld [vmem:[%s4635 + $0x19] sm:$0xff]
        %v4788 = vld [vmem:[%s4635 + $0x21] sm:$0xff]
        %v4789 = vld [vmem:[%s4635 + $0x31] sm:$0xff]
        %v4790 = vld [vmem:[%s4635 + $0x39] sm:$0xff]
        %v4791 = vld [vmem:[%s4635 + $0x49] sm:$0xff]
        %v4792 = vld [vmem:[%s4635 + $0x51] sm:$0xff]
        %v4793 = vld [vmem:[%s4635 + $0x61] sm:$0xff]
        %v4794 = vld [vmem:[%s4635 + $0x69] sm:$0xff]
        %v4795 = vld [vmem:[%s4635 + $0x79] sm:$0xff]
        %v4796 = vld [vmem:[%s4635 + $0x81] sm:$0xff]
        %v4797 = vld [vmem:[%s4635 + $0x91] sm:$0xff]
        %v4798 = vld [vmem:[%s4635 + $0x99] sm:$0xff]
        %v4799 = vld [vmem:[%s4635 + $0xa9] sm:$0xff]
        %v4800 = vld [vmem:[%s4635 + $0xb1] sm:$0xff]
        %v4801 = vld [vmem:[%s3 + $0xe0] sm:$0xff]
        %v4802 = vld [vmem:[%s3 + $0xe8] sm:$0xff]
        %v4803 = vld [vmem:[%s3 + $0xf0] sm:$0xff]
        %v4804 = vld [vmem:[%s3 + $0xf8] sm:$0xff]
        %v4806 = vsel %vm386, %v4785, 0
        %v4809 = vsel %vm386, %v4786, 0
        %v4812 = vsel %vm386, %v4787, 0
        %v4815 = vsel %vm386, %v4788, 0
        %v4818 = vsel %vm386, %v4789, 0
        %v4821 = vsel %vm386, %v4790, 0
        %v4824 = vsel %vm386, %v4791, 0
        %v4827 = vsel %vm386, %v4792, 0
        %v4830 = vsel %vm386, %v4793, 0
        %v4833 = vsel %vm386, %v4794, 0
        %v4836 = vsel %vm386, %v4795, 0
        %v4839 = vsel %vm386, %v4796, 0
        %v4842 = vsel %vm386, %v4797, 0
        %v4845 = vsel %vm386, %v4798, 0
        %v4848 = vsel %vm386, %v4799, 0
        %v4851 = vsel %vm386, %v4800, 0
        %4853 = vmatpush.msra.mxu0 0.0
        %4854 = vmatpush.msra.mxu0 0.0
        %4855 = vmatpush.msra.mxu0 0.0
        %4856 = vmatpush.msra.mxu0 0.0
        %4857 = vmatpush.msra.mxu0 0.0
        %4858 = vmatpush.msra.mxu0 0.0
        %4859 = vmatpush.msra.mxu0 0.0
        %4860 = vmatpush.msra.mxu0 0.0
        %4861 = vmatpush.msra.mxu0 0.0
        %4862 = vmatpush.msra.mxu0 0.0
        %4863 = vmatpush.msra.mxu0 0.0
        %4864 = vmatpush.msra.mxu0 0.0
        %4865 = vmatpush.msra.mxu0 %v4804
        %4866 = vmatpush.msra.mxu0 %v4803
        %4867 = vmatpush.msra.mxu0 %v4802
        %4868 = vmatpush.msra.mxu0 %v4801
        %4869 = vmatmul.f32.gmra.mxu0 %v4806
        %v4870 = vpop.f32.mrf.mxu0
        %v4871 = vadd.f32 0.0, %v4870
        %4872 = vmatmul.f32.gmra.mxu0 %v4809
        %v4873 = vpop.f32.mrf.mxu0
        %v4874 = vadd.f32 0.0, %v4873
        %4875 = vmatmul.f32.gmra.mxu0 %v4812
        %v4876 = vpop.f32.mrf.mxu0
        %v4877 = vadd.f32 0.0, %v4876
        %4878 = vmatmul.f32.gmra.mxu0 %v4815
        %v4879 = vpop.f32.mrf.mxu0
        %v4880 = vadd.f32 0.0, %v4879
        %4881 = vmatmul.f32.gmra.mxu0 %v4818
        %v4882 = vpop.f32.mrf.mxu0
        %v4883 = vadd.f32 0.0, %v4882
        %4884 = vmatmul.f32.gmra.mxu0 %v4821
        %v4885 = vpop.f32.mrf.mxu0
        %v4886 = vadd.f32 0.0, %v4885
        %4887 = vmatmul.f32.gmra.mxu0 %v4824
        %v4888 = vpop.f32.mrf.mxu0
        %v4889 = vadd.f32 0.0, %v4888
        %4890 = vmatmul.f32.gmra.mxu0 %v4827
        %v4891 = vpop.f32.mrf.mxu0
        %v4892 = vadd.f32 0.0, %v4891
        %4893 = vmatmul.f32.gmra.mxu0 %v4830
        %v4894 = vpop.f32.mrf.mxu0
        %v4895 = vadd.f32 0.0, %v4894
        %4896 = vmatmul.f32.gmra.mxu0 %v4833
        %v4897 = vpop.f32.mrf.mxu0
        %v4898 = vadd.f32 0.0, %v4897
        %4899 = vmatmul.f32.gmra.mxu0 %v4836
        %v4900 = vpop.f32.mrf.mxu0
        %v4901 = vadd.f32 0.0, %v4900
        %4902 = vmatmul.f32.gmra.mxu0 %v4839
        %v4903 = vpop.f32.mrf.mxu0
        %v4904 = vadd.f32 0.0, %v4903
        %4905 = vmatmul.f32.gmra.mxu0 %v4842
        %v4906 = vpop.f32.mrf.mxu0
        %v4907 = vadd.f32 0.0, %v4906
        %4908 = vmatmul.f32.gmra.mxu0 %v4845
        %v4909 = vpop.f32.mrf.mxu0
        %v4910 = vadd.f32 0.0, %v4909
        %4911 = vmatmul.f32.gmra.mxu0 %v4848
        %v4912 = vpop.f32.mrf.mxu0
        %v4913 = vadd.f32 0.0, %v4912
        %4914 = vmatmul.f32.gmra.mxu0 %v4851
        %v4915 = vpop.f32.mrf.mxu0
        %v4916 = vadd.f32 0.0, %v4915
        %4917 = vdwg.mxu0
        %v4918 = vadd.f32 %v4769, %v4871
        %v4919 = vadd.f32 %v4770, %v4874
        %v4920 = vadd.f32 %v4771, %v4877
        %v4921 = vadd.f32 %v4772, %v4880
        %v4922 = vadd.f32 %v4773, %v4883
        %v4923 = vadd.f32 %v4774, %v4886
        %v4924 = vadd.f32 %v4775, %v4889
        %v4925 = vadd.f32 %v4776, %v4892
        %v4926 = vadd.f32 %v4777, %v4895
        %v4927 = vadd.f32 %v4778, %v4898
        %v4928 = vadd.f32 %v4779, %v4901
        %v4929 = vadd.f32 %v4780, %v4904
        %v4930 = vadd.f32 %v4781, %v4907
        %v4931 = vadd.f32 %v4782, %v4910
        %v4932 = vadd.f32 %v4783, %v4913
        %v4933 = vadd.f32 %v4784, %v4916
        %v4934 = vld [vmem:[%s4635 + $0x2] sm:$0xff]
        %v4935 = vld [vmem:[%s4635 + $0xa] sm:$0xff]
        %v4936 = vld [vmem:[%s4635 + $0x1a] sm:$0xff]
        %v4937 = vld [vmem:[%s4635 + $0x22] sm:$0xff]
        %v4938 = vld [vmem:[%s4635 + $0x32] sm:$0xff]
        %v4939 = vld [vmem:[%s4635 + $0x3a] sm:$0xff]
        %v4940 = vld [vmem:[%s4635 + $0x4a] sm:$0xff]
        %v4941 = vld [vmem:[%s4635 + $0x52] sm:$0xff]
        %v4942 = vld [vmem:[%s4635 + $0x62] sm:$0xff]
        %v4943 = vld [vmem:[%s4635 + $0x6a] sm:$0xff]
        %v4944 = vld [vmem:[%s4635 + $0x7a] sm:$0xff]
        %v4945 = vld [vmem:[%s4635 + $0x82] sm:$0xff]
        %v4946 = vld [vmem:[%s4635 + $0x92] sm:$0xff]
        %v4947 = vld [vmem:[%s4635 + $0x9a] sm:$0xff]
        %v4948 = vld [vmem:[%s4635 + $0xaa] sm:$0xff]
        %v4949 = vld [vmem:[%s4635 + $0xb2] sm:$0xff]
        %v4950 = vld [vmem:[%s3 + $0x100] sm:$0xff]
        %v4951 = vld [vmem:[%s3 + $0x108] sm:$0xff]
        %v4952 = vld [vmem:[%s3 + $0x110] sm:$0xff]
        %v4953 = vld [vmem:[%s3 + $0x118] sm:$0xff]
        %v4955 = vsel %vm386, %v4934, 0
        %v4958 = vsel %vm386, %v4935, 0
        %v4961 = vsel %vm386, %v4936, 0
        %v4964 = vsel %vm386, %v4937, 0
        %v4967 = vsel %vm386, %v4938, 0
        %v4970 = vsel %vm386, %v4939, 0
        %v4973 = vsel %vm386, %v4940, 0
        %v4976 = vsel %vm386, %v4941, 0
        %v4979 = vsel %vm386, %v4942, 0
        %v4982 = vsel %vm386, %v4943, 0
        %v4985 = vsel %vm386, %v4944, 0
        %v4988 = vsel %vm386, %v4945, 0
        %v4991 = vsel %vm386, %v4946, 0
        %v4994 = vsel %vm386, %v4947, 0
        %v4997 = vsel %vm386, %v4948, 0
        %v5000 = vsel %vm386, %v4949, 0
        %5002 = vmatpush.msra.mxu0 0.0
        %5003 = vmatpush.msra.mxu0 0.0
        %5004 = vmatpush.msra.mxu0 0.0
        %5005 = vmatpush.msra.mxu0 0.0
        %5006 = vmatpush.msra.mxu0 0.0
        %5007 = vmatpush.msra.mxu0 0.0
        %5008 = vmatpush.msra.mxu0 0.0
        %5009 = vmatpush.msra.mxu0 0.0
        %5010 = vmatpush.msra.mxu0 0.0
        %5011 = vmatpush.msra.mxu0 0.0
        %5012 = vmatpush.msra.mxu0 0.0
        %5013 = vmatpush.msra.mxu0 0.0
        %5014 = vmatpush.msra.mxu0 %v4953
        %5015 = vmatpush.msra.mxu0 %v4952
        %5016 = vmatpush.msra.mxu0 %v4951
        %5017 = vmatpush.msra.mxu0 %v4950
        %5018 = vmatmul.f32.gmra.mxu0 %v4955
        %v5019 = vpop.f32.mrf.mxu0
        %v5020 = vadd.f32 0.0, %v5019
        %5021 = vmatmul.f32.gmra.mxu0 %v4958
        %v5022 = vpop.f32.mrf.mxu0
        %v5023 = vadd.f32 0.0, %v5022
        %5024 = vmatmul.f32.gmra.mxu0 %v4961
        %v5025 = vpop.f32.mrf.mxu0
        %v5026 = vadd.f32 0.0, %v5025
        %5027 = vmatmul.f32.gmra.mxu0 %v4964
        %v5028 = vpop.f32.mrf.mxu0
        %v5029 = vadd.f32 0.0, %v5028
        %5030 = vmatmul.f32.gmra.mxu0 %v4967
        %v5031 = vpop.f32.mrf.mxu0
        %v5032 = vadd.f32 0.0, %v5031
        %5033 = vmatmul.f32.gmra.mxu0 %v4970
        %v5034 = vpop.f32.mrf.mxu0
        %v5035 = vadd.f32 0.0, %v5034
        %5036 = vmatmul.f32.gmra.mxu0 %v4973
        %v5037 = vpop.f32.mrf.mxu0
        %v5038 = vadd.f32 0.0, %v5037
        %5039 = vmatmul.f32.gmra.mxu0 %v4976
        %v5040 = vpop.f32.mrf.mxu0
        %v5041 = vadd.f32 0.0, %v5040
        %5042 = vmatmul.f32.gmra.mxu0 %v4979
        %v5043 = vpop.f32.mrf.mxu0
        %v5044 = vadd.f32 0.0, %v5043
        %5045 = vmatmul.f32.gmra.mxu0 %v4982
        %v5046 = vpop.f32.mrf.mxu0
        %v5047 = vadd.f32 0.0, %v5046
        %5048 = vmatmul.f32.gmra.mxu0 %v4985
        %v5049 = vpop.f32.mrf.mxu0
        %v5050 = vadd.f32 0.0, %v5049
        %5051 = vmatmul.f32.gmra.mxu0 %v4988
        %v5052 = vpop.f32.mrf.mxu0
        %v5053 = vadd.f32 0.0, %v5052
        %5054 = vmatmul.f32.gmra.mxu0 %v4991
        %v5055 = vpop.f32.mrf.mxu0
        %v5056 = vadd.f32 0.0, %v5055
        %5057 = vmatmul.f32.gmra.mxu0 %v4994
        %v5058 = vpop.f32.mrf.mxu0
        %v5059 = vadd.f32 0.0, %v5058
        %5060 = vmatmul.f32.gmra.mxu0 %v4997
        %v5061 = vpop.f32.mrf.mxu0
        %v5062 = vadd.f32 0.0, %v5061
        %5063 = vmatmul.f32.gmra.mxu0 %v5000
        %v5064 = vpop.f32.mrf.mxu0
        %v5065 = vadd.f32 0.0, %v5064
        %5066 = vdwg.mxu0
        %v5067 = vadd.f32 %v4918, %v5020
        %v5068 = vadd.f32 %v4919, %v5023
        %v5069 = vadd.f32 %v4920, %v5026
        %v5070 = vadd.f32 %v4921, %v5029
        %v5071 = vadd.f32 %v4922, %v5032
        %v5072 = vadd.f32 %v4923, %v5035
        %v5073 = vadd.f32 %v4924, %v5038
        %v5074 = vadd.f32 %v4925, %v5041
        %v5075 = vadd.f32 %v4926, %v5044
        %v5076 = vadd.f32 %v4927, %v5047
        %v5077 = vadd.f32 %v4928, %v5050
        %v5078 = vadd.f32 %v4929, %v5053
        %v5079 = vadd.f32 %v4930, %v5056
        %v5080 = vadd.f32 %v4931, %v5059
        %v5081 = vadd.f32 %v4932, %v5062
        %v5082 = vadd.f32 %v4933, %v5065
        %v5083 = vld [vmem:[#allocation8] sm:$0x1]
        %v5085 = vperm.slane %v5083, 0
        %v5087 = vadd.f32 %v5067, %v5085
        %v5088 = vadd.f32 %v5068, %v5085
        %v5089 = vadd.f32 %v5069, %v5085
        %v5090 = vadd.f32 %v5070, %v5085
        %v5091 = vadd.f32 %v5071, %v5085
        %v5092 = vadd.f32 %v5072, %v5085
        %v5093 = vadd.f32 %v5073, %v5085
        %v5094 = vadd.f32 %v5074, %v5085
        %v5095 = vadd.f32 %v5075, %v5085
        %v5096 = vadd.f32 %v5076, %v5085
        %v5097 = vadd.f32 %v5077, %v5085
        %v5098 = vadd.f32 %v5078, %v5085
        %v5099 = vadd.f32 %v5079, %v5085
        %v5100 = vadd.f32 %v5080, %v5085
        %v5101 = vadd.f32 %v5081, %v5085
        %v5102 = vadd.f32 %v5082, %v5085
        %v5103 = vmax.f32 %v5087, 0.0
        %v5104 = vmax.f32 %v5088, 0.0
        %v5105 = vmax.f32 %v5089, 0.0
        %v5106 = vmax.f32 %v5090, 0.0
        %v5107 = vmax.f32 %v5091, 0.0
        %v5108 = vmax.f32 %v5092, 0.0
        %v5109 = vmax.f32 %v5093, 0.0
        %v5110 = vmax.f32 %v5094, 0.0
        %v5111 = vmax.f32 %v5095, 0.0
        %v5112 = vmax.f32 %v5096, 0.0
        %v5113 = vmax.f32 %v5097, 0.0
        %v5114 = vmax.f32 %v5098, 0.0
        %v5115 = vmax.f32 %v5099, 0.0
        %v5116 = vmax.f32 %v5100, 0.0
        %v5117 = vmax.f32 %v5101, 0.0
        %v5118 = vmax.f32 %v5102, 0.0
        %v5135 = vrot.slane %v5103, 2
        %v5136 = vrot.slane %v5103, 4
        %v5137 = vrot.slane %v5103, 6
        %v5138 = vrot.slane %v5104, 2
        %v5139 = vrot.slane %v5104, 4
        %v5140 = vrot.slane %v5104, 6
        %v5141 = vrot.slane %v5105, 2
        %v5142 = vrot.slane %v5105, 4
        %v5143 = vrot.slane %v5105, 6
        %v5144 = vrot.slane %v5106, 2
        %v5145 = vrot.slane %v5106, 4
        %v5146 = vrot.slane %v5106, 6
        %v5147 = vrot.slane %v5107, 2
        %v5148 = vrot.slane %v5107, 4
        %v5149 = vrot.slane %v5107, 6
        %v5150 = vrot.slane %v5108, 2
        %v5151 = vrot.slane %v5108, 4
        %v5152 = vrot.slane %v5108, 6
        %v5153 = vrot.slane %v5109, 2
        %v5154 = vrot.slane %v5109, 4
        %v5155 = vrot.slane %v5109, 6
        %v5156 = vrot.slane %v5110, 2
        %v5157 = vrot.slane %v5110, 4
        %v5158 = vrot.slane %v5110, 6
        %v5159 = vrot.slane %v5111, 2
        %v5160 = vrot.slane %v5111, 4
        %v5161 = vrot.slane %v5111, 6
        %v5162 = vrot.slane %v5112, 2
        %v5163 = vrot.slane %v5112, 4
        %v5164 = vrot.slane %v5112, 6
        %v5165 = vrot.slane %v5113, 2
        %v5166 = vrot.slane %v5113, 4
        %v5167 = vrot.slane %v5113, 6
        %v5168 = vrot.slane %v5114, 2
        %v5169 = vrot.slane %v5114, 4
        %v5170 = vrot.slane %v5114, 6
        %v5171 = vrot.slane %v5115, 2
        %v5172 = vrot.slane %v5115, 4
        %v5173 = vrot.slane %v5115, 6
        %v5174 = vrot.slane %v5116, 2
        %v5175 = vrot.slane %v5116, 4
        %v5176 = vrot.slane %v5116, 6
        %v5177 = vrot.slane %v5117, 2
        %v5178 = vrot.slane %v5117, 4
        %v5179 = vrot.slane %v5117, 6
        %v5180 = vrot.slane %v5118, 2
        %v5181 = vrot.slane %v5118, 4
        %v5182 = vrot.slane %v5118, 6
        %v5231 = vrot.slane %v5103, 7
        %v5232 = vrot.slane %v5231, 2
        %v5233 = vrot.slane %v5135, 7
        %v5234 = vrot.slane %v5233, 2
        %v5235 = vrot.slane %v5136, 7
        %v5236 = vrot.slane %v5235, 2
        %v5237 = vrot.slane %v5137, 7
        %v5238 = vrot.slane %v5237, 2
        %v5239 = vrot.slane %v5104, 7
        %v5240 = vrot.slane %v5239, 2
        %v5241 = vrot.slane %v5138, 7
        %v5242 = vrot.slane %v5241, 2
        %v5243 = vrot.slane %v5139, 7
        %v5244 = vrot.slane %v5243, 2
        %v5245 = vrot.slane %v5140, 7
        %v5246 = vrot.slane %v5245, 2
        %v5247 = vrot.slane %v5105, 7
        %v5248 = vrot.slane %v5247, 2
        %v5249 = vrot.slane %v5141, 7
        %v5250 = vrot.slane %v5249, 2
        %v5251 = vrot.slane %v5142, 7
        %v5252 = vrot.slane %v5251, 2
        %v5253 = vrot.slane %v5143, 7
        %v5254 = vrot.slane %v5253, 2
        %v5255 = vrot.slane %v5106, 7
        %v5256 = vrot.slane %v5255, 2
        %v5257 = vrot.slane %v5144, 7
        %v5258 = vrot.slane %v5257, 2
        %v5259 = vrot.slane %v5145, 7
        %v5260 = vrot.slane %v5259, 2
        %v5261 = vrot.slane %v5146, 7
        %v5262 = vrot.slane %v5261, 2
        %v5263 = vrot.slane %v5107, 7
        %v5264 = vrot.slane %v5263, 2
        %v5265 = vrot.slane %v5147, 7
        %v5266 = vrot.slane %v5265, 2
        %v5267 = vrot.slane %v5148, 7
        %v5268 = vrot.slane %v5267, 2
        %v5269 = vrot.slane %v5149, 7
        %v5270 = vrot.slane %v5269, 2
        %v5271 = vrot.slane %v5108, 7
        %v5272 = vrot.slane %v5271, 2
        %v5273 = vrot.slane %v5150, 7
        %v5274 = vrot.slane %v5273, 2
        %v5275 = vrot.slane %v5151, 7
        %v5276 = vrot.slane %v5275, 2
        %v5277 = vrot.slane %v5152, 7
        %v5278 = vrot.slane %v5277, 2
        %v5279 = vrot.slane %v5109, 7
        %v5280 = vrot.slane %v5279, 2
        %v5281 = vrot.slane %v5153, 7
        %v5282 = vrot.slane %v5281, 2
        %v5283 = vrot.slane %v5154, 7
        %v5284 = vrot.slane %v5283, 2
        %v5285 = vrot.slane %v5155, 7
        %v5286 = vrot.slane %v5285, 2
        %v5287 = vrot.slane %v5110, 7
        %v5288 = vrot.slane %v5287, 2
        %v5289 = vrot.slane %v5156, 7
        %v5290 = vrot.slane %v5289, 2
        %v5291 = vrot.slane %v5157, 7
        %v5292 = vrot.slane %v5291, 2
        %v5293 = vrot.slane %v5158, 7
        %v5294 = vrot.slane %v5293, 2
        %v5295 = vrot.slane %v5111, 7
        %v5296 = vrot.slane %v5295, 2
        %v5297 = vrot.slane %v5159, 7
        %v5298 = vrot.slane %v5297, 2
        %v5299 = vrot.slane %v5160, 7
        %v5300 = vrot.slane %v5299, 2
        %v5301 = vrot.slane %v5161, 7
        %v5302 = vrot.slane %v5301, 2
        %v5303 = vrot.slane %v5112, 7
        %v5304 = vrot.slane %v5303, 2
        %v5305 = vrot.slane %v5162, 7
        %v5306 = vrot.slane %v5305, 2
        %v5307 = vrot.slane %v5163, 7
        %v5308 = vrot.slane %v5307, 2
        %v5309 = vrot.slane %v5164, 7
        %v5310 = vrot.slane %v5309, 2
        %v5311 = vrot.slane %v5113, 7
        %v5312 = vrot.slane %v5311, 2
        %v5313 = vrot.slane %v5165, 7
        %v5314 = vrot.slane %v5313, 2
        %v5315 = vrot.slane %v5166, 7
        %v5316 = vrot.slane %v5315, 2
        %v5317 = vrot.slane %v5167, 7
        %v5318 = vrot.slane %v5317, 2
        %v5319 = vrot.slane %v5114, 7
        %v5320 = vrot.slane %v5319, 2
        %v5321 = vrot.slane %v5168, 7
        %v5322 = vrot.slane %v5321, 2
        %v5323 = vrot.slane %v5169, 7
        %v5324 = vrot.slane %v5323, 2
        %v5325 = vrot.slane %v5170, 7
        %v5326 = vrot.slane %v5325, 2
        %v5327 = vrot.slane %v5115, 7
        %v5328 = vrot.slane %v5327, 2
        %v5329 = vrot.slane %v5171, 7
        %v5330 = vrot.slane %v5329, 2
        %v5331 = vrot.slane %v5172, 7
        %v5332 = vrot.slane %v5331, 2
        %v5333 = vrot.slane %v5173, 7
        %v5334 = vrot.slane %v5333, 2
        %v5335 = vrot.slane %v5116, 7
        %v5336 = vrot.slane %v5335, 2
        %v5337 = vrot.slane %v5174, 7
        %v5338 = vrot.slane %v5337, 2
        %v5339 = vrot.slane %v5175, 7
        %v5340 = vrot.slane %v5339, 2
        %v5341 = vrot.slane %v5176, 7
        %v5342 = vrot.slane %v5341, 2
        %v5343 = vrot.slane %v5117, 7
        %v5344 = vrot.slane %v5343, 2
        %v5345 = vrot.slane %v5177, 7
        %v5346 = vrot.slane %v5345, 2
        %v5347 = vrot.slane %v5178, 7
        %v5348 = vrot.slane %v5347, 2
        %v5349 = vrot.slane %v5179, 7
        %v5350 = vrot.slane %v5349, 2
        %v5351 = vrot.slane %v5118, 7
        %v5352 = vrot.slane %v5351, 2
        %v5353 = vrot.slane %v5180, 7
        %v5354 = vrot.slane %v5353, 2
        %v5355 = vrot.slane %v5181, 7
        %v5356 = vrot.slane %v5355, 2
        %v5357 = vrot.slane %v5182, 7
        %v5358 = vrot.slane %v5357, 2
        %v5423 = vmax.f32 %v5103, %v5232
        %v5424 = vmax.f32 %v5135, %v5234
        %v5425 = vmax.f32 %v5136, %v5236
        %v5426 = vmax.f32 %v5137, %v5238
        %v5427 = vmax.f32 %v5104, %v5240
        %v5428 = vmax.f32 %v5138, %v5242
        %v5429 = vmax.f32 %v5139, %v5244
        %v5430 = vmax.f32 %v5140, %v5246
        %v5431 = vmax.f32 %v5105, %v5248
        %v5432 = vmax.f32 %v5141, %v5250
        %v5433 = vmax.f32 %v5142, %v5252
        %v5434 = vmax.f32 %v5143, %v5254
        %v5435 = vmax.f32 %v5106, %v5256
        %v5436 = vmax.f32 %v5144, %v5258
        %v5437 = vmax.f32 %v5145, %v5260
        %v5438 = vmax.f32 %v5146, %v5262
        %v5439 = vmax.f32 %v5107, %v5264
        %v5440 = vmax.f32 %v5147, %v5266
        %v5441 = vmax.f32 %v5148, %v5268
        %v5442 = vmax.f32 %v5149, %v5270
        %v5443 = vmax.f32 %v5108, %v5272
        %v5444 = vmax.f32 %v5150, %v5274
        %v5445 = vmax.f32 %v5151, %v5276
        %v5446 = vmax.f32 %v5152, %v5278
        %v5447 = vmax.f32 %v5109, %v5280
        %v5448 = vmax.f32 %v5153, %v5282
        %v5449 = vmax.f32 %v5154, %v5284
        %v5450 = vmax.f32 %v5155, %v5286
        %v5451 = vmax.f32 %v5110, %v5288
        %v5452 = vmax.f32 %v5156, %v5290
        %v5453 = vmax.f32 %v5157, %v5292
        %v5454 = vmax.f32 %v5158, %v5294
        %v5455 = vmax.f32 %v5111, %v5296
        %v5456 = vmax.f32 %v5159, %v5298
        %v5457 = vmax.f32 %v5160, %v5300
        %v5458 = vmax.f32 %v5161, %v5302
        %v5459 = vmax.f32 %v5112, %v5304
        %v5460 = vmax.f32 %v5162, %v5306
        %v5461 = vmax.f32 %v5163, %v5308
        %v5462 = vmax.f32 %v5164, %v5310
        %v5463 = vmax.f32 %v5113, %v5312
        %v5464 = vmax.f32 %v5165, %v5314
        %v5465 = vmax.f32 %v5166, %v5316
        %v5466 = vmax.f32 %v5167, %v5318
        %v5467 = vmax.f32 %v5114, %v5320
        %v5468 = vmax.f32 %v5168, %v5322
        %v5469 = vmax.f32 %v5169, %v5324
        %v5470 = vmax.f32 %v5170, %v5326
        %v5471 = vmax.f32 %v5115, %v5328
        %v5472 = vmax.f32 %v5171, %v5330
        %v5473 = vmax.f32 %v5172, %v5332
        %v5474 = vmax.f32 %v5173, %v5334
        %v5475 = vmax.f32 %v5116, %v5336
        %v5476 = vmax.f32 %v5174, %v5338
        %v5477 = vmax.f32 %v5175, %v5340
        %v5478 = vmax.f32 %v5176, %v5342
        %v5479 = vmax.f32 %v5117, %v5344
        %v5480 = vmax.f32 %v5177, %v5346
        %v5481 = vmax.f32 %v5178, %v5348
        %v5482 = vmax.f32 %v5179, %v5350
        %v5483 = vmax.f32 %v5118, %v5352
        %v5484 = vmax.f32 %v5180, %v5354
        %v5485 = vmax.f32 %v5181, %v5356
        %v5486 = vmax.f32 %v5182, %v5358
        %v5487 = vmax.f32 %v5423, %v5431
        %v5488 = vmax.f32 %v5424, %v5432
        %v5489 = vmax.f32 %v5425, %v5433
        %v5490 = vmax.f32 %v5426, %v5434
        %v5491 = vmax.f32 %v5427, %v5435
        %v5492 = vmax.f32 %v5428, %v5436
        %v5493 = vmax.f32 %v5429, %v5437
        %v5494 = vmax.f32 %v5430, %v5438
        %v5495 = vmax.f32 %v5439, %v5447
        %v5496 = vmax.f32 %v5440, %v5448
        %v5497 = vmax.f32 %v5441, %v5449
        %v5498 = vmax.f32 %v5442, %v5450
        %v5499 = vmax.f32 %v5443, %v5451
        %v5500 = vmax.f32 %v5444, %v5452
        %v5501 = vmax.f32 %v5445, %v5453
        %v5502 = vmax.f32 %v5446, %v5454
        %v5503 = vmax.f32 %v5455, %v5463
        %v5504 = vmax.f32 %v5456, %v5464
        %v5505 = vmax.f32 %v5457, %v5465
        %v5506 = vmax.f32 %v5458, %v5466
        %v5507 = vmax.f32 %v5459, %v5467
        %v5508 = vmax.f32 %v5460, %v5468
        %v5509 = vmax.f32 %v5461, %v5469
        %v5510 = vmax.f32 %v5462, %v5470
        %v5511 = vmax.f32 %v5471, %v5479
        %v5512 = vmax.f32 %v5472, %v5480
        %v5513 = vmax.f32 %v5473, %v5481
        %v5514 = vmax.f32 %v5474, %v5482
        %v5515 = vmax.f32 %v5475, %v5483
        %v5516 = vmax.f32 %v5476, %v5484
        %v5517 = vmax.f32 %v5477, %v5485
        %v5518 = vmax.f32 %v5478, %v5486
        %v5551 = vsel %vm1758, %v5487, %v5487
        %v5552 = vsel %vm1760, %v5487, %v5551
        %v5553 = vrot.slane %v5488, 7
        %v5554 = vsel %vm1763, %v5553, %v5552
        %v5555 = vsel %vm1765, %v5553, %v5554
        %v5556 = vsel %vm1767, %v5553, %v5555
        %v5557 = vsel %vm1769, %v5553, %v5556
        %v5558 = vsel %vm1758, %v5489, %v5489
        %v5559 = vsel %vm1760, %v5489, %v5558
        %v5560 = vrot.slane %v5490, 7
        %v5561 = vsel %vm1763, %v5560, %v5559
        %v5562 = vsel %vm1765, %v5560, %v5561
        %v5563 = vsel %vm1767, %v5560, %v5562
        %v5564 = vsel %vm1769, %v5560, %v5563
        %v5565 = vsel %vm1758, %v5491, %v5491
        %v5566 = vsel %vm1760, %v5491, %v5565
        %v5567 = vrot.slane %v5492, 7
        %v5568 = vsel %vm1763, %v5567, %v5566
        %v5569 = vsel %vm1765, %v5567, %v5568
        %v5570 = vsel %vm1767, %v5567, %v5569
        %v5571 = vsel %vm1769, %v5567, %v5570
        %v5572 = vsel %vm1758, %v5493, %v5493
        %v5573 = vsel %vm1760, %v5493, %v5572
        %v5574 = vrot.slane %v5494, 7
        %v5575 = vsel %vm1763, %v5574, %v5573
        %v5576 = vsel %vm1765, %v5574, %v5575
        %v5577 = vsel %vm1767, %v5574, %v5576
        %v5578 = vsel %vm1769, %v5574, %v5577
        %v5579 = vsel %vm1758, %v5495, %v5495
        %v5580 = vsel %vm1760, %v5495, %v5579
        %v5581 = vrot.slane %v5496, 7
        %v5582 = vsel %vm1763, %v5581, %v5580
        %v5583 = vsel %vm1765, %v5581, %v5582
        %v5584 = vsel %vm1767, %v5581, %v5583
        %v5585 = vsel %vm1769, %v5581, %v5584
        %v5586 = vsel %vm1758, %v5497, %v5497
        %v5587 = vsel %vm1760, %v5497, %v5586
        %v5588 = vrot.slane %v5498, 7
        %v5589 = vsel %vm1763, %v5588, %v5587
        %v5590 = vsel %vm1765, %v5588, %v5589
        %v5591 = vsel %vm1767, %v5588, %v5590
        %v5592 = vsel %vm1769, %v5588, %v5591
        %v5593 = vsel %vm1758, %v5499, %v5499
        %v5594 = vsel %vm1760, %v5499, %v5593
        %v5595 = vrot.slane %v5500, 7
        %v5596 = vsel %vm1763, %v5595, %v5594
        %v5597 = vsel %vm1765, %v5595, %v5596
        %v5598 = vsel %vm1767, %v5595, %v5597
        %v5599 = vsel %vm1769, %v5595, %v5598
        %v5600 = vsel %vm1758, %v5501, %v5501
        %v5601 = vsel %vm1760, %v5501, %v5600
        %v5602 = vrot.slane %v5502, 7
        %v5603 = vsel %vm1763, %v5602, %v5601
        %v5604 = vsel %vm1765, %v5602, %v5603
        %v5605 = vsel %vm1767, %v5602, %v5604
        %v5606 = vsel %vm1769, %v5602, %v5605
        %v5607 = vsel %vm1758, %v5503, %v5503
        %v5608 = vsel %vm1760, %v5503, %v5607
        %v5609 = vrot.slane %v5504, 7
        %v5610 = vsel %vm1763, %v5609, %v5608
        %v5611 = vsel %vm1765, %v5609, %v5610
        %v5612 = vsel %vm1767, %v5609, %v5611
        %v5613 = vsel %vm1769, %v5609, %v5612
        %v5614 = vsel %vm1758, %v5505, %v5505
        %v5615 = vsel %vm1760, %v5505, %v5614
        %v5616 = vrot.slane %v5506, 7
        %v5617 = vsel %vm1763, %v5616, %v5615
        %v5618 = vsel %vm1765, %v5616, %v5617
        %v5619 = vsel %vm1767, %v5616, %v5618
        %v5620 = vsel %vm1769, %v5616, %v5619
        %v5621 = vsel %vm1758, %v5507, %v5507
        %v5622 = vsel %vm1760, %v5507, %v5621
        %v5623 = vrot.slane %v5508, 7
        %v5624 = vsel %vm1763, %v5623, %v5622
        %v5625 = vsel %vm1765, %v5623, %v5624
        %v5626 = vsel %vm1767, %v5623, %v5625
        %v5627 = vsel %vm1769, %v5623, %v5626
        %v5628 = vsel %vm1758, %v5509, %v5509
        %v5629 = vsel %vm1760, %v5509, %v5628
        %v5630 = vrot.slane %v5510, 7
        %v5631 = vsel %vm1763, %v5630, %v5629
        %v5632 = vsel %vm1765, %v5630, %v5631
        %v5633 = vsel %vm1767, %v5630, %v5632
        %v5634 = vsel %vm1769, %v5630, %v5633
        %v5635 = vsel %vm1758, %v5511, %v5511
        %v5636 = vsel %vm1760, %v5511, %v5635
        %v5637 = vrot.slane %v5512, 7
        %v5638 = vsel %vm1763, %v5637, %v5636
        %v5639 = vsel %vm1765, %v5637, %v5638
        %v5640 = vsel %vm1767, %v5637, %v5639
        %v5641 = vsel %vm1769, %v5637, %v5640
        %v5642 = vsel %vm1758, %v5513, %v5513
        %v5643 = vsel %vm1760, %v5513, %v5642
        %v5644 = vrot.slane %v5514, 7
        %v5645 = vsel %vm1763, %v5644, %v5643
        %v5646 = vsel %vm1765, %v5644, %v5645
        %v5647 = vsel %vm1767, %v5644, %v5646
        %v5648 = vsel %vm1769, %v5644, %v5647
        %v5649 = vsel %vm1758, %v5515, %v5515
        %v5650 = vsel %vm1760, %v5515, %v5649
        %v5651 = vrot.slane %v5516, 7
        %v5652 = vsel %vm1763, %v5651, %v5650
        %v5653 = vsel %vm1765, %v5651, %v5652
        %v5654 = vsel %vm1767, %v5651, %v5653
        %v5655 = vsel %vm1769, %v5651, %v5654
        %v5656 = vsel %vm1758, %v5517, %v5517
        %v5657 = vsel %vm1760, %v5517, %v5656
        %v5658 = vrot.slane %v5518, 7
        %v5659 = vsel %vm1763, %v5658, %v5657
        %v5660 = vsel %vm1765, %v5658, %v5659
        %v5661 = vsel %vm1767, %v5658, %v5660
        %v5662 = vsel %vm1769, %v5658, %v5661
        %v5679 = vrot.slane %v5585, 4
        %v5680 = vsel %vm2789, %v5679, %v5557
        %v5682 = vunpack.c.l.s4 1934713408
        %v5683 = vunpack.c.0.s8 %v5682
        %v5684 = vperm.slane %v5680, %v5683
        %v5685 = vrot.slane %v5684, 4
        %v5686 = vsel %vm2789, 0.0, %v5685
        %v5687 = vrot.slane %v5641, 4
        %v5688 = vsel %vm2789, %v5687, %v5613
        %v5690 = vunpack.c.l.s4 1934713408
        %v5691 = vunpack.c.0.s8 %v5690
        %v5692 = vperm.slane %v5688, %v5691
        %v5693 = vrot.slane %v5692, 4
        %v5694 = vsel %vm2789, 0.0, %v5693
        %v5695 = vrot.slane %v5592, 4
        %v5696 = vsel %vm2789, %v5695, %v5564
        %v5698 = vunpack.c.l.s4 1934713408
        %v5699 = vunpack.c.0.s8 %v5698
        %v5700 = vperm.slane %v5696, %v5699
        %v5701 = vrot.slane %v5700, 4
        %v5702 = vsel %vm2789, 0.0, %v5701
        %v5703 = vrot.slane %v5648, 4
        %v5704 = vsel %vm2789, %v5703, %v5620
        %v5706 = vunpack.c.l.s4 1934713408
        %v5707 = vunpack.c.0.s8 %v5706
        %v5708 = vperm.slane %v5704, %v5707
        %v5709 = vrot.slane %v5708, 4
        %v5710 = vsel %vm2789, 0.0, %v5709
        %v5711 = vrot.slane %v5599, 4
        %v5712 = vsel %vm2789, %v5711, %v5571
        %v5714 = vunpack.c.l.s4 1934713408
        %v5715 = vunpack.c.0.s8 %v5714
        %v5716 = vperm.slane %v5712, %v5715
        %v5717 = vrot.slane %v5716, 4
        %v5718 = vsel %vm2789, 0.0, %v5717
        %v5719 = vrot.slane %v5655, 4
        %v5720 = vsel %vm2789, %v5719, %v5627
        %v5722 = vunpack.c.l.s4 1934713408
        %v5723 = vunpack.c.0.s8 %v5722
        %v5724 = vperm.slane %v5720, %v5723
        %v5725 = vrot.slane %v5724, 4
        %v5726 = vsel %vm2789, 0.0, %v5725
        %v5727 = vrot.slane %v5606, 4
        %v5728 = vsel %vm2789, %v5727, %v5578
        %v5730 = vunpack.c.l.s4 1934713408
        %v5731 = vunpack.c.0.s8 %v5730
        %v5732 = vperm.slane %v5728, %v5731
        %v5733 = vrot.slane %v5732, 4
        %v5734 = vsel %vm2789, 0.0, %v5733
        %v5735 = vrot.slane %v5662, 4
        %v5736 = vsel %vm2789, %v5735, %v5634
        %v5738 = vunpack.c.l.s4 1934713408
        %v5739 = vunpack.c.0.s8 %v5738
        %v5740 = vperm.slane %v5736, %v5739
        %v5741 = vrot.slane %v5740, 4
        %v5742 = vsel %vm2789, 0.0, %v5741
        %5745 = vst [vmem:[#allocation1] ss:$4 sm:$0xff] %v5684
        %s5746 = scalar_lea.vmem [#allocation1], 1
        %5747 = vst [vmem:[%s5746] ss:$4 sm:$0xff] %v5692
        %v5748 = vld.sshfl [vmem:[#allocation1] sm:$0xff pattern:$0x73625140]
        %5752 = vst [vmem:[#allocation1] ss:$4 sm:$0xff] %v5686
        %s5753 = scalar_lea.vmem [#allocation1], 1
        %5754 = vst [vmem:[%s5753] ss:$4 sm:$0xff] %v5694
        %v5755 = vld.sshfl [vmem:[#allocation1] sm:$0xff pattern:$0x73625140]
        %5756 = vrot.lane.b32.xlu0 %v5755, 64
        %v5757 = vpop.permute.xlu0 %5756
        %5761 = vst [vmem:[#allocation1] ss:$4 sm:$0xff] %v5700
        %s5762 = scalar_lea.vmem [#allocation1], 1
        %5763 = vst [vmem:[%s5762] ss:$4 sm:$0xff] %v5708
        %v5764 = vld.sshfl [vmem:[#allocation1] sm:$0xff pattern:$0x73625140]
        %5768 = vst [vmem:[#allocation1] ss:$4 sm:$0xff] %v5702
        %s5769 = scalar_lea.vmem [#allocation1], 1
        %5770 = vst [vmem:[%s5769] ss:$4 sm:$0xff] %v5710
        %v5771 = vld.sshfl [vmem:[#allocation1] sm:$0xff pattern:$0x73625140]
        %5772 = vrot.lane.b32.xlu0 %v5771, 64
        %v5773 = vpop.permute.xlu0 %5772
        %5777 = vst [vmem:[#allocation1] ss:$4 sm:$0xff] %v5716
        %s5778 = scalar_lea.vmem [#allocation1], 1
        %5779 = vst [vmem:[%s5778] ss:$4 sm:$0xff] %v5724
        %v5780 = vld.sshfl [vmem:[#allocation1] sm:$0xff pattern:$0x73625140]
        %5784 = vst [vmem:[#allocation1] ss:$4 sm:$0xff] %v5718
        %s5785 = scalar_lea.vmem [#allocation1], 1
        %5786 = vst [vmem:[%s5785] ss:$4 sm:$0xff] %v5726
        %v5787 = vld.sshfl [vmem:[#allocation1] sm:$0xff pattern:$0x73625140]
        %5788 = vrot.lane.b32.xlu0 %v5787, 64
        %v5789 = vpop.permute.xlu0 %5788
        %5793 = vst [vmem:[#allocation1] ss:$4 sm:$0xff] %v5732
        %s5794 = scalar_lea.vmem [#allocation1], 1
        %5795 = vst [vmem:[%s5794] ss:$4 sm:$0xff] %v5740
        %v5796 = vld.sshfl [vmem:[#allocation1] sm:$0xff pattern:$0x73625140]
        %5800 = vst [vmem:[#allocation1] ss:$4 sm:$0xff] %v5734
        %s5801 = scalar_lea.vmem [#allocation1], 1
        %5802 = vst [vmem:[%s5801] ss:$4 sm:$0xff] %v5742
        %v5803 = vld.sshfl [vmem:[#allocation1] sm:$0xff pattern:$0x73625140]
        %5804 = vrot.lane.b32.xlu0 %v5803, 64
        %v5805 = vpop.permute.xlu0 %5804
        %vm5807 = vcmask 523264
        %v5808 = vsel %vm5807, %v5748, %v5757
        %v5809 = vsel %vm5807, %v5764, %v5773
        %v5810 = vsel %vm5807, %v5780, %v5789
        %v5811 = vsel %vm5807, %v5796, %v5805
        %5812 = vst [vmem:[%s292] sm:$0xf] %v5808
        %5813 = vst [vmem:[%s292 + $0x8] sm:$0xf] %v5809
        %5814 = vst [vmem:[%s292 + $0x10] sm:$0xf] %v5810
        %5815 = vst [vmem:[%s292 + $0x18] sm:$0xf] %v5811
        %s5816 = scalar_lea.vmem [#allocation2], 192
        %v5817 = vld [vmem:[%s5816] sm:$0xff]
        %v5818 = vld [vmem:[%s5816 + $0x8] sm:$0xff]
        %v5819 = vld [vmem:[%s5816 + $0x18] sm:$0xff]
        %v5820 = vld [vmem:[%s5816 + $0x20] sm:$0xff]
        %v5821 = vld [vmem:[%s5816 + $0x30] sm:$0xff]
        %v5822 = vld [vmem:[%s5816 + $0x38] sm:$0xff]
        %v5823 = vld [vmem:[%s5816 + $0x48] sm:$0xff]
        %v5824 = vld [vmem:[%s5816 + $0x50] sm:$0xff]
        %v5825 = vld [vmem:[%s5816 + $0x60] sm:$0xff]
        %v5826 = vld [vmem:[%s5816 + $0x68] sm:$0xff]
        %v5827 = vld [vmem:[%s5816 + $0x78] sm:$0xff]
        %v5828 = vld [vmem:[%s5816 + $0x80] sm:$0xff]
        %v5829 = vld [vmem:[%s5816 + $0x90] sm:$0xff]
        %v5830 = vld [vmem:[%s5816 + $0x98] sm:$0xff]
        %v5831 = vld [vmem:[%s5816 + $0xa8] sm:$0xff]
        %v5832 = vld [vmem:[%s5816 + $0xb0] sm:$0xff]
        %v5833 = vld [vmem:[%s3] sm:$0xff]
        %v5834 = vld [vmem:[%s3 + $0x8] sm:$0xff]
        %v5835 = vld [vmem:[%s3 + $0x10] sm:$0xff]
        %v5836 = vld [vmem:[%s3 + $0x18] sm:$0xff]
        %v5837 = vld [vmem:[%s5816 + $0x1] sm:$0xff]
        %v5838 = vld [vmem:[%s5816 + $0x9] sm:$0xff]
        %v5839 = vld [vmem:[%s5816 + $0x19] sm:$0xff]
        %v5840 = vld [vmem:[%s5816 + $0x21] sm:$0xff]
        %v5841 = vld [vmem:[%s5816 + $0x31] sm:$0xff]
        %v5842 = vld [vmem:[%s5816 + $0x39] sm:$0xff]
        %v5843 = vld [vmem:[%s5816 + $0x49] sm:$0xff]
        %v5844 = vld [vmem:[%s5816 + $0x51] sm:$0xff]
        %v5845 = vld [vmem:[%s5816 + $0x61] sm:$0xff]
        %v5846 = vld [vmem:[%s5816 + $0x69] sm:$0xff]
        %v5847 = vld [vmem:[%s5816 + $0x79] sm:$0xff]
        %v5848 = vld [vmem:[%s5816 + $0x81] sm:$0xff]
        %v5849 = vld [vmem:[%s5816 + $0x91] sm:$0xff]
        %v5850 = vld [vmem:[%s5816 + $0x99] sm:$0xff]
        %v5851 = vld [vmem:[%s5816 + $0xa9] sm:$0xff]
        %v5852 = vld [vmem:[%s5816 + $0xb1] sm:$0xff]
        %v5853 = vld [vmem:[%s3 + $0x20] sm:$0xff]
        %v5854 = vld [vmem:[%s3 + $0x28] sm:$0xff]
        %v5855 = vld [vmem:[%s3 + $0x30] sm:$0xff]
        %v5856 = vld [vmem:[%s3 + $0x38] sm:$0xff]
        %v5858 = vsel %vm386, %v5837, 0
        %v5861 = vsel %vm386, %v5838, 0
        %v5864 = vsel %vm386, %v5839, 0
        %v5867 = vsel %vm386, %v5840, 0
        %v5870 = vsel %vm386, %v5841, 0
        %v5873 = vsel %vm386, %v5842, 0
        %v5876 = vsel %vm386, %v5843, 0
        %v5879 = vsel %vm386, %v5844, 0
        %v5882 = vsel %vm386, %v5845, 0
        %v5885 = vsel %vm386, %v5846, 0
        %v5888 = vsel %vm386, %v5847, 0
        %v5891 = vsel %vm386, %v5848, 0
        %v5894 = vsel %vm386, %v5849, 0
        %v5897 = vsel %vm386, %v5850, 0
        %v5900 = vsel %vm386, %v5851, 0
        %v5903 = vsel %vm386, %v5852, 0
        %5905 = vmatpush.msra.mxu0 0.0
        %5906 = vmatpush.msra.mxu0 0.0
        %5907 = vmatpush.msra.mxu0 0.0
        %5908 = vmatpush.msra.mxu0 0.0
        %5909 = vmatpush.msra.mxu0 0.0
        %5910 = vmatpush.msra.mxu0 0.0
        %5911 = vmatpush.msra.mxu0 0.0
        %5912 = vmatpush.msra.mxu0 0.0
        %5913 = vmatpush.msra.mxu0 0.0
        %5914 = vmatpush.msra.mxu0 0.0
        %5915 = vmatpush.msra.mxu0 0.0
        %5916 = vmatpush.msra.mxu0 0.0
        %5917 = vmatpush.msra.mxu0 %v5856
        %5918 = vmatpush.msra.mxu0 %v5855
        %5919 = vmatpush.msra.mxu0 %v5854
        %5920 = vmatpush.msra.mxu0 %v5853
        %5921 = vmatmul.f32.gmra.mxu0 %v5858
        %v5922 = vpop.f32.mrf.mxu0
        %v5923 = vadd.f32 0.0, %v5922
        %5924 = vmatmul.f32.gmra.mxu0 %v5861
        %v5925 = vpop.f32.mrf.mxu0
        %v5926 = vadd.f32 0.0, %v5925
        %5927 = vmatmul.f32.gmra.mxu0 %v5864
        %v5928 = vpop.f32.mrf.mxu0
        %v5929 = vadd.f32 0.0, %v5928
        %5930 = vmatmul.f32.gmra.mxu0 %v5867
        %v5931 = vpop.f32.mrf.mxu0
        %v5932 = vadd.f32 0.0, %v5931
        %5933 = vmatmul.f32.gmra.mxu0 %v5870
        %v5934 = vpop.f32.mrf.mxu0
        %v5935 = vadd.f32 0.0, %v5934
        %5936 = vmatmul.f32.gmra.mxu0 %v5873
        %v5937 = vpop.f32.mrf.mxu0
        %v5938 = vadd.f32 0.0, %v5937
        %5939 = vmatmul.f32.gmra.mxu0 %v5876
        %v5940 = vpop.f32.mrf.mxu0
        %v5941 = vadd.f32 0.0, %v5940
        %5942 = vmatmul.f32.gmra.mxu0 %v5879
        %v5943 = vpop.f32.mrf.mxu0
        %v5944 = vadd.f32 0.0, %v5943
        %5945 = vmatmul.f32.gmra.mxu0 %v5882
        %v5946 = vpop.f32.mrf.mxu0
        %v5947 = vadd.f32 0.0, %v5946
        %5948 = vmatmul.f32.gmra.mxu0 %v5885
        %v5949 = vpop.f32.mrf.mxu0
        %v5950 = vadd.f32 0.0, %v5949
        %5951 = vmatmul.f32.gmra.mxu0 %v5888
        %v5952 = vpop.f32.mrf.mxu0
        %v5953 = vadd.f32 0.0, %v5952
        %5954 = vmatmul.f32.gmra.mxu0 %v5891
        %v5955 = vpop.f32.mrf.mxu0
        %v5956 = vadd.f32 0.0, %v5955
        %5957 = vmatmul.f32.gmra.mxu0 %v5894
        %v5958 = vpop.f32.mrf.mxu0
        %v5959 = vadd.f32 0.0, %v5958
        %5960 = vmatmul.f32.gmra.mxu0 %v5897
        %v5961 = vpop.f32.mrf.mxu0
        %v5962 = vadd.f32 0.0, %v5961
        %5963 = vmatmul.f32.gmra.mxu0 %v5900
        %v5964 = vpop.f32.mrf.mxu0
        %v5965 = vadd.f32 0.0, %v5964
        %5966 = vmatmul.f32.gmra.mxu0 %v5903
        %v5967 = vpop.f32.mrf.mxu0
        %v5968 = vadd.f32 0.0, %v5967
        %5969 = vdwg.mxu0
        %v5971 = vsel %vm386, %v5817, 0
        %v5974 = vsel %vm386, %v5818, 0
        %v5977 = vsel %vm386, %v5819, 0
        %v5980 = vsel %vm386, %v5820, 0
        %v5983 = vsel %vm386, %v5821, 0
        %v5986 = vsel %vm386, %v5822, 0
        %v5989 = vsel %vm386, %v5823, 0
        %v5992 = vsel %vm386, %v5824, 0
        %v5995 = vsel %vm386, %v5825, 0
        %v5998 = vsel %vm386, %v5826, 0
        %v6001 = vsel %vm386, %v5827, 0
        %v6004 = vsel %vm386, %v5828, 0
        %v6007 = vsel %vm386, %v5829, 0
        %v6010 = vsel %vm386, %v5830, 0
        %v6013 = vsel %vm386, %v5831, 0
        %v6016 = vsel %vm386, %v5832, 0
        %6018 = vmatpush.msra.mxu0 0.0
        %6019 = vmatpush.msra.mxu0 0.0
        %6020 = vmatpush.msra.mxu0 0.0
        %6021 = vmatpush.msra.mxu0 0.0
        %6022 = vmatpush.msra.mxu0 0.0
        %6023 = vmatpush.msra.mxu0 0.0
        %6024 = vmatpush.msra.mxu0 0.0
        %6025 = vmatpush.msra.mxu0 0.0
        %6026 = vmatpush.msra.mxu0 0.0
        %6027 = vmatpush.msra.mxu0 0.0
        %6028 = vmatpush.msra.mxu0 0.0
        %6029 = vmatpush.msra.mxu0 0.0
        %6030 = vmatpush.msra.mxu0 %v5836
        %6031 = vmatpush.msra.mxu0 %v5835
        %6032 = vmatpush.msra.mxu0 %v5834
        %6033 = vmatpush.msra.mxu0 %v5833
        %6034 = vmatmul.f32.gmra.mxu0 %v5971
        %v6035 = vpop.f32.mrf.mxu0
        %v6036 = vadd.f32 %v5923, %v6035
        %6037 = vmatmul.f32.gmra.mxu0 %v5974
        %v6038 = vpop.f32.mrf.mxu0
        %v6039 = vadd.f32 %v5926, %v6038
        %6040 = vmatmul.f32.gmra.mxu0 %v5977
        %v6041 = vpop.f32.mrf.mxu0
        %v6042 = vadd.f32 %v5929, %v6041
        %6043 = vmatmul.f32.gmra.mxu0 %v5980
        %v6044 = vpop.f32.mrf.mxu0
        %v6045 = vadd.f32 %v5932, %v6044
        %6046 = vmatmul.f32.gmra.mxu0 %v5983
        %v6047 = vpop.f32.mrf.mxu0
        %v6048 = vadd.f32 %v5935, %v6047
        %6049 = vmatmul.f32.gmra.mxu0 %v5986
        %v6050 = vpop.f32.mrf.mxu0
        %v6051 = vadd.f32 %v5938, %v6050
        %6052 = vmatmul.f32.gmra.mxu0 %v5989
        %v6053 = vpop.f32.mrf.mxu0
        %v6054 = vadd.f32 %v5941, %v6053
        %6055 = vmatmul.f32.gmra.mxu0 %v5992
        %v6056 = vpop.f32.mrf.mxu0
        %v6057 = vadd.f32 %v5944, %v6056
        %6058 = vmatmul.f32.gmra.mxu0 %v5995
        %v6059 = vpop.f32.mrf.mxu0
        %v6060 = vadd.f32 %v5947, %v6059
        %6061 = vmatmul.f32.gmra.mxu0 %v5998
        %v6062 = vpop.f32.mrf.mxu0
        %v6063 = vadd.f32 %v5950, %v6062
        %6064 = vmatmul.f32.gmra.mxu0 %v6001
        %v6065 = vpop.f32.mrf.mxu0
        %v6066 = vadd.f32 %v5953, %v6065
        %6067 = vmatmul.f32.gmra.mxu0 %v6004
        %v6068 = vpop.f32.mrf.mxu0
        %v6069 = vadd.f32 %v5956, %v6068
        %6070 = vmatmul.f32.gmra.mxu0 %v6007
        %v6071 = vpop.f32.mrf.mxu0
        %v6072 = vadd.f32 %v5959, %v6071
        %6073 = vmatmul.f32.gmra.mxu0 %v6010
        %v6074 = vpop.f32.mrf.mxu0
        %v6075 = vadd.f32 %v5962, %v6074
        %6076 = vmatmul.f32.gmra.mxu0 %v6013
        %v6077 = vpop.f32.mrf.mxu0
        %v6078 = vadd.f32 %v5965, %v6077
        %6079 = vmatmul.f32.gmra.mxu0 %v6016
        %v6080 = vpop.f32.mrf.mxu0
        %v6081 = vadd.f32 %v5968, %v6080
        %6082 = vdwg.mxu0
        %v6083 = vld [vmem:[%s5816 + $0x2] sm:$0xff]
        %v6084 = vld [vmem:[%s5816 + $0xa] sm:$0xff]
        %v6085 = vld [vmem:[%s5816 + $0x1a] sm:$0xff]
        %v6086 = vld [vmem:[%s5816 + $0x22] sm:$0xff]
        %v6087 = vld [vmem:[%s5816 + $0x32] sm:$0xff]
        %v6088 = vld [vmem:[%s5816 + $0x3a] sm:$0xff]
        %v6089 = vld [vmem:[%s5816 + $0x4a] sm:$0xff]
        %v6090 = vld [vmem:[%s5816 + $0x52] sm:$0xff]
        %v6091 = vld [vmem:[%s5816 + $0x62] sm:$0xff]
        %v6092 = vld [vmem:[%s5816 + $0x6a] sm:$0xff]
        %v6093 = vld [vmem:[%s5816 + $0x7a] sm:$0xff]
        %v6094 = vld [vmem:[%s5816 + $0x82] sm:$0xff]
        %v6095 = vld [vmem:[%s5816 + $0x92] sm:$0xff]
        %v6096 = vld [vmem:[%s5816 + $0x9a] sm:$0xff]
        %v6097 = vld [vmem:[%s5816 + $0xaa] sm:$0xff]
        %v6098 = vld [vmem:[%s5816 + $0xb2] sm:$0xff]
        %v6099 = vld [vmem:[%s3 + $0x40] sm:$0xff]
        %v6100 = vld [vmem:[%s3 + $0x48] sm:$0xff]
        %v6101 = vld [vmem:[%s3 + $0x50] sm:$0xff]
        %v6102 = vld [vmem:[%s3 + $0x58] sm:$0xff]
        %v6104 = vsel %vm386, %v6083, 0
        %v6107 = vsel %vm386, %v6084, 0
        %v6110 = vsel %vm386, %v6085, 0
        %v6113 = vsel %vm386, %v6086, 0
        %v6116 = vsel %vm386, %v6087, 0
        %v6119 = vsel %vm386, %v6088, 0
        %v6122 = vsel %vm386, %v6089, 0
        %v6125 = vsel %vm386, %v6090, 0
        %v6128 = vsel %vm386, %v6091, 0
        %v6131 = vsel %vm386, %v6092, 0
        %v6134 = vsel %vm386, %v6093, 0
        %v6137 = vsel %vm386, %v6094, 0
        %v6140 = vsel %vm386, %v6095, 0
        %v6143 = vsel %vm386, %v6096, 0
        %v6146 = vsel %vm386, %v6097, 0
        %v6149 = vsel %vm386, %v6098, 0
        %6151 = vmatpush.msra.mxu0 0.0
        %6152 = vmatpush.msra.mxu0 0.0
        %6153 = vmatpush.msra.mxu0 0.0
        %6154 = vmatpush.msra.mxu0 0.0
        %6155 = vmatpush.msra.mxu0 0.0
        %6156 = vmatpush.msra.mxu0 0.0
        %6157 = vmatpush.msra.mxu0 0.0
        %6158 = vmatpush.msra.mxu0 0.0
        %6159 = vmatpush.msra.mxu0 0.0
        %6160 = vmatpush.msra.mxu0 0.0
        %6161 = vmatpush.msra.mxu0 0.0
        %6162 = vmatpush.msra.mxu0 0.0
        %6163 = vmatpush.msra.mxu0 %v6102
        %6164 = vmatpush.msra.mxu0 %v6101
        %6165 = vmatpush.msra.mxu0 %v6100
        %6166 = vmatpush.msra.mxu0 %v6099
        %6167 = vmatmul.f32.gmra.mxu0 %v6104
        %v6168 = vpop.f32.mrf.mxu0
        %v6169 = vadd.f32 0.0, %v6168
        %6170 = vmatmul.f32.gmra.mxu0 %v6107
        %v6171 = vpop.f32.mrf.mxu0
        %v6172 = vadd.f32 0.0, %v6171
        %6173 = vmatmul.f32.gmra.mxu0 %v6110
        %v6174 = vpop.f32.mrf.mxu0
        %v6175 = vadd.f32 0.0, %v6174
        %6176 = vmatmul.f32.gmra.mxu0 %v6113
        %v6177 = vpop.f32.mrf.mxu0
        %v6178 = vadd.f32 0.0, %v6177
        %6179 = vmatmul.f32.gmra.mxu0 %v6116
        %v6180 = vpop.f32.mrf.mxu0
        %v6181 = vadd.f32 0.0, %v6180
        %6182 = vmatmul.f32.gmra.mxu0 %v6119
        %v6183 = vpop.f32.mrf.mxu0
        %v6184 = vadd.f32 0.0, %v6183
        %6185 = vmatmul.f32.gmra.mxu0 %v6122
        %v6186 = vpop.f32.mrf.mxu0
        %v6187 = vadd.f32 0.0, %v6186
        %6188 = vmatmul.f32.gmra.mxu0 %v6125
        %v6189 = vpop.f32.mrf.mxu0
        %v6190 = vadd.f32 0.0, %v6189
        %6191 = vmatmul.f32.gmra.mxu0 %v6128
        %v6192 = vpop.f32.mrf.mxu0
        %v6193 = vadd.f32 0.0, %v6192
        %6194 = vmatmul.f32.gmra.mxu0 %v6131
        %v6195 = vpop.f32.mrf.mxu0
        %v6196 = vadd.f32 0.0, %v6195
        %6197 = vmatmul.f32.gmra.mxu0 %v6134
        %v6198 = vpop.f32.mrf.mxu0
        %v6199 = vadd.f32 0.0, %v6198
        %6200 = vmatmul.f32.gmra.mxu0 %v6137
        %v6201 = vpop.f32.mrf.mxu0
        %v6202 = vadd.f32 0.0, %v6201
        %6203 = vmatmul.f32.gmra.mxu0 %v6140
        %v6204 = vpop.f32.mrf.mxu0
        %v6205 = vadd.f32 0.0, %v6204
        %6206 = vmatmul.f32.gmra.mxu0 %v6143
        %v6207 = vpop.f32.mrf.mxu0
        %v6208 = vadd.f32 0.0, %v6207
        %6209 = vmatmul.f32.gmra.mxu0 %v6146
        %v6210 = vpop.f32.mrf.mxu0
        %v6211 = vadd.f32 0.0, %v6210
        %6212 = vmatmul.f32.gmra.mxu0 %v6149
        %v6213 = vpop.f32.mrf.mxu0
        %v6214 = vadd.f32 0.0, %v6213
        %6215 = vdwg.mxu0
        %v6216 = vadd.f32 %v6036, %v6169
        %v6217 = vadd.f32 %v6039, %v6172
        %v6218 = vadd.f32 %v6042, %v6175
        %v6219 = vadd.f32 %v6045, %v6178
        %v6220 = vadd.f32 %v6048, %v6181
        %v6221 = vadd.f32 %v6051, %v6184
        %v6222 = vadd.f32 %v6054, %v6187
        %v6223 = vadd.f32 %v6057, %v6190
        %v6224 = vadd.f32 %v6060, %v6193
        %v6225 = vadd.f32 %v6063, %v6196
        %v6226 = vadd.f32 %v6066, %v6199
        %v6227 = vadd.f32 %v6069, %v6202
        %v6228 = vadd.f32 %v6072, %v6205
        %v6229 = vadd.f32 %v6075, %v6208
        %v6230 = vadd.f32 %v6078, %v6211
        %v6231 = vadd.f32 %v6081, %v6214
        %s6232 = scalar_lea.vmem [#allocation2], 216
        %v6233 = vld [vmem:[%s6232] sm:$0xff]
        %v6234 = vld [vmem:[%s6232 + $0x8] sm:$0xff]
        %v6235 = vld [vmem:[%s6232 + $0x18] sm:$0xff]
        %v6236 = vld [vmem:[%s6232 + $0x20] sm:$0xff]
        %v6237 = vld [vmem:[%s6232 + $0x30] sm:$0xff]
        %v6238 = vld [vmem:[%s6232 + $0x38] sm:$0xff]
        %v6239 = vld [vmem:[%s6232 + $0x48] sm:$0xff]
        %v6240 = vld [vmem:[%s6232 + $0x50] sm:$0xff]
        %v6241 = vld [vmem:[%s6232 + $0x60] sm:$0xff]
        %v6242 = vld [vmem:[%s6232 + $0x68] sm:$0xff]
        %v6243 = vld [vmem:[%s6232 + $0x78] sm:$0xff]
        %v6244 = vld [vmem:[%s6232 + $0x80] sm:$0xff]
        %v6245 = vld [vmem:[%s6232 + $0x90] sm:$0xff]
        %v6246 = vld [vmem:[%s6232 + $0x98] sm:$0xff]
        %v6247 = vld [vmem:[%s6232 + $0xa8] sm:$0xff]
        %v6248 = vld [vmem:[%s6232 + $0xb0] sm:$0xff]
        %v6249 = vld [vmem:[%s3 + $0x60] sm:$0xff]
        %v6250 = vld [vmem:[%s3 + $0x68] sm:$0xff]
        %v6251 = vld [vmem:[%s3 + $0x70] sm:$0xff]
        %v6252 = vld [vmem:[%s3 + $0x78] sm:$0xff]
        %v6254 = vsel %vm386, %v6233, 0
        %v6257 = vsel %vm386, %v6234, 0
        %v6260 = vsel %vm386, %v6235, 0
        %v6263 = vsel %vm386, %v6236, 0
        %v6266 = vsel %vm386, %v6237, 0
        %v6269 = vsel %vm386, %v6238, 0
        %v6272 = vsel %vm386, %v6239, 0
        %v6275 = vsel %vm386, %v6240, 0
        %v6278 = vsel %vm386, %v6241, 0
        %v6281 = vsel %vm386, %v6242, 0
        %v6284 = vsel %vm386, %v6243, 0
        %v6287 = vsel %vm386, %v6244, 0
        %v6290 = vsel %vm386, %v6245, 0
        %v6293 = vsel %vm386, %v6246, 0
        %v6296 = vsel %vm386, %v6247, 0
        %v6299 = vsel %vm386, %v6248, 0
        %6301 = vmatpush.msra.mxu0 0.0
        %6302 = vmatpush.msra.mxu0 0.0
        %6303 = vmatpush.msra.mxu0 0.0
        %6304 = vmatpush.msra.mxu0 0.0
        %6305 = vmatpush.msra.mxu0 0.0
        %6306 = vmatpush.msra.mxu0 0.0
        %6307 = vmatpush.msra.mxu0 0.0
        %6308 = vmatpush.msra.mxu0 0.0
        %6309 = vmatpush.msra.mxu0 0.0
        %6310 = vmatpush.msra.mxu0 0.0
        %6311 = vmatpush.msra.mxu0 0.0
        %6312 = vmatpush.msra.mxu0 0.0
        %6313 = vmatpush.msra.mxu0 %v6252
        %6314 = vmatpush.msra.mxu0 %v6251
        %6315 = vmatpush.msra.mxu0 %v6250
        %6316 = vmatpush.msra.mxu0 %v6249
        %6317 = vmatmul.f32.gmra.mxu0 %v6254
        %v6318 = vpop.f32.mrf.mxu0
        %v6319 = vadd.f32 0.0, %v6318
        %6320 = vmatmul.f32.gmra.mxu0 %v6257
        %v6321 = vpop.f32.mrf.mxu0
        %v6322 = vadd.f32 0.0, %v6321
        %6323 = vmatmul.f32.gmra.mxu0 %v6260
        %v6324 = vpop.f32.mrf.mxu0
        %v6325 = vadd.f32 0.0, %v6324
        %6326 = vmatmul.f32.gmra.mxu0 %v6263
        %v6327 = vpop.f32.mrf.mxu0
        %v6328 = vadd.f32 0.0, %v6327
        %6329 = vmatmul.f32.gmra.mxu0 %v6266
        %v6330 = vpop.f32.mrf.mxu0
        %v6331 = vadd.f32 0.0, %v6330
        %6332 = vmatmul.f32.gmra.mxu0 %v6269
        %v6333 = vpop.f32.mrf.mxu0
        %v6334 = vadd.f32 0.0, %v6333
        %6335 = vmatmul.f32.gmra.mxu0 %v6272
        %v6336 = vpop.f32.mrf.mxu0
        %v6337 = vadd.f32 0.0, %v6336
        %6338 = vmatmul.f32.gmra.mxu0 %v6275
        %v6339 = vpop.f32.mrf.mxu0
        %v6340 = vadd.f32 0.0, %v6339
        %6341 = vmatmul.f32.gmra.mxu0 %v6278
        %v6342 = vpop.f32.mrf.mxu0
        %v6343 = vadd.f32 0.0, %v6342
        %6344 = vmatmul.f32.gmra.mxu0 %v6281
        %v6345 = vpop.f32.mrf.mxu0
        %v6346 = vadd.f32 0.0, %v6345
        %6347 = vmatmul.f32.gmra.mxu0 %v6284
        %v6348 = vpop.f32.mrf.mxu0
        %v6349 = vadd.f32 0.0, %v6348
        %6350 = vmatmul.f32.gmra.mxu0 %v6287
        %v6351 = vpop.f32.mrf.mxu0
        %v6352 = vadd.f32 0.0, %v6351
        %6353 = vmatmul.f32.gmra.mxu0 %v6290
        %v6354 = vpop.f32.mrf.mxu0
        %v6355 = vadd.f32 0.0, %v6354
        %6356 = vmatmul.f32.gmra.mxu0 %v6293
        %v6357 = vpop.f32.mrf.mxu0
        %v6358 = vadd.f32 0.0, %v6357
        %6359 = vmatmul.f32.gmra.mxu0 %v6296
        %v6360 = vpop.f32.mrf.mxu0
        %v6361 = vadd.f32 0.0, %v6360
        %6362 = vmatmul.f32.gmra.mxu0 %v6299
        %v6363 = vpop.f32.mrf.mxu0
        %v6364 = vadd.f32 0.0, %v6363
        %6365 = vdwg.mxu0
        %v6366 = vadd.f32 %v6216, %v6319
        %v6367 = vadd.f32 %v6217, %v6322
        %v6368 = vadd.f32 %v6218, %v6325
        %v6369 = vadd.f32 %v6219, %v6328
        %v6370 = vadd.f32 %v6220, %v6331
        %v6371 = vadd.f32 %v6221, %v6334
        %v6372 = vadd.f32 %v6222, %v6337
        %v6373 = vadd.f32 %v6223, %v6340
        %v6374 = vadd.f32 %v6224, %v6343
        %v6375 = vadd.f32 %v6225, %v6346
        %v6376 = vadd.f32 %v6226, %v6349
        %v6377 = vadd.f32 %v6227, %v6352
        %v6378 = vadd.f32 %v6228, %v6355
        %v6379 = vadd.f32 %v6229, %v6358
        %v6380 = vadd.f32 %v6230, %v6361
        %v6381 = vadd.f32 %v6231, %v6364
        %v6382 = vld [vmem:[%s6232 + $0x1] sm:$0xff]
        %v6383 = vld [vmem:[%s6232 + $0x9] sm:$0xff]
        %v6384 = vld [vmem:[%s6232 + $0x19] sm:$0xff]
        %v6385 = vld [vmem:[%s6232 + $0x21] sm:$0xff]
        %v6386 = vld [vmem:[%s6232 + $0x31] sm:$0xff]
        %v6387 = vld [vmem:[%s6232 + $0x39] sm:$0xff]
        %v6388 = vld [vmem:[%s6232 + $0x49] sm:$0xff]
        %v6389 = vld [vmem:[%s6232 + $0x51] sm:$0xff]
        %v6390 = vld [vmem:[%s6232 + $0x61] sm:$0xff]
        %v6391 = vld [vmem:[%s6232 + $0x69] sm:$0xff]
        %v6392 = vld [vmem:[%s6232 + $0x79] sm:$0xff]
        %v6393 = vld [vmem:[%s6232 + $0x81] sm:$0xff]
        %v6394 = vld [vmem:[%s6232 + $0x91] sm:$0xff]
        %v6395 = vld [vmem:[%s6232 + $0x99] sm:$0xff]
        %v6396 = vld [vmem:[%s6232 + $0xa9] sm:$0xff]
        %v6397 = vld [vmem:[%s6232 + $0xb1] sm:$0xff]
        %v6398 = vld [vmem:[%s3 + $0x80] sm:$0xff]
        %v6399 = vld [vmem:[%s3 + $0x88] sm:$0xff]
        %v6400 = vld [vmem:[%s3 + $0x90] sm:$0xff]
        %v6401 = vld [vmem:[%s3 + $0x98] sm:$0xff]
        %v6403 = vsel %vm386, %v6382, 0
        %v6406 = vsel %vm386, %v6383, 0
        %v6409 = vsel %vm386, %v6384, 0
        %v6412 = vsel %vm386, %v6385, 0
        %v6415 = vsel %vm386, %v6386, 0
        %v6418 = vsel %vm386, %v6387, 0
        %v6421 = vsel %vm386, %v6388, 0
        %v6424 = vsel %vm386, %v6389, 0
        %v6427 = vsel %vm386, %v6390, 0
        %v6430 = vsel %vm386, %v6391, 0
        %v6433 = vsel %vm386, %v6392, 0
        %v6436 = vsel %vm386, %v6393, 0
        %v6439 = vsel %vm386, %v6394, 0
        %v6442 = vsel %vm386, %v6395, 0
        %v6445 = vsel %vm386, %v6396, 0
        %v6448 = vsel %vm386, %v6397, 0
        %6450 = vmatpush.msra.mxu0 0.0
        %6451 = vmatpush.msra.mxu0 0.0
        %6452 = vmatpush.msra.mxu0 0.0
        %6453 = vmatpush.msra.mxu0 0.0
        %6454 = vmatpush.msra.mxu0 0.0
        %6455 = vmatpush.msra.mxu0 0.0
        %6456 = vmatpush.msra.mxu0 0.0
        %6457 = vmatpush.msra.mxu0 0.0
        %6458 = vmatpush.msra.mxu0 0.0
        %6459 = vmatpush.msra.mxu0 0.0
        %6460 = vmatpush.msra.mxu0 0.0
        %6461 = vmatpush.msra.mxu0 0.0
        %6462 = vmatpush.msra.mxu0 %v6401
        %6463 = vmatpush.msra.mxu0 %v6400
        %6464 = vmatpush.msra.mxu0 %v6399
        %6465 = vmatpush.msra.mxu0 %v6398
        %6466 = vmatmul.f32.gmra.mxu0 %v6403
        %v6467 = vpop.f32.mrf.mxu0
        %v6468 = vadd.f32 0.0, %v6467
        %6469 = vmatmul.f32.gmra.mxu0 %v6406
        %v6470 = vpop.f32.mrf.mxu0
        %v6471 = vadd.f32 0.0, %v6470
        %6472 = vmatmul.f32.gmra.mxu0 %v6409
        %v6473 = vpop.f32.mrf.mxu0
        %v6474 = vadd.f32 0.0, %v6473
        %6475 = vmatmul.f32.gmra.mxu0 %v6412
        %v6476 = vpop.f32.mrf.mxu0
        %v6477 = vadd.f32 0.0, %v6476
        %6478 = vmatmul.f32.gmra.mxu0 %v6415
        %v6479 = vpop.f32.mrf.mxu0
        %v6480 = vadd.f32 0.0, %v6479
        %6481 = vmatmul.f32.gmra.mxu0 %v6418
        %v6482 = vpop.f32.mrf.mxu0
        %v6483 = vadd.f32 0.0, %v6482
        %6484 = vmatmul.f32.gmra.mxu0 %v6421
        %v6485 = vpop.f32.mrf.mxu0
        %v6486 = vadd.f32 0.0, %v6485
        %6487 = vmatmul.f32.gmra.mxu0 %v6424
        %v6488 = vpop.f32.mrf.mxu0
        %v6489 = vadd.f32 0.0, %v6488
        %6490 = vmatmul.f32.gmra.mxu0 %v6427
        %v6491 = vpop.f32.mrf.mxu0
        %v6492 = vadd.f32 0.0, %v6491
        %6493 = vmatmul.f32.gmra.mxu0 %v6430
        %v6494 = vpop.f32.mrf.mxu0
        %v6495 = vadd.f32 0.0, %v6494
        %6496 = vmatmul.f32.gmra.mxu0 %v6433
        %v6497 = vpop.f32.mrf.mxu0
        %v6498 = vadd.f32 0.0, %v6497
        %6499 = vmatmul.f32.gmra.mxu0 %v6436
        %v6500 = vpop.f32.mrf.mxu0
        %v6501 = vadd.f32 0.0, %v6500
        %6502 = vmatmul.f32.gmra.mxu0 %v6439
        %v6503 = vpop.f32.mrf.mxu0
        %v6504 = vadd.f32 0.0, %v6503
        %6505 = vmatmul.f32.gmra.mxu0 %v6442
        %v6506 = vpop.f32.mrf.mxu0
        %v6507 = vadd.f32 0.0, %v6506
        %6508 = vmatmul.f32.gmra.mxu0 %v6445
        %v6509 = vpop.f32.mrf.mxu0
        %v6510 = vadd.f32 0.0, %v6509
        %6511 = vmatmul.f32.gmra.mxu0 %v6448
        %v6512 = vpop.f32.mrf.mxu0
        %v6513 = vadd.f32 0.0, %v6512
        %6514 = vdwg.mxu0
        %v6515 = vadd.f32 %v6366, %v6468
        %v6516 = vadd.f32 %v6367, %v6471
        %v6517 = vadd.f32 %v6368, %v6474
        %v6518 = vadd.f32 %v6369, %v6477
        %v6519 = vadd.f32 %v6370, %v6480
        %v6520 = vadd.f32 %v6371, %v6483
        %v6521 = vadd.f32 %v6372, %v6486
        %v6522 = vadd.f32 %v6373, %v6489
        %v6523 = vadd.f32 %v6374, %v6492
        %v6524 = vadd.f32 %v6375, %v6495
        %v6525 = vadd.f32 %v6376, %v6498
        %v6526 = vadd.f32 %v6377, %v6501
        %v6527 = vadd.f32 %v6378, %v6504
        %v6528 = vadd.f32 %v6379, %v6507
        %v6529 = vadd.f32 %v6380, %v6510
        %v6530 = vadd.f32 %v6381, %v6513
        %v6531 = vld [vmem:[%s6232 + $0x2] sm:$0xff]
        %v6532 = vld [vmem:[%s6232 + $0xa] sm:$0xff]
        %v6533 = vld [vmem:[%s6232 + $0x1a] sm:$0xff]
        %v6534 = vld [vmem:[%s6232 + $0x22] sm:$0xff]
        %v6535 = vld [vmem:[%s6232 + $0x32] sm:$0xff]
        %v6536 = vld [vmem:[%s6232 + $0x3a] sm:$0xff]
        %v6537 = vld [vmem:[%s6232 + $0x4a] sm:$0xff]
        %v6538 = vld [vmem:[%s6232 + $0x52] sm:$0xff]
        %v6539 = vld [vmem:[%s6232 + $0x62] sm:$0xff]
        %v6540 = vld [vmem:[%s6232 + $0x6a] sm:$0xff]
        %v6541 = vld [vmem:[%s6232 + $0x7a] sm:$0xff]
        %v6542 = vld [vmem:[%s6232 + $0x82] sm:$0xff]
        %v6543 = vld [vmem:[%s6232 + $0x92] sm:$0xff]
        %v6544 = vld [vmem:[%s6232 + $0x9a] sm:$0xff]
        %v6545 = vld [vmem:[%s6232 + $0xaa] sm:$0xff]
        %v6546 = vld [vmem:[%s6232 + $0xb2] sm:$0xff]
        %v6547 = vld [vmem:[%s3 + $0xa0] sm:$0xff]
        %v6548 = vld [vmem:[%s3 + $0xa8] sm:$0xff]
        %v6549 = vld [vmem:[%s3 + $0xb0] sm:$0xff]
        %v6550 = vld [vmem:[%s3 + $0xb8] sm:$0xff]
        %v6552 = vsel %vm386, %v6531, 0
        %v6555 = vsel %vm386, %v6532, 0
        %v6558 = vsel %vm386, %v6533, 0
        %v6561 = vsel %vm386, %v6534, 0
        %v6564 = vsel %vm386, %v6535, 0
        %v6567 = vsel %vm386, %v6536, 0
        %v6570 = vsel %vm386, %v6537, 0
        %v6573 = vsel %vm386, %v6538, 0
        %v6576 = vsel %vm386, %v6539, 0
        %v6579 = vsel %vm386, %v6540, 0
        %v6582 = vsel %vm386, %v6541, 0
        %v6585 = vsel %vm386, %v6542, 0
        %v6588 = vsel %vm386, %v6543, 0
        %v6591 = vsel %vm386, %v6544, 0
        %v6594 = vsel %vm386, %v6545, 0
        %v6597 = vsel %vm386, %v6546, 0
        %6599 = vmatpush.msra.mxu0 0.0
        %6600 = vmatpush.msra.mxu0 0.0
        %6601 = vmatpush.msra.mxu0 0.0
        %6602 = vmatpush.msra.mxu0 0.0
        %6603 = vmatpush.msra.mxu0 0.0
        %6604 = vmatpush.msra.mxu0 0.0
        %6605 = vmatpush.msra.mxu0 0.0
        %6606 = vmatpush.msra.mxu0 0.0
        %6607 = vmatpush.msra.mxu0 0.0
        %6608 = vmatpush.msra.mxu0 0.0
        %6609 = vmatpush.msra.mxu0 0.0
        %6610 = vmatpush.msra.mxu0 0.0
        %6611 = vmatpush.msra.mxu0 %v6550
        %6612 = vmatpush.msra.mxu0 %v6549
        %6613 = vmatpush.msra.mxu0 %v6548
        %6614 = vmatpush.msra.mxu0 %v6547
        %6615 = vmatmul.f32.gmra.mxu0 %v6552
        %v6616 = vpop.f32.mrf.mxu0
        %v6617 = vadd.f32 0.0, %v6616
        %6618 = vmatmul.f32.gmra.mxu0 %v6555
        %v6619 = vpop.f32.mrf.mxu0
        %v6620 = vadd.f32 0.0, %v6619
        %6621 = vmatmul.f32.gmra.mxu0 %v6558
        %v6622 = vpop.f32.mrf.mxu0
        %v6623 = vadd.f32 0.0, %v6622
        %6624 = vmatmul.f32.gmra.mxu0 %v6561
        %v6625 = vpop.f32.mrf.mxu0
        %v6626 = vadd.f32 0.0, %v6625
        %6627 = vmatmul.f32.gmra.mxu0 %v6564
        %v6628 = vpop.f32.mrf.mxu0
        %v6629 = vadd.f32 0.0, %v6628
        %6630 = vmatmul.f32.gmra.mxu0 %v6567
        %v6631 = vpop.f32.mrf.mxu0
        %v6632 = vadd.f32 0.0, %v6631
        %6633 = vmatmul.f32.gmra.mxu0 %v6570
        %v6634 = vpop.f32.mrf.mxu0
        %v6635 = vadd.f32 0.0, %v6634
        %6636 = vmatmul.f32.gmra.mxu0 %v6573
        %v6637 = vpop.f32.mrf.mxu0
        %v6638 = vadd.f32 0.0, %v6637
        %6639 = vmatmul.f32.gmra.mxu0 %v6576
        %v6640 = vpop.f32.mrf.mxu0
        %v6641 = vadd.f32 0.0, %v6640
        %6642 = vmatmul.f32.gmra.mxu0 %v6579
        %v6643 = vpop.f32.mrf.mxu0
        %v6644 = vadd.f32 0.0, %v6643
        %6645 = vmatmul.f32.gmra.mxu0 %v6582
        %v6646 = vpop.f32.mrf.mxu0
        %v6647 = vadd.f32 0.0, %v6646
        %6648 = vmatmul.f32.gmra.mxu0 %v6585
        %v6649 = vpop.f32.mrf.mxu0
        %v6650 = vadd.f32 0.0, %v6649
        %6651 = vmatmul.f32.gmra.mxu0 %v6588
        %v6652 = vpop.f32.mrf.mxu0
        %v6653 = vadd.f32 0.0, %v6652
        %6654 = vmatmul.f32.gmra.mxu0 %v6591
        %v6655 = vpop.f32.mrf.mxu0
        %v6656 = vadd.f32 0.0, %v6655
        %6657 = vmatmul.f32.gmra.mxu0 %v6594
        %v6658 = vpop.f32.mrf.mxu0
        %v6659 = vadd.f32 0.0, %v6658
        %6660 = vmatmul.f32.gmra.mxu0 %v6597
        %v6661 = vpop.f32.mrf.mxu0
        %v6662 = vadd.f32 0.0, %v6661
        %6663 = vdwg.mxu0
        %v6664 = vadd.f32 %v6515, %v6617
        %v6665 = vadd.f32 %v6516, %v6620
        %v6666 = vadd.f32 %v6517, %v6623
        %v6667 = vadd.f32 %v6518, %v6626
        %v6668 = vadd.f32 %v6519, %v6629
        %v6669 = vadd.f32 %v6520, %v6632
        %v6670 = vadd.f32 %v6521, %v6635
        %v6671 = vadd.f32 %v6522, %v6638
        %v6672 = vadd.f32 %v6523, %v6641
        %v6673 = vadd.f32 %v6524, %v6644
        %v6674 = vadd.f32 %v6525, %v6647
        %v6675 = vadd.f32 %v6526, %v6650
        %v6676 = vadd.f32 %v6527, %v6653
        %v6677 = vadd.f32 %v6528, %v6656
        %v6678 = vadd.f32 %v6529, %v6659
        %v6679 = vadd.f32 %v6530, %v6662
        %s6680 = scalar_lea.vmem [#allocation2], 240
        %v6681 = vld [vmem:[%s6680] sm:$0xff]
        %v6682 = vld [vmem:[%s6680 + $0x8] sm:$0xff]
        %v6683 = vld [vmem:[%s6680 + $0x18] sm:$0xff]
        %v6684 = vld [vmem:[%s6680 + $0x20] sm:$0xff]
        %v6685 = vld [vmem:[%s6680 + $0x30] sm:$0xff]
        %v6686 = vld [vmem:[%s6680 + $0x38] sm:$0xff]
        %v6687 = vld [vmem:[%s6680 + $0x48] sm:$0xff]
        %v6688 = vld [vmem:[%s6680 + $0x50] sm:$0xff]
        %v6689 = vld [vmem:[%s6680 + $0x60] sm:$0xff]
        %v6690 = vld [vmem:[%s6680 + $0x68] sm:$0xff]
        %v6691 = vld [vmem:[%s6680 + $0x78] sm:$0xff]
        %v6692 = vld [vmem:[%s6680 + $0x80] sm:$0xff]
        %v6693 = vld [vmem:[%s6680 + $0x90] sm:$0xff]
        %v6694 = vld [vmem:[%s6680 + $0x98] sm:$0xff]
        %v6695 = vld [vmem:[%s6680 + $0xa8] sm:$0xff]
        %v6696 = vld [vmem:[%s6680 + $0xb0] sm:$0xff]
        %v6697 = vld [vmem:[%s3 + $0xc0] sm:$0xff]
        %v6698 = vld [vmem:[%s3 + $0xc8] sm:$0xff]
        %v6699 = vld [vmem:[%s3 + $0xd0] sm:$0xff]
        %v6700 = vld [vmem:[%s3 + $0xd8] sm:$0xff]
        %v6702 = vsel %vm386, %v6681, 0
        %v6705 = vsel %vm386, %v6682, 0
        %v6708 = vsel %vm386, %v6683, 0
        %v6711 = vsel %vm386, %v6684, 0
        %v6714 = vsel %vm386, %v6685, 0
        %v6717 = vsel %vm386, %v6686, 0
        %v6720 = vsel %vm386, %v6687, 0
        %v6723 = vsel %vm386, %v6688, 0
        %v6726 = vsel %vm386, %v6689, 0
        %v6729 = vsel %vm386, %v6690, 0
        %v6732 = vsel %vm386, %v6691, 0
        %v6735 = vsel %vm386, %v6692, 0
        %v6738 = vsel %vm386, %v6693, 0
        %v6741 = vsel %vm386, %v6694, 0
        %v6744 = vsel %vm386, %v6695, 0
        %v6747 = vsel %vm386, %v6696, 0
        %6749 = vmatpush.msra.mxu0 0.0
        %6750 = vmatpush.msra.mxu0 0.0
        %6751 = vmatpush.msra.mxu0 0.0
        %6752 = vmatpush.msra.mxu0 0.0
        %6753 = vmatpush.msra.mxu0 0.0
        %6754 = vmatpush.msra.mxu0 0.0
        %6755 = vmatpush.msra.mxu0 0.0
        %6756 = vmatpush.msra.mxu0 0.0
        %6757 = vmatpush.msra.mxu0 0.0
        %6758 = vmatpush.msra.mxu0 0.0
        %6759 = vmatpush.msra.mxu0 0.0
        %6760 = vmatpush.msra.mxu0 0.0
        %6761 = vmatpush.msra.mxu0 %v6700
        %6762 = vmatpush.msra.mxu0 %v6699
        %6763 = vmatpush.msra.mxu0 %v6698
        %6764 = vmatpush.msra.mxu0 %v6697
        %6765 = vmatmul.f32.gmra.mxu0 %v6702
        %v6766 = vpop.f32.mrf.mxu0
        %v6767 = vadd.f32 0.0, %v6766
        %6768 = vmatmul.f32.gmra.mxu0 %v6705
        %v6769 = vpop.f32.mrf.mxu0
        %v6770 = vadd.f32 0.0, %v6769
        %6771 = vmatmul.f32.gmra.mxu0 %v6708
        %v6772 = vpop.f32.mrf.mxu0
        %v6773 = vadd.f32 0.0, %v6772
        %6774 = vmatmul.f32.gmra.mxu0 %v6711
        %v6775 = vpop.f32.mrf.mxu0
        %v6776 = vadd.f32 0.0, %v6775
        %6777 = vmatmul.f32.gmra.mxu0 %v6714
        %v6778 = vpop.f32.mrf.mxu0
        %v6779 = vadd.f32 0.0, %v6778
        %6780 = vmatmul.f32.gmra.mxu0 %v6717
        %v6781 = vpop.f32.mrf.mxu0
        %v6782 = vadd.f32 0.0, %v6781
        %6783 = vmatmul.f32.gmra.mxu0 %v6720
        %v6784 = vpop.f32.mrf.mxu0
        %v6785 = vadd.f32 0.0, %v6784
        %6786 = vmatmul.f32.gmra.mxu0 %v6723
        %v6787 = vpop.f32.mrf.mxu0
        %v6788 = vadd.f32 0.0, %v6787
        %6789 = vmatmul.f32.gmra.mxu0 %v6726
        %v6790 = vpop.f32.mrf.mxu0
        %v6791 = vadd.f32 0.0, %v6790
        %6792 = vmatmul.f32.gmra.mxu0 %v6729
        %v6793 = vpop.f32.mrf.mxu0
        %v6794 = vadd.f32 0.0, %v6793
        %6795 = vmatmul.f32.gmra.mxu0 %v6732
        %v6796 = vpop.f32.mrf.mxu0
        %v6797 = vadd.f32 0.0, %v6796
        %6798 = vmatmul.f32.gmra.mxu0 %v6735
        %v6799 = vpop.f32.mrf.mxu0
        %v6800 = vadd.f32 0.0, %v6799
        %6801 = vmatmul.f32.gmra.mxu0 %v6738
        %v6802 = vpop.f32.mrf.mxu0
        %v6803 = vadd.f32 0.0, %v6802
        %6804 = vmatmul.f32.gmra.mxu0 %v6741
        %v6805 = vpop.f32.mrf.mxu0
        %v6806 = vadd.f32 0.0, %v6805
        %6807 = vmatmul.f32.gmra.mxu0 %v6744
        %v6808 = vpop.f32.mrf.mxu0
        %v6809 = vadd.f32 0.0, %v6808
        %6810 = vmatmul.f32.gmra.mxu0 %v6747
        %v6811 = vpop.f32.mrf.mxu0
        %v6812 = vadd.f32 0.0, %v6811
        %6813 = vdwg.mxu0
        %v6814 = vadd.f32 %v6664, %v6767
        %v6815 = vadd.f32 %v6665, %v6770
        %v6816 = vadd.f32 %v6666, %v6773
        %v6817 = vadd.f32 %v6667, %v6776
        %v6818 = vadd.f32 %v6668, %v6779
        %v6819 = vadd.f32 %v6669, %v6782
        %v6820 = vadd.f32 %v6670, %v6785
        %v6821 = vadd.f32 %v6671, %v6788
        %v6822 = vadd.f32 %v6672, %v6791
        %v6823 = vadd.f32 %v6673, %v6794
        %v6824 = vadd.f32 %v6674, %v6797
        %v6825 = vadd.f32 %v6675, %v6800
        %v6826 = vadd.f32 %v6676, %v6803
        %v6827 = vadd.f32 %v6677, %v6806
        %v6828 = vadd.f32 %v6678, %v6809
        %v6829 = vadd.f32 %v6679, %v6812
        %v6830 = vld [vmem:[%s6680 + $0x1] sm:$0xff]
        %v6831 = vld [vmem:[%s6680 + $0x9] sm:$0xff]
        %v6832 = vld [vmem:[%s6680 + $0x19] sm:$0xff]
        %v6833 = vld [vmem:[%s6680 + $0x21] sm:$0xff]
        %v6834 = vld [vmem:[%s6680 + $0x31] sm:$0xff]
        %v6835 = vld [vmem:[%s6680 + $0x39] sm:$0xff]
        %v6836 = vld [vmem:[%s6680 + $0x49] sm:$0xff]
        %v6837 = vld [vmem:[%s6680 + $0x51] sm:$0xff]
        %v6838 = vld [vmem:[%s6680 + $0x61] sm:$0xff]
        %v6839 = vld [vmem:[%s6680 + $0x69] sm:$0xff]
        %v6840 = vld [vmem:[%s6680 + $0x79] sm:$0xff]
        %v6841 = vld [vmem:[%s6680 + $0x81] sm:$0xff]
        %v6842 = vld [vmem:[%s6680 + $0x91] sm:$0xff]
        %v6843 = vld [vmem:[%s6680 + $0x99] sm:$0xff]
        %v6844 = vld [vmem:[%s6680 + $0xa9] sm:$0xff]
        %v6845 = vld [vmem:[%s6680 + $0xb1] sm:$0xff]
        %v6846 = vld [vmem:[%s3 + $0xe0] sm:$0xff]
        %v6847 = vld [vmem:[%s3 + $0xe8] sm:$0xff]
        %v6848 = vld [vmem:[%s3 + $0xf0] sm:$0xff]
        %v6849 = vld [vmem:[%s3 + $0xf8] sm:$0xff]
        %v6851 = vsel %vm386, %v6830, 0
        %v6854 = vsel %vm386, %v6831, 0
        %v6857 = vsel %vm386, %v6832, 0
        %v6860 = vsel %vm386, %v6833, 0
        %v6863 = vsel %vm386, %v6834, 0
        %v6866 = vsel %vm386, %v6835, 0
        %v6869 = vsel %vm386, %v6836, 0
        %v6872 = vsel %vm386, %v6837, 0
        %v6875 = vsel %vm386, %v6838, 0
        %v6878 = vsel %vm386, %v6839, 0
        %v6881 = vsel %vm386, %v6840, 0
        %v6884 = vsel %vm386, %v6841, 0
        %v6887 = vsel %vm386, %v6842, 0
        %v6890 = vsel %vm386, %v6843, 0
        %v6893 = vsel %vm386, %v6844, 0
        %v6896 = vsel %vm386, %v6845, 0
        %6898 = vmatpush.msra.mxu0 0.0
        %6899 = vmatpush.msra.mxu0 0.0
        %6900 = vmatpush.msra.mxu0 0.0
        %6901 = vmatpush.msra.mxu0 0.0
        %6902 = vmatpush.msra.mxu0 0.0
        %6903 = vmatpush.msra.mxu0 0.0
        %6904 = vmatpush.msra.mxu0 0.0
        %6905 = vmatpush.msra.mxu0 0.0
        %6906 = vmatpush.msra.mxu0 0.0
        %6907 = vmatpush.msra.mxu0 0.0
        %6908 = vmatpush.msra.mxu0 0.0
        %6909 = vmatpush.msra.mxu0 0.0
        %6910 = vmatpush.msra.mxu0 %v6849
        %6911 = vmatpush.msra.mxu0 %v6848
        %6912 = vmatpush.msra.mxu0 %v6847
        %6913 = vmatpush.msra.mxu0 %v6846
        %6914 = vmatmul.f32.gmra.mxu0 %v6851
        %v6915 = vpop.f32.mrf.mxu0
        %v6916 = vadd.f32 0.0, %v6915
        %6917 = vmatmul.f32.gmra.mxu0 %v6854
        %v6918 = vpop.f32.mrf.mxu0
        %v6919 = vadd.f32 0.0, %v6918
        %6920 = vmatmul.f32.gmra.mxu0 %v6857
        %v6921 = vpop.f32.mrf.mxu0
        %v6922 = vadd.f32 0.0, %v6921
        %6923 = vmatmul.f32.gmra.mxu0 %v6860
        %v6924 = vpop.f32.mrf.mxu0
        %v6925 = vadd.f32 0.0, %v6924
        %6926 = vmatmul.f32.gmra.mxu0 %v6863
        %v6927 = vpop.f32.mrf.mxu0
        %v6928 = vadd.f32 0.0, %v6927
        %6929 = vmatmul.f32.gmra.mxu0 %v6866
        %v6930 = vpop.f32.mrf.mxu0
        %v6931 = vadd.f32 0.0, %v6930
        %6932 = vmatmul.f32.gmra.mxu0 %v6869
        %v6933 = vpop.f32.mrf.mxu0
        %v6934 = vadd.f32 0.0, %v6933
        %6935 = vmatmul.f32.gmra.mxu0 %v6872
        %v6936 = vpop.f32.mrf.mxu0
        %v6937 = vadd.f32 0.0, %v6936
        %6938 = vmatmul.f32.gmra.mxu0 %v6875
        %v6939 = vpop.f32.mrf.mxu0
        %v6940 = vadd.f32 0.0, %v6939
        %6941 = vmatmul.f32.gmra.mxu0 %v6878
        %v6942 = vpop.f32.mrf.mxu0
        %v6943 = vadd.f32 0.0, %v6942
        %6944 = vmatmul.f32.gmra.mxu0 %v6881
        %v6945 = vpop.f32.mrf.mxu0
        %v6946 = vadd.f32 0.0, %v6945
        %6947 = vmatmul.f32.gmra.mxu0 %v6884
        %v6948 = vpop.f32.mrf.mxu0
        %v6949 = vadd.f32 0.0, %v6948
        %6950 = vmatmul.f32.gmra.mxu0 %v6887
        %v6951 = vpop.f32.mrf.mxu0
        %v6952 = vadd.f32 0.0, %v6951
        %6953 = vmatmul.f32.gmra.mxu0 %v6890
        %v6954 = vpop.f32.mrf.mxu0
        %v6955 = vadd.f32 0.0, %v6954
        %6956 = vmatmul.f32.gmra.mxu0 %v6893
        %v6957 = vpop.f32.mrf.mxu0
        %v6958 = vadd.f32 0.0, %v6957
        %6959 = vmatmul.f32.gmra.mxu0 %v6896
        %v6960 = vpop.f32.mrf.mxu0
        %v6961 = vadd.f32 0.0, %v6960
        %6962 = vdwg.mxu0
        %v6963 = vadd.f32 %v6814, %v6916
        %v6964 = vadd.f32 %v6815, %v6919
        %v6965 = vadd.f32 %v6816, %v6922
        %v6966 = vadd.f32 %v6817, %v6925
        %v6967 = vadd.f32 %v6818, %v6928
        %v6968 = vadd.f32 %v6819, %v6931
        %v6969 = vadd.f32 %v6820, %v6934
        %v6970 = vadd.f32 %v6821, %v6937
        %v6971 = vadd.f32 %v6822, %v6940
        %v6972 = vadd.f32 %v6823, %v6943
        %v6973 = vadd.f32 %v6824, %v6946
        %v6974 = vadd.f32 %v6825, %v6949
        %v6975 = vadd.f32 %v6826, %v6952
        %v6976 = vadd.f32 %v6827, %v6955
        %v6977 = vadd.f32 %v6828, %v6958
        %v6978 = vadd.f32 %v6829, %v6961
        %v6979 = vld [vmem:[%s6680 + $0x2] sm:$0xff]
        %v6980 = vld [vmem:[%s6680 + $0xa] sm:$0xff]
        %v6981 = vld [vmem:[%s6680 + $0x1a] sm:$0xff]
        %v6982 = vld [vmem:[%s6680 + $0x22] sm:$0xff]
        %v6983 = vld [vmem:[%s6680 + $0x32] sm:$0xff]
        %v6984 = vld [vmem:[%s6680 + $0x3a] sm:$0xff]
        %v6985 = vld [vmem:[%s6680 + $0x4a] sm:$0xff]
        %v6986 = vld [vmem:[%s6680 + $0x52] sm:$0xff]
        %v6987 = vld [vmem:[%s6680 + $0x62] sm:$0xff]
        %v6988 = vld [vmem:[%s6680 + $0x6a] sm:$0xff]
        %v6989 = vld [vmem:[%s6680 + $0x7a] sm:$0xff]
        %v6990 = vld [vmem:[%s6680 + $0x82] sm:$0xff]
        %v6991 = vld [vmem:[%s6680 + $0x92] sm:$0xff]
        %v6992 = vld [vmem:[%s6680 + $0x9a] sm:$0xff]
        %v6993 = vld [vmem:[%s6680 + $0xaa] sm:$0xff]
        %v6994 = vld [vmem:[%s6680 + $0xb2] sm:$0xff]
        %v6995 = vld [vmem:[%s3 + $0x100] sm:$0xff]
        %v6996 = vld [vmem:[%s3 + $0x108] sm:$0xff]
        %v6997 = vld [vmem:[%s3 + $0x110] sm:$0xff]
        %v6998 = vld [vmem:[%s3 + $0x118] sm:$0xff]
        %v7000 = vsel %vm386, %v6979, 0
        %v7003 = vsel %vm386, %v6980, 0
        %v7006 = vsel %vm386, %v6981, 0
        %v7009 = vsel %vm386, %v6982, 0
        %v7012 = vsel %vm386, %v6983, 0
        %v7015 = vsel %vm386, %v6984, 0
        %v7018 = vsel %vm386, %v6985, 0
        %v7021 = vsel %vm386, %v6986, 0
        %v7024 = vsel %vm386, %v6987, 0
        %v7027 = vsel %vm386, %v6988, 0
        %v7030 = vsel %vm386, %v6989, 0
        %v7033 = vsel %vm386, %v6990, 0
        %v7036 = vsel %vm386, %v6991, 0
        %v7039 = vsel %vm386, %v6992, 0
        %v7042 = vsel %vm386, %v6993, 0
        %v7045 = vsel %vm386, %v6994, 0
        %7047 = vmatpush.msra.mxu0 0.0
        %7048 = vmatpush.msra.mxu0 0.0
        %7049 = vmatpush.msra.mxu0 0.0
        %7050 = vmatpush.msra.mxu0 0.0
        %7051 = vmatpush.msra.mxu0 0.0
        %7052 = vmatpush.msra.mxu0 0.0
        %7053 = vmatpush.msra.mxu0 0.0
        %7054 = vmatpush.msra.mxu0 0.0
        %7055 = vmatpush.msra.mxu0 0.0
        %7056 = vmatpush.msra.mxu0 0.0
        %7057 = vmatpush.msra.mxu0 0.0
        %7058 = vmatpush.msra.mxu0 0.0
        %7059 = vmatpush.msra.mxu0 %v6998
        %7060 = vmatpush.msra.mxu0 %v6997
        %7061 = vmatpush.msra.mxu0 %v6996
        %7062 = vmatpush.msra.mxu0 %v6995
        %7063 = vmatmul.f32.gmra.mxu0 %v7000
        %v7064 = vpop.f32.mrf.mxu0
        %v7065 = vadd.f32 0.0, %v7064
        %7066 = vmatmul.f32.gmra.mxu0 %v7003
        %v7067 = vpop.f32.mrf.mxu0
        %v7068 = vadd.f32 0.0, %v7067
        %7069 = vmatmul.f32.gmra.mxu0 %v7006
        %v7070 = vpop.f32.mrf.mxu0
        %v7071 = vadd.f32 0.0, %v7070
        %7072 = vmatmul.f32.gmra.mxu0 %v7009
        %v7073 = vpop.f32.mrf.mxu0
        %v7074 = vadd.f32 0.0, %v7073
        %7075 = vmatmul.f32.gmra.mxu0 %v7012
        %v7076 = vpop.f32.mrf.mxu0
        %v7077 = vadd.f32 0.0, %v7076
        %7078 = vmatmul.f32.gmra.mxu0 %v7015
        %v7079 = vpop.f32.mrf.mxu0
        %v7080 = vadd.f32 0.0, %v7079
        %7081 = vmatmul.f32.gmra.mxu0 %v7018
        %v7082 = vpop.f32.mrf.mxu0
        %v7083 = vadd.f32 0.0, %v7082
        %7084 = vmatmul.f32.gmra.mxu0 %v7021
        %v7085 = vpop.f32.mrf.mxu0
        %v7086 = vadd.f32 0.0, %v7085
        %7087 = vmatmul.f32.gmra.mxu0 %v7024
        %v7088 = vpop.f32.mrf.mxu0
        %v7089 = vadd.f32 0.0, %v7088
        %7090 = vmatmul.f32.gmra.mxu0 %v7027
        %v7091 = vpop.f32.mrf.mxu0
        %v7092 = vadd.f32 0.0, %v7091
        %7093 = vmatmul.f32.gmra.mxu0 %v7030
        %v7094 = vpop.f32.mrf.mxu0
        %v7095 = vadd.f32 0.0, %v7094
        %7096 = vmatmul.f32.gmra.mxu0 %v7033
        %v7097 = vpop.f32.mrf.mxu0
        %v7098 = vadd.f32 0.0, %v7097
        %7099 = vmatmul.f32.gmra.mxu0 %v7036
        %v7100 = vpop.f32.mrf.mxu0
        %v7101 = vadd.f32 0.0, %v7100
        %7102 = vmatmul.f32.gmra.mxu0 %v7039
        %v7103 = vpop.f32.mrf.mxu0
        %v7104 = vadd.f32 0.0, %v7103
        %7105 = vmatmul.f32.gmra.mxu0 %v7042
        %v7106 = vpop.f32.mrf.mxu0
        %v7107 = vadd.f32 0.0, %v7106
        %7108 = vmatmul.f32.gmra.mxu0 %v7045
        %v7109 = vpop.f32.mrf.mxu0
        %v7110 = vadd.f32 0.0, %v7109
        %7111 = vdwg.mxu0
        %v7112 = vadd.f32 %v6963, %v7065
        %v7113 = vadd.f32 %v6964, %v7068
        %v7114 = vadd.f32 %v6965, %v7071
        %v7115 = vadd.f32 %v6966, %v7074
        %v7116 = vadd.f32 %v6967, %v7077
        %v7117 = vadd.f32 %v6968, %v7080
        %v7118 = vadd.f32 %v6969, %v7083
        %v7119 = vadd.f32 %v6970, %v7086
        %v7120 = vadd.f32 %v6971, %v7089
        %v7121 = vadd.f32 %v6972, %v7092
        %v7122 = vadd.f32 %v6973, %v7095
        %v7123 = vadd.f32 %v6974, %v7098
        %v7124 = vadd.f32 %v6975, %v7101
        %v7125 = vadd.f32 %v6976, %v7104
        %v7126 = vadd.f32 %v6977, %v7107
        %v7127 = vadd.f32 %v6978, %v7110
        %v7128 = vld [vmem:[#allocation8] sm:$0x1]
        %v7130 = vperm.slane %v7128, 0
        %v7132 = vadd.f32 %v7112, %v7130
        %v7133 = vadd.f32 %v7113, %v7130
        %v7134 = vadd.f32 %v7114, %v7130
        %v7135 = vadd.f32 %v7115, %v7130
        %v7136 = vadd.f32 %v7116, %v7130
        %v7137 = vadd.f32 %v7117, %v7130
        %v7138 = vadd.f32 %v7118, %v7130
        %v7139 = vadd.f32 %v7119, %v7130
        %v7140 = vadd.f32 %v7120, %v7130
        %v7141 = vadd.f32 %v7121, %v7130
        %v7142 = vadd.f32 %v7122, %v7130
        %v7143 = vadd.f32 %v7123, %v7130
        %v7144 = vadd.f32 %v7124, %v7130
        %v7145 = vadd.f32 %v7125, %v7130
        %v7146 = vadd.f32 %v7126, %v7130
        %v7147 = vadd.f32 %v7127, %v7130
        %v7148 = vmax.f32 %v7132, 0.0
        %v7149 = vmax.f32 %v7133, 0.0
        %v7150 = vmax.f32 %v7134, 0.0
        %v7151 = vmax.f32 %v7135, 0.0
        %v7152 = vmax.f32 %v7136, 0.0
        %v7153 = vmax.f32 %v7137, 0.0
        %v7154 = vmax.f32 %v7138, 0.0
        %v7155 = vmax.f32 %v7139, 0.0
        %v7156 = vmax.f32 %v7140, 0.0
        %v7157 = vmax.f32 %v7141, 0.0
        %v7158 = vmax.f32 %v7142, 0.0
        %v7159 = vmax.f32 %v7143, 0.0
        %v7160 = vmax.f32 %v7144, 0.0
        %v7161 = vmax.f32 %v7145, 0.0
        %v7162 = vmax.f32 %v7146, 0.0
        %v7163 = vmax.f32 %v7147, 0.0
        %v7180 = vrot.slane %v7148, 2
        %v7181 = vrot.slane %v7148, 4
        %v7182 = vrot.slane %v7148, 6
        %v7183 = vrot.slane %v7149, 2
        %v7184 = vrot.slane %v7149, 4
        %v7185 = vrot.slane %v7149, 6
        %v7186 = vrot.slane %v7150, 2
        %v7187 = vrot.slane %v7150, 4
        %v7188 = vrot.slane %v7150, 6
        %v7189 = vrot.slane %v7151, 2
        %v7190 = vrot.slane %v7151, 4
        %v7191 = vrot.slane %v7151, 6
        %v7192 = vrot.slane %v7152, 2
        %v7193 = vrot.slane %v7152, 4
        %v7194 = vrot.slane %v7152, 6
        %v7195 = vrot.slane %v7153, 2
        %v7196 = vrot.slane %v7153, 4
        %v7197 = vrot.slane %v7153, 6
        %v7198 = vrot.slane %v7154, 2
        %v7199 = vrot.slane %v7154, 4
        %v7200 = vrot.slane %v7154, 6
        %v7201 = vrot.slane %v7155, 2
        %v7202 = vrot.slane %v7155, 4
        %v7203 = vrot.slane %v7155, 6
        %v7204 = vrot.slane %v7156, 2
        %v7205 = vrot.slane %v7156, 4
        %v7206 = vrot.slane %v7156, 6
        %v7207 = vrot.slane %v7157, 2
        %v7208 = vrot.slane %v7157, 4
        %v7209 = vrot.slane %v7157, 6
        %v7210 = vrot.slane %v7158, 2
        %v7211 = vrot.slane %v7158, 4
        %v7212 = vrot.slane %v7158, 6
        %v7213 = vrot.slane %v7159, 2
        %v7214 = vrot.slane %v7159, 4
        %v7215 = vrot.slane %v7159, 6
        %v7216 = vrot.slane %v7160, 2
        %v7217 = vrot.slane %v7160, 4
        %v7218 = vrot.slane %v7160, 6
        %v7219 = vrot.slane %v7161, 2
        %v7220 = vrot.slane %v7161, 4
        %v7221 = vrot.slane %v7161, 6
        %v7222 = vrot.slane %v7162, 2
        %v7223 = vrot.slane %v7162, 4
        %v7224 = vrot.slane %v7162, 6
        %v7225 = vrot.slane %v7163, 2
        %v7226 = vrot.slane %v7163, 4
        %v7227 = vrot.slane %v7163, 6
        %v7276 = vrot.slane %v7148, 7
        %v7277 = vrot.slane %v7276, 2
        %v7278 = vrot.slane %v7180, 7
        %v7279 = vrot.slane %v7278, 2
        %v7280 = vrot.slane %v7181, 7
        %v7281 = vrot.slane %v7280, 2
        %v7282 = vrot.slane %v7182, 7
        %v7283 = vrot.slane %v7282, 2
        %v7284 = vrot.slane %v7149, 7
        %v7285 = vrot.slane %v7284, 2
        %v7286 = vrot.slane %v7183, 7
        %v7287 = vrot.slane %v7286, 2
        %v7288 = vrot.slane %v7184, 7
        %v7289 = vrot.slane %v7288, 2
        %v7290 = vrot.slane %v7185, 7
        %v7291 = vrot.slane %v7290, 2
        %v7292 = vrot.slane %v7150, 7
        %v7293 = vrot.slane %v7292, 2
        %v7294 = vrot.slane %v7186, 7
        %v7295 = vrot.slane %v7294, 2
        %v7296 = vrot.slane %v7187, 7
        %v7297 = vrot.slane %v7296, 2
        %v7298 = vrot.slane %v7188, 7
        %v7299 = vrot.slane %v7298, 2
        %v7300 = vrot.slane %v7151, 7
        %v7301 = vrot.slane %v7300, 2
        %v7302 = vrot.slane %v7189, 7
        %v7303 = vrot.slane %v7302, 2
        %v7304 = vrot.slane %v7190, 7
        %v7305 = vrot.slane %v7304, 2
        %v7306 = vrot.slane %v7191, 7
        %v7307 = vrot.slane %v7306, 2
        %v7308 = vrot.slane %v7152, 7
        %v7309 = vrot.slane %v7308, 2
        %v7310 = vrot.slane %v7192, 7
        %v7311 = vrot.slane %v7310, 2
        %v7312 = vrot.slane %v7193, 7
        %v7313 = vrot.slane %v7312, 2
        %v7314 = vrot.slane %v7194, 7
        %v7315 = vrot.slane %v7314, 2
        %v7316 = vrot.slane %v7153, 7
        %v7317 = vrot.slane %v7316, 2
        %v7318 = vrot.slane %v7195, 7
        %v7319 = vrot.slane %v7318, 2
        %v7320 = vrot.slane %v7196, 7
        %v7321 = vrot.slane %v7320, 2
        %v7322 = vrot.slane %v7197, 7
        %v7323 = vrot.slane %v7322, 2
        %v7324 = vrot.slane %v7154, 7
        %v7325 = vrot.slane %v7324, 2
        %v7326 = vrot.slane %v7198, 7
        %v7327 = vrot.slane %v7326, 2
        %v7328 = vrot.slane %v7199, 7
        %v7329 = vrot.slane %v7328, 2
        %v7330 = vrot.slane %v7200, 7
        %v7331 = vrot.slane %v7330, 2
        %v7332 = vrot.slane %v7155, 7
        %v7333 = vrot.slane %v7332, 2
        %v7334 = vrot.slane %v7201, 7
        %v7335 = vrot.slane %v7334, 2
        %v7336 = vrot.slane %v7202, 7
        %v7337 = vrot.slane %v7336, 2
        %v7338 = vrot.slane %v7203, 7
        %v7339 = vrot.slane %v7338, 2
        %v7340 = vrot.slane %v7156, 7
        %v7341 = vrot.slane %v7340, 2
        %v7342 = vrot.slane %v7204, 7
        %v7343 = vrot.slane %v7342, 2
        %v7344 = vrot.slane %v7205, 7
        %v7345 = vrot.slane %v7344, 2
        %v7346 = vrot.slane %v7206, 7
        %v7347 = vrot.slane %v7346, 2
        %v7348 = vrot.slane %v7157, 7
        %v7349 = vrot.slane %v7348, 2
        %v7350 = vrot.slane %v7207, 7
        %v7351 = vrot.slane %v7350, 2
        %v7352 = vrot.slane %v7208, 7
        %v7353 = vrot.slane %v7352, 2
        %v7354 = vrot.slane %v7209, 7
        %v7355 = vrot.slane %v7354, 2
        %v7356 = vrot.slane %v7158, 7
        %v7357 = vrot.slane %v7356, 2
        %v7358 = vrot.slane %v7210, 7
        %v7359 = vrot.slane %v7358, 2
        %v7360 = vrot.slane %v7211, 7
        %v7361 = vrot.slane %v7360, 2
        %v7362 = vrot.slane %v7212, 7
        %v7363 = vrot.slane %v7362, 2
        %v7364 = vrot.slane %v7159, 7
        %v7365 = vrot.slane %v7364, 2
        %v7366 = vrot.slane %v7213, 7
        %v7367 = vrot.slane %v7366, 2
        %v7368 = vrot.slane %v7214, 7
        %v7369 = vrot.slane %v7368, 2
        %v7370 = vrot.slane %v7215, 7
        %v7371 = vrot.slane %v7370, 2
        %v7372 = vrot.slane %v7160, 7
        %v7373 = vrot.slane %v7372, 2
        %v7374 = vrot.slane %v7216, 7
        %v7375 = vrot.slane %v7374, 2
        %v7376 = vrot.slane %v7217, 7
        %v7377 = vrot.slane %v7376, 2
        %v7378 = vrot.slane %v7218, 7
        %v7379 = vrot.slane %v7378, 2
        %v7380 = vrot.slane %v7161, 7
        %v7381 = vrot.slane %v7380, 2
        %v7382 = vrot.slane %v7219, 7
        %v7383 = vrot.slane %v7382, 2
        %v7384 = vrot.slane %v7220, 7
        %v7385 = vrot.slane %v7384, 2
        %v7386 = vrot.slane %v7221, 7
        %v7387 = vrot.slane %v7386, 2
        %v7388 = vrot.slane %v7162, 7
        %v7389 = vrot.slane %v7388, 2
        %v7390 = vrot.slane %v7222, 7
        %v7391 = vrot.slane %v7390, 2
        %v7392 = vrot.slane %v7223, 7
        %v7393 = vrot.slane %v7392, 2
        %v7394 = vrot.slane %v7224, 7
        %v7395 = vrot.slane %v7394, 2
        %v7396 = vrot.slane %v7163, 7
        %v7397 = vrot.slane %v7396, 2
        %v7398 = vrot.slane %v7225, 7
        %v7399 = vrot.slane %v7398, 2
        %v7400 = vrot.slane %v7226, 7
        %v7401 = vrot.slane %v7400, 2
        %v7402 = vrot.slane %v7227, 7
        %v7403 = vrot.slane %v7402, 2
        %v7468 = vmax.f32 %v7148, %v7277
        %v7469 = vmax.f32 %v7180, %v7279
        %v7470 = vmax.f32 %v7181, %v7281
        %v7471 = vmax.f32 %v7182, %v7283
        %v7472 = vmax.f32 %v7149, %v7285
        %v7473 = vmax.f32 %v7183, %v7287
        %v7474 = vmax.f32 %v7184, %v7289
        %v7475 = vmax.f32 %v7185, %v7291
        %v7476 = vmax.f32 %v7150, %v7293
        %v7477 = vmax.f32 %v7186, %v7295
        %v7478 = vmax.f32 %v7187, %v7297
        %v7479 = vmax.f32 %v7188, %v7299
        %v7480 = vmax.f32 %v7151, %v7301
        %v7481 = vmax.f32 %v7189, %v7303
        %v7482 = vmax.f32 %v7190, %v7305
        %v7483 = vmax.f32 %v7191, %v7307
        %v7484 = vmax.f32 %v7152, %v7309
        %v7485 = vmax.f32 %v7192, %v7311
        %v7486 = vmax.f32 %v7193, %v7313
        %v7487 = vmax.f32 %v7194, %v7315
        %v7488 = vmax.f32 %v7153, %v7317
        %v7489 = vmax.f32 %v7195, %v7319
        %v7490 = vmax.f32 %v7196, %v7321
        %v7491 = vmax.f32 %v7197, %v7323
        %v7492 = vmax.f32 %v7154, %v7325
        %v7493 = vmax.f32 %v7198, %v7327
        %v7494 = vmax.f32 %v7199, %v7329
        %v7495 = vmax.f32 %v7200, %v7331
        %v7496 = vmax.f32 %v7155, %v7333
        %v7497 = vmax.f32 %v7201, %v7335
        %v7498 = vmax.f32 %v7202, %v7337
        %v7499 = vmax.f32 %v7203, %v7339
        %v7500 = vmax.f32 %v7156, %v7341
        %v7501 = vmax.f32 %v7204, %v7343
        %v7502 = vmax.f32 %v7205, %v7345
        %v7503 = vmax.f32 %v7206, %v7347
        %v7504 = vmax.f32 %v7157, %v7349
        %v7505 = vmax.f32 %v7207, %v7351
        %v7506 = vmax.f32 %v7208, %v7353
        %v7507 = vmax.f32 %v7209, %v7355
        %v7508 = vmax.f32 %v7158, %v7357
        %v7509 = vmax.f32 %v7210, %v7359
        %v7510 = vmax.f32 %v7211, %v7361
        %v7511 = vmax.f32 %v7212, %v7363
        %v7512 = vmax.f32 %v7159, %v7365
        %v7513 = vmax.f32 %v7213, %v7367
        %v7514 = vmax.f32 %v7214, %v7369
        %v7515 = vmax.f32 %v7215, %v7371
        %v7516 = vmax.f32 %v7160, %v7373
        %v7517 = vmax.f32 %v7216, %v7375
        %v7518 = vmax.f32 %v7217, %v7377
        %v7519 = vmax.f32 %v7218, %v7379
        %v7520 = vmax.f32 %v7161, %v7381
        %v7521 = vmax.f32 %v7219, %v7383
        %v7522 = vmax.f32 %v7220, %v7385
        %v7523 = vmax.f32 %v7221, %v7387
        %v7524 = vmax.f32 %v7162, %v7389
        %v7525 = vmax.f32 %v7222, %v7391
        %v7526 = vmax.f32 %v7223, %v7393
        %v7527 = vmax.f32 %v7224, %v7395
        %v7528 = vmax.f32 %v7163, %v7397
        %v7529 = vmax.f32 %v7225, %v7399
        %v7530 = vmax.f32 %v7226, %v7401
        %v7531 = vmax.f32 %v7227, %v7403
        %v7532 = vmax.f32 %v7468, %v7476
        %v7533 = vmax.f32 %v7469, %v7477
        %v7534 = vmax.f32 %v7470, %v7478
        %v7535 = vmax.f32 %v7471, %v7479
        %v7536 = vmax.f32 %v7472, %v7480
        %v7537 = vmax.f32 %v7473, %v7481
        %v7538 = vmax.f32 %v7474, %v7482
        %v7539 = vmax.f32 %v7475, %v7483
        %v7540 = vmax.f32 %v7484, %v7492
        %v7541 = vmax.f32 %v7485, %v7493
        %v7542 = vmax.f32 %v7486, %v7494
        %v7543 = vmax.f32 %v7487, %v7495
        %v7544 = vmax.f32 %v7488, %v7496
        %v7545 = vmax.f32 %v7489, %v7497
        %v7546 = vmax.f32 %v7490, %v7498
        %v7547 = vmax.f32 %v7491, %v7499
        %v7548 = vmax.f32 %v7500, %v7508
        %v7549 = vmax.f32 %v7501, %v7509
        %v7550 = vmax.f32 %v7502, %v7510
        %v7551 = vmax.f32 %v7503, %v7511
        %v7552 = vmax.f32 %v7504, %v7512
        %v7553 = vmax.f32 %v7505, %v7513
        %v7554 = vmax.f32 %v7506, %v7514
        %v7555 = vmax.f32 %v7507, %v7515
        %v7556 = vmax.f32 %v7516, %v7524
        %v7557 = vmax.f32 %v7517, %v7525
        %v7558 = vmax.f32 %v7518, %v7526
        %v7559 = vmax.f32 %v7519, %v7527
        %v7560 = vmax.f32 %v7520, %v7528
        %v7561 = vmax.f32 %v7521, %v7529
        %v7562 = vmax.f32 %v7522, %v7530
        %v7563 = vmax.f32 %v7523, %v7531
        %v7596 = vsel %vm1758, %v7532, %v7532
        %v7597 = vsel %vm1760, %v7532, %v7596
        %v7598 = vrot.slane %v7533, 7
        %v7599 = vsel %vm1763, %v7598, %v7597
        %v7600 = vsel %vm1765, %v7598, %v7599
        %v7601 = vsel %vm1767, %v7598, %v7600
        %v7602 = vsel %vm1769, %v7598, %v7601
        %v7603 = vsel %vm1758, %v7534, %v7534
        %v7604 = vsel %vm1760, %v7534, %v7603
        %v7605 = vrot.slane %v7535, 7
        %v7606 = vsel %vm1763, %v7605, %v7604
        %v7607 = vsel %vm1765, %v7605, %v7606
        %v7608 = vsel %vm1767, %v7605, %v7607
        %v7609 = vsel %vm1769, %v7605, %v7608
        %v7610 = vsel %vm1758, %v7536, %v7536
        %v7611 = vsel %vm1760, %v7536, %v7610
        %v7612 = vrot.slane %v7537, 7
        %v7613 = vsel %vm1763, %v7612, %v7611
        %v7614 = vsel %vm1765, %v7612, %v7613
        %v7615 = vsel %vm1767, %v7612, %v7614
        %v7616 = vsel %vm1769, %v7612, %v7615
        %v7617 = vsel %vm1758, %v7538, %v7538
        %v7618 = vsel %vm1760, %v7538, %v7617
        %v7619 = vrot.slane %v7539, 7
        %v7620 = vsel %vm1763, %v7619, %v7618
        %v7621 = vsel %vm1765, %v7619, %v7620
        %v7622 = vsel %vm1767, %v7619, %v7621
        %v7623 = vsel %vm1769, %v7619, %v7622
        %v7624 = vsel %vm1758, %v7540, %v7540
        %v7625 = vsel %vm1760, %v7540, %v7624
        %v7626 = vrot.slane %v7541, 7
        %v7627 = vsel %vm1763, %v7626, %v7625
        %v7628 = vsel %vm1765, %v7626, %v7627
        %v7629 = vsel %vm1767, %v7626, %v7628
        %v7630 = vsel %vm1769, %v7626, %v7629
        %v7631 = vsel %vm1758, %v7542, %v7542
        %v7632 = vsel %vm1760, %v7542, %v7631
        %v7633 = vrot.slane %v7543, 7
        %v7634 = vsel %vm1763, %v7633, %v7632
        %v7635 = vsel %vm1765, %v7633, %v7634
        %v7636 = vsel %vm1767, %v7633, %v7635
        %v7637 = vsel %vm1769, %v7633, %v7636
        %v7638 = vsel %vm1758, %v7544, %v7544
        %v7639 = vsel %vm1760, %v7544, %v7638
        %v7640 = vrot.slane %v7545, 7
        %v7641 = vsel %vm1763, %v7640, %v7639
        %v7642 = vsel %vm1765, %v7640, %v7641
        %v7643 = vsel %vm1767, %v7640, %v7642
        %v7644 = vsel %vm1769, %v7640, %v7643
        %v7645 = vsel %vm1758, %v7546, %v7546
        %v7646 = vsel %vm1760, %v7546, %v7645
        %v7647 = vrot.slane %v7547, 7
        %v7648 = vsel %vm1763, %v7647, %v7646
        %v7649 = vsel %vm1765, %v7647, %v7648
        %v7650 = vsel %vm1767, %v7647, %v7649
        %v7651 = vsel %vm1769, %v7647, %v7650
        %v7652 = vsel %vm1758, %v7548, %v7548
        %v7653 = vsel %vm1760, %v7548, %v7652
        %v7654 = vrot.slane %v7549, 7
        %v7655 = vsel %vm1763, %v7654, %v7653
        %v7656 = vsel %vm1765, %v7654, %v7655
        %v7657 = vsel %vm1767, %v7654, %v7656
        %v7658 = vsel %vm1769, %v7654, %v7657
        %v7659 = vsel %vm1758, %v7550, %v7550
        %v7660 = vsel %vm1760, %v7550, %v7659
        %v7661 = vrot.slane %v7551, 7
        %v7662 = vsel %vm1763, %v7661, %v7660
        %v7663 = vsel %vm1765, %v7661, %v7662
        %v7664 = vsel %vm1767, %v7661, %v7663
        %v7665 = vsel %vm1769, %v7661, %v7664
        %v7666 = vsel %vm1758, %v7552, %v7552
        %v7667 = vsel %vm1760, %v7552, %v7666
        %v7668 = vrot.slane %v7553, 7
        %v7669 = vsel %vm1763, %v7668, %v7667
        %v7670 = vsel %vm1765, %v7668, %v7669
        %v7671 = vsel %vm1767, %v7668, %v7670
        %v7672 = vsel %vm1769, %v7668, %v7671
        %v7673 = vsel %vm1758, %v7554, %v7554
        %v7674 = vsel %vm1760, %v7554, %v7673
        %v7675 = vrot.slane %v7555, 7
        %v7676 = vsel %vm1763, %v7675, %v7674
        %v7677 = vsel %vm1765, %v7675, %v7676
        %v7678 = vsel %vm1767, %v7675, %v7677
        %v7679 = vsel %vm1769, %v7675, %v7678
        %v7680 = vsel %vm1758, %v7556, %v7556
        %v7681 = vsel %vm1760, %v7556, %v7680
        %v7682 = vrot.slane %v7557, 7
        %v7683 = vsel %vm1763, %v7682, %v7681
        %v7684 = vsel %vm1765, %v7682, %v7683
        %v7685 = vsel %vm1767, %v7682, %v7684
        %v7686 = vsel %vm1769, %v7682, %v7685
        %v7687 = vsel %vm1758, %v7558, %v7558
        %v7688 = vsel %vm1760, %v7558, %v7687
        %v7689 = vrot.slane %v7559, 7
        %v7690 = vsel %vm1763, %v7689, %v7688
        %v7691 = vsel %vm1765, %v7689, %v7690
        %v7692 = vsel %vm1767, %v7689, %v7691
        %v7693 = vsel %vm1769, %v7689, %v7692
        %v7694 = vsel %vm1758, %v7560, %v7560
        %v7695 = vsel %vm1760, %v7560, %v7694
        %v7696 = vrot.slane %v7561, 7
        %v7697 = vsel %vm1763, %v7696, %v7695
        %v7698 = vsel %vm1765, %v7696, %v7697
        %v7699 = vsel %vm1767, %v7696, %v7698
        %v7700 = vsel %vm1769, %v7696, %v7699
        %v7701 = vsel %vm1758, %v7562, %v7562
        %v7702 = vsel %vm1760, %v7562, %v7701
        %v7703 = vrot.slane %v7563, 7
        %v7704 = vsel %vm1763, %v7703, %v7702
        %v7705 = vsel %vm1765, %v7703, %v7704
        %v7706 = vsel %vm1767, %v7703, %v7705
        %v7707 = vsel %vm1769, %v7703, %v7706
        %v7724 = vrot.slane %v7630, 4
        %v7725 = vsel %vm2789, %v7724, %v7602
        %v7727 = vunpack.c.l.s4 1934713408
        %v7728 = vunpack.c.0.s8 %v7727
        %v7729 = vperm.slane %v7725, %v7728
        %v7730 = vrot.slane %v7729, 4
        %v7731 = vsel %vm2789, 0.0, %v7730
        %v7732 = vrot.slane %v7686, 4
        %v7733 = vsel %vm2789, %v7732, %v7658
        %v7735 = vunpack.c.l.s4 1934713408
        %v7736 = vunpack.c.0.s8 %v7735
        %v7737 = vperm.slane %v7733, %v7736
        %v7738 = vrot.slane %v7737, 4
        %v7739 = vsel %vm2789, 0.0, %v7738
        %v7740 = vrot.slane %v7637, 4
        %v7741 = vsel %vm2789, %v7740, %v7609
        %v7743 = vunpack.c.l.s4 1934713408
        %v7744 = vunpack.c.0.s8 %v7743
        %v7745 = vperm.slane %v7741, %v7744
        %v7746 = vrot.slane %v7745, 4
        %v7747 = vsel %vm2789, 0.0, %v7746
        %v7748 = vrot.slane %v7693, 4
        %v7749 = vsel %vm2789, %v7748, %v7665
        %v7751 = vunpack.c.l.s4 1934713408
        %v7752 = vunpack.c.0.s8 %v7751
        %v7753 = vperm.slane %v7749, %v7752
        %v7754 = vrot.slane %v7753, 4
        %v7755 = vsel %vm2789, 0.0, %v7754
        %v7756 = vrot.slane %v7644, 4
        %v7757 = vsel %vm2789, %v7756, %v7616
        %v7759 = vunpack.c.l.s4 1934713408
        %v7760 = vunpack.c.0.s8 %v7759
        %v7761 = vperm.slane %v7757, %v7760
        %v7762 = vrot.slane %v7761, 4
        %v7763 = vsel %vm2789, 0.0, %v7762
        %v7764 = vrot.slane %v7700, 4
        %v7765 = vsel %vm2789, %v7764, %v7672
        %v7767 = vunpack.c.l.s4 1934713408
        %v7768 = vunpack.c.0.s8 %v7767
        %v7769 = vperm.slane %v7765, %v7768
        %v7770 = vrot.slane %v7769, 4
        %v7771 = vsel %vm2789, 0.0, %v7770
        %v7772 = vrot.slane %v7651, 4
        %v7773 = vsel %vm2789, %v7772, %v7623
        %v7775 = vunpack.c.l.s4 1934713408
        %v7776 = vunpack.c.0.s8 %v7775
        %v7777 = vperm.slane %v7773, %v7776
        %v7778 = vrot.slane %v7777, 4
        %v7779 = vsel %vm2789, 0.0, %v7778
        %v7780 = vrot.slane %v7707, 4
        %v7781 = vsel %vm2789, %v7780, %v7679
        %v7783 = vunpack.c.l.s4 1934713408
        %v7784 = vunpack.c.0.s8 %v7783
        %v7785 = vperm.slane %v7781, %v7784
        %v7786 = vrot.slane %v7785, 4
        %v7787 = vsel %vm2789, 0.0, %v7786
        %7790 = vst [vmem:[#allocation1] ss:$4 sm:$0xff] %v7729
        %s7791 = scalar_lea.vmem [#allocation1], 1
        %7792 = vst [vmem:[%s7791] ss:$4 sm:$0xff] %v7737
        %v7793 = vld.sshfl [vmem:[#allocation1] sm:$0xff pattern:$0x73625140]
        %7797 = vst [vmem:[#allocation1] ss:$4 sm:$0xff] %v7731
        %s7798 = scalar_lea.vmem [#allocation1], 1
        %7799 = vst [vmem:[%s7798] ss:$4 sm:$0xff] %v7739
        %v7800 = vld.sshfl [vmem:[#allocation1] sm:$0xff pattern:$0x73625140]
        %7801 = vrot.lane.b32.xlu0 %v7800, 64
        %v7802 = vpop.permute.xlu0 %7801
        %7806 = vst [vmem:[#allocation1] ss:$4 sm:$0xff] %v7745
        %s7807 = scalar_lea.vmem [#allocation1], 1
        %7808 = vst [vmem:[%s7807] ss:$4 sm:$0xff] %v7753
        %v7809 = vld.sshfl [vmem:[#allocation1] sm:$0xff pattern:$0x73625140]
        %7813 = vst [vmem:[#allocation1] ss:$4 sm:$0xff] %v7747
        %s7814 = scalar_lea.vmem [#allocation1], 1
        %7815 = vst [vmem:[%s7814] ss:$4 sm:$0xff] %v7755
        %v7816 = vld.sshfl [vmem:[#allocation1] sm:$0xff pattern:$0x73625140]
        %7817 = vrot.lane.b32.xlu0 %v7816, 64
        %v7818 = vpop.permute.xlu0 %7817
        %7822 = vst [vmem:[#allocation1] ss:$4 sm:$0xff] %v7761
        %s7823 = scalar_lea.vmem [#allocation1], 1
        %7824 = vst [vmem:[%s7823] ss:$4 sm:$0xff] %v7769
        %v7825 = vld.sshfl [vmem:[#allocation1] sm:$0xff pattern:$0x73625140]
        %7829 = vst [vmem:[#allocation1] ss:$4 sm:$0xff] %v7763
        %s7830 = scalar_lea.vmem [#allocation1], 1
        %7831 = vst [vmem:[%s7830] ss:$4 sm:$0xff] %v7771
        %v7832 = vld.sshfl [vmem:[#allocation1] sm:$0xff pattern:$0x73625140]
        %7833 = vrot.lane.b32.xlu0 %v7832, 64
        %v7834 = vpop.permute.xlu0 %7833
        %7838 = vst [vmem:[#allocation1] ss:$4 sm:$0xff] %v7777
        %s7839 = scalar_lea.vmem [#allocation1], 1
        %7840 = vst [vmem:[%s7839] ss:$4 sm:$0xff] %v7785
        %v7841 = vld.sshfl [vmem:[#allocation1] sm:$0xff pattern:$0x73625140]
        %7845 = vst [vmem:[#allocation1] ss:$4 sm:$0xff] %v7779
        %s7846 = scalar_lea.vmem [#allocation1], 1
        %7847 = vst [vmem:[%s7846] ss:$4 sm:$0xff] %v7787
        %v7848 = vld.sshfl [vmem:[#allocation1] sm:$0xff pattern:$0x73625140]
        %7849 = vrot.lane.b32.xlu0 %v7848, 64
        %v7850 = vpop.permute.xlu0 %7849
        %v7852 = vsel %vm5807, %v7793, %v7802
        %v7853 = vsel %vm5807, %v7809, %v7818
        %v7854 = vsel %vm5807, %v7825, %v7834
        %v7855 = vsel %vm5807, %v7841, %v7850
        %v7860 = vrot.slane %v7852, 4
        %v7861 = vrot.slane %v7853, 4
        %v7862 = vrot.slane %v7854, 4
        %v7863 = vrot.slane %v7855, 4
        %7868 = vst [vmem:[%s292] sm:$0xf0] %v7860
        %7869 = vst [vmem:[%s292 + $0x8] sm:$0xf0] %v7861
        %7870 = vst [vmem:[%s292 + $0x10] sm:$0xf0] %v7862
        %7871 = vst [vmem:[%s292 + $0x18] sm:$0xf0] %v7863
        %p7872 = scmp.lt.s32.totalorder %s21, 1
        %s7873 = scalar_select %p7872, %s21, 1
        %s7874 = smul.addr %s7873, 4
        %s7875 = smul.addr %s7874, 8
        %s7876 = scalar_lea.vmem %s5, %s7875
        // Predicated region
        $region57: #{landmark_forward.2} parent=39 // pred_check
          %p7877 = pneg %p149
        $region58: #{landmark_forward.2} parent=39 // pred_check_branch
          %7879 = sbr.rel (%p7877) target = $region60
        $region59: #{landmark_forward.2} parent=39 // pred_region
          _
        $region60: #{landmark_forward.2} parent=39 // pred_fallthru
          _
      $region40: #{landmark_forward.2} parent=5 // pred_fallthru
        _
      %p7880 = scmp.le.s32.totalorder 2, %s16
      // Predicated region
      $region61: #{landmark_forward.2} parent=5 // pred_check
        %p7881 = pneg %p7880
      $region62: #{landmark_forward.2} parent=5 // pred_check_branch
        %7883 = sbr.rel (%p7881) target = $region64
      $region63: #{landmark_forward.2} parent=5 // pred_region
        %s7884 = ssub.s32 %s16, 2
        // Predicated region
        $region65: #{landmark_forward.2} parent=63 // pred_check
          %p7885 = pneg %p155
        $region66: #{landmark_forward.2} parent=63 // pred_check_branch
          %7887 = sbr.rel (%p7885) target = $region68
        $region67: #{landmark_forward.2} parent=63 // pred_region
          %p7888 = scmp.lt.s32.totalorder %s22, 1
          %s7889 = scalar_select %p7888, %s22, 1
          %s7890 = smul.addr %s7889, 4
          %s7891 = smul.addr %s7890, 8
          %s7892 = scalar_lea.vmem %s5, %s7891
        $region68: #{landmark_forward.2} parent=63 // pred_fallthru
          _
      $region64: #{landmark_forward.2} parent=5 // pred_fallthru
        _
    $region6: #{landmark_forward.2} parent=1 // loop_footer
      %s20 = sadd.s32 1, %s16
    $region7: #{landmark_forward.2} parent=1 // loop_footer_branch
      %15 = sbr.rel target = $region3
    $region8: #{landmark_forward.2} parent=1 // loop_exit
      _
    %7893 = vsyncpa [#allocation4], 1
    %s7894 = scalar_lea.sflag [#allocation4], 1
    %7895 = vsyncpa %s7894, 1
    %7896 = vsyncpa [#allocation6], 1
    %7897 = vsyncpa [#allocation9], 1

</llo_original>
